<compile_context>
chip_gen: v7x
topology: tpu7x:2x2x1
jax: 0.10.0
libtpu: 0.0.40
codegen_flags: <defaults>
</compile_context>

<pallas_src>
import jax
import jax.numpy as jnp
from jax.experimental import pallas as pl
from jax.experimental.pallas import tpu as pltpu

# ----------------------------- model config (small, synthetic) ----------------
B = 1                 # Prithvi processes a single geospatial scene at a time
C_IN = 6              # 6 spectral bands (matches the dummy input builder)
H = W = 64            # small spatial size (real model uses 512)
PATCH = 8
GH, GW = H // PATCH, W // PATCH
N_PATCH = GH * GW     # 64 tokens
N_TOK = B * N_PATCH
PATCH_DIM = C_IN * PATCH * PATCH          # 384 (= 3*128, lane-dense input)
D = 64                # embed dim
HEADS = 4
HEAD_DIM = D // HEADS
DEPTH = 2             # transformer depth
MLP_HIDDEN = 4 * D    # 256
NUM_CLASSES = 4       # segmentation classes
HEAD_OUT = NUM_CLASSES * PATCH * PATCH    # 256 (= 2*128, lane-dense output)
LN_EPS = 1e-6         # timm/terratorch ViT LayerNorm eps
SCALE = 1.0 / (HEAD_DIM ** 0.5)


# ----------------------------- in-kernel helpers (f32 VPU math) ----------------
def _layernorm(x, g, b):
    mean = jnp.mean(x, axis=-1, keepdims=True)
    xc = x - mean
    var = jnp.mean(xc * xc, axis=-1, keepdims=True)
    return xc * jax.lax.rsqrt(var + LN_EPS) * g + b


def _erf(x):
    # Abramowitz & Stegun 7.1.26 rational approximation (|err| <= 1.5e-7 before
    # the approx reciprocal).  Built only from exp/mul/reciprocal so it lowers
    # on all TPU generations; the divide rides the idle EUP slot.
    a1, a2, a3, a4, a5 = (0.254829592, -0.284496736, 1.421413741,
                          -1.453152027, 1.061405429)
    p = 0.3275911
    s = jnp.where(x < 0.0, -1.0, 1.0)
    ax = jnp.abs(x)
    t = pl.reciprocal(1.0 + p * ax, approx=True)
    poly = ((((a5 * t + a4) * t + a3) * t + a2) * t + a1) * t
    return s * (1.0 - poly * jnp.exp(-ax * ax))


def _gelu_exact(x):
    # Exact-erf GELU (PyTorch nn.GELU default), not the tanh approximation.
    return 0.5 * x * (1.0 + _erf(x * 0.7071067811865476))


# ----------------------------- fused encoder + head kernel ---------------------
def _model_kernel(patches_ref, patch_w_ref, patch_b_ref, posloc_ref,
                  ln1_g_ref, ln1_b_ref, qkv_w_ref, qkv_b_ref,
                  proj_w_ref, proj_b_ref, ln2_g_ref, ln2_b_ref,
                  fc1_w_ref, fc1_b_ref, fc2_w_ref, fc2_b_ref,
                  lnf_g_ref, lnf_b_ref, head_w_ref, head_b_ref,
                  out_ref):
    # --- patch-embed matmul (== strided Conv2d) + pos/loc embedding -----------
    x = (jnp.dot(patches_ref[...].astype(jnp.bfloat16), patch_w_ref[...],
                 preferred_element_type=jnp.float32)
         + patch_b_ref[...] + posloc_ref[...])                 # (N_TOK, D) f32

    # --- transformer blocks: static unroll over depth (no grid steps) ---------
    for d in range(DEPTH):
        # attention sub-block (pre-LN)
        h = _layernorm(x, ln1_g_ref[d], ln1_b_ref[d])
        # ONE fused lane-dense QKV matmul + ONE lane-dense bias add.
        qkv = (jnp.dot(h.astype(jnp.bfloat16), qkv_w_ref[d],
                       preferred_element_type=jnp.float32)
               + qkv_b_ref[d])                                 # (N_TOK, 3D)
        o_heads = []
        for hh in range(HEADS):                                # static unroll
            q = qkv[:, hh * HEAD_DIM:(hh + 1) * HEAD_DIM]
            k = qkv[:, D + hh * HEAD_DIM:D + (hh + 1) * HEAD_DIM]
            v = qkv[:, 2 * D + hh * HEAD_DIM:2 * D + (hh + 1) * HEAD_DIM]
            # q @ k^T without an explicit transpose (contract last dims).
            s = jax.lax.dot_general(
                q.astype(jnp.bfloat16), k.astype(jnp.bfloat16),
                (((1,), (1,)), ((), ())),
                preferred_element_type=jnp.float32) * SCALE    # (N_TOK, N_TOK)
            s = s - jnp.max(s, axis=-1, keepdims=True)
            p = jnp.exp(s)
            p = p * pl.reciprocal(jnp.sum(p, axis=-1, keepdims=True), approx=True)
            o_heads.append(jnp.dot(p.astype(jnp.bfloat16), v.astype(jnp.bfloat16),
                                   preferred_element_type=jnp.float32))
        # concat heads inside one vreg row and do ONE K=D output projection.
        o_cat = jnp.concatenate(o_heads, axis=-1)              # (N_TOK, D)
        x = x + (jnp.dot(o_cat.astype(jnp.bfloat16), proj_w_ref[d],
                         preferred_element_type=jnp.float32) + proj_b_ref[d])

        # MLP sub-block
        h = _layernorm(x, ln2_g_ref[d], ln2_b_ref[d])
        h = (jnp.dot(h.astype(jnp.bfloat16), fc1_w_ref[d],
                     preferred_element_type=jnp.float32) + fc1_b_ref[d])
        h = _gelu_exact(h)
        x = x + (jnp.dot(h.astype(jnp.bfloat16), fc2_w_ref[d],
                         preferred_element_type=jnp.float32) + fc2_b_ref[d])

    # --- final LN + segmentation head: single lane-dense (256-wide) HBM store -
    xf = _layernorm(x, lnf_g_ref[...], lnf_b_ref[...])
    out_ref[...] = (jnp.dot(xf.astype(jnp.bfloat16), head_w_ref[...],
                            preferred_element_type=jnp.float32)
                    + head_b_ref[...])


def _encoder_call(patches, posloc, kp):
    vmem = pl.BlockSpec(memory_space=pltpu.MemorySpace.VMEM)   # whole array in VMEM
    # TODO(synk): for the real 512x512 / ViT-L config, re-introduce a
    # ("parallel","arbitrary") grid over Q-tiles x KV-tiles with online softmax
    # (flash style) so the score matrix never materializes and v7x's 2 TCs are used.
    return pl.pallas_call(
        _model_kernel,
        out_shape=jax.ShapeDtypeStruct((N_TOK, HEAD_OUT), jnp.float32),
        in_specs=[vmem] * 20,
        out_specs=vmem,
        compiler_params=pltpu.CompilerParams(vmem_limit_bytes=32 * 1024 * 1024),
    )(patches, kp["patch_w"], kp["patch_b"], posloc,
      kp["ln1_g"], kp["ln1_b"], kp["qkv_w"], kp["qkv_b"],
      kp["proj_w"], kp["proj_b"], kp["ln2_g"], kp["ln2_b"],
      kp["fc1_w"], kp["fc1_b"], kp["fc2_w"], kp["fc2_b"],
      kp["lnf_g"], kp["lnf_b"], kp["head_w"], kp["head_b"])


# ----------------------------- parameters --------------------------------------
def _sincos_2d_pos_embed(dim, gh, gw):
    def _1d(d, pos):
        omega = jnp.arange(d // 2, dtype=jnp.float32) / (d / 2.0)
        omega = 1.0 / (10000.0 ** omega)
        out = pos[:, None] * omega[None, :]
        return jnp.concatenate([jnp.sin(out), jnp.cos(out)], axis=1)

    gy, gx = jnp.meshgrid(jnp.arange(gh, dtype=jnp.float32),
                          jnp.arange(gw, dtype=jnp.float32), indexing="ij")
    emb_h = _1d(dim // 2, gy.reshape(-1))
    emb_w = _1d(dim // 2, gx.reshape(-1))
    return jnp.concatenate([emb_h, emb_w], axis=1)  # (gh*gw, dim)


def init_params(key):
    """Parameters in the PyTorch-like (in, out) layouts of the reference module."""
    def nrm(k, shape, scale=0.02):
        return scale * jax.random.normal(k, shape, dtype=jnp.float32)

    keys = jax.random.split(key, 8 + DEPTH)
    p = {
        # patch embed (== Conv2d(C_IN, D, kernel=PATCH, stride=PATCH) as matmul)
        "patch_w": nrm(keys[0], (PATCH_DIM, D)),
        "patch_b": jnp.zeros((D,), jnp.float32),
        "pos_embed": _sincos_2d_pos_embed(D, GH, GW),        # (N_PATCH, D), frozen
        # location-coordinate conditioning (lat/lon -> embed)
        "loc_w": nrm(keys[1], (2, D)),
        "loc_b": jnp.zeros((D,), jnp.float32),
        # final encoder norm
        "lnf_g": jnp.ones((D,), jnp.float32),
        "lnf_b": jnp.zeros((D,), jnp.float32),
        # segmentation head: per-token linear -> NUM_CLASSES * P * P (pixel shuffle)
        "head_w": nrm(keys[2], (D, HEAD_OUT)),
        "head_b": jnp.zeros((HEAD_OUT,), jnp.float32),
        "blocks": [],
    }
    for d in range(DEPTH):
        bk = jax.random.split(keys[8 + d], 6)
        p["blocks"].append({
            "ln1_g": jnp.ones((D,), jnp.float32),
            "ln1_b": jnp.zeros((D,), jnp.float32),
            "qkv_w": nrm(bk[0], (D, 3 * D)),     # columns ordered [q | k | v]
            "qkv_b": jnp.zeros((3 * D,), jnp.float32),
            "proj_w": nrm(bk[1], (D, D)),
            "proj_b": jnp.zeros((D,), jnp.float32),
            "ln2_g": jnp.ones((D,), jnp.float32),
            "ln2_b": jnp.zeros((D,), jnp.float32),
            "fc1_w": nrm(bk[2], (D, MLP_HIDDEN)),
            "fc1_b": jnp.zeros((MLP_HIDDEN,), jnp.float32),
            "fc2_w": nrm(bk[3], (MLP_HIDDEN, D)),
            "fc2_b": jnp.zeros((D,), jnp.float32),
        })
    return p


def prepare_kernel_params(p):
    """Stack block weights along a leading DEPTH axis (static unroll indexes them),
    keep QKV fused and lane-dense (D, 3D), cast matmul weights to bf16 (MXU
    inputs); biases / LN params stay f32."""
    def stack(name):
        return jnp.stack([blk[name] for blk in p["blocks"]], axis=0)

    return {
        "patch_w": p["patch_w"].astype(jnp.bfloat16),
        "patch_b": p["patch_b"].reshape(1, D),
        "pos_embed": p["pos_embed"],
        "loc_w": p["loc_w"],
        "loc_b": p["loc_b"],
        "ln1_g": stack("ln1_g").reshape(DEPTH, 1, D),
        "ln1_b": stack("ln1_b").reshape(DEPTH, 1, D),
        "qkv_w": stack("qkv_w").astype(jnp.bfloat16),            # (DEPTH, D, 3D)
        "qkv_b": stack("qkv_b").reshape(DEPTH, 1, 3 * D),        # lane-dense bias
        "proj_w": stack("proj_w").astype(jnp.bfloat16),          # (DEPTH, D, D)
        "proj_b": stack("proj_b").reshape(DEPTH, 1, D),
        "ln2_g": stack("ln2_g").reshape(DEPTH, 1, D),
        "ln2_b": stack("ln2_b").reshape(DEPTH, 1, D),
        "fc1_w": stack("fc1_w").astype(jnp.bfloat16),
        "fc1_b": stack("fc1_b").reshape(DEPTH, 1, MLP_HIDDEN),
        "fc2_w": stack("fc2_w").astype(jnp.bfloat16),
        "fc2_b": stack("fc2_b").reshape(DEPTH, 1, D),
        "lnf_g": p["lnf_g"].reshape(1, D),
        "lnf_b": p["lnf_b"].reshape(1, D),
        "head_w": p["head_w"].astype(jnp.bfloat16),
        "head_b": p["head_b"].reshape(1, HEAD_OUT),
    }


# ----------------------------- forward ------------------------------------------
def prithvi_geospatial_mae_forward(pixel_values, location_coords, kp):
    """pixel_values: (B, C_IN, H, W) NCHW; location_coords: (1, 2).
    Returns segmentation logits (B, NUM_CLASSES, H, W) — the `.output` of the
    terratorch SemanticSegmentationTask model that forward() returns."""
    pv = pixel_values.astype(jnp.float32)

    # --- patchify for the in-kernel patch-embed matmul (== strided Conv2d) ---
    x = pv.reshape(B, C_IN, GH, PATCH, GW, PATCH)
    x = x.transpose(0, 2, 4, 1, 3, 5)                          # (B, gh, gw, C, ph, pw)
    patches = x.reshape(N_TOK, PATCH_DIM)

    # --- positional + location-coordinate embeddings (tiny; plain JAX glue) ---
    # TODO(synk): terratorch Prithvi uses a CLS token and 3D (temporal+spatial)
    # sin-cos encodings; approximated here with a frozen 2D sin-cos pos-embed plus
    # a learned linear on (lat, lon) — the 2x64 linear is kept in plain JAX.
    loc = location_coords.astype(jnp.float32)                  # (1, 2)
    loc_embed = loc @ kp["loc_w"] + kp["loc_b"]                # (1, D)
    posloc = kp["pos_embed"] + loc_embed                       # (N_PATCH, D)
    posloc = jnp.broadcast_to(posloc[None], (B, N_PATCH, D)).reshape(N_TOK, D)

    # --- fused patch-embed + transformer encoder + final LN + seg head ---
    logits = _encoder_call(patches, posloc, kp)                # (N_TOK, HEAD_OUT)

    # --- pixel-shuffle the per-token class logits back to NCHW ---
    # TODO(synk): real terratorch config may use an FCN/UperNet decoder; a linear
    # pixel-shuffle head preserves output shape semantics (B, num_classes, H, W).
    logits = logits.reshape(B, GH, GW, NUM_CLASSES, PATCH, PATCH)
    logits = logits.transpose(0, 3, 1, 4, 2, 5)                # (B, K, gh, ph, gw, pw)
    return logits.reshape(B, NUM_CLASSES, H, W)


# ----------------------------- main ---------------------------------------------
if __name__ == "__main__":
    key = jax.random.PRNGKey(0)
    k_param, k_px = jax.random.split(key)

    params = init_params(k_param)
    kparams = prepare_kernel_params(params)
    pixel_values = jax.random.normal(k_px, (B, C_IN, H, W), dtype=jnp.float32)
    location_coords = jnp.array([[45.0, 13.0]], dtype=jnp.float32)

    fwd = jax.jit(lambda pv, lc: prithvi_geospatial_mae_forward(pv, lc, kparams))
    out = fwd(pixel_values, location_coords)
    jax.block_until_ready(out)

    assert out.shape == (B, NUM_CLASSES, H, W), out.shape
    assert out.dtype == jnp.float32
    assert bool(jnp.all(jnp.isfinite(out)))
    print("KERNEL_OK")
</pallas_src>

<mosaic_0001>
module attributes {stable_mosaic.version = 11 : i64} {
  func.func @_model_kernel(%arg0: memref<64x384xf32, #tpu.memory_space<vmem>>, %arg1: memref<384x64xbf16, #tpu.memory_space<vmem>>, %arg2: memref<1x64xf32, #tpu.memory_space<vmem>>, %arg3: memref<64x64xf32, #tpu.memory_space<vmem>>, %arg4: memref<2x1x64xf32, #tpu.memory_space<vmem>>, %arg5: memref<2x1x64xf32, #tpu.memory_space<vmem>>, %arg6: memref<2x64x192xbf16, #tpu.memory_space<vmem>>, %arg7: memref<2x1x192xf32, #tpu.memory_space<vmem>>, %arg8: memref<2x64x64xbf16, #tpu.memory_space<vmem>>, %arg9: memref<2x1x64xf32, #tpu.memory_space<vmem>>, %arg10: memref<2x1x64xf32, #tpu.memory_space<vmem>>, %arg11: memref<2x1x64xf32, #tpu.memory_space<vmem>>, %arg12: memref<2x64x256xbf16, #tpu.memory_space<vmem>>, %arg13: memref<2x1x256xf32, #tpu.memory_space<vmem>>, %arg14: memref<2x256x64xbf16, #tpu.memory_space<vmem>>, %arg15: memref<2x1x64xf32, #tpu.memory_space<vmem>>, %arg16: memref<1x64xf32, #tpu.memory_space<vmem>>, %arg17: memref<1x64xf32, #tpu.memory_space<vmem>>, %arg18: memref<64x256xbf16, #tpu.memory_space<vmem>>, %arg19: memref<1x256xf32, #tpu.memory_space<vmem>>, %arg20: memref<64x256xf32, #tpu.memory_space<vmem>>) attributes {dimension_semantics = [], scalar_prefetch = 0 : i64, scratch_operands = 0 : i64, tpu.core_type = #tpu.core_type<tc>} {
    %c0 = arith.constant 0 : index
    %c0_0 = arith.constant 0 : index
    %0 = vector.load %arg0[%c0, %c0_0] : memref<64x384xf32, #tpu.memory_space<vmem>>, vector<64x384xf32>
    %1 = arith.truncf %0 : vector<64x384xf32> to vector<64x384xbf16>
    %c0_1 = arith.constant 0 : index
    %c0_2 = arith.constant 0 : index
    %2 = vector.load %arg1[%c0_1, %c0_2] : memref<384x64xbf16, #tpu.memory_space<vmem>>, vector<384x64xbf16>
    %cst = arith.constant dense<0.000000e+00> : vector<64x64xf32>
    %3 = tpu.matmul %1, %2, %cst {dimension_numbers = #tpu.dot_dimension_numbers<[1], [0], [0], [1], [0, 0, 1, 1], [], []>} : vector<64x384xbf16>, vector<384x64xbf16>, vector<64x64xf32> -> vector<64x64xf32>
    %c0_3 = arith.constant 0 : index
    %c0_4 = arith.constant 0 : index
    %4 = vector.load %arg2[%c0_3, %c0_4] : memref<1x64xf32, #tpu.memory_space<vmem>>, vector<1x64xf32>
    %5 = vector.broadcast %4 : vector<1x64xf32> to vector<64x64xf32>
    %6 = arith.addf %3, %5 : vector<64x64xf32>
    %c0_5 = arith.constant 0 : index
    %c0_6 = arith.constant 0 : index
    %7 = vector.load %arg3[%c0_5, %c0_6] : memref<64x64xf32, #tpu.memory_space<vmem>>, vector<64x64xf32>
    %8 = arith.addf %6, %7 : vector<64x64xf32>
    %c0_7 = arith.constant 0 : index
    %c0_8 = arith.constant 0 : index
    %c0_9 = arith.constant 0 : index
    %9 = vector.load %arg4[%c0_7, %c0_8, %c0_9] : memref<2x1x64xf32, #tpu.memory_space<vmem>>, vector<1x1x64xf32>
    %10 = vector.shape_cast %9 : vector<1x1x64xf32> to vector<1x64xf32>
    %c0_10 = arith.constant 0 : index
    %c0_11 = arith.constant 0 : index
    %c0_12 = arith.constant 0 : index
    %11 = vector.load %arg5[%c0_10, %c0_11, %c0_12] : memref<2x1x64xf32, #tpu.memory_space<vmem>>, vector<1x1x64xf32>
    %12 = vector.shape_cast %11 : vector<1x1x64xf32> to vector<1x64xf32>
    %cst_13 = arith.constant dense<0.000000e+00> : vector<64xf32>
    %13 = vector.multi_reduction <add>, %8, %cst_13 [1] : vector<64x64xf32> to vector<64xf32>
    %14 = vector.shape_cast %13 : vector<64xf32> to vector<64x1xf32>
    %cst_14 = arith.constant 6.400000e+01 : f32
    %15 = vector.broadcast %cst_14 : f32 to vector<64x1xf32>
    %16 = arith.divf %14, %15 : vector<64x1xf32>
    %17 = vector.broadcast %16 : vector<64x1xf32> to vector<64x64xf32>
    %18 = arith.subf %8, %17 : vector<64x64xf32>
    %19 = arith.mulf %18, %18 : vector<64x64xf32>
    %cst_15 = arith.constant dense<0.000000e+00> : vector<64xf32>
    %20 = vector.multi_reduction <add>, %19, %cst_15 [1] : vector<64x64xf32> to vector<64xf32>
    %21 = vector.shape_cast %20 : vector<64xf32> to vector<64x1xf32>
    %cst_16 = arith.constant 6.400000e+01 : f32
    %22 = vector.broadcast %cst_16 : f32 to vector<64x1xf32>
    %23 = arith.divf %21, %22 : vector<64x1xf32>
    %cst_17 = arith.constant 9.99999997E-7 : f32
    %24 = vector.broadcast %cst_17 : f32 to vector<64x1xf32>
    %25 = arith.addf %23, %24 : vector<64x1xf32>
    %26 = math.rsqrt %25 : vector<64x1xf32>
    %27 = vector.broadcast %26 : vector<64x1xf32> to vector<64x64xf32>
    %28 = arith.mulf %18, %27 : vector<64x64xf32>
    %29 = vector.broadcast %10 : vector<1x64xf32> to vector<64x64xf32>
    %30 = arith.mulf %28, %29 : vector<64x64xf32>
    %31 = vector.broadcast %12 : vector<1x64xf32> to vector<64x64xf32>
    %32 = arith.addf %30, %31 : vector<64x64xf32>
    %33 = arith.truncf %32 : vector<64x64xf32> to vector<64x64xbf16>
    %c0_18 = arith.constant 0 : index
    %c0_19 = arith.constant 0 : index
    %c0_20 = arith.constant 0 : index
    %34 = vector.load %arg6[%c0_18, %c0_19, %c0_20] : memref<2x64x192xbf16, #tpu.memory_space<vmem>>, vector<1x64x192xbf16>
    %35 = vector.shape_cast %34 : vector<1x64x192xbf16> to vector<64x192xbf16>
    %cst_21 = arith.constant dense<0.000000e+00> : vector<64x192xf32>
    %36 = tpu.matmul %33, %35, %cst_21 {dimension_numbers = #tpu.dot_dimension_numbers<[1], [0], [0], [1], [0, 0, 1, 1], [], []>} : vector<64x64xbf16>, vector<64x192xbf16>, vector<64x192xf32> -> vector<64x192xf32>
    %c0_22 = arith.constant 0 : index
    %c0_23 = arith.constant 0 : index
    %c0_24 = arith.constant 0 : index
    %37 = vector.load %arg7[%c0_22, %c0_23, %c0_24] : memref<2x1x192xf32, #tpu.memory_space<vmem>>, vector<1x1x192xf32>
    %38 = vector.shape_cast %37 : vector<1x1x192xf32> to vector<1x192xf32>
    %39 = vector.broadcast %38 : vector<1x192xf32> to vector<64x192xf32>
    %40 = arith.addf %36, %39 : vector<64x192xf32>
    %41 = vector.extract_strided_slice %40 {offsets = [0, 0], sizes = [64, 16], strides = [1, 1]} : vector<64x192xf32> to vector<64x16xf32>
    %42 = vector.extract_strided_slice %40 {offsets = [0, 64], sizes = [64, 16], strides = [1, 1]} : vector<64x192xf32> to vector<64x16xf32>
    %43 = vector.extract_strided_slice %40 {offsets = [0, 128], sizes = [64, 16], strides = [1, 1]} : vector<64x192xf32> to vector<64x16xf32>
    %44 = arith.truncf %41 : vector<64x16xf32> to vector<64x16xbf16>
    %45 = arith.truncf %42 : vector<64x16xf32> to vector<64x16xbf16>
    %cst_25 = arith.constant dense<0.000000e+00> : vector<64x64xf32>
    %46 = tpu.matmul %44, %45, %cst_25 {dimension_numbers = #tpu.dot_dimension_numbers<[1], [1], [0], [0], [0, 0, 1, 0], [], []>} : vector<64x16xbf16>, vector<64x16xbf16>, vector<64x64xf32> -> vector<64x64xf32>
    %cst_26 = arith.constant 2.500000e-01 : f32
    %47 = vector.broadcast %cst_26 : f32 to vector<64x64xf32>
    %48 = arith.mulf %46, %47 : vector<64x64xf32>
    %cst_27 = arith.constant dense<0xFF800000> : vector<64xf32>
    %49 = vector.multi_reduction <maximumf>, %48, %cst_27 [1] : vector<64x64xf32> to vector<64xf32>
    %50 = vector.shape_cast %49 : vector<64xf32> to vector<64x1xf32>
    %51 = vector.broadcast %50 : vector<64x1xf32> to vector<64x64xf32>
    %52 = arith.subf %48, %51 : vector<64x64xf32>
    %53 = math.exp %52 : vector<64x64xf32>
    %cst_28 = arith.constant dense<0.000000e+00> : vector<64xf32>
    %54 = vector.multi_reduction <add>, %53, %cst_28 [1] : vector<64x64xf32> to vector<64xf32>
    %55 = vector.shape_cast %54 : vector<64xf32> to vector<64x1xf32>
    %56 = tpu.reciprocal %55 {approx = true} : vector<64x1xf32> -> vector<64x1xf32>
    %57 = vector.broadcast %56 : vector<64x1xf32> to vector<64x64xf32>
    %58 = arith.mulf %53, %57 : vector<64x64xf32>
    %59 = arith.truncf %58 : vector<64x64xf32> to vector<64x64xbf16>
    %60 = arith.truncf %43 : vector<64x16xf32> to vector<64x16xbf16>
    %cst_29 = arith.constant dense<0.000000e+00> : vector<64x16xf32>
    %61 = tpu.matmul %59, %60, %cst_29 {dimension_numbers = #tpu.dot_dimension_numbers<[1], [0], [0], [1], [0, 0, 1, 1], [], []>} : vector<64x64xbf16>, vector<64x16xbf16>, vector<64x16xf32> -> vector<64x16xf32>
    %62 = vector.extract_strided_slice %40 {offsets = [0, 16], sizes = [64, 16], strides = [1, 1]} : vector<64x192xf32> to vector<64x16xf32>
    %63 = vector.extract_strided_slice %40 {offsets = [0, 80], sizes = [64, 16], strides = [1, 1]} : vector<64x192xf32> to vector<64x16xf32>
    %64 = vector.extract_strided_slice %40 {offsets = [0, 144], sizes = [64, 16], strides = [1, 1]} : vector<64x192xf32> to vector<64x16xf32>
    %65 = arith.truncf %62 : vector<64x16xf32> to vector<64x16xbf16>
    %66 = arith.truncf %63 : vector<64x16xf32> to vector<64x16xbf16>
    %cst_30 = arith.constant dense<0.000000e+00> : vector<64x64xf32>
    %67 = tpu.matmul %65, %66, %cst_30 {dimension_numbers = #tpu.dot_dimension_numbers<[1], [1], [0], [0], [0, 0, 1, 0], [], []>} : vector<64x16xbf16>, vector<64x16xbf16>, vector<64x64xf32> -> vector<64x64xf32>
    %cst_31 = arith.constant 2.500000e-01 : f32
    %68 = vector.broadcast %cst_31 : f32 to vector<64x64xf32>
    %69 = arith.mulf %67, %68 : vector<64x64xf32>
    %cst_32 = arith.constant dense<0xFF800000> : vector<64xf32>
    %70 = vector.multi_reduction <maximumf>, %69, %cst_32 [1] : vector<64x64xf32> to vector<64xf32>
    %71 = vector.shape_cast %70 : vector<64xf32> to vector<64x1xf32>
    %72 = vector.broadcast %71 : vector<64x1xf32> to vector<64x64xf32>
    %73 = arith.subf %69, %72 : vector<64x64xf32>
    %74 = math.exp %73 : vector<64x64xf32>
    %cst_33 = arith.constant dense<0.000000e+00> : vector<64xf32>
    %75 = vector.multi_reduction <add>, %74, %cst_33 [1] : vector<64x64xf32> to vector<64xf32>
    %76 = vector.shape_cast %75 : vector<64xf32> to vector<64x1xf32>
    %77 = tpu.reciprocal %76 {approx = true} : vector<64x1xf32> -> vector<64x1xf32>
    %78 = vector.broadcast %77 : vector<64x1xf32> to vector<64x64xf32>
    %79 = arith.mulf %74, %78 : vector<64x64xf32>
    %80 = arith.truncf %79 : vector<64x64xf32> to vector<64x64xbf16>
    %81 = arith.truncf %64 : vector<64x16xf32> to vector<64x16xbf16>
    %cst_34 = arith.constant dense<0.000000e+00> : vector<64x16xf32>
    %82 = tpu.matmul %80, %81, %cst_34 {dimension_numbers = #tpu.dot_dimension_numbers<[1], [0], [0], [1], [0, 0, 1, 1], [], []>} : vector<64x64xbf16>, vector<64x16xbf16>, vector<64x16xf32> -> vector<64x16xf32>
    %83 = vector.extract_strided_slice %40 {offsets = [0, 32], sizes = [64, 16], strides = [1, 1]} : vector<64x192xf32> to vector<64x16xf32>
    %84 = vector.extract_strided_slice %40 {offsets = [0, 96], sizes = [64, 16], strides = [1, 1]} : vector<64x192xf32> to vector<64x16xf32>
    %85 = vector.extract_strided_slice %40 {offsets = [0, 160], sizes = [64, 16], strides = [1, 1]} : vector<64x192xf32> to vector<64x16xf32>
    %86 = arith.truncf %83 : vector<64x16xf32> to vector<64x16xbf16>
    %87 = arith.truncf %84 : vector<64x16xf32> to vector<64x16xbf16>
    %cst_35 = arith.constant dense<0.000000e+00> : vector<64x64xf32>
    %88 = tpu.matmul %86, %87, %cst_35 {dimension_numbers = #tpu.dot_dimension_numbers<[1], [1], [0], [0], [0, 0, 1, 0], [], []>} : vector<64x16xbf16>, vector<64x16xbf16>, vector<64x64xf32> -> vector<64x64xf32>
    %cst_36 = arith.constant 2.500000e-01 : f32
    %89 = vector.broadcast %cst_36 : f32 to vector<64x64xf32>
    %90 = arith.mulf %88, %89 : vector<64x64xf32>
    %cst_37 = arith.constant dense<0xFF800000> : vector<64xf32>
    %91 = vector.multi_reduction <maximumf>, %90, %cst_37 [1] : vector<64x64xf32> to vector<64xf32>
    %92 = vector.shape_cast %91 : vector<64xf32> to vector<64x1xf32>
    %93 = vector.broadcast %92 : vector<64x1xf32> to vector<64x64xf32>
    %94 = arith.subf %90, %93 : vector<64x64xf32>
    %95 = math.exp %94 : vector<64x64xf32>
    %cst_38 = arith.constant dense<0.000000e+00> : vector<64xf32>
    %96 = vector.multi_reduction <add>, %95, %cst_38 [1] : vector<64x64xf32> to vector<64xf32>
    %97 = vector.shape_cast %96 : vector<64xf32> to vector<64x1xf32>
    %98 = tpu.reciprocal %97 {approx = true} : vector<64x1xf32> -> vector<64x1xf32>
    %99 = vector.broadcast %98 : vector<64x1xf32> to vector<64x64xf32>
    %100 = arith.mulf %95, %99 : vector<64x64xf32>
    %101 = arith.truncf %100 : vector<64x64xf32> to vector<64x64xbf16>
    %102 = arith.truncf %85 : vector<64x16xf32> to vector<64x16xbf16>
    %cst_39 = arith.constant dense<0.000000e+00> : vector<64x16xf32>
    %103 = tpu.matmul %101, %102, %cst_39 {dimension_numbers = #tpu.dot_dimension_numbers<[1], [0], [0], [1], [0, 0, 1, 1], [], []>} : vector<64x64xbf16>, vector<64x16xbf16>, vector<64x16xf32> -> vector<64x16xf32>
    %104 = vector.extract_strided_slice %40 {offsets = [0, 48], sizes = [64, 16], strides = [1, 1]} : vector<64x192xf32> to vector<64x16xf32>
    %105 = vector.extract_strided_slice %40 {offsets = [0, 112], sizes = [64, 16], strides = [1, 1]} : vector<64x192xf32> to vector<64x16xf32>
    %106 = vector.extract_strided_slice %40 {offsets = [0, 176], sizes = [64, 16], strides = [1, 1]} : vector<64x192xf32> to vector<64x16xf32>
    %107 = arith.truncf %104 : vector<64x16xf32> to vector<64x16xbf16>
    %108 = arith.truncf %105 : vector<64x16xf32> to vector<64x16xbf16>
    %cst_40 = arith.constant dense<0.000000e+00> : vector<64x64xf32>
    %109 = tpu.matmul %107, %108, %cst_40 {dimension_numbers = #tpu.dot_dimension_numbers<[1], [1], [0], [0], [0, 0, 1, 0], [], []>} : vector<64x16xbf16>, vector<64x16xbf16>, vector<64x64xf32> -> vector<64x64xf32>
    %cst_41 = arith.constant 2.500000e-01 : f32
    %110 = vector.broadcast %cst_41 : f32 to vector<64x64xf32>
    %111 = arith.mulf %109, %110 : vector<64x64xf32>
    %cst_42 = arith.constant dense<0xFF800000> : vector<64xf32>
    %112 = vector.multi_reduction <maximumf>, %111, %cst_42 [1] : vector<64x64xf32> to vector<64xf32>
    %113 = vector.shape_cast %112 : vector<64xf32> to vector<64x1xf32>
    %114 = vector.broadcast %113 : vector<64x1xf32> to vector<64x64xf32>
    %115 = arith.subf %111, %114 : vector<64x64xf32>
    %116 = math.exp %115 : vector<64x64xf32>
    %cst_43 = arith.constant dense<0.000000e+00> : vector<64xf32>
    %117 = vector.multi_reduction <add>, %116, %cst_43 [1] : vector<64x64xf32> to vector<64xf32>
    %118 = vector.shape_cast %117 : vector<64xf32> to vector<64x1xf32>
    %119 = tpu.reciprocal %118 {approx = true} : vector<64x1xf32> -> vector<64x1xf32>
    %120 = vector.broadcast %119 : vector<64x1xf32> to vector<64x64xf32>
    %121 = arith.mulf %116, %120 : vector<64x64xf32>
    %122 = arith.truncf %121 : vector<64x64xf32> to vector<64x64xbf16>
    %123 = arith.truncf %106 : vector<64x16xf32> to vector<64x16xbf16>
    %cst_44 = arith.constant dense<0.000000e+00> : vector<64x16xf32>
    %124 = tpu.matmul %122, %123, %cst_44 {dimension_numbers = #tpu.dot_dimension_numbers<[1], [0], [0], [1], [0, 0, 1, 1], [], []>} : vector<64x64xbf16>, vector<64x16xbf16>, vector<64x16xf32> -> vector<64x16xf32>
    %125 = tpu.concatenate %61, %82, %103, %124 in 1 : vector<64x16xf32>, vector<64x16xf32>, vector<64x16xf32>, vector<64x16xf32> -> vector<64x64xf32>
    %126 = arith.truncf %125 : vector<64x64xf32> to vector<64x64xbf16>
    %c0_45 = arith.constant 0 : index
    %c0_46 = arith.constant 0 : index
    %c0_47 = arith.constant 0 : index
    %127 = vector.load %arg8[%c0_45, %c0_46, %c0_47] : memref<2x64x64xbf16, #tpu.memory_space<vmem>>, vector<1x64x64xbf16>
    %128 = vector.shape_cast %127 : vector<1x64x64xbf16> to vector<64x64xbf16>
    %cst_48 = arith.constant dense<0.000000e+00> : vector<64x64xf32>
    %129 = tpu.matmul %126, %128, %cst_48 {dimension_numbers = #tpu.dot_dimension_numbers<[1], [0], [0], [1], [0, 0, 1, 1], [], []>} : vector<64x64xbf16>, vector<64x64xbf16>, vector<64x64xf32> -> vector<64x64xf32>
    %c0_49 = arith.constant 0 : index
    %c0_50 = arith.constant 0 : index
    %c0_51 = arith.constant 0 : index
    %130 = vector.load %arg9[%c0_49, %c0_50, %c0_51] : memref<2x1x64xf32, #tpu.memory_space<vmem>>, vector<1x1x64xf32>
    %131 = vector.shape_cast %130 : vector<1x1x64xf32> to vector<1x64xf32>
    %132 = vector.broadcast %131 : vector<1x64xf32> to vector<64x64xf32>
    %133 = arith.addf %129, %132 : vector<64x64xf32>
    %134 = arith.addf %8, %133 : vector<64x64xf32>
    %c0_52 = arith.constant 0 : index
    %c0_53 = arith.constant 0 : index
    %c0_54 = arith.constant 0 : index
    %135 = vector.load %arg10[%c0_52, %c0_53, %c0_54] : memref<2x1x64xf32, #tpu.memory_space<vmem>>, vector<1x1x64xf32>
    %136 = vector.shape_cast %135 : vector<1x1x64xf32> to vector<1x64xf32>
    %c0_55 = arith.constant 0 : index
    %c0_56 = arith.constant 0 : index
    %c0_57 = arith.constant 0 : index
    %137 = vector.load %arg11[%c0_55, %c0_56, %c0_57] : memref<2x1x64xf32, #tpu.memory_space<vmem>>, vector<1x1x64xf32>
    %138 = vector.shape_cast %137 : vector<1x1x64xf32> to vector<1x64xf32>
    %cst_58 = arith.constant dense<0.000000e+00> : vector<64xf32>
    %139 = vector.multi_reduction <add>, %134, %cst_58 [1] : vector<64x64xf32> to vector<64xf32>
    %140 = vector.shape_cast %139 : vector<64xf32> to vector<64x1xf32>
    %cst_59 = arith.constant 6.400000e+01 : f32
    %141 = vector.broadcast %cst_59 : f32 to vector<64x1xf32>
    %142 = arith.divf %140, %141 : vector<64x1xf32>
    %143 = vector.broadcast %142 : vector<64x1xf32> to vector<64x64xf32>
    %144 = arith.subf %134, %143 : vector<64x64xf32>
    %145 = arith.mulf %144, %144 : vector<64x64xf32>
    %cst_60 = arith.constant dense<0.000000e+00> : vector<64xf32>
    %146 = vector.multi_reduction <add>, %145, %cst_60 [1] : vector<64x64xf32> to vector<64xf32>
    %147 = vector.shape_cast %146 : vector<64xf32> to vector<64x1xf32>
    %cst_61 = arith.constant 6.400000e+01 : f32
    %148 = vector.broadcast %cst_61 : f32 to vector<64x1xf32>
    %149 = arith.divf %147, %148 : vector<64x1xf32>
    %cst_62 = arith.constant 9.99999997E-7 : f32
    %150 = vector.broadcast %cst_62 : f32 to vector<64x1xf32>
    %151 = arith.addf %149, %150 : vector<64x1xf32>
    %152 = math.rsqrt %151 : vector<64x1xf32>
    %153 = vector.broadcast %152 : vector<64x1xf32> to vector<64x64xf32>
    %154 = arith.mulf %144, %153 : vector<64x64xf32>
    %155 = vector.broadcast %136 : vector<1x64xf32> to vector<64x64xf32>
    %156 = arith.mulf %154, %155 : vector<64x64xf32>
    %157 = vector.broadcast %138 : vector<1x64xf32> to vector<64x64xf32>
    %158 = arith.addf %156, %157 : vector<64x64xf32>
    %159 = arith.truncf %158 : vector<64x64xf32> to vector<64x64xbf16>
    %c0_63 = arith.constant 0 : index
    %c0_64 = arith.constant 0 : index
    %c0_65 = arith.constant 0 : index
    %160 = vector.load %arg12[%c0_63, %c0_64, %c0_65] : memref<2x64x256xbf16, #tpu.memory_space<vmem>>, vector<1x64x256xbf16>
    %161 = vector.shape_cast %160 : vector<1x64x256xbf16> to vector<64x256xbf16>
    %cst_66 = arith.constant dense<0.000000e+00> : vector<64x256xf32>
    %162 = tpu.matmul %159, %161, %cst_66 {dimension_numbers = #tpu.dot_dimension_numbers<[1], [0], [0], [1], [0, 0, 1, 1], [], []>} : vector<64x64xbf16>, vector<64x256xbf16>, vector<64x256xf32> -> vector<64x256xf32>
    %c0_67 = arith.constant 0 : index
    %c0_68 = arith.constant 0 : index
    %c0_69 = arith.constant 0 : index
    %163 = vector.load %arg13[%c0_67, %c0_68, %c0_69] : memref<2x1x256xf32, #tpu.memory_space<vmem>>, vector<1x1x256xf32>
    %164 = vector.shape_cast %163 : vector<1x1x256xf32> to vector<1x256xf32>
    %165 = vector.broadcast %164 : vector<1x256xf32> to vector<64x256xf32>
    %166 = arith.addf %162, %165 : vector<64x256xf32>
    %cst_70 = arith.constant 5.000000e-01 : f32
    %167 = vector.broadcast %cst_70 : f32 to vector<64x256xf32>
    %168 = arith.mulf %167, %166 : vector<64x256xf32>
    %cst_71 = arith.constant 0.707106769 : f32
    %169 = vector.broadcast %cst_71 : f32 to vector<64x256xf32>
    %170 = arith.mulf %166, %169 : vector<64x256xf32>
    %cst_72 = arith.constant 0.000000e+00 : f32
    %171 = vector.broadcast %cst_72 : f32 to vector<64x256xf32>
    %172 = arith.cmpf olt, %170, %171 : vector<64x256xf32>
    %cst_73 = arith.constant -1.000000e+00 : f32
    %cst_74 = arith.constant 1.000000e+00 : f32
    %173 = vector.broadcast %cst_73 : f32 to vector<64x256xf32>
    %174 = vector.broadcast %cst_74 : f32 to vector<64x256xf32>
    %175 = arith.select %172, %173, %174 : vector<64x256xi1>, vector<64x256xf32>
    %176 = math.absf %170 : vector<64x256xf32>
    %cst_75 = arith.constant 0.327591091 : f32
    %177 = vector.broadcast %cst_75 : f32 to vector<64x256xf32>
    %178 = arith.mulf %177, %176 : vector<64x256xf32>
    %cst_76 = arith.constant 1.000000e+00 : f32
    %179 = vector.broadcast %cst_76 : f32 to vector<64x256xf32>
    %180 = arith.addf %179, %178 : vector<64x256xf32>
    %181 = tpu.reciprocal %180 {approx = true} : vector<64x256xf32> -> vector<64x256xf32>
    %cst_77 = arith.constant 1.06140542 : f32
    %182 = vector.broadcast %cst_77 : f32 to vector<64x256xf32>
    %183 = arith.mulf %182, %181 : vector<64x256xf32>
    %cst_78 = arith.constant -1.45315206 : f32
    %184 = vector.broadcast %cst_78 : f32 to vector<64x256xf32>
    %185 = arith.addf %183, %184 : vector<64x256xf32>
    %186 = arith.mulf %185, %181 : vector<64x256xf32>
    %cst_79 = arith.constant 1.42141378 : f32
    %187 = vector.broadcast %cst_79 : f32 to vector<64x256xf32>
    %188 = arith.addf %186, %187 : vector<64x256xf32>
    %189 = arith.mulf %188, %181 : vector<64x256xf32>
    %cst_80 = arith.constant -0.284496725 : f32
    %190 = vector.broadcast %cst_80 : f32 to vector<64x256xf32>
    %191 = arith.addf %189, %190 : vector<64x256xf32>
    %192 = arith.mulf %191, %181 : vector<64x256xf32>
    %cst_81 = arith.constant 0.254829586 : f32
    %193 = vector.broadcast %cst_81 : f32 to vector<64x256xf32>
    %194 = arith.addf %192, %193 : vector<64x256xf32>
    %195 = arith.mulf %194, %181 : vector<64x256xf32>
    %cst_82 = arith.constant 0.000000e+00 : f32
    %196 = vector.broadcast %cst_82 : f32 to vector<64x256xf32>
    %197 = arith.subf %196, %176 : vector<64x256xf32>
    %198 = arith.mulf %197, %176 : vector<64x256xf32>
    %199 = math.exp %198 : vector<64x256xf32>
    %200 = arith.mulf %195, %199 : vector<64x256xf32>
    %cst_83 = arith.constant 1.000000e+00 : f32
    %201 = vector.broadcast %cst_83 : f32 to vector<64x256xf32>
    %202 = arith.subf %201, %200 : vector<64x256xf32>
    %203 = arith.mulf %175, %202 : vector<64x256xf32>
    %cst_84 = arith.constant 1.000000e+00 : f32
    %204 = vector.broadcast %cst_84 : f32 to vector<64x256xf32>
    %205 = arith.addf %204, %203 : vector<64x256xf32>
    %206 = arith.mulf %168, %205 : vector<64x256xf32>
    %207 = arith.truncf %206 : vector<64x256xf32> to vector<64x256xbf16>
    %c0_85 = arith.constant 0 : index
    %c0_86 = arith.constant 0 : index
    %c0_87 = arith.constant 0 : index
    %208 = vector.load %arg14[%c0_85, %c0_86, %c0_87] : memref<2x256x64xbf16, #tpu.memory_space<vmem>>, vector<1x256x64xbf16>
    %209 = vector.shape_cast %208 : vector<1x256x64xbf16> to vector<256x64xbf16>
    %cst_88 = arith.constant dense<0.000000e+00> : vector<64x64xf32>
    %210 = tpu.matmul %207, %209, %cst_88 {dimension_numbers = #tpu.dot_dimension_numbers<[1], [0], [0], [1], [0, 0, 1, 1], [], []>} : vector<64x256xbf16>, vector<256x64xbf16>, vector<64x64xf32> -> vector<64x64xf32>
    %c0_89 = arith.constant 0 : index
    %c0_90 = arith.constant 0 : index
    %c0_91 = arith.constant 0 : index
    %211 = vector.load %arg15[%c0_89, %c0_90, %c0_91] : memref<2x1x64xf32, #tpu.memory_space<vmem>>, vector<1x1x64xf32>
    %212 = vector.shape_cast %211 : vector<1x1x64xf32> to vector<1x64xf32>
    %213 = vector.broadcast %212 : vector<1x64xf32> to vector<64x64xf32>
    %214 = arith.addf %210, %213 : vector<64x64xf32>
    %215 = arith.addf %134, %214 : vector<64x64xf32>
    %c1 = arith.constant 1 : index
    %c0_92 = arith.constant 0 : index
    %c0_93 = arith.constant 0 : index
    %216 = vector.load %arg4[%c1, %c0_92, %c0_93] : memref<2x1x64xf32, #tpu.memory_space<vmem>>, vector<1x1x64xf32>
    %217 = vector.shape_cast %216 : vector<1x1x64xf32> to vector<1x64xf32>
    %c1_94 = arith.constant 1 : index
    %c0_95 = arith.constant 0 : index
    %c0_96 = arith.constant 0 : index
    %218 = vector.load %arg5[%c1_94, %c0_95, %c0_96] : memref<2x1x64xf32, #tpu.memory_space<vmem>>, vector<1x1x64xf32>
    %219 = vector.shape_cast %218 : vector<1x1x64xf32> to vector<1x64xf32>
    %cst_97 = arith.constant dense<0.000000e+00> : vector<64xf32>
    %220 = vector.multi_reduction <add>, %215, %cst_97 [1] : vector<64x64xf32> to vector<64xf32>
    %221 = vector.shape_cast %220 : vector<64xf32> to vector<64x1xf32>
    %cst_98 = arith.constant 6.400000e+01 : f32
    %222 = vector.broadcast %cst_98 : f32 to vector<64x1xf32>
    %223 = arith.divf %221, %222 : vector<64x1xf32>
    %224 = vector.broadcast %223 : vector<64x1xf32> to vector<64x64xf32>
    %225 = arith.subf %215, %224 : vector<64x64xf32>
    %226 = arith.mulf %225, %225 : vector<64x64xf32>
    %cst_99 = arith.constant dense<0.000000e+00> : vector<64xf32>
    %227 = vector.multi_reduction <add>, %226, %cst_99 [1] : vector<64x64xf32> to vector<64xf32>
    %228 = vector.shape_cast %227 : vector<64xf32> to vector<64x1xf32>
    %cst_100 = arith.constant 6.400000e+01 : f32
    %229 = vector.broadcast %cst_100 : f32 to vector<64x1xf32>
    %230 = arith.divf %228, %229 : vector<64x1xf32>
    %cst_101 = arith.constant 9.99999997E-7 : f32
    %231 = vector.broadcast %cst_101 : f32 to vector<64x1xf32>
    %232 = arith.addf %230, %231 : vector<64x1xf32>
    %233 = math.rsqrt %232 : vector<64x1xf32>
    %234 = vector.broadcast %233 : vector<64x1xf32> to vector<64x64xf32>
    %235 = arith.mulf %225, %234 : vector<64x64xf32>
    %236 = vector.broadcast %217 : vector<1x64xf32> to vector<64x64xf32>
    %237 = arith.mulf %235, %236 : vector<64x64xf32>
    %238 = vector.broadcast %219 : vector<1x64xf32> to vector<64x64xf32>
    %239 = arith.addf %237, %238 : vector<64x64xf32>
    %240 = arith.truncf %239 : vector<64x64xf32> to vector<64x64xbf16>
    %c1_102 = arith.constant 1 : index
    %c0_103 = arith.constant 0 : index
    %c0_104 = arith.constant 0 : index
    %241 = vector.load %arg6[%c1_102, %c0_103, %c0_104] : memref<2x64x192xbf16, #tpu.memory_space<vmem>>, vector<1x64x192xbf16>
    %242 = vector.shape_cast %241 : vector<1x64x192xbf16> to vector<64x192xbf16>
    %cst_105 = arith.constant dense<0.000000e+00> : vector<64x192xf32>
    %243 = tpu.matmul %240, %242, %cst_105 {dimension_numbers = #tpu.dot_dimension_numbers<[1], [0], [0], [1], [0, 0, 1, 1], [], []>} : vector<64x64xbf16>, vector<64x192xbf16>, vector<64x192xf32> -> vector<64x192xf32>
    %c1_106 = arith.constant 1 : index
    %c0_107 = arith.constant 0 : index
    %c0_108 = arith.constant 0 : index
    %244 = vector.load %arg7[%c1_106, %c0_107, %c0_108] : memref<2x1x192xf32, #tpu.memory_space<vmem>>, vector<1x1x192xf32>
    %245 = vector.shape_cast %244 : vector<1x1x192xf32> to vector<1x192xf32>
    %246 = vector.broadcast %245 : vector<1x192xf32> to vector<64x192xf32>
    %247 = arith.addf %243, %246 : vector<64x192xf32>
    %248 = vector.extract_strided_slice %247 {offsets = [0, 0], sizes = [64, 16], strides = [1, 1]} : vector<64x192xf32> to vector<64x16xf32>
    %249 = vector.extract_strided_slice %247 {offsets = [0, 64], sizes = [64, 16], strides = [1, 1]} : vector<64x192xf32> to vector<64x16xf32>
    %250 = vector.extract_strided_slice %247 {offsets = [0, 128], sizes = [64, 16], strides = [1, 1]} : vector<64x192xf32> to vector<64x16xf32>
    %251 = arith.truncf %248 : vector<64x16xf32> to vector<64x16xbf16>
    %252 = arith.truncf %249 : vector<64x16xf32> to vector<64x16xbf16>
    %cst_109 = arith.constant dense<0.000000e+00> : vector<64x64xf32>
    %253 = tpu.matmul %251, %252, %cst_109 {dimension_numbers = #tpu.dot_dimension_numbers<[1], [1], [0], [0], [0, 0, 1, 0], [], []>} : vector<64x16xbf16>, vector<64x16xbf16>, vector<64x64xf32> -> vector<64x64xf32>
    %cst_110 = arith.constant 2.500000e-01 : f32
    %254 = vector.broadcast %cst_110 : f32 to vector<64x64xf32>
    %255 = arith.mulf %253, %254 : vector<64x64xf32>
    %cst_111 = arith.constant dense<0xFF800000> : vector<64xf32>
    %256 = vector.multi_reduction <maximumf>, %255, %cst_111 [1] : vector<64x64xf32> to vector<64xf32>
    %257 = vector.shape_cast %256 : vector<64xf32> to vector<64x1xf32>
    %258 = vector.broadcast %257 : vector<64x1xf32> to vector<64x64xf32>
    %259 = arith.subf %255, %258 : vector<64x64xf32>
    %260 = math.exp %259 : vector<64x64xf32>
    %cst_112 = arith.constant dense<0.000000e+00> : vector<64xf32>
    %261 = vector.multi_reduction <add>, %260, %cst_112 [1] : vector<64x64xf32> to vector<64xf32>
    %262 = vector.shape_cast %261 : vector<64xf32> to vector<64x1xf32>
    %263 = tpu.reciprocal %262 {approx = true} : vector<64x1xf32> -> vector<64x1xf32>
    %264 = vector.broadcast %263 : vector<64x1xf32> to vector<64x64xf32>
    %265 = arith.mulf %260, %264 : vector<64x64xf32>
    %266 = arith.truncf %265 : vector<64x64xf32> to vector<64x64xbf16>
    %267 = arith.truncf %250 : vector<64x16xf32> to vector<64x16xbf16>
    %cst_113 = arith.constant dense<0.000000e+00> : vector<64x16xf32>
    %268 = tpu.matmul %266, %267, %cst_113 {dimension_numbers = #tpu.dot_dimension_numbers<[1], [0], [0], [1], [0, 0, 1, 1], [], []>} : vector<64x64xbf16>, vector<64x16xbf16>, vector<64x16xf32> -> vector<64x16xf32>
    %269 = vector.extract_strided_slice %247 {offsets = [0, 16], sizes = [64, 16], strides = [1, 1]} : vector<64x192xf32> to vector<64x16xf32>
    %270 = vector.extract_strided_slice %247 {offsets = [0, 80], sizes = [64, 16], strides = [1, 1]} : vector<64x192xf32> to vector<64x16xf32>
    %271 = vector.extract_strided_slice %247 {offsets = [0, 144], sizes = [64, 16], strides = [1, 1]} : vector<64x192xf32> to vector<64x16xf32>
    %272 = arith.truncf %269 : vector<64x16xf32> to vector<64x16xbf16>
    %273 = arith.truncf %270 : vector<64x16xf32> to vector<64x16xbf16>
    %cst_114 = arith.constant dense<0.000000e+00> : vector<64x64xf32>
    %274 = tpu.matmul %272, %273, %cst_114 {dimension_numbers = #tpu.dot_dimension_numbers<[1], [1], [0], [0], [0, 0, 1, 0], [], []>} : vector<64x16xbf16>, vector<64x16xbf16>, vector<64x64xf32> -> vector<64x64xf32>
    %cst_115 = arith.constant 2.500000e-01 : f32
    %275 = vector.broadcast %cst_115 : f32 to vector<64x64xf32>
    %276 = arith.mulf %274, %275 : vector<64x64xf32>
    %cst_116 = arith.constant dense<0xFF800000> : vector<64xf32>
    %277 = vector.multi_reduction <maximumf>, %276, %cst_116 [1] : vector<64x64xf32> to vector<64xf32>
    %278 = vector.shape_cast %277 : vector<64xf32> to vector<64x1xf32>
    %279 = vector.broadcast %278 : vector<64x1xf32> to vector<64x64xf32>
    %280 = arith.subf %276, %279 : vector<64x64xf32>
    %281 = math.exp %280 : vector<64x64xf32>
    %cst_117 = arith.constant dense<0.000000e+00> : vector<64xf32>
    %282 = vector.multi_reduction <add>, %281, %cst_117 [1] : vector<64x64xf32> to vector<64xf32>
    %283 = vector.shape_cast %282 : vector<64xf32> to vector<64x1xf32>
    %284 = tpu.reciprocal %283 {approx = true} : vector<64x1xf32> -> vector<64x1xf32>
    %285 = vector.broadcast %284 : vector<64x1xf32> to vector<64x64xf32>
    %286 = arith.mulf %281, %285 : vector<64x64xf32>
    %287 = arith.truncf %286 : vector<64x64xf32> to vector<64x64xbf16>
    %288 = arith.truncf %271 : vector<64x16xf32> to vector<64x16xbf16>
    %cst_118 = arith.constant dense<0.000000e+00> : vector<64x16xf32>
    %289 = tpu.matmul %287, %288, %cst_118 {dimension_numbers = #tpu.dot_dimension_numbers<[1], [0], [0], [1], [0, 0, 1, 1], [], []>} : vector<64x64xbf16>, vector<64x16xbf16>, vector<64x16xf32> -> vector<64x16xf32>
    %290 = vector.extract_strided_slice %247 {offsets = [0, 32], sizes = [64, 16], strides = [1, 1]} : vector<64x192xf32> to vector<64x16xf32>
    %291 = vector.extract_strided_slice %247 {offsets = [0, 96], sizes = [64, 16], strides = [1, 1]} : vector<64x192xf32> to vector<64x16xf32>
    %292 = vector.extract_strided_slice %247 {offsets = [0, 160], sizes = [64, 16], strides = [1, 1]} : vector<64x192xf32> to vector<64x16xf32>
    %293 = arith.truncf %290 : vector<64x16xf32> to vector<64x16xbf16>
    %294 = arith.truncf %291 : vector<64x16xf32> to vector<64x16xbf16>
    %cst_119 = arith.constant dense<0.000000e+00> : vector<64x64xf32>
    %295 = tpu.matmul %293, %294, %cst_119 {dimension_numbers = #tpu.dot_dimension_numbers<[1], [1], [0], [0], [0, 0, 1, 0], [], []>} : vector<64x16xbf16>, vector<64x16xbf16>, vector<64x64xf32> -> vector<64x64xf32>
    %cst_120 = arith.constant 2.500000e-01 : f32
    %296 = vector.broadcast %cst_120 : f32 to vector<64x64xf32>
    %297 = arith.mulf %295, %296 : vector<64x64xf32>
    %cst_121 = arith.constant dense<0xFF800000> : vector<64xf32>
    %298 = vector.multi_reduction <maximumf>, %297, %cst_121 [1] : vector<64x64xf32> to vector<64xf32>
    %299 = vector.shape_cast %298 : vector<64xf32> to vector<64x1xf32>
    %300 = vector.broadcast %299 : vector<64x1xf32> to vector<64x64xf32>
    %301 = arith.subf %297, %300 : vector<64x64xf32>
    %302 = math.exp %301 : vector<64x64xf32>
    %cst_122 = arith.constant dense<0.000000e+00> : vector<64xf32>
    %303 = vector.multi_reduction <add>, %302, %cst_122 [1] : vector<64x64xf32> to vector<64xf32>
    %304 = vector.shape_cast %303 : vector<64xf32> to vector<64x1xf32>
    %305 = tpu.reciprocal %304 {approx = true} : vector<64x1xf32> -> vector<64x1xf32>
    %306 = vector.broadcast %305 : vector<64x1xf32> to vector<64x64xf32>
    %307 = arith.mulf %302, %306 : vector<64x64xf32>
    %308 = arith.truncf %307 : vector<64x64xf32> to vector<64x64xbf16>
    %309 = arith.truncf %292 : vector<64x16xf32> to vector<64x16xbf16>
    %cst_123 = arith.constant dense<0.000000e+00> : vector<64x16xf32>
    %310 = tpu.matmul %308, %309, %cst_123 {dimension_numbers = #tpu.dot_dimension_numbers<[1], [0], [0], [1], [0, 0, 1, 1], [], []>} : vector<64x64xbf16>, vector<64x16xbf16>, vector<64x16xf32> -> vector<64x16xf32>
    %311 = vector.extract_strided_slice %247 {offsets = [0, 48], sizes = [64, 16], strides = [1, 1]} : vector<64x192xf32> to vector<64x16xf32>
    %312 = vector.extract_strided_slice %247 {offsets = [0, 112], sizes = [64, 16], strides = [1, 1]} : vector<64x192xf32> to vector<64x16xf32>
    %313 = vector.extract_strided_slice %247 {offsets = [0, 176], sizes = [64, 16], strides = [1, 1]} : vector<64x192xf32> to vector<64x16xf32>
    %314 = arith.truncf %311 : vector<64x16xf32> to vector<64x16xbf16>
    %315 = arith.truncf %312 : vector<64x16xf32> to vector<64x16xbf16>
    %cst_124 = arith.constant dense<0.000000e+00> : vector<64x64xf32>
    %316 = tpu.matmul %314, %315, %cst_124 {dimension_numbers = #tpu.dot_dimension_numbers<[1], [1], [0], [0], [0, 0, 1, 0], [], []>} : vector<64x16xbf16>, vector<64x16xbf16>, vector<64x64xf32> -> vector<64x64xf32>
    %cst_125 = arith.constant 2.500000e-01 : f32
    %317 = vector.broadcast %cst_125 : f32 to vector<64x64xf32>
    %318 = arith.mulf %316, %317 : vector<64x64xf32>
    %cst_126 = arith.constant dense<0xFF800000> : vector<64xf32>
    %319 = vector.multi_reduction <maximumf>, %318, %cst_126 [1] : vector<64x64xf32> to vector<64xf32>
    %320 = vector.shape_cast %319 : vector<64xf32> to vector<64x1xf32>
    %321 = vector.broadcast %320 : vector<64x1xf32> to vector<64x64xf32>
    %322 = arith.subf %318, %321 : vector<64x64xf32>
    %323 = math.exp %322 : vector<64x64xf32>
    %cst_127 = arith.constant dense<0.000000e+00> : vector<64xf32>
    %324 = vector.multi_reduction <add>, %323, %cst_127 [1] : vector<64x64xf32> to vector<64xf32>
    %325 = vector.shape_cast %324 : vector<64xf32> to vector<64x1xf32>
    %326 = tpu.reciprocal %325 {approx = true} : vector<64x1xf32> -> vector<64x1xf32>
    %327 = vector.broadcast %326 : vector<64x1xf32> to vector<64x64xf32>
    %328 = arith.mulf %323, %327 : vector<64x64xf32>
    %329 = arith.truncf %328 : vector<64x64xf32> to vector<64x64xbf16>
    %330 = arith.truncf %313 : vector<64x16xf32> to vector<64x16xbf16>
    %cst_128 = arith.constant dense<0.000000e+00> : vector<64x16xf32>
    %331 = tpu.matmul %329, %330, %cst_128 {dimension_numbers = #tpu.dot_dimension_numbers<[1], [0], [0], [1], [0, 0, 1, 1], [], []>} : vector<64x64xbf16>, vector<64x16xbf16>, vector<64x16xf32> -> vector<64x16xf32>
    %332 = tpu.concatenate %268, %289, %310, %331 in 1 : vector<64x16xf32>, vector<64x16xf32>, vector<64x16xf32>, vector<64x16xf32> -> vector<64x64xf32>
    %333 = arith.truncf %332 : vector<64x64xf32> to vector<64x64xbf16>
    %c1_129 = arith.constant 1 : index
    %c0_130 = arith.constant 0 : index
    %c0_131 = arith.constant 0 : index
    %334 = vector.load %arg8[%c1_129, %c0_130, %c0_131] : memref<2x64x64xbf16, #tpu.memory_space<vmem>>, vector<1x64x64xbf16>
    %335 = vector.shape_cast %334 : vector<1x64x64xbf16> to vector<64x64xbf16>
    %cst_132 = arith.constant dense<0.000000e+00> : vector<64x64xf32>
    %336 = tpu.matmul %333, %335, %cst_132 {dimension_numbers = #tpu.dot_dimension_numbers<[1], [0], [0], [1], [0, 0, 1, 1], [], []>} : vector<64x64xbf16>, vector<64x64xbf16>, vector<64x64xf32> -> vector<64x64xf32>
    %c1_133 = arith.constant 1 : index
    %c0_134 = arith.constant 0 : index
    %c0_135 = arith.constant 0 : index
    %337 = vector.load %arg9[%c1_133, %c0_134, %c0_135] : memref<2x1x64xf32, #tpu.memory_space<vmem>>, vector<1x1x64xf32>
    %338 = vector.shape_cast %337 : vector<1x1x64xf32> to vector<1x64xf32>
    %339 = vector.broadcast %338 : vector<1x64xf32> to vector<64x64xf32>
    %340 = arith.addf %336, %339 : vector<64x64xf32>
    %341 = arith.addf %215, %340 : vector<64x64xf32>
    %c1_136 = arith.constant 1 : index
    %c0_137 = arith.constant 0 : index
    %c0_138 = arith.constant 0 : index
    %342 = vector.load %arg10[%c1_136, %c0_137, %c0_138] : memref<2x1x64xf32, #tpu.memory_space<vmem>>, vector<1x1x64xf32>
    %343 = vector.shape_cast %342 : vector<1x1x64xf32> to vector<1x64xf32>
    %c1_139 = arith.constant 1 : index
    %c0_140 = arith.constant 0 : index
    %c0_141 = arith.constant 0 : index
    %344 = vector.load %arg11[%c1_139, %c0_140, %c0_141] : memref<2x1x64xf32, #tpu.memory_space<vmem>>, vector<1x1x64xf32>
    %345 = vector.shape_cast %344 : vector<1x1x64xf32> to vector<1x64xf32>
    %cst_142 = arith.constant dense<0.000000e+00> : vector<64xf32>
    %346 = vector.multi_reduction <add>, %341, %cst_142 [1] : vector<64x64xf32> to vector<64xf32>
    %347 = vector.shape_cast %346 : vector<64xf32> to vector<64x1xf32>
    %cst_143 = arith.constant 6.400000e+01 : f32
    %348 = vector.broadcast %cst_143 : f32 to vector<64x1xf32>
    %349 = arith.divf %347, %348 : vector<64x1xf32>
    %350 = vector.broadcast %349 : vector<64x1xf32> to vector<64x64xf32>
    %351 = arith.subf %341, %350 : vector<64x64xf32>
    %352 = arith.mulf %351, %351 : vector<64x64xf32>
    %cst_144 = arith.constant dense<0.000000e+00> : vector<64xf32>
    %353 = vector.multi_reduction <add>, %352, %cst_144 [1] : vector<64x64xf32> to vector<64xf32>
    %354 = vector.shape_cast %353 : vector<64xf32> to vector<64x1xf32>
    %cst_145 = arith.constant 6.400000e+01 : f32
    %355 = vector.broadcast %cst_145 : f32 to vector<64x1xf32>
    %356 = arith.divf %354, %355 : vector<64x1xf32>
    %cst_146 = arith.constant 9.99999997E-7 : f32
    %357 = vector.broadcast %cst_146 : f32 to vector<64x1xf32>
    %358 = arith.addf %356, %357 : vector<64x1xf32>
    %359 = math.rsqrt %358 : vector<64x1xf32>
    %360 = vector.broadcast %359 : vector<64x1xf32> to vector<64x64xf32>
    %361 = arith.mulf %351, %360 : vector<64x64xf32>
    %362 = vector.broadcast %343 : vector<1x64xf32> to vector<64x64xf32>
    %363 = arith.mulf %361, %362 : vector<64x64xf32>
    %364 = vector.broadcast %345 : vector<1x64xf32> to vector<64x64xf32>
    %365 = arith.addf %363, %364 : vector<64x64xf32>
    %366 = arith.truncf %365 : vector<64x64xf32> to vector<64x64xbf16>
    %c1_147 = arith.constant 1 : index
    %c0_148 = arith.constant 0 : index
    %c0_149 = arith.constant 0 : index
    %367 = vector.load %arg12[%c1_147, %c0_148, %c0_149] : memref<2x64x256xbf16, #tpu.memory_space<vmem>>, vector<1x64x256xbf16>
    %368 = vector.shape_cast %367 : vector<1x64x256xbf16> to vector<64x256xbf16>
    %cst_150 = arith.constant dense<0.000000e+00> : vector<64x256xf32>
    %369 = tpu.matmul %366, %368, %cst_150 {dimension_numbers = #tpu.dot_dimension_numbers<[1], [0], [0], [1], [0, 0, 1, 1], [], []>} : vector<64x64xbf16>, vector<64x256xbf16>, vector<64x256xf32> -> vector<64x256xf32>
    %c1_151 = arith.constant 1 : index
    %c0_152 = arith.constant 0 : index
    %c0_153 = arith.constant 0 : index
    %370 = vector.load %arg13[%c1_151, %c0_152, %c0_153] : memref<2x1x256xf32, #tpu.memory_space<vmem>>, vector<1x1x256xf32>
    %371 = vector.shape_cast %370 : vector<1x1x256xf32> to vector<1x256xf32>
    %372 = vector.broadcast %371 : vector<1x256xf32> to vector<64x256xf32>
    %373 = arith.addf %369, %372 : vector<64x256xf32>
    %cst_154 = arith.constant 5.000000e-01 : f32
    %374 = vector.broadcast %cst_154 : f32 to vector<64x256xf32>
    %375 = arith.mulf %374, %373 : vector<64x256xf32>
    %cst_155 = arith.constant 0.707106769 : f32
    %376 = vector.broadcast %cst_155 : f32 to vector<64x256xf32>
    %377 = arith.mulf %373, %376 : vector<64x256xf32>
    %cst_156 = arith.constant 0.000000e+00 : f32
    %378 = vector.broadcast %cst_156 : f32 to vector<64x256xf32>
    %379 = arith.cmpf olt, %377, %378 : vector<64x256xf32>
    %cst_157 = arith.constant -1.000000e+00 : f32
    %cst_158 = arith.constant 1.000000e+00 : f32
    %380 = vector.broadcast %cst_157 : f32 to vector<64x256xf32>
    %381 = vector.broadcast %cst_158 : f32 to vector<64x256xf32>
    %382 = arith.select %379, %380, %381 : vector<64x256xi1>, vector<64x256xf32>
    %383 = math.absf %377 : vector<64x256xf32>
    %cst_159 = arith.constant 0.327591091 : f32
    %384 = vector.broadcast %cst_159 : f32 to vector<64x256xf32>
    %385 = arith.mulf %384, %383 : vector<64x256xf32>
    %cst_160 = arith.constant 1.000000e+00 : f32
    %386 = vector.broadcast %cst_160 : f32 to vector<64x256xf32>
    %387 = arith.addf %386, %385 : vector<64x256xf32>
    %388 = tpu.reciprocal %387 {approx = true} : vector<64x256xf32> -> vector<64x256xf32>
    %cst_161 = arith.constant 1.06140542 : f32
    %389 = vector.broadcast %cst_161 : f32 to vector<64x256xf32>
    %390 = arith.mulf %389, %388 : vector<64x256xf32>
    %cst_162 = arith.constant -1.45315206 : f32
    %391 = vector.broadcast %cst_162 : f32 to vector<64x256xf32>
    %392 = arith.addf %390, %391 : vector<64x256xf32>
    %393 = arith.mulf %392, %388 : vector<64x256xf32>
    %cst_163 = arith.constant 1.42141378 : f32
    %394 = vector.broadcast %cst_163 : f32 to vector<64x256xf32>
    %395 = arith.addf %393, %394 : vector<64x256xf32>
    %396 = arith.mulf %395, %388 : vector<64x256xf32>
    %cst_164 = arith.constant -0.284496725 : f32
    %397 = vector.broadcast %cst_164 : f32 to vector<64x256xf32>
    %398 = arith.addf %396, %397 : vector<64x256xf32>
    %399 = arith.mulf %398, %388 : vector<64x256xf32>
    %cst_165 = arith.constant 0.254829586 : f32
    %400 = vector.broadcast %cst_165 : f32 to vector<64x256xf32>
    %401 = arith.addf %399, %400 : vector<64x256xf32>
    %402 = arith.mulf %401, %388 : vector<64x256xf32>
    %cst_166 = arith.constant 0.000000e+00 : f32
    %403 = vector.broadcast %cst_166 : f32 to vector<64x256xf32>
    %404 = arith.subf %403, %383 : vector<64x256xf32>
    %405 = arith.mulf %404, %383 : vector<64x256xf32>
    %406 = math.exp %405 : vector<64x256xf32>
    %407 = arith.mulf %402, %406 : vector<64x256xf32>
    %cst_167 = arith.constant 1.000000e+00 : f32
    %408 = vector.broadcast %cst_167 : f32 to vector<64x256xf32>
    %409 = arith.subf %408, %407 : vector<64x256xf32>
    %410 = arith.mulf %382, %409 : vector<64x256xf32>
    %cst_168 = arith.constant 1.000000e+00 : f32
    %411 = vector.broadcast %cst_168 : f32 to vector<64x256xf32>
    %412 = arith.addf %411, %410 : vector<64x256xf32>
    %413 = arith.mulf %375, %412 : vector<64x256xf32>
    %414 = arith.truncf %413 : vector<64x256xf32> to vector<64x256xbf16>
    %c1_169 = arith.constant 1 : index
    %c0_170 = arith.constant 0 : index
    %c0_171 = arith.constant 0 : index
    %415 = vector.load %arg14[%c1_169, %c0_170, %c0_171] : memref<2x256x64xbf16, #tpu.memory_space<vmem>>, vector<1x256x64xbf16>
    %416 = vector.shape_cast %415 : vector<1x256x64xbf16> to vector<256x64xbf16>
    %cst_172 = arith.constant dense<0.000000e+00> : vector<64x64xf32>
    %417 = tpu.matmul %414, %416, %cst_172 {dimension_numbers = #tpu.dot_dimension_numbers<[1], [0], [0], [1], [0, 0, 1, 1], [], []>} : vector<64x256xbf16>, vector<256x64xbf16>, vector<64x64xf32> -> vector<64x64xf32>
    %c1_173 = arith.constant 1 : index
    %c0_174 = arith.constant 0 : index
    %c0_175 = arith.constant 0 : index
    %418 = vector.load %arg15[%c1_173, %c0_174, %c0_175] : memref<2x1x64xf32, #tpu.memory_space<vmem>>, vector<1x1x64xf32>
    %419 = vector.shape_cast %418 : vector<1x1x64xf32> to vector<1x64xf32>
    %420 = vector.broadcast %419 : vector<1x64xf32> to vector<64x64xf32>
    %421 = arith.addf %417, %420 : vector<64x64xf32>
    %422 = arith.addf %341, %421 : vector<64x64xf32>
    %c0_176 = arith.constant 0 : index
    %c0_177 = arith.constant 0 : index
    %423 = vector.load %arg16[%c0_176, %c0_177] : memref<1x64xf32, #tpu.memory_space<vmem>>, vector<1x64xf32>
    %c0_178 = arith.constant 0 : index
    %c0_179 = arith.constant 0 : index
    %424 = vector.load %arg17[%c0_178, %c0_179] : memref<1x64xf32, #tpu.memory_space<vmem>>, vector<1x64xf32>
    %cst_180 = arith.constant dense<0.000000e+00> : vector<64xf32>
    %425 = vector.multi_reduction <add>, %422, %cst_180 [1] : vector<64x64xf32> to vector<64xf32>
    %426 = vector.shape_cast %425 : vector<64xf32> to vector<64x1xf32>
    %cst_181 = arith.constant 6.400000e+01 : f32
    %427 = vector.broadcast %cst_181 : f32 to vector<64x1xf32>
    %428 = arith.divf %426, %427 : vector<64x1xf32>
    %429 = vector.broadcast %428 : vector<64x1xf32> to vector<64x64xf32>
    %430 = arith.subf %422, %429 : vector<64x64xf32>
    %431 = arith.mulf %430, %430 : vector<64x64xf32>
    %cst_182 = arith.constant dense<0.000000e+00> : vector<64xf32>
    %432 = vector.multi_reduction <add>, %431, %cst_182 [1] : vector<64x64xf32> to vector<64xf32>
    %433 = vector.shape_cast %432 : vector<64xf32> to vector<64x1xf32>
    %cst_183 = arith.constant 6.400000e+01 : f32
    %434 = vector.broadcast %cst_183 : f32 to vector<64x1xf32>
    %435 = arith.divf %433, %434 : vector<64x1xf32>
    %cst_184 = arith.constant 9.99999997E-7 : f32
    %436 = vector.broadcast %cst_184 : f32 to vector<64x1xf32>
    %437 = arith.addf %435, %436 : vector<64x1xf32>
    %438 = math.rsqrt %437 : vector<64x1xf32>
    %439 = vector.broadcast %438 : vector<64x1xf32> to vector<64x64xf32>
    %440 = arith.mulf %430, %439 : vector<64x64xf32>
    %441 = vector.broadcast %423 : vector<1x64xf32> to vector<64x64xf32>
    %442 = arith.mulf %440, %441 : vector<64x64xf32>
    %443 = vector.broadcast %424 : vector<1x64xf32> to vector<64x64xf32>
    %444 = arith.addf %442, %443 : vector<64x64xf32>
    %445 = arith.truncf %444 : vector<64x64xf32> to vector<64x64xbf16>
    %c0_185 = arith.constant 0 : index
    %c0_186 = arith.constant 0 : index
    %446 = vector.load %arg18[%c0_185, %c0_186] : memref<64x256xbf16, #tpu.memory_space<vmem>>, vector<64x256xbf16>
    %cst_187 = arith.constant dense<0.000000e+00> : vector<64x256xf32>
    %447 = tpu.matmul %445, %446, %cst_187 {dimension_numbers = #tpu.dot_dimension_numbers<[1], [0], [0], [1], [0, 0, 1, 1], [], []>} : vector<64x64xbf16>, vector<64x256xbf16>, vector<64x256xf32> -> vector<64x256xf32>
    %c0_188 = arith.constant 0 : index
    %c0_189 = arith.constant 0 : index
    %448 = vector.load %arg19[%c0_188, %c0_189] : memref<1x256xf32, #tpu.memory_space<vmem>>, vector<1x256xf32>
    %449 = vector.broadcast %448 : vector<1x256xf32> to vector<64x256xf32>
    %450 = arith.addf %447, %449 : vector<64x256xf32>
    %c0_190 = arith.constant 0 : index
    %c0_191 = arith.constant 0 : index
    %451 = vector.load %arg20[%c0_190, %c0_191] : memref<64x256xf32, #tpu.memory_space<vmem>>, vector<64x256xf32>
    tpu.vector_store %arg20[%c0_190, %c0_191], %450 {strides = array<i32>} : memref<64x256xf32, #tpu.memory_space<vmem>>, vector<64x256xf32>,
    return
  }
}

</mosaic_0001>

<llo_original>
// kernel: _lambda_.1
$region0: #{_lambda_.1}
  #allocation0 [shape = 'u32[]', space=smem, size = 0x4, offset = 0x4, fixed_abs, tag = 'smem constant byte address 0x4 - core index']
  #allocation1 [shape = 'u32[144,128]{1,0:T(1,128)}', space=vmem, size = 0x12000, scoped, tag = 'internal scratch']
  %s0 = inlined_call_operand.vmem [shape: f32[64,384], index: 0, kind: input, shape index: {}]
  %s1 = inlined_call_operand.vmem [shape: bf16[384,64], index: 1, kind: input, shape index: {}]
  %s2 = inlined_call_operand.vmem [shape: f32[1,64], index: 2, kind: input, shape index: {}, may-alias: {2,17}]
  %s3 = inlined_call_operand.vmem [shape: f32[64,64], index: 3, kind: input, shape index: {}]
  %s4 = inlined_call_operand.vmem [shape: f32[2,1,64], index: 4, kind: input, shape index: {}, may-alias: {4,10}]
  %s5 = inlined_call_operand.vmem [shape: f32[2,1,64], index: 5, kind: input, shape index: {}, may-alias: {5,9,11,15}]
  %s6 = inlined_call_operand.vmem [shape: bf16[2,64,192], index: 6, kind: input, shape index: {}]
  %s7 = inlined_call_operand.vmem [shape: f32[2,1,192], index: 7, kind: input, shape index: {}]
  %s8 = inlined_call_operand.vmem [shape: bf16[2,64,64], index: 8, kind: input, shape index: {}]
  %s9 = inlined_call_operand.vmem [shape: f32[2,1,64], index: 9, kind: input, shape index: {}, may-alias: {5,9,11,15}]
  %s10 = inlined_call_operand.vmem [shape: f32[2,1,64], index: 10, kind: input, shape index: {}, may-alias: {4,10}]
  %s11 = inlined_call_operand.vmem [shape: f32[2,1,64], index: 11, kind: input, shape index: {}, may-alias: {5,9,11,15}]
  %s12 = inlined_call_operand.vmem [shape: bf16[2,64,256], index: 12, kind: input, shape index: {}]
  %s13 = inlined_call_operand.vmem [shape: f32[2,1,256], index: 13, kind: input, shape index: {}]
  %s14 = inlined_call_operand.vmem [shape: bf16[2,256,64], index: 14, kind: input, shape index: {}]
  %s15 = inlined_call_operand.vmem [shape: f32[2,1,64], index: 15, kind: input, shape index: {}, may-alias: {5,9,11,15}]
  %s16 = inlined_call_operand.vmem [shape: f32[1,64], index: 16, kind: input, shape index: {}]
  %s17 = inlined_call_operand.vmem [shape: f32[1,64], index: 17, kind: input, shape index: {}, may-alias: {2,17}]
  %s18 = inlined_call_operand.vmem [shape: bf16[64,256], index: 18, kind: input, shape index: {}]
  %s19 = inlined_call_operand.vmem [shape: f32[1,256], index: 19, kind: input, shape index: {}]
  %s20 = inlined_call_operand.vmem [shape: f32[64,256], index: 20, kind: output, shape index: {}]
  %s21 = sld [smem:[#allocation0]]
  $region90: #{_lambda_.1} parent=0
    _
  %s23 = ssub.s32 1, %s21
  %s24 = scalar_select 0, %s23, %s21
  // Predicated region
  $region2: #{_lambda_.1} parent=0 // pred_check
    _
  $region3: #{_lambda_.1} parent=0 // pred_check_branch
    %26 = sbr.rel (0) target = $region5
  $region4: #{_lambda_.1} parent=0 // pred_region
    _
  $region5: #{_lambda_.1} parent=0 // pred_fallthru
    _
  // Predicated region
  $region6: #{_lambda_.1} parent=0 // pred_check
    _
  $region7: #{_lambda_.1} parent=0 // pred_check_branch
    %28 = sbr.rel (0) target = $region9
  $region8: #{_lambda_.1} parent=0 // pred_region
    _
  $region9: #{_lambda_.1} parent=0 // pred_fallthru
    _
  // Predicated region
  $region10: #{_lambda_.1} parent=0 // pred_check
    _
  $region11: #{_lambda_.1} parent=0 // pred_check_branch
    %30 = sbr.rel (0) target = $region13
  $region12: #{_lambda_.1} parent=0 // pred_region
    _
  $region13: #{_lambda_.1} parent=0 // pred_fallthru
    _
  // Predicated region
  $region14: #{_lambda_.1} parent=0 // pred_check
    _
  $region15: #{_lambda_.1} parent=0 // pred_check_branch
    %32 = sbr.rel (0) target = $region17
  $region16: #{_lambda_.1} parent=0 // pred_region
    _
  $region17: #{_lambda_.1} parent=0 // pred_fallthru
    _
  // Predicated region
  $region18: #{_lambda_.1} parent=0 // pred_check
    _
  $region19: #{_lambda_.1} parent=0 // pred_check_branch
    %34 = sbr.rel (0) target = $region21
  $region20: #{_lambda_.1} parent=0 // pred_region
    _
  $region21: #{_lambda_.1} parent=0 // pred_fallthru
    _
  // Predicated region
  $region22: #{_lambda_.1} parent=0 // pred_check
    _
  $region23: #{_lambda_.1} parent=0 // pred_check_branch
    %36 = sbr.rel (0) target = $region25
  $region24: #{_lambda_.1} parent=0 // pred_region
    _
  $region25: #{_lambda_.1} parent=0 // pred_fallthru
    _
  // Predicated region
  $region26: #{_lambda_.1} parent=0 // pred_check
    _
  $region27: #{_lambda_.1} parent=0 // pred_check_branch
    %38 = sbr.rel (0) target = $region29
  $region28: #{_lambda_.1} parent=0 // pred_region
    _
  $region29: #{_lambda_.1} parent=0 // pred_fallthru
    _
  // Predicated region
  $region30: #{_lambda_.1} parent=0 // pred_check
    _
  $region31: #{_lambda_.1} parent=0 // pred_check_branch
    %40 = sbr.rel (0) target = $region33
  $region32: #{_lambda_.1} parent=0 // pred_region
    _
  $region33: #{_lambda_.1} parent=0 // pred_fallthru
    _
  // Predicated region
  $region34: #{_lambda_.1} parent=0 // pred_check
    _
  $region35: #{_lambda_.1} parent=0 // pred_check_branch
    %42 = sbr.rel (0) target = $region37
  $region36: #{_lambda_.1} parent=0 // pred_region
    _
  $region37: #{_lambda_.1} parent=0 // pred_fallthru
    _
  // Predicated region
  $region38: #{_lambda_.1} parent=0 // pred_check
    _
  $region39: #{_lambda_.1} parent=0 // pred_check_branch
    %44 = sbr.rel (0) target = $region41
  $region40: #{_lambda_.1} parent=0 // pred_region
    _
  $region41: #{_lambda_.1} parent=0 // pred_fallthru
    _
  // Predicated region
  $region42: #{_lambda_.1} parent=0 // pred_check
    _
  $region43: #{_lambda_.1} parent=0 // pred_check_branch
    %46 = sbr.rel (0) target = $region45
  $region44: #{_lambda_.1} parent=0 // pred_region
    _
  $region45: #{_lambda_.1} parent=0 // pred_fallthru
    _
  // Predicated region
  $region46: #{_lambda_.1} parent=0 // pred_check
    _
  $region47: #{_lambda_.1} parent=0 // pred_check_branch
    %48 = sbr.rel (0) target = $region49
  $region48: #{_lambda_.1} parent=0 // pred_region
    _
  $region49: #{_lambda_.1} parent=0 // pred_fallthru
    _
  // Predicated region
  $region50: #{_lambda_.1} parent=0 // pred_check
    _
  $region51: #{_lambda_.1} parent=0 // pred_check_branch
    %50 = sbr.rel (0) target = $region53
  $region52: #{_lambda_.1} parent=0 // pred_region
    _
  $region53: #{_lambda_.1} parent=0 // pred_fallthru
    _
  // Predicated region
  $region54: #{_lambda_.1} parent=0 // pred_check
    _
  $region55: #{_lambda_.1} parent=0 // pred_check_branch
    %52 = sbr.rel (0) target = $region57
  $region56: #{_lambda_.1} parent=0 // pred_region
    _
  $region57: #{_lambda_.1} parent=0 // pred_fallthru
    _
  // Predicated region
  $region58: #{_lambda_.1} parent=0 // pred_check
    _
  $region59: #{_lambda_.1} parent=0 // pred_check_branch
    %54 = sbr.rel (0) target = $region61
  $region60: #{_lambda_.1} parent=0 // pred_region
    _
  $region61: #{_lambda_.1} parent=0 // pred_fallthru
    _
  // Predicated region
  $region62: #{_lambda_.1} parent=0 // pred_check
    _
  $region63: #{_lambda_.1} parent=0 // pred_check_branch
    %56 = sbr.rel (0) target = $region65
  $region64: #{_lambda_.1} parent=0 // pred_region
    _
  $region65: #{_lambda_.1} parent=0 // pred_fallthru
    _
  // Predicated region
  $region66: #{_lambda_.1} parent=0 // pred_check
    _
  $region67: #{_lambda_.1} parent=0 // pred_check_branch
    %58 = sbr.rel (0) target = $region69
  $region68: #{_lambda_.1} parent=0 // pred_region
    _
  $region69: #{_lambda_.1} parent=0 // pred_fallthru
    _
  // Predicated region
  $region70: #{_lambda_.1} parent=0 // pred_check
    _
  $region71: #{_lambda_.1} parent=0 // pred_check_branch
    %60 = sbr.rel (0) target = $region73
  $region72: #{_lambda_.1} parent=0 // pred_region
    _
  $region73: #{_lambda_.1} parent=0 // pred_fallthru
    _
  // Predicated region
  $region74: #{_lambda_.1} parent=0 // pred_check
    _
  $region75: #{_lambda_.1} parent=0 // pred_check_branch
    %62 = sbr.rel (0) target = $region77
  $region76: #{_lambda_.1} parent=0 // pred_region
    _
  $region77: #{_lambda_.1} parent=0 // pred_fallthru
    _
  // Predicated region
  $region78: #{_lambda_.1} parent=0 // pred_check
    _
  $region79: #{_lambda_.1} parent=0 // pred_check_branch
    %64 = sbr.rel (0) target = $region81
  $region80: #{_lambda_.1} parent=0 // pred_region
    _
  $region81: #{_lambda_.1} parent=0 // pred_fallthru
    _
  %v66 = vld [vmem:[%s0] sm:$0xff]
  %v67 = vld [vmem:[%s0 + $0x8] sm:$0xff]
  %v68 = vld [vmem:[%s0 + $0x10] sm:$0xff]
  %v69 = vld [vmem:[%s0 + $0x18] sm:$0xff]
  %v70 = vld [vmem:[%s0 + $0x20] sm:$0xff]
  %v71 = vld [vmem:[%s0 + $0x28] sm:$0xff]
  %v72 = vld [vmem:[%s0 + $0x30] sm:$0xff]
  %v73 = vld [vmem:[%s0 + $0x38] sm:$0xff]
  %v74 = vld [vmem:[%s0 + $0x40] sm:$0xff]
  %v75 = vld [vmem:[%s0 + $0x48] sm:$0xff]
  %v76 = vld [vmem:[%s0 + $0x50] sm:$0xff]
  %v77 = vld [vmem:[%s0 + $0x58] sm:$0xff]
  %v78 = vld [vmem:[%s0 + $0x60] sm:$0xff]
  %v79 = vld [vmem:[%s0 + $0x68] sm:$0xff]
  %v80 = vld [vmem:[%s0 + $0x70] sm:$0xff]
  %v81 = vld [vmem:[%s0 + $0x78] sm:$0xff]
  %v82 = vld [vmem:[%s0 + $0x80] sm:$0xff]
  %v83 = vld [vmem:[%s0 + $0x88] sm:$0xff]
  %v84 = vld [vmem:[%s0 + $0x90] sm:$0xff]
  %v85 = vld [vmem:[%s0 + $0x98] sm:$0xff]
  %v86 = vld [vmem:[%s0 + $0xa0] sm:$0xff]
  %v87 = vld [vmem:[%s0 + $0xa8] sm:$0xff]
  %v88 = vld [vmem:[%s0 + $0xb0] sm:$0xff]
  %v89 = vld [vmem:[%s0 + $0xb8] sm:$0xff]
  %v90 = vpack.c.bf16 %v69, %v66
  %v91 = vpack.c.bf16 %v70, %v67
  %v92 = vpack.c.bf16 %v71, %v68
  %v93 = vpack.c.bf16 %v75, %v72
  %v94 = vpack.c.bf16 %v76, %v73
  %v95 = vpack.c.bf16 %v77, %v74
  %v96 = vpack.c.bf16 %v81, %v78
  %v97 = vpack.c.bf16 %v82, %v79
  %v98 = vpack.c.bf16 %v83, %v80
  %v99 = vpack.c.bf16 %v87, %v84
  %v100 = vpack.c.bf16 %v88, %v85
  %v101 = vpack.c.bf16 %v89, %v86
  %v102 = vld [vmem:[%s1] sm:$0xf]
  %v103 = vld [vmem:[%s1 + $0x4] sm:$0xf]
  %v104 = vld [vmem:[%s1 + $0x8] sm:$0xf]
  %v105 = vld [vmem:[%s1 + $0xc] sm:$0xf]
  %v106 = vld [vmem:[%s1 + $0x10] sm:$0xf]
  %v107 = vld [vmem:[%s1 + $0x14] sm:$0xf]
  %v108 = vld [vmem:[%s1 + $0x18] sm:$0xf]
  %v109 = vld [vmem:[%s1 + $0x1c] sm:$0xf]
  %v110 = vld [vmem:[%s1 + $0x20] sm:$0xf]
  %v111 = vld [vmem:[%s1 + $0x24] sm:$0xf]
  %v112 = vld [vmem:[%s1 + $0x28] sm:$0xf]
  %v113 = vld [vmem:[%s1 + $0x2c] sm:$0xf]
  %v114 = vld [vmem:[%s1 + $0x30] sm:$0xf]
  %v115 = vld [vmem:[%s1 + $0x34] sm:$0xf]
  %v116 = vld [vmem:[%s1 + $0x38] sm:$0xf]
  %v117 = vld [vmem:[%s1 + $0x3c] sm:$0xf]
  %v118 = vld [vmem:[%s1 + $0x40] sm:$0xf]
  %v119 = vld [vmem:[%s1 + $0x44] sm:$0xf]
  %v120 = vld [vmem:[%s1 + $0x48] sm:$0xf]
  %v121 = vld [vmem:[%s1 + $0x4c] sm:$0xf]
  %v122 = vld [vmem:[%s1 + $0x50] sm:$0xf]
  %v123 = vld [vmem:[%s1 + $0x54] sm:$0xf]
  %v124 = vld [vmem:[%s1 + $0x58] sm:$0xf]
  %v125 = vld [vmem:[%s1 + $0x5c] sm:$0xf]
  %v126 = vld [vmem:[%s1 + $0x60] sm:$0xf]
  %v127 = vld [vmem:[%s1 + $0x64] sm:$0xf]
  %v128 = vld [vmem:[%s1 + $0x68] sm:$0xf]
  %v129 = vld [vmem:[%s1 + $0x6c] sm:$0xf]
  %v130 = vld [vmem:[%s1 + $0x70] sm:$0xf]
  %v131 = vld [vmem:[%s1 + $0x74] sm:$0xf]
  %v132 = vld [vmem:[%s1 + $0x78] sm:$0xf]
  %v133 = vld [vmem:[%s1 + $0x7c] sm:$0xf]
  %v134 = vld [vmem:[%s1 + $0x80] sm:$0xf]
  %v135 = vld [vmem:[%s1 + $0x84] sm:$0xf]
  %v136 = vld [vmem:[%s1 + $0x88] sm:$0xf]
  %v137 = vld [vmem:[%s1 + $0x8c] sm:$0xf]
  %v138 = vld [vmem:[%s1 + $0x90] sm:$0xf]
  %v139 = vld [vmem:[%s1 + $0x94] sm:$0xf]
  %v140 = vld [vmem:[%s1 + $0x98] sm:$0xf]
  %v141 = vld [vmem:[%s1 + $0x9c] sm:$0xf]
  %v142 = vld [vmem:[%s1 + $0xa0] sm:$0xf]
  %v143 = vld [vmem:[%s1 + $0xa4] sm:$0xf]
  %v144 = vld [vmem:[%s1 + $0xa8] sm:$0xf]
  %v145 = vld [vmem:[%s1 + $0xac] sm:$0xf]
  %v146 = vld [vmem:[%s1 + $0xb0] sm:$0xf]
  %v147 = vld [vmem:[%s1 + $0xb4] sm:$0xf]
  %v148 = vld [vmem:[%s1 + $0xb8] sm:$0xf]
  %v149 = vld [vmem:[%s1 + $0xbc] sm:$0xf]
  %v150 = vld [vmem:[%s2] sm:$0x1]
  %v152 = vlaneseq
  %v153 = vshrl.u32 %v152, 7
  %v154 = vsub.s32 0, %v153
  %v155 = vrot.slane %v150, %v154
  %v205 = vunpack.c.l.b16 %v102
  %v206 = vunpack.c.l.b16 %v103
  %v207 = vunpack.c.l.b16 %v104
  %v208 = vunpack.c.l.b16 %v105
  %v209 = vunpack.c.l.b16 %v106
  %v210 = vunpack.c.l.b16 %v107
  %v211 = vunpack.c.l.b16 %v108
  %v212 = vunpack.c.l.b16 %v109
  %v213 = vunpack.c.l.b16 %v110
  %v214 = vunpack.c.l.b16 %v111
  %v215 = vunpack.c.l.b16 %v112
  %v216 = vunpack.c.l.b16 %v113
  %v217 = vunpack.c.l.b16 %v114
  %v218 = vunpack.c.l.b16 %v115
  %v219 = vunpack.c.l.b16 %v116
  %v220 = vunpack.c.l.b16 %v117
  %v221 = vunpack.c.l.b16 %v118
  %v222 = vunpack.c.l.b16 %v119
  %v223 = vunpack.c.l.b16 %v120
  %v224 = vunpack.c.l.b16 %v121
  %v225 = vunpack.c.l.b16 %v122
  %v226 = vunpack.c.l.b16 %v123
  %v227 = vunpack.c.l.b16 %v124
  %v228 = vunpack.c.l.b16 %v125
  %v229 = vunpack.c.l.b16 %v126
  %v230 = vunpack.c.l.b16 %v127
  %v231 = vunpack.c.l.b16 %v128
  %v232 = vunpack.c.l.b16 %v129
  %v233 = vunpack.c.l.b16 %v130
  %v234 = vunpack.c.l.b16 %v131
  %v235 = vunpack.c.l.b16 %v132
  %v236 = vunpack.c.l.b16 %v133
  %v237 = vunpack.c.l.b16 %v134
  %v238 = vunpack.c.l.b16 %v135
  %v239 = vunpack.c.l.b16 %v136
  %v240 = vunpack.c.l.b16 %v137
  %v241 = vunpack.c.l.b16 %v138
  %v242 = vunpack.c.l.b16 %v139
  %v243 = vunpack.c.l.b16 %v140
  %v244 = vunpack.c.l.b16 %v141
  %v245 = vunpack.c.l.b16 %v142
  %v246 = vunpack.c.l.b16 %v143
  %v247 = vunpack.c.l.b16 %v144
  %v248 = vunpack.c.l.b16 %v145
  %v249 = vunpack.c.l.b16 %v146
  %v250 = vunpack.c.l.b16 %v147
  %v251 = vunpack.c.l.b16 %v148
  %v252 = vunpack.c.l.b16 %v149
  %v253 = vpack.c.b16 %v206, %v205
  %v254 = vpack.c.b16 %v208, %v207
  %v255 = vpack.c.b16 %v210, %v209
  %v256 = vpack.c.b16 %v212, %v211
  %v257 = vpack.c.b16 %v214, %v213
  %v258 = vpack.c.b16 %v216, %v215
  %v259 = vpack.c.b16 %v218, %v217
  %v260 = vpack.c.b16 %v220, %v219
  %v261 = vpack.c.b16 %v222, %v221
  %v262 = vpack.c.b16 %v224, %v223
  %v263 = vpack.c.b16 %v226, %v225
  %v264 = vpack.c.b16 %v228, %v227
  %v265 = vpack.c.b16 %v230, %v229
  %v266 = vpack.c.b16 %v232, %v231
  %v267 = vpack.c.b16 %v234, %v233
  %v268 = vpack.c.b16 %v236, %v235
  %v269 = vpack.c.b16 %v238, %v237
  %v270 = vpack.c.b16 %v240, %v239
  %v271 = vpack.c.b16 %v242, %v241
  %v272 = vpack.c.b16 %v244, %v243
  %v273 = vpack.c.b16 %v246, %v245
  %v274 = vpack.c.b16 %v248, %v247
  %v275 = vpack.c.b16 %v250, %v249
  %v276 = vpack.c.b16 %v252, %v251
  %301 = vmatprep.subr.bf16.mxu0 0
  %302 = vmatpush1.bf16.msra.mxu0 %v253
  %303 = vmatprep.subr.bf16.mxu0 0
  %304 = vmatpush1.bf16.msra.mxu0 %v254
  %305 = vmatprep.subr.bf16.mxu0 0
  %306 = vmatpush1.bf16.msra.mxu0 %v255
  %307 = vmatprep.subr.bf16.mxu0 0
  %308 = vmatpush1.bf16.msra.mxu0 %v256
  %309 = vmatprep.subr.bf16.mxu0 0
  %310 = vmatpush1.bf16.msra.mxu0 %v257
  %311 = vmatprep.subr.bf16.mxu0 0
  %312 = vmatpush1.bf16.msra.mxu0 %v258
  %313 = vmatprep.subr.bf16.mxu0 0
  %314 = vmatpush1.bf16.msra.mxu0 %v259
  %315 = vmatprep.subr.bf16.mxu0 0
  %316 = vmatpush1.bf16.msra.mxu0 %v260
  %317 = vmatprep.subr.bf16.mxu0 0
  %318 = vmatpush1.bf16.msra.mxu0 %v261
  %319 = vmatprep.subr.bf16.mxu0 0
  %320 = vmatpush1.bf16.msra.mxu0 %v262
  %321 = vmatprep.subr.bf16.mxu0 0
  %322 = vmatpush1.bf16.msra.mxu0 %v263
  %323 = vmatprep.subr.bf16.mxu0 0
  %324 = vmatpush1.bf16.msra.mxu0 %v264
  %325 = vmatprep.subr.bf16.mxu0 0
  %326 = vmatpush1.bf16.msra.mxu0 %v265
  %327 = vmatprep.subr.bf16.mxu0 0
  %328 = vmatpush1.bf16.msra.mxu0 %v266
  %329 = vmatprep.subr.bf16.mxu0 0
  %330 = vmatpush1.bf16.msra.mxu0 %v267
  %331 = vmatprep.subr.bf16.mxu0 0
  %332 = vmatpush1.bf16.msra.mxu0 %v268
  %333 = vmatprep.mubr.bf16.mxu0 %v91
  %334 = vmatmul.mubr.bf16.gmra.mrb[0].mxu0 %v90
  %v335 = vpop.f32.mrb[0].mxu0
  %v336 = vadd.f32 %v155, %v335
  %v337 = vpop.f32.mrb[0].mxu0
  %v338 = vpop.f32.mrb[0].mxu0
  %v339 = vadd.f32 %v155, %v338
  %v340 = vpop.f32.mrb[0].mxu0
  %341 = vmatprep.mubr.bf16.mxu0 %v94
  %342 = vmatmul.mubr.bf16.gmra.mrb[0].mxu0 %v93
  %v343 = vpop.f32.mrb[0].mxu0
  %v344 = vadd.f32 %v155, %v343
  %v345 = vpop.f32.mrb[0].mxu0
  %v346 = vpop.f32.mrb[0].mxu0
  %v347 = vadd.f32 %v155, %v346
  %v348 = vpop.f32.mrb[0].mxu0
  %349 = vmatprep.mubr.bf16.mxu0 %v97
  %350 = vmatmul.mubr.bf16.gmra.mrb[0].mxu0 %v96
  %v351 = vpop.f32.mrb[0].mxu0
  %v352 = vadd.f32 %v155, %v351
  %v353 = vpop.f32.mrb[0].mxu0
  %v354 = vpop.f32.mrb[0].mxu0
  %v355 = vadd.f32 %v155, %v354
  %v356 = vpop.f32.mrb[0].mxu0
  %357 = vmatprep.mubr.bf16.mxu0 %v100
  %358 = vmatmul.mubr.bf16.gmra.mrb[0].mxu0 %v99
  %v359 = vpop.f32.mrb[0].mxu0
  %v360 = vadd.f32 %v155, %v359
  %v361 = vpop.f32.mrb[0].mxu0
  %v362 = vpop.f32.mrb[0].mxu0
  %v363 = vadd.f32 %v155, %v362
  %v364 = vpop.f32.mrb[0].mxu0
  %365 = vdwg.mxu0
  %366 = vmatprep.subr.bf16.mxu0 0
  %367 = vmatpush1.bf16.msra.mxu0 %v269
  %368 = vmatprep.subr.bf16.mxu0 0
  %369 = vmatpush1.bf16.msra.mxu0 %v270
  %370 = vmatprep.subr.bf16.mxu0 0
  %371 = vmatpush1.bf16.msra.mxu0 %v271
  %372 = vmatprep.subr.bf16.mxu0 0
  %373 = vmatpush1.bf16.msra.mxu0 %v272
  %374 = vmatprep.subr.bf16.mxu0 0
  %375 = vmatpush1.bf16.msra.mxu0 %v273
  %376 = vmatprep.subr.bf16.mxu0 0
  %377 = vmatpush1.bf16.msra.mxu0 %v274
  %378 = vmatprep.subr.bf16.mxu0 0
  %379 = vmatpush1.bf16.msra.mxu0 %v275
  %380 = vmatprep.subr.bf16.mxu0 0
  %381 = vmatpush1.bf16.msra.mxu0 %v276
  %382 = vmatprep.subr.bf16.mxu0 0
  %383 = vmatpush1.bf16.msra.mxu0 0
  %384 = vmatprep.subr.bf16.mxu0 0
  %385 = vmatpush1.bf16.msra.mxu0 0
  %386 = vmatprep.subr.bf16.mxu0 0
  %387 = vmatpush1.bf16.msra.mxu0 0
  %388 = vmatprep.subr.bf16.mxu0 0
  %389 = vmatpush1.bf16.msra.mxu0 0
  %390 = vmatprep.subr.bf16.mxu0 0
  %391 = vmatpush1.bf16.msra.mxu0 0
  %392 = vmatprep.subr.bf16.mxu0 0
  %393 = vmatpush1.bf16.msra.mxu0 0
  %394 = vmatprep.subr.bf16.mxu0 0
  %395 = vmatpush1.bf16.msra.mxu0 0
  %396 = vmatprep.subr.bf16.mxu0 0
  %397 = vmatpush1.bf16.msra.mxu0 0
  %398 = vmatprep.mubr.bf16.mxu0 0
  %399 = vmatmul.mubr.bf16.gmra.mrb[0].mxu0 %v92
  %v400 = vpop.f32.mrb[0].mxu0
  %v401 = vadd.f32 %v336, %v400
  %v402 = vpop.f32.mrb[0].mxu0
  %v403 = vpop.f32.mrb[0].mxu0
  %v404 = vadd.f32 %v339, %v403
  %v405 = vpop.f32.mrb[0].mxu0
  %406 = vmatprep.mubr.bf16.mxu0 0
  %407 = vmatmul.mubr.bf16.gmra.mrb[0].mxu0 %v95
  %v408 = vpop.f32.mrb[0].mxu0
  %v409 = vadd.f32 %v344, %v408
  %v410 = vpop.f32.mrb[0].mxu0
  %v411 = vpop.f32.mrb[0].mxu0
  %v412 = vadd.f32 %v347, %v411
  %v413 = vpop.f32.mrb[0].mxu0
  %414 = vmatprep.mubr.bf16.mxu0 0
  %415 = vmatmul.mubr.bf16.gmra.mrb[0].mxu0 %v98
  %v416 = vpop.f32.mrb[0].mxu0
  %v417 = vadd.f32 %v352, %v416
  %v418 = vpop.f32.mrb[0].mxu0
  %v419 = vpop.f32.mrb[0].mxu0
  %v420 = vadd.f32 %v355, %v419
  %v421 = vpop.f32.mrb[0].mxu0
  %422 = vmatprep.mubr.bf16.mxu0 0
  %423 = vmatmul.mubr.bf16.gmra.mrb[0].mxu0 %v101
  %v424 = vpop.f32.mrb[0].mxu0
  %v425 = vadd.f32 %v360, %v424
  %v426 = vpop.f32.mrb[0].mxu0
  %v427 = vpop.f32.mrb[0].mxu0
  %v428 = vadd.f32 %v363, %v427
  %v429 = vpop.f32.mrb[0].mxu0
  %430 = vdwg.mxu0
  %v431 = vld [vmem:[%s3] sm:$0xff]
  %v432 = vld [vmem:[%s3 + $0x8] sm:$0xff]
  %v433 = vld [vmem:[%s3 + $0x10] sm:$0xff]
  %v434 = vld [vmem:[%s3 + $0x18] sm:$0xff]
  %v435 = vld [vmem:[%s3 + $0x20] sm:$0xff]
  %v436 = vld [vmem:[%s3 + $0x28] sm:$0xff]
  %v437 = vld [vmem:[%s3 + $0x30] sm:$0xff]
  %v438 = vld [vmem:[%s3 + $0x38] sm:$0xff]
  %v439 = vadd.f32 %v401, %v431
  %v440 = vadd.f32 %v404, %v432
  %v441 = vadd.f32 %v409, %v433
  %v442 = vadd.f32 %v412, %v434
  %v443 = vadd.f32 %v417, %v435
  %v444 = vadd.f32 %v420, %v436
  %v445 = vadd.f32 %v425, %v437
  %v446 = vadd.f32 %v428, %v438
  %v447 = vld [vmem:[%s4] sm:$0x1]
  %v448 = vld [vmem:[%s5] sm:$0x1]
  %vm449 = vcmask 523264
  %v450 = vsel %vm449, %v439, 0.0
  %451 = vadd.xlane.f32.xlu0 %v450
  %v452 = vpop.xlane.xlu0 %451
  %v453 = vsel %vm449, %v440, 0.0
  %454 = vadd.xlane.f32.xlu0 %v453
  %v455 = vpop.xlane.xlu0 %454
  %v456 = vsel %vm449, %v441, 0.0
  %457 = vadd.xlane.f32.xlu0 %v456
  %v458 = vpop.xlane.xlu0 %457
  %v459 = vsel %vm449, %v442, 0.0
  %460 = vadd.xlane.f32.xlu0 %v459
  %v461 = vpop.xlane.xlu0 %460
  %v462 = vsel %vm449, %v443, 0.0
  %463 = vadd.xlane.f32.xlu0 %v462
  %v464 = vpop.xlane.xlu0 %463
  %v465 = vsel %vm449, %v444, 0.0
  %466 = vadd.xlane.f32.xlu0 %v465
  %v467 = vpop.xlane.xlu0 %466
  %v468 = vsel %vm449, %v445, 0.0
  %469 = vadd.xlane.f32.xlu0 %v468
  %v470 = vpop.xlane.xlu0 %469
  %v471 = vsel %vm449, %v446, 0.0
  %472 = vadd.xlane.f32.xlu0 %v471
  %v473 = vpop.xlane.xlu0 %472
  %v474 = vrcp.pop 64.0
  %v475 = vmul.f32 %v452, %v474
  %v476 = vmul.f32 %v455, %v474
  %v477 = vmul.f32 %v458, %v474
  %v478 = vmul.f32 %v461, %v474
  %v479 = vmul.f32 %v464, %v474
  %v480 = vmul.f32 %v467, %v474
  %v481 = vmul.f32 %v470, %v474
  %v482 = vmul.f32 %v473, %v474
  %v483 = vsub.f32 %v439, %v475
  %v484 = vsub.f32 %v440, %v476
  %v485 = vsub.f32 %v441, %v477
  %v486 = vsub.f32 %v442, %v478
  %v487 = vsub.f32 %v443, %v479
  %v488 = vsub.f32 %v444, %v480
  %v489 = vsub.f32 %v445, %v481
  %v490 = vsub.f32 %v446, %v482
  %v491 = vmul.f32 %v483, %v483
  %v492 = vmul.f32 %v484, %v484
  %v493 = vmul.f32 %v485, %v485
  %v494 = vmul.f32 %v486, %v486
  %v495 = vmul.f32 %v487, %v487
  %v496 = vmul.f32 %v488, %v488
  %v497 = vmul.f32 %v489, %v489
  %v498 = vmul.f32 %v490, %v490
  %v499 = vsel %vm449, %v491, 0.0
  %500 = vadd.xlane.f32.xlu0 %v499
  %v501 = vpop.xlane.xlu0 %500
  %v502 = vsel %vm449, %v492, 0.0
  %503 = vadd.xlane.f32.xlu0 %v502
  %v504 = vpop.xlane.xlu0 %503
  %v505 = vsel %vm449, %v493, 0.0
  %506 = vadd.xlane.f32.xlu0 %v505
  %v507 = vpop.xlane.xlu0 %506
  %v508 = vsel %vm449, %v494, 0.0
  %509 = vadd.xlane.f32.xlu0 %v508
  %v510 = vpop.xlane.xlu0 %509
  %v511 = vsel %vm449, %v495, 0.0
  %512 = vadd.xlane.f32.xlu0 %v511
  %v513 = vpop.xlane.xlu0 %512
  %v514 = vsel %vm449, %v496, 0.0
  %515 = vadd.xlane.f32.xlu0 %v514
  %v516 = vpop.xlane.xlu0 %515
  %v517 = vsel %vm449, %v497, 0.0
  %518 = vadd.xlane.f32.xlu0 %v517
  %v519 = vpop.xlane.xlu0 %518
  %v520 = vsel %vm449, %v498, 0.0
  %521 = vadd.xlane.f32.xlu0 %v520
  %v522 = vpop.xlane.xlu0 %521
  %v523 = vmul.f32 %v501, %v474
  %v524 = vmul.f32 %v504, %v474
  %v525 = vmul.f32 %v507, %v474
  %v526 = vmul.f32 %v510, %v474
  %v527 = vmul.f32 %v513, %v474
  %v528 = vmul.f32 %v516, %v474
  %v529 = vmul.f32 %v519, %v474
  %v530 = vmul.f32 %v522, %v474
  %v531 = vadd.f32 %v523, 1e-06
  %v532 = vadd.f32 %v524, 1e-06
  %v533 = vadd.f32 %v525, 1e-06
  %v534 = vadd.f32 %v526, 1e-06
  %v535 = vadd.f32 %v527, 1e-06
  %v536 = vadd.f32 %v528, 1e-06
  %v537 = vadd.f32 %v529, 1e-06
  %v538 = vadd.f32 %v530, 1e-06
  %v539 = vrsqrt.pop %v531
  %v540 = vrsqrt.pop %v532
  %v541 = vrsqrt.pop %v533
  %v542 = vrsqrt.pop %v534
  %v543 = vrsqrt.pop %v535
  %v544 = vrsqrt.pop %v536
  %v545 = vrsqrt.pop %v537
  %v546 = vrsqrt.pop %v538
  %v547 = vmul.f32 %v483, %v539
  %v548 = vmul.f32 %v484, %v540
  %v549 = vmul.f32 %v485, %v541
  %v550 = vmul.f32 %v486, %v542
  %v551 = vmul.f32 %v487, %v543
  %v552 = vmul.f32 %v488, %v544
  %v553 = vmul.f32 %v489, %v545
  %v554 = vmul.f32 %v490, %v546
  %v556 = vlaneseq
  %v557 = vshrl.u32 %v556, 7
  %v558 = vsub.s32 0, %v557
  %v559 = vrot.slane %v447, %v558
  %v561 = vmul.f32 %v547, %v559
  %v562 = vmul.f32 %v548, %v559
  %v563 = vmul.f32 %v549, %v559
  %v564 = vmul.f32 %v550, %v559
  %v565 = vmul.f32 %v551, %v559
  %v566 = vmul.f32 %v552, %v559
  %v567 = vmul.f32 %v553, %v559
  %v568 = vmul.f32 %v554, %v559
  %v570 = vlaneseq
  %v571 = vshrl.u32 %v570, 7
  %v572 = vsub.s32 0, %v571
  %v573 = vrot.slane %v448, %v572
  %v575 = vadd.f32 %v561, %v573
  %v576 = vadd.f32 %v562, %v573
  %v577 = vadd.f32 %v563, %v573
  %v578 = vadd.f32 %v564, %v573
  %v579 = vadd.f32 %v565, %v573
  %v580 = vadd.f32 %v566, %v573
  %v581 = vadd.f32 %v567, %v573
  %v582 = vadd.f32 %v568, %v573
  %v583 = vpack.c.bf16 %v576, %v575
  %v584 = vpack.c.bf16 %v578, %v577
  %v585 = vpack.c.bf16 %v580, %v579
  %v586 = vpack.c.bf16 %v582, %v581
  %v587 = vld [vmem:[%s6] sm:$0xff]
  %v588 = vld [vmem:[%s6 + $0x8] sm:$0xff]
  %v589 = vld [vmem:[%s6 + $0x10] sm:$0xff]
  %v590 = vld [vmem:[%s6 + $0x18] sm:$0xff]
  %v591 = vld [vmem:[%s6 + $0x20] sm:$0xff]
  %v592 = vld [vmem:[%s6 + $0x28] sm:$0xff]
  %v593 = vld [vmem:[%s6 + $0x30] sm:$0xff]
  %v594 = vld [vmem:[%s6 + $0x38] sm:$0xff]
  %v595 = vld [vmem:[%s7] sm:$0x3]
  %v597 = vlaneseq
  %v598 = vshrl.u32 %v597, 7
  %v599 = vsub.s32 0, %v598
  %v600 = vrot.slane %v595, %v599
  %v601 = vlaneseq
  %v602 = vshrl.u32 %v601, 7
  %v603 = vsub.s32 1, %v602
  %v604 = vrot.slane %v595, %v603
  %v615 = vunpack.c.l.b16 %v587
  %v616 = vunpack.c.h.b16 %v587
  %v617 = vunpack.c.l.b16 %v588
  %v618 = vunpack.c.h.b16 %v588
  %v619 = vunpack.c.l.b16 %v589
  %v620 = vunpack.c.h.b16 %v589
  %v621 = vunpack.c.l.b16 %v590
  %v622 = vunpack.c.h.b16 %v590
  %v623 = vunpack.c.l.b16 %v591
  %v624 = vunpack.c.h.b16 %v591
  %v625 = vunpack.c.l.b16 %v592
  %v626 = vunpack.c.h.b16 %v592
  %v627 = vunpack.c.l.b16 %v593
  %v628 = vunpack.c.h.b16 %v593
  %v629 = vunpack.c.l.b16 %v594
  %v630 = vunpack.c.h.b16 %v594
  %v631 = vpack.c.b16 %v617, %v615
  %v632 = vpack.c.b16 %v618, %v616
  %v633 = vpack.c.b16 %v621, %v619
  %v634 = vpack.c.b16 %v622, %v620
  %v635 = vpack.c.b16 %v625, %v623
  %v636 = vpack.c.b16 %v626, %v624
  %v637 = vpack.c.b16 %v629, %v627
  %v638 = vpack.c.b16 %v630, %v628
  %v648 = vsel %vm449, %v583, 0
  %v651 = vsel %vm449, %v584, 0
  %v654 = vsel %vm449, %v585, 0
  %v657 = vsel %vm449, %v586, 0
  %659 = vmatprep.subr.bf16.mxu0 %v632
  %660 = vmatpush1.bf16.msra.mxu0 %v631
  %661 = vmatprep.subr.bf16.mxu0 %v634
  %662 = vmatpush1.bf16.msra.mxu0 %v633
  %663 = vmatprep.subr.bf16.mxu0 %v636
  %664 = vmatpush1.bf16.msra.mxu0 %v635
  %665 = vmatprep.subr.bf16.mxu0 %v638
  %666 = vmatpush1.bf16.msra.mxu0 %v637
  %667 = vmatprep.subr.bf16.mxu0 0
  %668 = vmatpush1.bf16.msra.mxu0 0
  %669 = vmatprep.subr.bf16.mxu0 0
  %670 = vmatpush1.bf16.msra.mxu0 0
  %671 = vmatprep.subr.bf16.mxu0 0
  %672 = vmatpush1.bf16.msra.mxu0 0
  %673 = vmatprep.subr.bf16.mxu0 0
  %674 = vmatpush1.bf16.msra.mxu0 0
  %675 = vmatprep.subr.bf16.mxu0 0
  %676 = vmatpush1.bf16.msra.mxu0 0
  %677 = vmatprep.subr.bf16.mxu0 0
  %678 = vmatpush1.bf16.msra.mxu0 0
  %679 = vmatprep.subr.bf16.mxu0 0
  %680 = vmatpush1.bf16.msra.mxu0 0
  %681 = vmatprep.subr.bf16.mxu0 0
  %682 = vmatpush1.bf16.msra.mxu0 0
  %683 = vmatprep.subr.bf16.mxu0 0
  %684 = vmatpush1.bf16.msra.mxu0 0
  %685 = vmatprep.subr.bf16.mxu0 0
  %686 = vmatpush1.bf16.msra.mxu0 0
  %687 = vmatprep.subr.bf16.mxu0 0
  %688 = vmatpush1.bf16.msra.mxu0 0
  %689 = vmatprep.subr.bf16.mxu0 0
  %690 = vmatpush1.bf16.msra.mxu0 0
  %691 = vmatprep.mubr.bf16.mxu0 0
  %692 = vmatmul.mubr.bf16.gmra.mrb[0].mxu0 %v648
  %v693 = vpop.f32.mrb[0].mxu0
  %v694 = vadd.f32 %v600, %v693
  %v695 = vpop.f32.mrb[0].mxu0
  %v696 = vadd.f32 %v604, %v695
  %v697 = vpop.f32.mrb[0].mxu0
  %v698 = vadd.f32 %v600, %v697
  %v699 = vpop.f32.mrb[0].mxu0
  %v700 = vadd.f32 %v604, %v699
  %701 = vmatprep.mubr.bf16.mxu0 0
  %702 = vmatmul.mubr.bf16.gmra.mrb[0].mxu0 %v651
  %v703 = vpop.f32.mrb[0].mxu0
  %v704 = vadd.f32 %v600, %v703
  %v705 = vpop.f32.mrb[0].mxu0
  %v706 = vadd.f32 %v604, %v705
  %v707 = vpop.f32.mrb[0].mxu0
  %v708 = vadd.f32 %v600, %v707
  %v709 = vpop.f32.mrb[0].mxu0
  %v710 = vadd.f32 %v604, %v709
  %711 = vmatprep.mubr.bf16.mxu0 0
  %712 = vmatmul.mubr.bf16.gmra.mrb[0].mxu0 %v654
  %v713 = vpop.f32.mrb[0].mxu0
  %v714 = vadd.f32 %v600, %v713
  %v715 = vpop.f32.mrb[0].mxu0
  %v716 = vadd.f32 %v604, %v715
  %v717 = vpop.f32.mrb[0].mxu0
  %v718 = vadd.f32 %v600, %v717
  %v719 = vpop.f32.mrb[0].mxu0
  %v720 = vadd.f32 %v604, %v719
  %721 = vmatprep.mubr.bf16.mxu0 0
  %722 = vmatmul.mubr.bf16.gmra.mrb[0].mxu0 %v657
  %v723 = vpop.f32.mrb[0].mxu0
  %v724 = vadd.f32 %v600, %v723
  %v725 = vpop.f32.mrb[0].mxu0
  %v726 = vadd.f32 %v604, %v725
  %v727 = vpop.f32.mrb[0].mxu0
  %v728 = vadd.f32 %v600, %v727
  %v729 = vpop.f32.mrb[0].mxu0
  %v730 = vadd.f32 %v604, %v729
  %731 = vdwg.mxu0
  %v732 = vpack.c.bf16 %v698, %v694
  %v733 = vpack.c.bf16 %v708, %v704
  %v734 = vpack.c.bf16 %v718, %v714
  %v735 = vpack.c.bf16 %v728, %v724
  %740 = vrot.lane.b32.xlu0 %v732, 64
  %v741 = vpop.permute.xlu0 %740
  %742 = vrot.lane.b32.xlu0 %v733, 64
  %v743 = vpop.permute.xlu0 %742
  %744 = vrot.lane.b32.xlu0 %v734, 64
  %v745 = vpop.permute.xlu0 %744
  %746 = vrot.lane.b32.xlu0 %v735, 64
  %v747 = vpop.permute.xlu0 %746
  %vm748 = vcmask 130048
  %v750 = vsel %vm748, %v732, 0
  %v753 = vsel %vm748, %v733, 0
  %v756 = vsel %vm748, %v734, 0
  %v759 = vsel %vm748, %v735, 0
  %v762 = vsel %vm748, %v741, 0
  %v765 = vsel %vm748, %v743, 0
  %v768 = vsel %vm748, %v745, 0
  %v771 = vsel %vm748, %v747, 0
  %773 = vmatprep.subr.bf16.mxu0 0
  %774 = vmatpush1.bf16.xpose.msra.mxu0 %v762
  %775 = vmatprep.subr.bf16.mxu0 0
  %776 = vmatpush1.bf16.xpose.msra.mxu0 %v765
  %777 = vmatprep.subr.bf16.mxu0 0
  %778 = vmatpush1.bf16.xpose.msra.mxu0 %v768
  %779 = vmatprep.subr.bf16.mxu0 0
  %780 = vmatpush1.bf16.xpose.msra.mxu0 %v771
  %781 = vmatprep.subr.bf16.mxu0 0
  %782 = vmatpush1.bf16.xpose.msra.mxu0 0
  %783 = vmatprep.subr.bf16.mxu0 0
  %784 = vmatpush1.bf16.xpose.msra.mxu0 0
  %785 = vmatprep.subr.bf16.mxu0 0
  %786 = vmatpush1.bf16.xpose.msra.mxu0 0
  %787 = vmatprep.subr.bf16.mxu0 0
  %788 = vmatpush1.bf16.xpose.msra.mxu0 0
  %789 = vmatprep.subr.bf16.mxu0 0
  %790 = vmatpush1.bf16.xpose.msra.mxu0 0
  %791 = vmatprep.subr.bf16.mxu0 0
  %792 = vmatpush1.bf16.xpose.msra.mxu0 0
  %793 = vmatprep.subr.bf16.mxu0 0
  %794 = vmatpush1.bf16.xpose.msra.mxu0 0
  %795 = vmatprep.subr.bf16.mxu0 0
  %796 = vmatpush1.bf16.xpose.msra.mxu0 0
  %797 = vmatprep.subr.bf16.mxu0 0
  %798 = vmatpush1.bf16.xpose.msra.mxu0 0
  %799 = vmatprep.subr.bf16.mxu0 0
  %800 = vmatpush1.bf16.xpose.msra.mxu0 0
  %801 = vmatprep.subr.bf16.mxu0 0
  %802 = vmatpush1.bf16.xpose.msra.mxu0 0
  %803 = vmatprep.subr.bf16.mxu0 0
  %804 = vmatpush1.bf16.xpose.msra.mxu0 0
  %805 = vmatprep.mubr.bf16.mxu0 0
  %806 = vmatmul.mubr.bf16.gmra.mrb[0].mxu0 %v750
  %v807 = vpop.f32.mrb[0].mxu0
  %v808 = vadd.f32 0.0, %v807
  %v809 = vpop.f32.mrb[0].mxu0
  %v810 = vpop.f32.mrb[0].mxu0
  %v811 = vadd.f32 0.0, %v810
  %v812 = vpop.f32.mrb[0].mxu0
  %813 = vmatprep.mubr.bf16.mxu0 0
  %814 = vmatmul.mubr.bf16.gmra.mrb[0].mxu0 %v753
  %v815 = vpop.f32.mrb[0].mxu0
  %v816 = vadd.f32 0.0, %v815
  %v817 = vpop.f32.mrb[0].mxu0
  %v818 = vpop.f32.mrb[0].mxu0
  %v819 = vadd.f32 0.0, %v818
  %v820 = vpop.f32.mrb[0].mxu0
  %821 = vmatprep.mubr.bf16.mxu0 0
  %822 = vmatmul.mubr.bf16.gmra.mrb[0].mxu0 %v756
  %v823 = vpop.f32.mrb[0].mxu0
  %v824 = vadd.f32 0.0, %v823
  %v825 = vpop.f32.mrb[0].mxu0
  %v826 = vpop.f32.mrb[0].mxu0
  %v827 = vadd.f32 0.0, %v826
  %v828 = vpop.f32.mrb[0].mxu0
  %829 = vmatprep.mubr.bf16.mxu0 0
  %830 = vmatmul.mubr.bf16.gmra.mrb[0].mxu0 %v759
  %v831 = vpop.f32.mrb[0].mxu0
  %v832 = vadd.f32 0.0, %v831
  %v833 = vpop.f32.mrb[0].mxu0
  %v834 = vpop.f32.mrb[0].mxu0
  %v835 = vadd.f32 0.0, %v834
  %v836 = vpop.f32.mrb[0].mxu0
  %837 = vdwg.mxu0
  %v838 = vmul.f32 %v808, 0.25
  %v839 = vmul.f32 %v811, 0.25
  %v840 = vmul.f32 %v816, 0.25
  %v841 = vmul.f32 %v819, 0.25
  %v842 = vmul.f32 %v824, 0.25
  %v843 = vmul.f32 %v827, 0.25
  %v844 = vmul.f32 %v832, 0.25
  %v845 = vmul.f32 %v835, 0.25
  %v846 = vsel %vm449, %v838, -inf
  %847 = vmax.xlane.f32.xlu0 %v846
  %v848 = vpop.xlane.xlu0 %847
  %v849 = vsel %vm449, %v839, -inf
  %850 = vmax.xlane.f32.xlu0 %v849
  %v851 = vpop.xlane.xlu0 %850
  %v852 = vsel %vm449, %v840, -inf
  %853 = vmax.xlane.f32.xlu0 %v852
  %v854 = vpop.xlane.xlu0 %853
  %v855 = vsel %vm449, %v841, -inf
  %856 = vmax.xlane.f32.xlu0 %v855
  %v857 = vpop.xlane.xlu0 %856
  %v858 = vsel %vm449, %v842, -inf
  %859 = vmax.xlane.f32.xlu0 %v858
  %v860 = vpop.xlane.xlu0 %859
  %v861 = vsel %vm449, %v843, -inf
  %862 = vmax.xlane.f32.xlu0 %v861
  %v863 = vpop.xlane.xlu0 %862
  %v864 = vsel %vm449, %v844, -inf
  %865 = vmax.xlane.f32.xlu0 %v864
  %v866 = vpop.xlane.xlu0 %865
  %v867 = vsel %vm449, %v845, -inf
  %868 = vmax.xlane.f32.xlu0 %v867
  %v869 = vpop.xlane.xlu0 %868
  %v870 = vsub.f32 %v838, %v848
  %v871 = vsub.f32 %v839, %v851
  %v872 = vsub.f32 %v840, %v854
  %v873 = vsub.f32 %v841, %v857
  %v874 = vsub.f32 %v842, %v860
  %v875 = vsub.f32 %v843, %v863
  %v876 = vsub.f32 %v844, %v866
  %v877 = vsub.f32 %v845, %v869
  %v878 = vmul.f32 %v870, 1.442695
  %v879 = vpow.pop %v878
  %v880 = vmul.f32 %v871, 1.442695
  %v881 = vpow.pop %v880
  %v882 = vmul.f32 %v872, 1.442695
  %v883 = vpow.pop %v882
  %v884 = vmul.f32 %v873, 1.442695
  %v885 = vpow.pop %v884
  %v886 = vmul.f32 %v874, 1.442695
  %v887 = vpow.pop %v886
  %v888 = vmul.f32 %v875, 1.442695
  %v889 = vpow.pop %v888
  %v890 = vmul.f32 %v876, 1.442695
  %v891 = vpow.pop %v890
  %v892 = vmul.f32 %v877, 1.442695
  %v893 = vpow.pop %v892
  %v894 = vsel %vm449, %v879, 0.0
  %895 = vadd.xlane.f32.xlu0 %v894
  %v896 = vpop.xlane.xlu0 %895
  %v897 = vsel %vm449, %v881, 0.0
  %898 = vadd.xlane.f32.xlu0 %v897
  %v899 = vpop.xlane.xlu0 %898
  %v900 = vsel %vm449, %v883, 0.0
  %901 = vadd.xlane.f32.xlu0 %v900
  %v902 = vpop.xlane.xlu0 %901
  %v903 = vsel %vm449, %v885, 0.0
  %904 = vadd.xlane.f32.xlu0 %v903
  %v905 = vpop.xlane.xlu0 %904
  %v906 = vsel %vm449, %v887, 0.0
  %907 = vadd.xlane.f32.xlu0 %v906
  %v908 = vpop.xlane.xlu0 %907
  %v909 = vsel %vm449, %v889, 0.0
  %910 = vadd.xlane.f32.xlu0 %v909
  %v911 = vpop.xlane.xlu0 %910
  %v912 = vsel %vm449, %v891, 0.0
  %913 = vadd.xlane.f32.xlu0 %v912
  %v914 = vpop.xlane.xlu0 %913
  %v915 = vsel %vm449, %v893, 0.0
  %916 = vadd.xlane.f32.xlu0 %v915
  %v917 = vpop.xlane.xlu0 %916
  %v918 = vrcp.pop %v896
  %v919 = vrcp.pop %v899
  %v920 = vrcp.pop %v902
  %v921 = vrcp.pop %v905
  %v922 = vrcp.pop %v908
  %v923 = vrcp.pop %v911
  %v924 = vrcp.pop %v914
  %v925 = vrcp.pop %v917
  %v926 = vmul.f32 %v879, %v918
  %v927 = vmul.f32 %v881, %v919
  %v928 = vmul.f32 %v883, %v920
  %v929 = vmul.f32 %v885, %v921
  %v930 = vmul.f32 %v887, %v922
  %v931 = vmul.f32 %v889, %v923
  %v932 = vmul.f32 %v891, %v924
  %v933 = vmul.f32 %v893, %v925
  %v934 = vpack.c.bf16 %v927, %v926
  %v935 = vpack.c.bf16 %v929, %v928
  %v936 = vpack.c.bf16 %v931, %v930
  %v937 = vpack.c.bf16 %v933, %v932
  %v938 = vpack.c.bf16 %v700, %v696
  %v939 = vpack.c.bf16 %v710, %v706
  %v940 = vpack.c.bf16 %v720, %v716
  %v941 = vpack.c.bf16 %v730, %v726
  %v943 = vsel %vm449, %v934, 0
  %v946 = vsel %vm449, %v935, 0
  %v949 = vsel %vm449, %v936, 0
  %v952 = vsel %vm449, %v937, 0
  %954 = vmatprep.subr.bf16.mxu0 0
  %955 = vmatpush1.bf16.msra.mxu0 %v938
  %956 = vmatprep.subr.bf16.mxu0 0
  %957 = vmatpush1.bf16.msra.mxu0 %v939
  %958 = vmatprep.subr.bf16.mxu0 0
  %959 = vmatpush1.bf16.msra.mxu0 %v940
  %960 = vmatprep.subr.bf16.mxu0 0
  %961 = vmatpush1.bf16.msra.mxu0 %v941
  %962 = vmatprep.subr.bf16.mxu0 0
  %963 = vmatpush1.bf16.msra.mxu0 0
  %964 = vmatprep.subr.bf16.mxu0 0
  %965 = vmatpush1.bf16.msra.mxu0 0
  %966 = vmatprep.subr.bf16.mxu0 0
  %967 = vmatpush1.bf16.msra.mxu0 0
  %968 = vmatprep.subr.bf16.mxu0 0
  %969 = vmatpush1.bf16.msra.mxu0 0
  %970 = vmatprep.subr.bf16.mxu0 0
  %971 = vmatpush1.bf16.msra.mxu0 0
  %972 = vmatprep.subr.bf16.mxu0 0
  %973 = vmatpush1.bf16.msra.mxu0 0
  %974 = vmatprep.subr.bf16.mxu0 0
  %975 = vmatpush1.bf16.msra.mxu0 0
  %976 = vmatprep.subr.bf16.mxu0 0
  %977 = vmatpush1.bf16.msra.mxu0 0
  %978 = vmatprep.subr.bf16.mxu0 0
  %979 = vmatpush1.bf16.msra.mxu0 0
  %980 = vmatprep.subr.bf16.mxu0 0
  %981 = vmatpush1.bf16.msra.mxu0 0
  %982 = vmatprep.subr.bf16.mxu0 0
  %983 = vmatpush1.bf16.msra.mxu0 0
  %984 = vmatprep.subr.bf16.mxu0 0
  %985 = vmatpush1.bf16.msra.mxu0 0
  %986 = vmatprep.mubr.bf16.mxu0 0
  %987 = vmatmul.mubr.bf16.gmra.mrb[0].mxu0 %v943
  %v988 = vpop.f32.mrb[0].mxu0
  %v989 = vadd.f32 0.0, %v988
  %v990 = vpop.f32.mrb[0].mxu0
  %v991 = vpop.f32.mrb[0].mxu0
  %v992 = vadd.f32 0.0, %v991
  %v993 = vpop.f32.mrb[0].mxu0
  %994 = vmatprep.mubr.bf16.mxu0 0
  %995 = vmatmul.mubr.bf16.gmra.mrb[0].mxu0 %v946
  %v996 = vpop.f32.mrb[0].mxu0
  %v997 = vadd.f32 0.0, %v996
  %v998 = vpop.f32.mrb[0].mxu0
  %v999 = vpop.f32.mrb[0].mxu0
  %v1000 = vadd.f32 0.0, %v999
  %v1001 = vpop.f32.mrb[0].mxu0
  %1002 = vmatprep.mubr.bf16.mxu0 0
  %1003 = vmatmul.mubr.bf16.gmra.mrb[0].mxu0 %v949
  %v1004 = vpop.f32.mrb[0].mxu0
  %v1005 = vadd.f32 0.0, %v1004
  %v1006 = vpop.f32.mrb[0].mxu0
  %v1007 = vpop.f32.mrb[0].mxu0
  %v1008 = vadd.f32 0.0, %v1007
  %v1009 = vpop.f32.mrb[0].mxu0
  %1010 = vmatprep.mubr.bf16.mxu0 0
  %1011 = vmatmul.mubr.bf16.gmra.mrb[0].mxu0 %v952
  %v1012 = vpop.f32.mrb[0].mxu0
  %v1013 = vadd.f32 0.0, %v1012
  %v1014 = vpop.f32.mrb[0].mxu0
  %v1015 = vpop.f32.mrb[0].mxu0
  %v1016 = vadd.f32 0.0, %v1015
  %v1017 = vpop.f32.mrb[0].mxu0
  %1018 = vdwg.mxu0
  %1019 = vrot.lane.b32.xlu0 %v732, 112
  %v1020 = vpop.permute.xlu0 %1019
  %1021 = vrot.lane.b32.xlu0 %v733, 112
  %v1022 = vpop.permute.xlu0 %1021
  %1023 = vrot.lane.b32.xlu0 %v734, 112
  %v1024 = vpop.permute.xlu0 %1023
  %1025 = vrot.lane.b32.xlu0 %v735, 112
  %v1026 = vpop.permute.xlu0 %1025
  %1027 = vrot.lane.b32.xlu0 %v732, 48
  %v1028 = vpop.permute.xlu0 %1027
  %1029 = vrot.lane.b32.xlu0 %v733, 48
  %v1030 = vpop.permute.xlu0 %1029
  %1031 = vrot.lane.b32.xlu0 %v734, 48
  %v1032 = vpop.permute.xlu0 %1031
  %1033 = vrot.lane.b32.xlu0 %v735, 48
  %v1034 = vpop.permute.xlu0 %1033
  %v1036 = vsel %vm748, %v1020, 0
  %v1039 = vsel %vm748, %v1022, 0
  %v1042 = vsel %vm748, %v1024, 0
  %v1045 = vsel %vm748, %v1026, 0
  %v1048 = vsel %vm748, %v1028, 0
  %v1051 = vsel %vm748, %v1030, 0
  %v1054 = vsel %vm748, %v1032, 0
  %v1057 = vsel %vm748, %v1034, 0
  %1059 = vmatprep.subr.bf16.mxu0 0
  %1060 = vmatpush1.bf16.xpose.msra.mxu0 %v1048
  %1061 = vmatprep.subr.bf16.mxu0 0
  %1062 = vmatpush1.bf16.xpose.msra.mxu0 %v1051
  %1063 = vmatprep.subr.bf16.mxu0 0
  %1064 = vmatpush1.bf16.xpose.msra.mxu0 %v1054
  %1065 = vmatprep.subr.bf16.mxu0 0
  %1066 = vmatpush1.bf16.xpose.msra.mxu0 %v1057
  %1067 = vmatprep.subr.bf16.mxu0 0
  %1068 = vmatpush1.bf16.xpose.msra.mxu0 0
  %1069 = vmatprep.subr.bf16.mxu0 0
  %1070 = vmatpush1.bf16.xpose.msra.mxu0 0
  %1071 = vmatprep.subr.bf16.mxu0 0
  %1072 = vmatpush1.bf16.xpose.msra.mxu0 0
  %1073 = vmatprep.subr.bf16.mxu0 0
  %1074 = vmatpush1.bf16.xpose.msra.mxu0 0
  %1075 = vmatprep.subr.bf16.mxu0 0
  %1076 = vmatpush1.bf16.xpose.msra.mxu0 0
  %1077 = vmatprep.subr.bf16.mxu0 0
  %1078 = vmatpush1.bf16.xpose.msra.mxu0 0
  %1079 = vmatprep.subr.bf16.mxu0 0
  %1080 = vmatpush1.bf16.xpose.msra.mxu0 0
  %1081 = vmatprep.subr.bf16.mxu0 0
  %1082 = vmatpush1.bf16.xpose.msra.mxu0 0
  %1083 = vmatprep.subr.bf16.mxu0 0
  %1084 = vmatpush1.bf16.xpose.msra.mxu0 0
  %1085 = vmatprep.subr.bf16.mxu0 0
  %1086 = vmatpush1.bf16.xpose.msra.mxu0 0
  %1087 = vmatprep.subr.bf16.mxu0 0
  %1088 = vmatpush1.bf16.xpose.msra.mxu0 0
  %1089 = vmatprep.subr.bf16.mxu0 0
  %1090 = vmatpush1.bf16.xpose.msra.mxu0 0
  %1091 = vmatprep.mubr.bf16.mxu0 0
  %1092 = vmatmul.mubr.bf16.gmra.mrb[0].mxu0 %v1036
  %v1093 = vpop.f32.mrb[0].mxu0
  %v1094 = vadd.f32 0.0, %v1093
  %v1095 = vpop.f32.mrb[0].mxu0
  %v1096 = vpop.f32.mrb[0].mxu0
  %v1097 = vadd.f32 0.0, %v1096
  %v1098 = vpop.f32.mrb[0].mxu0
  %1099 = vmatprep.mubr.bf16.mxu0 0
  %1100 = vmatmul.mubr.bf16.gmra.mrb[0].mxu0 %v1039
  %v1101 = vpop.f32.mrb[0].mxu0
  %v1102 = vadd.f32 0.0, %v1101
  %v1103 = vpop.f32.mrb[0].mxu0
  %v1104 = vpop.f32.mrb[0].mxu0
  %v1105 = vadd.f32 0.0, %v1104
  %v1106 = vpop.f32.mrb[0].mxu0
  %1107 = vmatprep.mubr.bf16.mxu0 0
  %1108 = vmatmul.mubr.bf16.gmra.mrb[0].mxu0 %v1042
  %v1109 = vpop.f32.mrb[0].mxu0
  %v1110 = vadd.f32 0.0, %v1109
  %v1111 = vpop.f32.mrb[0].mxu0
  %v1112 = vpop.f32.mrb[0].mxu0
  %v1113 = vadd.f32 0.0, %v1112
  %v1114 = vpop.f32.mrb[0].mxu0
  %1115 = vmatprep.mubr.bf16.mxu0 0
  %1116 = vmatmul.mubr.bf16.gmra.mrb[0].mxu0 %v1045
  %v1117 = vpop.f32.mrb[0].mxu0
  %v1118 = vadd.f32 0.0, %v1117
  %v1119 = vpop.f32.mrb[0].mxu0
  %v1120 = vpop.f32.mrb[0].mxu0
  %v1121 = vadd.f32 0.0, %v1120
  %v1122 = vpop.f32.mrb[0].mxu0
  %1123 = vdwg.mxu0
  %v1124 = vmul.f32 %v1094, 0.25
  %v1125 = vmul.f32 %v1097, 0.25
  %v1126 = vmul.f32 %v1102, 0.25
  %v1127 = vmul.f32 %v1105, 0.25
  %v1128 = vmul.f32 %v1110, 0.25
  %v1129 = vmul.f32 %v1113, 0.25
  %v1130 = vmul.f32 %v1118, 0.25
  %v1131 = vmul.f32 %v1121, 0.25
  %v1132 = vsel %vm449, %v1124, -inf
  %1133 = vmax.xlane.f32.xlu0 %v1132
  %v1134 = vpop.xlane.xlu0 %1133
  %v1135 = vsel %vm449, %v1125, -inf
  %1136 = vmax.xlane.f32.xlu0 %v1135
  %v1137 = vpop.xlane.xlu0 %1136
  %v1138 = vsel %vm449, %v1126, -inf
  %1139 = vmax.xlane.f32.xlu0 %v1138
  %v1140 = vpop.xlane.xlu0 %1139
  %v1141 = vsel %vm449, %v1127, -inf
  %1142 = vmax.xlane.f32.xlu0 %v1141
  %v1143 = vpop.xlane.xlu0 %1142
  %v1144 = vsel %vm449, %v1128, -inf
  %1145 = vmax.xlane.f32.xlu0 %v1144
  %v1146 = vpop.xlane.xlu0 %1145
  %v1147 = vsel %vm449, %v1129, -inf
  %1148 = vmax.xlane.f32.xlu0 %v1147
  %v1149 = vpop.xlane.xlu0 %1148
  %v1150 = vsel %vm449, %v1130, -inf
  %1151 = vmax.xlane.f32.xlu0 %v1150
  %v1152 = vpop.xlane.xlu0 %1151
  %v1153 = vsel %vm449, %v1131, -inf
  %1154 = vmax.xlane.f32.xlu0 %v1153
  %v1155 = vpop.xlane.xlu0 %1154
  %v1156 = vsub.f32 %v1124, %v1134
  %v1157 = vsub.f32 %v1125, %v1137
  %v1158 = vsub.f32 %v1126, %v1140
  %v1159 = vsub.f32 %v1127, %v1143
  %v1160 = vsub.f32 %v1128, %v1146
  %v1161 = vsub.f32 %v1129, %v1149
  %v1162 = vsub.f32 %v1130, %v1152
  %v1163 = vsub.f32 %v1131, %v1155
  %v1164 = vmul.f32 %v1156, 1.442695
  %v1165 = vpow.pop %v1164
  %v1166 = vmul.f32 %v1157, 1.442695
  %v1167 = vpow.pop %v1166
  %v1168 = vmul.f32 %v1158, 1.442695
  %v1169 = vpow.pop %v1168
  %v1170 = vmul.f32 %v1159, 1.442695
  %v1171 = vpow.pop %v1170
  %v1172 = vmul.f32 %v1160, 1.442695
  %v1173 = vpow.pop %v1172
  %v1174 = vmul.f32 %v1161, 1.442695
  %v1175 = vpow.pop %v1174
  %v1176 = vmul.f32 %v1162, 1.442695
  %v1177 = vpow.pop %v1176
  %v1178 = vmul.f32 %v1163, 1.442695
  %v1179 = vpow.pop %v1178
  %v1180 = vsel %vm449, %v1165, 0.0
  %1181 = vadd.xlane.f32.xlu0 %v1180
  %v1182 = vpop.xlane.xlu0 %1181
  %v1183 = vsel %vm449, %v1167, 0.0
  %1184 = vadd.xlane.f32.xlu0 %v1183
  %v1185 = vpop.xlane.xlu0 %1184
  %v1186 = vsel %vm449, %v1169, 0.0
  %1187 = vadd.xlane.f32.xlu0 %v1186
  %v1188 = vpop.xlane.xlu0 %1187
  %v1189 = vsel %vm449, %v1171, 0.0
  %1190 = vadd.xlane.f32.xlu0 %v1189
  %v1191 = vpop.xlane.xlu0 %1190
  %v1192 = vsel %vm449, %v1173, 0.0
  %1193 = vadd.xlane.f32.xlu0 %v1192
  %v1194 = vpop.xlane.xlu0 %1193
  %v1195 = vsel %vm449, %v1175, 0.0
  %1196 = vadd.xlane.f32.xlu0 %v1195
  %v1197 = vpop.xlane.xlu0 %1196
  %v1198 = vsel %vm449, %v1177, 0.0
  %1199 = vadd.xlane.f32.xlu0 %v1198
  %v1200 = vpop.xlane.xlu0 %1199
  %v1201 = vsel %vm449, %v1179, 0.0
  %1202 = vadd.xlane.f32.xlu0 %v1201
  %v1203 = vpop.xlane.xlu0 %1202
  %v1204 = vrcp.pop %v1182
  %v1205 = vrcp.pop %v1185
  %v1206 = vrcp.pop %v1188
  %v1207 = vrcp.pop %v1191
  %v1208 = vrcp.pop %v1194
  %v1209 = vrcp.pop %v1197
  %v1210 = vrcp.pop %v1200
  %v1211 = vrcp.pop %v1203
  %v1212 = vmul.f32 %v1165, %v1204
  %v1213 = vmul.f32 %v1167, %v1205
  %v1214 = vmul.f32 %v1169, %v1206
  %v1215 = vmul.f32 %v1171, %v1207
  %v1216 = vmul.f32 %v1173, %v1208
  %v1217 = vmul.f32 %v1175, %v1209
  %v1218 = vmul.f32 %v1177, %v1210
  %v1219 = vmul.f32 %v1179, %v1211
  %v1220 = vpack.c.bf16 %v1213, %v1212
  %v1221 = vpack.c.bf16 %v1215, %v1214
  %v1222 = vpack.c.bf16 %v1217, %v1216
  %v1223 = vpack.c.bf16 %v1219, %v1218
  %1228 = vrot.lane.b32.xlu0 %v938, 112
  %v1229 = vpop.permute.xlu0 %1228
  %1230 = vrot.lane.b32.xlu0 %v939, 112
  %v1231 = vpop.permute.xlu0 %1230
  %1232 = vrot.lane.b32.xlu0 %v940, 112
  %v1233 = vpop.permute.xlu0 %1232
  %1234 = vrot.lane.b32.xlu0 %v941, 112
  %v1235 = vpop.permute.xlu0 %1234
  %v1241 = vsel %vm449, %v1220, 0
  %v1244 = vsel %vm449, %v1221, 0
  %v1247 = vsel %vm449, %v1222, 0
  %v1250 = vsel %vm449, %v1223, 0
  %1252 = vmatprep.subr.bf16.mxu0 0
  %1253 = vmatpush1.bf16.msra.mxu0 %v1229
  %1254 = vmatprep.subr.bf16.mxu0 0
  %1255 = vmatpush1.bf16.msra.mxu0 %v1231
  %1256 = vmatprep.subr.bf16.mxu0 0
  %1257 = vmatpush1.bf16.msra.mxu0 %v1233
  %1258 = vmatprep.subr.bf16.mxu0 0
  %1259 = vmatpush1.bf16.msra.mxu0 %v1235
  %1260 = vmatprep.subr.bf16.mxu0 0
  %1261 = vmatpush1.bf16.msra.mxu0 0
  %1262 = vmatprep.subr.bf16.mxu0 0
  %1263 = vmatpush1.bf16.msra.mxu0 0
  %1264 = vmatprep.subr.bf16.mxu0 0
  %1265 = vmatpush1.bf16.msra.mxu0 0
  %1266 = vmatprep.subr.bf16.mxu0 0
  %1267 = vmatpush1.bf16.msra.mxu0 0
  %1268 = vmatprep.subr.bf16.mxu0 0
  %1269 = vmatpush1.bf16.msra.mxu0 0
  %1270 = vmatprep.subr.bf16.mxu0 0
  %1271 = vmatpush1.bf16.msra.mxu0 0
  %1272 = vmatprep.subr.bf16.mxu0 0
  %1273 = vmatpush1.bf16.msra.mxu0 0
  %1274 = vmatprep.subr.bf16.mxu0 0
  %1275 = vmatpush1.bf16.msra.mxu0 0
  %1276 = vmatprep.subr.bf16.mxu0 0
  %1277 = vmatpush1.bf16.msra.mxu0 0
  %1278 = vmatprep.subr.bf16.mxu0 0
  %1279 = vmatpush1.bf16.msra.mxu0 0
  %1280 = vmatprep.subr.bf16.mxu0 0
  %1281 = vmatpush1.bf16.msra.mxu0 0
  %1282 = vmatprep.subr.bf16.mxu0 0
  %1283 = vmatpush1.bf16.msra.mxu0 0
  %1284 = vmatprep.mubr.bf16.mxu0 0
  %1285 = vmatmul.mubr.bf16.gmra.mrb[0].mxu0 %v1241
  %v1286 = vpop.f32.mrb[0].mxu0
  %v1287 = vadd.f32 0.0, %v1286
  %v1288 = vpop.f32.mrb[0].mxu0
  %v1289 = vpop.f32.mrb[0].mxu0
  %v1290 = vadd.f32 0.0, %v1289
  %v1291 = vpop.f32.mrb[0].mxu0
  %1292 = vmatprep.mubr.bf16.mxu0 0
  %1293 = vmatmul.mubr.bf16.gmra.mrb[0].mxu0 %v1244
  %v1294 = vpop.f32.mrb[0].mxu0
  %v1295 = vadd.f32 0.0, %v1294
  %v1296 = vpop.f32.mrb[0].mxu0
  %v1297 = vpop.f32.mrb[0].mxu0
  %v1298 = vadd.f32 0.0, %v1297
  %v1299 = vpop.f32.mrb[0].mxu0
  %1300 = vmatprep.mubr.bf16.mxu0 0
  %1301 = vmatmul.mubr.bf16.gmra.mrb[0].mxu0 %v1247
  %v1302 = vpop.f32.mrb[0].mxu0
  %v1303 = vadd.f32 0.0, %v1302
  %v1304 = vpop.f32.mrb[0].mxu0
  %v1305 = vpop.f32.mrb[0].mxu0
  %v1306 = vadd.f32 0.0, %v1305
  %v1307 = vpop.f32.mrb[0].mxu0
  %1308 = vmatprep.mubr.bf16.mxu0 0
  %1309 = vmatmul.mubr.bf16.gmra.mrb[0].mxu0 %v1250
  %v1310 = vpop.f32.mrb[0].mxu0
  %v1311 = vadd.f32 0.0, %v1310
  %v1312 = vpop.f32.mrb[0].mxu0
  %v1313 = vpop.f32.mrb[0].mxu0
  %v1314 = vadd.f32 0.0, %v1313
  %v1315 = vpop.f32.mrb[0].mxu0
  %1316 = vdwg.mxu0
  %1317 = vrot.lane.b32.xlu0 %v732, 96
  %v1318 = vpop.permute.xlu0 %1317
  %1319 = vrot.lane.b32.xlu0 %v733, 96
  %v1320 = vpop.permute.xlu0 %1319
  %1321 = vrot.lane.b32.xlu0 %v734, 96
  %v1322 = vpop.permute.xlu0 %1321
  %1323 = vrot.lane.b32.xlu0 %v735, 96
  %v1324 = vpop.permute.xlu0 %1323
  %1325 = vrot.lane.b32.xlu0 %v732, 32
  %v1326 = vpop.permute.xlu0 %1325
  %1327 = vrot.lane.b32.xlu0 %v733, 32
  %v1328 = vpop.permute.xlu0 %1327
  %1329 = vrot.lane.b32.xlu0 %v734, 32
  %v1330 = vpop.permute.xlu0 %1329
  %1331 = vrot.lane.b32.xlu0 %v735, 32
  %v1332 = vpop.permute.xlu0 %1331
  %v1334 = vsel %vm748, %v1318, 0
  %v1337 = vsel %vm748, %v1320, 0
  %v1340 = vsel %vm748, %v1322, 0
  %v1343 = vsel %vm748, %v1324, 0
  %v1346 = vsel %vm748, %v1326, 0
  %v1349 = vsel %vm748, %v1328, 0
  %v1352 = vsel %vm748, %v1330, 0
  %v1355 = vsel %vm748, %v1332, 0
  %1357 = vmatprep.subr.bf16.mxu0 0
  %1358 = vmatpush1.bf16.xpose.msra.mxu0 %v1346
  %1359 = vmatprep.subr.bf16.mxu0 0
  %1360 = vmatpush1.bf16.xpose.msra.mxu0 %v1349
  %1361 = vmatprep.subr.bf16.mxu0 0
  %1362 = vmatpush1.bf16.xpose.msra.mxu0 %v1352
  %1363 = vmatprep.subr.bf16.mxu0 0
  %1364 = vmatpush1.bf16.xpose.msra.mxu0 %v1355
  %1365 = vmatprep.subr.bf16.mxu0 0
  %1366 = vmatpush1.bf16.xpose.msra.mxu0 0
  %1367 = vmatprep.subr.bf16.mxu0 0
  %1368 = vmatpush1.bf16.xpose.msra.mxu0 0
  %1369 = vmatprep.subr.bf16.mxu0 0
  %1370 = vmatpush1.bf16.xpose.msra.mxu0 0
  %1371 = vmatprep.subr.bf16.mxu0 0
  %1372 = vmatpush1.bf16.xpose.msra.mxu0 0
  %1373 = vmatprep.subr.bf16.mxu0 0
  %1374 = vmatpush1.bf16.xpose.msra.mxu0 0
  %1375 = vmatprep.subr.bf16.mxu0 0
  %1376 = vmatpush1.bf16.xpose.msra.mxu0 0
  %1377 = vmatprep.subr.bf16.mxu0 0
  %1378 = vmatpush1.bf16.xpose.msra.mxu0 0
  %1379 = vmatprep.subr.bf16.mxu0 0
  %1380 = vmatpush1.bf16.xpose.msra.mxu0 0
  %1381 = vmatprep.subr.bf16.mxu0 0
  %1382 = vmatpush1.bf16.xpose.msra.mxu0 0
  %1383 = vmatprep.subr.bf16.mxu0 0
  %1384 = vmatpush1.bf16.xpose.msra.mxu0 0
  %1385 = vmatprep.subr.bf16.mxu0 0
  %1386 = vmatpush1.bf16.xpose.msra.mxu0 0
  %1387 = vmatprep.subr.bf16.mxu0 0
  %1388 = vmatpush1.bf16.xpose.msra.mxu0 0
  %1389 = vmatprep.mubr.bf16.mxu0 0
  %1390 = vmatmul.mubr.bf16.gmra.mrb[0].mxu0 %v1334
  %v1391 = vpop.f32.mrb[0].mxu0
  %v1392 = vadd.f32 0.0, %v1391
  %v1393 = vpop.f32.mrb[0].mxu0
  %v1394 = vpop.f32.mrb[0].mxu0
  %v1395 = vadd.f32 0.0, %v1394
  %v1396 = vpop.f32.mrb[0].mxu0
  %1397 = vmatprep.mubr.bf16.mxu0 0
  %1398 = vmatmul.mubr.bf16.gmra.mrb[0].mxu0 %v1337
  %v1399 = vpop.f32.mrb[0].mxu0
  %v1400 = vadd.f32 0.0, %v1399
  %v1401 = vpop.f32.mrb[0].mxu0
  %v1402 = vpop.f32.mrb[0].mxu0
  %v1403 = vadd.f32 0.0, %v1402
  %v1404 = vpop.f32.mrb[0].mxu0
  %1405 = vmatprep.mubr.bf16.mxu0 0
  %1406 = vmatmul.mubr.bf16.gmra.mrb[0].mxu0 %v1340
  %v1407 = vpop.f32.mrb[0].mxu0
  %v1408 = vadd.f32 0.0, %v1407
  %v1409 = vpop.f32.mrb[0].mxu0
  %v1410 = vpop.f32.mrb[0].mxu0
  %v1411 = vadd.f32 0.0, %v1410
  %v1412 = vpop.f32.mrb[0].mxu0
  %1413 = vmatprep.mubr.bf16.mxu0 0
  %1414 = vmatmul.mubr.bf16.gmra.mrb[0].mxu0 %v1343
  %v1415 = vpop.f32.mrb[0].mxu0
  %v1416 = vadd.f32 0.0, %v1415
  %v1417 = vpop.f32.mrb[0].mxu0
  %v1418 = vpop.f32.mrb[0].mxu0
  %v1419 = vadd.f32 0.0, %v1418
  %v1420 = vpop.f32.mrb[0].mxu0
  %1421 = vdwg.mxu0
  %v1422 = vmul.f32 %v1392, 0.25
  %v1423 = vmul.f32 %v1395, 0.25
  %v1424 = vmul.f32 %v1400, 0.25
  %v1425 = vmul.f32 %v1403, 0.25
  %v1426 = vmul.f32 %v1408, 0.25
  %v1427 = vmul.f32 %v1411, 0.25
  %v1428 = vmul.f32 %v1416, 0.25
  %v1429 = vmul.f32 %v1419, 0.25
  %v1430 = vsel %vm449, %v1422, -inf
  %1431 = vmax.xlane.f32.xlu0 %v1430
  %v1432 = vpop.xlane.xlu0 %1431
  %v1433 = vsel %vm449, %v1423, -inf
  %1434 = vmax.xlane.f32.xlu0 %v1433
  %v1435 = vpop.xlane.xlu0 %1434
  %v1436 = vsel %vm449, %v1424, -inf
  %1437 = vmax.xlane.f32.xlu0 %v1436
  %v1438 = vpop.xlane.xlu0 %1437
  %v1439 = vsel %vm449, %v1425, -inf
  %1440 = vmax.xlane.f32.xlu0 %v1439
  %v1441 = vpop.xlane.xlu0 %1440
  %v1442 = vsel %vm449, %v1426, -inf
  %1443 = vmax.xlane.f32.xlu0 %v1442
  %v1444 = vpop.xlane.xlu0 %1443
  %v1445 = vsel %vm449, %v1427, -inf
  %1446 = vmax.xlane.f32.xlu0 %v1445
  %v1447 = vpop.xlane.xlu0 %1446
  %v1448 = vsel %vm449, %v1428, -inf
  %1449 = vmax.xlane.f32.xlu0 %v1448
  %v1450 = vpop.xlane.xlu0 %1449
  %v1451 = vsel %vm449, %v1429, -inf
  %1452 = vmax.xlane.f32.xlu0 %v1451
  %v1453 = vpop.xlane.xlu0 %1452
  %v1454 = vsub.f32 %v1422, %v1432
  %v1455 = vsub.f32 %v1423, %v1435
  %v1456 = vsub.f32 %v1424, %v1438
  %v1457 = vsub.f32 %v1425, %v1441
  %v1458 = vsub.f32 %v1426, %v1444
  %v1459 = vsub.f32 %v1427, %v1447
  %v1460 = vsub.f32 %v1428, %v1450
  %v1461 = vsub.f32 %v1429, %v1453
  %v1462 = vmul.f32 %v1454, 1.442695
  %v1463 = vpow.pop %v1462
  %v1464 = vmul.f32 %v1455, 1.442695
  %v1465 = vpow.pop %v1464
  %v1466 = vmul.f32 %v1456, 1.442695
  %v1467 = vpow.pop %v1466
  %v1468 = vmul.f32 %v1457, 1.442695
  %v1469 = vpow.pop %v1468
  %v1470 = vmul.f32 %v1458, 1.442695
  %v1471 = vpow.pop %v1470
  %v1472 = vmul.f32 %v1459, 1.442695
  %v1473 = vpow.pop %v1472
  %v1474 = vmul.f32 %v1460, 1.442695
  %v1475 = vpow.pop %v1474
  %v1476 = vmul.f32 %v1461, 1.442695
  %v1477 = vpow.pop %v1476
  %v1478 = vsel %vm449, %v1463, 0.0
  %1479 = vadd.xlane.f32.xlu0 %v1478
  %v1480 = vpop.xlane.xlu0 %1479
  %v1481 = vsel %vm449, %v1465, 0.0
  %1482 = vadd.xlane.f32.xlu0 %v1481
  %v1483 = vpop.xlane.xlu0 %1482
  %v1484 = vsel %vm449, %v1467, 0.0
  %1485 = vadd.xlane.f32.xlu0 %v1484
  %v1486 = vpop.xlane.xlu0 %1485
  %v1487 = vsel %vm449, %v1469, 0.0
  %1488 = vadd.xlane.f32.xlu0 %v1487
  %v1489 = vpop.xlane.xlu0 %1488
  %v1490 = vsel %vm449, %v1471, 0.0
  %1491 = vadd.xlane.f32.xlu0 %v1490
  %v1492 = vpop.xlane.xlu0 %1491
  %v1493 = vsel %vm449, %v1473, 0.0
  %1494 = vadd.xlane.f32.xlu0 %v1493
  %v1495 = vpop.xlane.xlu0 %1494
  %v1496 = vsel %vm449, %v1475, 0.0
  %1497 = vadd.xlane.f32.xlu0 %v1496
  %v1498 = vpop.xlane.xlu0 %1497
  %v1499 = vsel %vm449, %v1477, 0.0
  %1500 = vadd.xlane.f32.xlu0 %v1499
  %v1501 = vpop.xlane.xlu0 %1500
  %v1502 = vrcp.pop %v1480
  %v1503 = vrcp.pop %v1483
  %v1504 = vrcp.pop %v1486
  %v1505 = vrcp.pop %v1489
  %v1506 = vrcp.pop %v1492
  %v1507 = vrcp.pop %v1495
  %v1508 = vrcp.pop %v1498
  %v1509 = vrcp.pop %v1501
  %v1510 = vmul.f32 %v1463, %v1502
  %v1511 = vmul.f32 %v1465, %v1503
  %v1512 = vmul.f32 %v1467, %v1504
  %v1513 = vmul.f32 %v1469, %v1505
  %v1514 = vmul.f32 %v1471, %v1506
  %v1515 = vmul.f32 %v1473, %v1507
  %v1516 = vmul.f32 %v1475, %v1508
  %v1517 = vmul.f32 %v1477, %v1509
  %v1518 = vpack.c.bf16 %v1511, %v1510
  %v1519 = vpack.c.bf16 %v1513, %v1512
  %v1520 = vpack.c.bf16 %v1515, %v1514
  %v1521 = vpack.c.bf16 %v1517, %v1516
  %1522 = vrot.lane.b32.xlu0 %v938, 96
  %v1523 = vpop.permute.xlu0 %1522
  %1524 = vrot.lane.b32.xlu0 %v939, 96
  %v1525 = vpop.permute.xlu0 %1524
  %1526 = vrot.lane.b32.xlu0 %v940, 96
  %v1527 = vpop.permute.xlu0 %1526
  %1528 = vrot.lane.b32.xlu0 %v941, 96
  %v1529 = vpop.permute.xlu0 %1528
  %v1535 = vsel %vm449, %v1518, 0
  %v1538 = vsel %vm449, %v1519, 0
  %v1541 = vsel %vm449, %v1520, 0
  %v1544 = vsel %vm449, %v1521, 0
  %1546 = vmatprep.subr.bf16.mxu0 0
  %1547 = vmatpush1.bf16.msra.mxu0 %v1523
  %1548 = vmatprep.subr.bf16.mxu0 0
  %1549 = vmatpush1.bf16.msra.mxu0 %v1525
  %1550 = vmatprep.subr.bf16.mxu0 0
  %1551 = vmatpush1.bf16.msra.mxu0 %v1527
  %1552 = vmatprep.subr.bf16.mxu0 0
  %1553 = vmatpush1.bf16.msra.mxu0 %v1529
  %1554 = vmatprep.subr.bf16.mxu0 0
  %1555 = vmatpush1.bf16.msra.mxu0 0
  %1556 = vmatprep.subr.bf16.mxu0 0
  %1557 = vmatpush1.bf16.msra.mxu0 0
  %1558 = vmatprep.subr.bf16.mxu0 0
  %1559 = vmatpush1.bf16.msra.mxu0 0
  %1560 = vmatprep.subr.bf16.mxu0 0
  %1561 = vmatpush1.bf16.msra.mxu0 0
  %1562 = vmatprep.subr.bf16.mxu0 0
  %1563 = vmatpush1.bf16.msra.mxu0 0
  %1564 = vmatprep.subr.bf16.mxu0 0
  %1565 = vmatpush1.bf16.msra.mxu0 0
  %1566 = vmatprep.subr.bf16.mxu0 0
  %1567 = vmatpush1.bf16.msra.mxu0 0
  %1568 = vmatprep.subr.bf16.mxu0 0
  %1569 = vmatpush1.bf16.msra.mxu0 0
  %1570 = vmatprep.subr.bf16.mxu0 0
  %1571 = vmatpush1.bf16.msra.mxu0 0
  %1572 = vmatprep.subr.bf16.mxu0 0
  %1573 = vmatpush1.bf16.msra.mxu0 0
  %1574 = vmatprep.subr.bf16.mxu0 0
  %1575 = vmatpush1.bf16.msra.mxu0 0
  %1576 = vmatprep.subr.bf16.mxu0 0
  %1577 = vmatpush1.bf16.msra.mxu0 0
  %1578 = vmatprep.mubr.bf16.mxu0 0
  %1579 = vmatmul.mubr.bf16.gmra.mrb[0].mxu0 %v1535
  %v1580 = vpop.f32.mrb[0].mxu0
  %v1581 = vadd.f32 0.0, %v1580
  %v1582 = vpop.f32.mrb[0].mxu0
  %v1583 = vpop.f32.mrb[0].mxu0
  %v1584 = vadd.f32 0.0, %v1583
  %v1585 = vpop.f32.mrb[0].mxu0
  %1586 = vmatprep.mubr.bf16.mxu0 0
  %1587 = vmatmul.mubr.bf16.gmra.mrb[0].mxu0 %v1538
  %v1588 = vpop.f32.mrb[0].mxu0
  %v1589 = vadd.f32 0.0, %v1588
  %v1590 = vpop.f32.mrb[0].mxu0
  %v1591 = vpop.f32.mrb[0].mxu0
  %v1592 = vadd.f32 0.0, %v1591
  %v1593 = vpop.f32.mrb[0].mxu0
  %1594 = vmatprep.mubr.bf16.mxu0 0
  %1595 = vmatmul.mubr.bf16.gmra.mrb[0].mxu0 %v1541
  %v1596 = vpop.f32.mrb[0].mxu0
  %v1597 = vadd.f32 0.0, %v1596
  %v1598 = vpop.f32.mrb[0].mxu0
  %v1599 = vpop.f32.mrb[0].mxu0
  %v1600 = vadd.f32 0.0, %v1599
  %v1601 = vpop.f32.mrb[0].mxu0
  %1602 = vmatprep.mubr.bf16.mxu0 0
  %1603 = vmatmul.mubr.bf16.gmra.mrb[0].mxu0 %v1544
  %v1604 = vpop.f32.mrb[0].mxu0
  %v1605 = vadd.f32 0.0, %v1604
  %v1606 = vpop.f32.mrb[0].mxu0
  %v1607 = vpop.f32.mrb[0].mxu0
  %v1608 = vadd.f32 0.0, %v1607
  %v1609 = vpop.f32.mrb[0].mxu0
  %1610 = vdwg.mxu0
  %1611 = vrot.lane.b32.xlu0 %v732, 80
  %v1612 = vpop.permute.xlu0 %1611
  %1613 = vrot.lane.b32.xlu0 %v733, 80
  %v1614 = vpop.permute.xlu0 %1613
  %1615 = vrot.lane.b32.xlu0 %v734, 80
  %v1616 = vpop.permute.xlu0 %1615
  %1617 = vrot.lane.b32.xlu0 %v735, 80
  %v1618 = vpop.permute.xlu0 %1617
  %1619 = vrot.lane.b32.xlu0 %v732, 16
  %v1620 = vpop.permute.xlu0 %1619
  %1621 = vrot.lane.b32.xlu0 %v733, 16
  %v1622 = vpop.permute.xlu0 %1621
  %1623 = vrot.lane.b32.xlu0 %v734, 16
  %v1624 = vpop.permute.xlu0 %1623
  %1625 = vrot.lane.b32.xlu0 %v735, 16
  %v1626 = vpop.permute.xlu0 %1625
  %v1628 = vsel %vm748, %v1612, 0
  %v1631 = vsel %vm748, %v1614, 0
  %v1634 = vsel %vm748, %v1616, 0
  %v1637 = vsel %vm748, %v1618, 0
  %v1640 = vsel %vm748, %v1620, 0
  %v1643 = vsel %vm748, %v1622, 0
  %v1646 = vsel %vm748, %v1624, 0
  %v1649 = vsel %vm748, %v1626, 0
  %1651 = vmatprep.subr.bf16.mxu0 0
  %1652 = vmatpush1.bf16.xpose.msra.mxu0 %v1640
  %1653 = vmatprep.subr.bf16.mxu0 0
  %1654 = vmatpush1.bf16.xpose.msra.mxu0 %v1643
  %1655 = vmatprep.subr.bf16.mxu0 0
  %1656 = vmatpush1.bf16.xpose.msra.mxu0 %v1646
  %1657 = vmatprep.subr.bf16.mxu0 0
  %1658 = vmatpush1.bf16.xpose.msra.mxu0 %v1649
  %1659 = vmatprep.subr.bf16.mxu0 0
  %1660 = vmatpush1.bf16.xpose.msra.mxu0 0
  %1661 = vmatprep.subr.bf16.mxu0 0
  %1662 = vmatpush1.bf16.xpose.msra.mxu0 0
  %1663 = vmatprep.subr.bf16.mxu0 0
  %1664 = vmatpush1.bf16.xpose.msra.mxu0 0
  %1665 = vmatprep.subr.bf16.mxu0 0
  %1666 = vmatpush1.bf16.xpose.msra.mxu0 0
  %1667 = vmatprep.subr.bf16.mxu0 0
  %1668 = vmatpush1.bf16.xpose.msra.mxu0 0
  %1669 = vmatprep.subr.bf16.mxu0 0
  %1670 = vmatpush1.bf16.xpose.msra.mxu0 0
  %1671 = vmatprep.subr.bf16.mxu0 0
  %1672 = vmatpush1.bf16.xpose.msra.mxu0 0
  %1673 = vmatprep.subr.bf16.mxu0 0
  %1674 = vmatpush1.bf16.xpose.msra.mxu0 0
  %1675 = vmatprep.subr.bf16.mxu0 0
  %1676 = vmatpush1.bf16.xpose.msra.mxu0 0
  %1677 = vmatprep.subr.bf16.mxu0 0
  %1678 = vmatpush1.bf16.xpose.msra.mxu0 0
  %1679 = vmatprep.subr.bf16.mxu0 0
  %1680 = vmatpush1.bf16.xpose.msra.mxu0 0
  %1681 = vmatprep.subr.bf16.mxu0 0
  %1682 = vmatpush1.bf16.xpose.msra.mxu0 0
  %1683 = vmatprep.mubr.bf16.mxu0 0
  %1684 = vmatmul.mubr.bf16.gmra.mrb[0].mxu0 %v1628
  %v1685 = vpop.f32.mrb[0].mxu0
  %v1686 = vadd.f32 0.0, %v1685
  %v1687 = vpop.f32.mrb[0].mxu0
  %v1688 = vpop.f32.mrb[0].mxu0
  %v1689 = vadd.f32 0.0, %v1688
  %v1690 = vpop.f32.mrb[0].mxu0
  %1691 = vmatprep.mubr.bf16.mxu0 0
  %1692 = vmatmul.mubr.bf16.gmra.mrb[0].mxu0 %v1631
  %v1693 = vpop.f32.mrb[0].mxu0
  %v1694 = vadd.f32 0.0, %v1693
  %v1695 = vpop.f32.mrb[0].mxu0
  %v1696 = vpop.f32.mrb[0].mxu0
  %v1697 = vadd.f32 0.0, %v1696
  %v1698 = vpop.f32.mrb[0].mxu0
  %1699 = vmatprep.mubr.bf16.mxu0 0
  %1700 = vmatmul.mubr.bf16.gmra.mrb[0].mxu0 %v1634
  %v1701 = vpop.f32.mrb[0].mxu0
  %v1702 = vadd.f32 0.0, %v1701
  %v1703 = vpop.f32.mrb[0].mxu0
  %v1704 = vpop.f32.mrb[0].mxu0
  %v1705 = vadd.f32 0.0, %v1704
  %v1706 = vpop.f32.mrb[0].mxu0
  %1707 = vmatprep.mubr.bf16.mxu0 0
  %1708 = vmatmul.mubr.bf16.gmra.mrb[0].mxu0 %v1637
  %v1709 = vpop.f32.mrb[0].mxu0
  %v1710 = vadd.f32 0.0, %v1709
  %v1711 = vpop.f32.mrb[0].mxu0
  %v1712 = vpop.f32.mrb[0].mxu0
  %v1713 = vadd.f32 0.0, %v1712
  %v1714 = vpop.f32.mrb[0].mxu0
  %1715 = vdwg.mxu0
  %v1716 = vmul.f32 %v1686, 0.25
  %v1717 = vmul.f32 %v1689, 0.25
  %v1718 = vmul.f32 %v1694, 0.25
  %v1719 = vmul.f32 %v1697, 0.25
  %v1720 = vmul.f32 %v1702, 0.25
  %v1721 = vmul.f32 %v1705, 0.25
  %v1722 = vmul.f32 %v1710, 0.25
  %v1723 = vmul.f32 %v1713, 0.25
  %v1724 = vsel %vm449, %v1716, -inf
  %1725 = vmax.xlane.f32.xlu0 %v1724
  %v1726 = vpop.xlane.xlu0 %1725
  %v1727 = vsel %vm449, %v1717, -inf
  %1728 = vmax.xlane.f32.xlu0 %v1727
  %v1729 = vpop.xlane.xlu0 %1728
  %v1730 = vsel %vm449, %v1718, -inf
  %1731 = vmax.xlane.f32.xlu0 %v1730
  %v1732 = vpop.xlane.xlu0 %1731
  %v1733 = vsel %vm449, %v1719, -inf
  %1734 = vmax.xlane.f32.xlu0 %v1733
  %v1735 = vpop.xlane.xlu0 %1734
  %v1736 = vsel %vm449, %v1720, -inf
  %1737 = vmax.xlane.f32.xlu0 %v1736
  %v1738 = vpop.xlane.xlu0 %1737
  %v1739 = vsel %vm449, %v1721, -inf
  %1740 = vmax.xlane.f32.xlu0 %v1739
  %v1741 = vpop.xlane.xlu0 %1740
  %v1742 = vsel %vm449, %v1722, -inf
  %1743 = vmax.xlane.f32.xlu0 %v1742
  %v1744 = vpop.xlane.xlu0 %1743
  %v1745 = vsel %vm449, %v1723, -inf
  %1746 = vmax.xlane.f32.xlu0 %v1745
  %v1747 = vpop.xlane.xlu0 %1746
  %v1748 = vsub.f32 %v1716, %v1726
  %v1749 = vsub.f32 %v1717, %v1729
  %v1750 = vsub.f32 %v1718, %v1732
  %v1751 = vsub.f32 %v1719, %v1735
  %v1752 = vsub.f32 %v1720, %v1738
  %v1753 = vsub.f32 %v1721, %v1741
  %v1754 = vsub.f32 %v1722, %v1744
  %v1755 = vsub.f32 %v1723, %v1747
  %v1756 = vmul.f32 %v1748, 1.442695
  %v1757 = vpow.pop %v1756
  %v1758 = vmul.f32 %v1749, 1.442695
  %v1759 = vpow.pop %v1758
  %v1760 = vmul.f32 %v1750, 1.442695
  %v1761 = vpow.pop %v1760
  %v1762 = vmul.f32 %v1751, 1.442695
  %v1763 = vpow.pop %v1762
  %v1764 = vmul.f32 %v1752, 1.442695
  %v1765 = vpow.pop %v1764
  %v1766 = vmul.f32 %v1753, 1.442695
  %v1767 = vpow.pop %v1766
  %v1768 = vmul.f32 %v1754, 1.442695
  %v1769 = vpow.pop %v1768
  %v1770 = vmul.f32 %v1755, 1.442695
  %v1771 = vpow.pop %v1770
  %v1772 = vsel %vm449, %v1757, 0.0
  %1773 = vadd.xlane.f32.xlu0 %v1772
  %v1774 = vpop.xlane.xlu0 %1773
  %v1775 = vsel %vm449, %v1759, 0.0
  %1776 = vadd.xlane.f32.xlu0 %v1775
  %v1777 = vpop.xlane.xlu0 %1776
  %v1778 = vsel %vm449, %v1761, 0.0
  %1779 = vadd.xlane.f32.xlu0 %v1778
  %v1780 = vpop.xlane.xlu0 %1779
  %v1781 = vsel %vm449, %v1763, 0.0
  %1782 = vadd.xlane.f32.xlu0 %v1781
  %v1783 = vpop.xlane.xlu0 %1782
  %v1784 = vsel %vm449, %v1765, 0.0
  %1785 = vadd.xlane.f32.xlu0 %v1784
  %v1786 = vpop.xlane.xlu0 %1785
  %v1787 = vsel %vm449, %v1767, 0.0
  %1788 = vadd.xlane.f32.xlu0 %v1787
  %v1789 = vpop.xlane.xlu0 %1788
  %v1790 = vsel %vm449, %v1769, 0.0
  %1791 = vadd.xlane.f32.xlu0 %v1790
  %v1792 = vpop.xlane.xlu0 %1791
  %v1793 = vsel %vm449, %v1771, 0.0
  %1794 = vadd.xlane.f32.xlu0 %v1793
  %v1795 = vpop.xlane.xlu0 %1794
  %v1796 = vrcp.pop %v1774
  %v1797 = vrcp.pop %v1777
  %v1798 = vrcp.pop %v1780
  %v1799 = vrcp.pop %v1783
  %v1800 = vrcp.pop %v1786
  %v1801 = vrcp.pop %v1789
  %v1802 = vrcp.pop %v1792
  %v1803 = vrcp.pop %v1795
  %v1804 = vmul.f32 %v1757, %v1796
  %v1805 = vmul.f32 %v1759, %v1797
  %v1806 = vmul.f32 %v1761, %v1798
  %v1807 = vmul.f32 %v1763, %v1799
  %v1808 = vmul.f32 %v1765, %v1800
  %v1809 = vmul.f32 %v1767, %v1801
  %v1810 = vmul.f32 %v1769, %v1802
  %v1811 = vmul.f32 %v1771, %v1803
  %v1812 = vpack.c.bf16 %v1805, %v1804
  %v1813 = vpack.c.bf16 %v1807, %v1806
  %v1814 = vpack.c.bf16 %v1809, %v1808
  %v1815 = vpack.c.bf16 %v1811, %v1810
  %1816 = vrot.lane.b32.xlu0 %v938, 80
  %v1817 = vpop.permute.xlu0 %1816
  %1818 = vrot.lane.b32.xlu0 %v939, 80
  %v1819 = vpop.permute.xlu0 %1818
  %1820 = vrot.lane.b32.xlu0 %v940, 80
  %v1821 = vpop.permute.xlu0 %1820
  %1822 = vrot.lane.b32.xlu0 %v941, 80
  %v1823 = vpop.permute.xlu0 %1822
  %v1829 = vsel %vm449, %v1812, 0
  %v1832 = vsel %vm449, %v1813, 0
  %v1835 = vsel %vm449, %v1814, 0
  %v1838 = vsel %vm449, %v1815, 0
  %1840 = vmatprep.subr.bf16.mxu0 0
  %1841 = vmatpush1.bf16.msra.mxu0 %v1817
  %1842 = vmatprep.subr.bf16.mxu0 0
  %1843 = vmatpush1.bf16.msra.mxu0 %v1819
  %1844 = vmatprep.subr.bf16.mxu0 0
  %1845 = vmatpush1.bf16.msra.mxu0 %v1821
  %1846 = vmatprep.subr.bf16.mxu0 0
  %1847 = vmatpush1.bf16.msra.mxu0 %v1823
  %1848 = vmatprep.subr.bf16.mxu0 0
  %1849 = vmatpush1.bf16.msra.mxu0 0
  %1850 = vmatprep.subr.bf16.mxu0 0
  %1851 = vmatpush1.bf16.msra.mxu0 0
  %1852 = vmatprep.subr.bf16.mxu0 0
  %1853 = vmatpush1.bf16.msra.mxu0 0
  %1854 = vmatprep.subr.bf16.mxu0 0
  %1855 = vmatpush1.bf16.msra.mxu0 0
  %1856 = vmatprep.subr.bf16.mxu0 0
  %1857 = vmatpush1.bf16.msra.mxu0 0
  %1858 = vmatprep.subr.bf16.mxu0 0
  %1859 = vmatpush1.bf16.msra.mxu0 0
  %1860 = vmatprep.subr.bf16.mxu0 0
  %1861 = vmatpush1.bf16.msra.mxu0 0
  %1862 = vmatprep.subr.bf16.mxu0 0
  %1863 = vmatpush1.bf16.msra.mxu0 0
  %1864 = vmatprep.subr.bf16.mxu0 0
  %1865 = vmatpush1.bf16.msra.mxu0 0
  %1866 = vmatprep.subr.bf16.mxu0 0
  %1867 = vmatpush1.bf16.msra.mxu0 0
  %1868 = vmatprep.subr.bf16.mxu0 0
  %1869 = vmatpush1.bf16.msra.mxu0 0
  %1870 = vmatprep.subr.bf16.mxu0 0
  %1871 = vmatpush1.bf16.msra.mxu0 0
  %1872 = vmatprep.mubr.bf16.mxu0 0
  %1873 = vmatmul.mubr.bf16.gmra.mrb[0].mxu0 %v1829
  %v1874 = vpop.f32.mrb[0].mxu0
  %v1875 = vadd.f32 0.0, %v1874
  %v1876 = vpop.f32.mrb[0].mxu0
  %v1877 = vpop.f32.mrb[0].mxu0
  %v1878 = vadd.f32 0.0, %v1877
  %v1879 = vpop.f32.mrb[0].mxu0
  %1880 = vmatprep.mubr.bf16.mxu0 0
  %1881 = vmatmul.mubr.bf16.gmra.mrb[0].mxu0 %v1832
  %v1882 = vpop.f32.mrb[0].mxu0
  %v1883 = vadd.f32 0.0, %v1882
  %v1884 = vpop.f32.mrb[0].mxu0
  %v1885 = vpop.f32.mrb[0].mxu0
  %v1886 = vadd.f32 0.0, %v1885
  %v1887 = vpop.f32.mrb[0].mxu0
  %1888 = vmatprep.mubr.bf16.mxu0 0
  %1889 = vmatmul.mubr.bf16.gmra.mrb[0].mxu0 %v1835
  %v1890 = vpop.f32.mrb[0].mxu0
  %v1891 = vadd.f32 0.0, %v1890
  %v1892 = vpop.f32.mrb[0].mxu0
  %v1893 = vpop.f32.mrb[0].mxu0
  %v1894 = vadd.f32 0.0, %v1893
  %v1895 = vpop.f32.mrb[0].mxu0
  %1896 = vmatprep.mubr.bf16.mxu0 0
  %1897 = vmatmul.mubr.bf16.gmra.mrb[0].mxu0 %v1838
  %v1898 = vpop.f32.mrb[0].mxu0
  %v1899 = vadd.f32 0.0, %v1898
  %v1900 = vpop.f32.mrb[0].mxu0
  %v1901 = vpop.f32.mrb[0].mxu0
  %v1902 = vadd.f32 0.0, %v1901
  %v1903 = vpop.f32.mrb[0].mxu0
  %1904 = vdwg.mxu0
  %1913 = vrot.lane.b32.xlu0 %v1287, 16
  %v1914 = vpop.permute.xlu0 %1913
  %1915 = vrot.lane.b32.xlu0 %v1290, 16
  %v1916 = vpop.permute.xlu0 %1915
  %1917 = vrot.lane.b32.xlu0 %v1295, 16
  %v1918 = vpop.permute.xlu0 %1917
  %1919 = vrot.lane.b32.xlu0 %v1298, 16
  %v1920 = vpop.permute.xlu0 %1919
  %1921 = vrot.lane.b32.xlu0 %v1303, 16
  %v1922 = vpop.permute.xlu0 %1921
  %1923 = vrot.lane.b32.xlu0 %v1306, 16
  %v1924 = vpop.permute.xlu0 %1923
  %1925 = vrot.lane.b32.xlu0 %v1311, 16
  %v1926 = vpop.permute.xlu0 %1925
  %1927 = vrot.lane.b32.xlu0 %v1314, 16
  %v1928 = vpop.permute.xlu0 %1927
  %1945 = vrot.lane.b32.xlu0 %v1581, 32
  %v1946 = vpop.permute.xlu0 %1945
  %1947 = vrot.lane.b32.xlu0 %v1584, 32
  %v1948 = vpop.permute.xlu0 %1947
  %1949 = vrot.lane.b32.xlu0 %v1589, 32
  %v1950 = vpop.permute.xlu0 %1949
  %1951 = vrot.lane.b32.xlu0 %v1592, 32
  %v1952 = vpop.permute.xlu0 %1951
  %1953 = vrot.lane.b32.xlu0 %v1597, 32
  %v1954 = vpop.permute.xlu0 %1953
  %1955 = vrot.lane.b32.xlu0 %v1600, 32
  %v1956 = vpop.permute.xlu0 %1955
  %1957 = vrot.lane.b32.xlu0 %v1605, 32
  %v1958 = vpop.permute.xlu0 %1957
  %1959 = vrot.lane.b32.xlu0 %v1608, 32
  %v1960 = vpop.permute.xlu0 %1959
  %1977 = vrot.lane.b32.xlu0 %v1875, 48
  %v1978 = vpop.permute.xlu0 %1977
  %1979 = vrot.lane.b32.xlu0 %v1878, 48
  %v1980 = vpop.permute.xlu0 %1979
  %1981 = vrot.lane.b32.xlu0 %v1883, 48
  %v1982 = vpop.permute.xlu0 %1981
  %1983 = vrot.lane.b32.xlu0 %v1886, 48
  %v1984 = vpop.permute.xlu0 %1983
  %1985 = vrot.lane.b32.xlu0 %v1891, 48
  %v1986 = vpop.permute.xlu0 %1985
  %1987 = vrot.lane.b32.xlu0 %v1894, 48
  %v1988 = vpop.permute.xlu0 %1987
  %1989 = vrot.lane.b32.xlu0 %v1899, 48
  %v1990 = vpop.permute.xlu0 %1989
  %1991 = vrot.lane.b32.xlu0 %v1902, 48
  %v1992 = vpop.permute.xlu0 %1991
  %v2001 = vsel %vm748, %v989, %v1914
  %v2002 = vsel %vm748, %v992, %v1916
  %v2003 = vsel %vm748, %v997, %v1918
  %v2004 = vsel %vm748, %v1000, %v1920
  %v2005 = vsel %vm748, %v1005, %v1922
  %v2006 = vsel %vm748, %v1008, %v1924
  %v2007 = vsel %vm748, %v1013, %v1926
  %v2008 = vsel %vm748, %v1016, %v1928
  %vm2009 = vcmask 261120
  %v2010 = vsel %vm2009, %v2001, %v1946
  %v2011 = vsel %vm2009, %v2002, %v1948
  %v2012 = vsel %vm2009, %v2003, %v1950
  %v2013 = vsel %vm2009, %v2004, %v1952
  %v2014 = vsel %vm2009, %v2005, %v1954
  %v2015 = vsel %vm2009, %v2006, %v1956
  %v2016 = vsel %vm2009, %v2007, %v1958
  %v2017 = vsel %vm2009, %v2008, %v1960
  %vm2018 = vcmask 392192
  %v2019 = vsel %vm2018, %v2010, %v1978
  %v2020 = vsel %vm2018, %v2011, %v1980
  %v2021 = vsel %vm2018, %v2012, %v1982
  %v2022 = vsel %vm2018, %v2013, %v1984
  %v2023 = vsel %vm2018, %v2014, %v1986
  %v2024 = vsel %vm2018, %v2015, %v1988
  %v2025 = vsel %vm2018, %v2016, %v1990
  %v2026 = vsel %vm2018, %v2017, %v1992
  %v2027 = vpack.c.bf16 %v2020, %v2019
  %v2028 = vpack.c.bf16 %v2022, %v2021
  %v2029 = vpack.c.bf16 %v2024, %v2023
  %v2030 = vpack.c.bf16 %v2026, %v2025
  %v2031 = vld [vmem:[%s8] sm:$0xf]
  %v2032 = vld [vmem:[%s8 + $0x4] sm:$0xf]
  %v2033 = vld [vmem:[%s8 + $0x8] sm:$0xf]
  %v2034 = vld [vmem:[%s8 + $0xc] sm:$0xf]
  %v2035 = vld [vmem:[%s8 + $0x10] sm:$0xf]
  %v2036 = vld [vmem:[%s8 + $0x14] sm:$0xf]
  %v2037 = vld [vmem:[%s8 + $0x18] sm:$0xf]
  %v2038 = vld [vmem:[%s8 + $0x1c] sm:$0xf]
  %v2039 = vld [vmem:[%s9] sm:$0x1]
  %v2041 = vlaneseq
  %v2042 = vshrl.u32 %v2041, 7
  %v2043 = vsub.s32 0, %v2042
  %v2044 = vrot.slane %v2039, %v2043
  %v2054 = vunpack.c.l.b16 %v2031
  %v2055 = vunpack.c.l.b16 %v2032
  %v2056 = vunpack.c.l.b16 %v2033
  %v2057 = vunpack.c.l.b16 %v2034
  %v2058 = vunpack.c.l.b16 %v2035
  %v2059 = vunpack.c.l.b16 %v2036
  %v2060 = vunpack.c.l.b16 %v2037
  %v2061 = vunpack.c.l.b16 %v2038
  %v2062 = vpack.c.b16 %v2055, %v2054
  %v2063 = vpack.c.b16 %v2057, %v2056
  %v2064 = vpack.c.b16 %v2059, %v2058
  %v2065 = vpack.c.b16 %v2061, %v2060
  %v2071 = vsel %vm449, %v2027, 0
  %v2074 = vsel %vm449, %v2028, 0
  %v2077 = vsel %vm449, %v2029, 0
  %v2080 = vsel %vm449, %v2030, 0
  %2082 = vmatprep.subr.bf16.mxu0 0
  %2083 = vmatpush1.bf16.msra.mxu0 %v2062
  %2084 = vmatprep.subr.bf16.mxu0 0
  %2085 = vmatpush1.bf16.msra.mxu0 %v2063
  %2086 = vmatprep.subr.bf16.mxu0 0
  %2087 = vmatpush1.bf16.msra.mxu0 %v2064
  %2088 = vmatprep.subr.bf16.mxu0 0
  %2089 = vmatpush1.bf16.msra.mxu0 %v2065
  %2090 = vmatprep.subr.bf16.mxu0 0
  %2091 = vmatpush1.bf16.msra.mxu0 0
  %2092 = vmatprep.subr.bf16.mxu0 0
  %2093 = vmatpush1.bf16.msra.mxu0 0
  %2094 = vmatprep.subr.bf16.mxu0 0
  %2095 = vmatpush1.bf16.msra.mxu0 0
  %2096 = vmatprep.subr.bf16.mxu0 0
  %2097 = vmatpush1.bf16.msra.mxu0 0
  %2098 = vmatprep.subr.bf16.mxu0 0
  %2099 = vmatpush1.bf16.msra.mxu0 0
  %2100 = vmatprep.subr.bf16.mxu0 0
  %2101 = vmatpush1.bf16.msra.mxu0 0
  %2102 = vmatprep.subr.bf16.mxu0 0
  %2103 = vmatpush1.bf16.msra.mxu0 0
  %2104 = vmatprep.subr.bf16.mxu0 0
  %2105 = vmatpush1.bf16.msra.mxu0 0
  %2106 = vmatprep.subr.bf16.mxu0 0
  %2107 = vmatpush1.bf16.msra.mxu0 0
  %2108 = vmatprep.subr.bf16.mxu0 0
  %2109 = vmatpush1.bf16.msra.mxu0 0
  %2110 = vmatprep.subr.bf16.mxu0 0
  %2111 = vmatpush1.bf16.msra.mxu0 0
  %2112 = vmatprep.subr.bf16.mxu0 0
  %2113 = vmatpush1.bf16.msra.mxu0 0
  %2114 = vmatprep.mubr.bf16.mxu0 0
  %2115 = vmatmul.mubr.bf16.gmra.mrb[0].mxu0 %v2071
  %v2116 = vpop.f32.mrb[0].mxu0
  %v2117 = vadd.f32 %v2044, %v2116
  %v2118 = vpop.f32.mrb[0].mxu0
  %v2119 = vpop.f32.mrb[0].mxu0
  %v2120 = vadd.f32 %v2044, %v2119
  %v2121 = vpop.f32.mrb[0].mxu0
  %2122 = vmatprep.mubr.bf16.mxu0 0
  %2123 = vmatmul.mubr.bf16.gmra.mrb[0].mxu0 %v2074
  %v2124 = vpop.f32.mrb[0].mxu0
  %v2125 = vadd.f32 %v2044, %v2124
  %v2126 = vpop.f32.mrb[0].mxu0
  %v2127 = vpop.f32.mrb[0].mxu0
  %v2128 = vadd.f32 %v2044, %v2127
  %v2129 = vpop.f32.mrb[0].mxu0
  %2130 = vmatprep.mubr.bf16.mxu0 0
  %2131 = vmatmul.mubr.bf16.gmra.mrb[0].mxu0 %v2077
  %v2132 = vpop.f32.mrb[0].mxu0
  %v2133 = vadd.f32 %v2044, %v2132
  %v2134 = vpop.f32.mrb[0].mxu0
  %v2135 = vpop.f32.mrb[0].mxu0
  %v2136 = vadd.f32 %v2044, %v2135
  %v2137 = vpop.f32.mrb[0].mxu0
  %2138 = vmatprep.mubr.bf16.mxu0 0
  %2139 = vmatmul.mubr.bf16.gmra.mrb[0].mxu0 %v2080
  %v2140 = vpop.f32.mrb[0].mxu0
  %v2141 = vadd.f32 %v2044, %v2140
  %v2142 = vpop.f32.mrb[0].mxu0
  %v2143 = vpop.f32.mrb[0].mxu0
  %v2144 = vadd.f32 %v2044, %v2143
  %v2145 = vpop.f32.mrb[0].mxu0
  %2146 = vdwg.mxu0
  %v2147 = vadd.f32 %v439, %v2117
  %v2148 = vadd.f32 %v440, %v2120
  %v2149 = vadd.f32 %v441, %v2125
  %v2150 = vadd.f32 %v442, %v2128
  %v2151 = vadd.f32 %v443, %v2133
  %v2152 = vadd.f32 %v444, %v2136
  %v2153 = vadd.f32 %v445, %v2141
  %v2154 = vadd.f32 %v446, %v2144
  %v2155 = vld [vmem:[%s10] sm:$0x1]
  %v2156 = vld [vmem:[%s11] sm:$0x1]
  %v2157 = vsel %vm449, %v2147, 0.0
  %2158 = vadd.xlane.f32.xlu0 %v2157
  %v2159 = vpop.xlane.xlu0 %2158
  %v2160 = vsel %vm449, %v2148, 0.0
  %2161 = vadd.xlane.f32.xlu0 %v2160
  %v2162 = vpop.xlane.xlu0 %2161
  %v2163 = vsel %vm449, %v2149, 0.0
  %2164 = vadd.xlane.f32.xlu0 %v2163
  %v2165 = vpop.xlane.xlu0 %2164
  %v2166 = vsel %vm449, %v2150, 0.0
  %2167 = vadd.xlane.f32.xlu0 %v2166
  %v2168 = vpop.xlane.xlu0 %2167
  %v2169 = vsel %vm449, %v2151, 0.0
  %2170 = vadd.xlane.f32.xlu0 %v2169
  %v2171 = vpop.xlane.xlu0 %2170
  %v2172 = vsel %vm449, %v2152, 0.0
  %2173 = vadd.xlane.f32.xlu0 %v2172
  %v2174 = vpop.xlane.xlu0 %2173
  %v2175 = vsel %vm449, %v2153, 0.0
  %2176 = vadd.xlane.f32.xlu0 %v2175
  %v2177 = vpop.xlane.xlu0 %2176
  %v2178 = vsel %vm449, %v2154, 0.0
  %2179 = vadd.xlane.f32.xlu0 %v2178
  %v2180 = vpop.xlane.xlu0 %2179
  %v2181 = vmul.f32 %v2159, %v474
  %v2182 = vmul.f32 %v2162, %v474
  %v2183 = vmul.f32 %v2165, %v474
  %v2184 = vmul.f32 %v2168, %v474
  %v2185 = vmul.f32 %v2171, %v474
  %v2186 = vmul.f32 %v2174, %v474
  %v2187 = vmul.f32 %v2177, %v474
  %v2188 = vmul.f32 %v2180, %v474
  %v2189 = vsub.f32 %v2147, %v2181
  %v2190 = vsub.f32 %v2148, %v2182
  %v2191 = vsub.f32 %v2149, %v2183
  %v2192 = vsub.f32 %v2150, %v2184
  %v2193 = vsub.f32 %v2151, %v2185
  %v2194 = vsub.f32 %v2152, %v2186
  %v2195 = vsub.f32 %v2153, %v2187
  %v2196 = vsub.f32 %v2154, %v2188
  %v2197 = vmul.f32 %v2189, %v2189
  %v2198 = vmul.f32 %v2190, %v2190
  %v2199 = vmul.f32 %v2191, %v2191
  %v2200 = vmul.f32 %v2192, %v2192
  %v2201 = vmul.f32 %v2193, %v2193
  %v2202 = vmul.f32 %v2194, %v2194
  %v2203 = vmul.f32 %v2195, %v2195
  %v2204 = vmul.f32 %v2196, %v2196
  %v2205 = vsel %vm449, %v2197, 0.0
  %2206 = vadd.xlane.f32.xlu0 %v2205
  %v2207 = vpop.xlane.xlu0 %2206
  %v2208 = vsel %vm449, %v2198, 0.0
  %2209 = vadd.xlane.f32.xlu0 %v2208
  %v2210 = vpop.xlane.xlu0 %2209
  %v2211 = vsel %vm449, %v2199, 0.0
  %2212 = vadd.xlane.f32.xlu0 %v2211
  %v2213 = vpop.xlane.xlu0 %2212
  %v2214 = vsel %vm449, %v2200, 0.0
  %2215 = vadd.xlane.f32.xlu0 %v2214
  %v2216 = vpop.xlane.xlu0 %2215
  %v2217 = vsel %vm449, %v2201, 0.0
  %2218 = vadd.xlane.f32.xlu0 %v2217
  %v2219 = vpop.xlane.xlu0 %2218
  %v2220 = vsel %vm449, %v2202, 0.0
  %2221 = vadd.xlane.f32.xlu0 %v2220
  %v2222 = vpop.xlane.xlu0 %2221
  %v2223 = vsel %vm449, %v2203, 0.0
  %2224 = vadd.xlane.f32.xlu0 %v2223
  %v2225 = vpop.xlane.xlu0 %2224
  %v2226 = vsel %vm449, %v2204, 0.0
  %2227 = vadd.xlane.f32.xlu0 %v2226
  %v2228 = vpop.xlane.xlu0 %2227
  %v2229 = vmul.f32 %v2207, %v474
  %v2230 = vmul.f32 %v2210, %v474
  %v2231 = vmul.f32 %v2213, %v474
  %v2232 = vmul.f32 %v2216, %v474
  %v2233 = vmul.f32 %v2219, %v474
  %v2234 = vmul.f32 %v2222, %v474
  %v2235 = vmul.f32 %v2225, %v474
  %v2236 = vmul.f32 %v2228, %v474
  %v2237 = vadd.f32 %v2229, 1e-06
  %v2238 = vadd.f32 %v2230, 1e-06
  %v2239 = vadd.f32 %v2231, 1e-06
  %v2240 = vadd.f32 %v2232, 1e-06
  %v2241 = vadd.f32 %v2233, 1e-06
  %v2242 = vadd.f32 %v2234, 1e-06
  %v2243 = vadd.f32 %v2235, 1e-06
  %v2244 = vadd.f32 %v2236, 1e-06
  %v2245 = vrsqrt.pop %v2237
  %v2246 = vrsqrt.pop %v2238
  %v2247 = vrsqrt.pop %v2239
  %v2248 = vrsqrt.pop %v2240
  %v2249 = vrsqrt.pop %v2241
  %v2250 = vrsqrt.pop %v2242
  %v2251 = vrsqrt.pop %v2243
  %v2252 = vrsqrt.pop %v2244
  %v2253 = vmul.f32 %v2189, %v2245
  %v2254 = vmul.f32 %v2190, %v2246
  %v2255 = vmul.f32 %v2191, %v2247
  %v2256 = vmul.f32 %v2192, %v2248
  %v2257 = vmul.f32 %v2193, %v2249
  %v2258 = vmul.f32 %v2194, %v2250
  %v2259 = vmul.f32 %v2195, %v2251
  %v2260 = vmul.f32 %v2196, %v2252
  %v2262 = vlaneseq
  %v2263 = vshrl.u32 %v2262, 7
  %v2264 = vsub.s32 0, %v2263
  %v2265 = vrot.slane %v2155, %v2264
  %v2267 = vmul.f32 %v2253, %v2265
  %v2268 = vmul.f32 %v2254, %v2265
  %v2269 = vmul.f32 %v2255, %v2265
  %v2270 = vmul.f32 %v2256, %v2265
  %v2271 = vmul.f32 %v2257, %v2265
  %v2272 = vmul.f32 %v2258, %v2265
  %v2273 = vmul.f32 %v2259, %v2265
  %v2274 = vmul.f32 %v2260, %v2265
  %v2276 = vlaneseq
  %v2277 = vshrl.u32 %v2276, 7
  %v2278 = vsub.s32 0, %v2277
  %v2279 = vrot.slane %v2156, %v2278
  %v2281 = vadd.f32 %v2267, %v2279
  %v2282 = vadd.f32 %v2268, %v2279
  %v2283 = vadd.f32 %v2269, %v2279
  %v2284 = vadd.f32 %v2270, %v2279
  %v2285 = vadd.f32 %v2271, %v2279
  %v2286 = vadd.f32 %v2272, %v2279
  %v2287 = vadd.f32 %v2273, %v2279
  %v2288 = vadd.f32 %v2274, %v2279
  %v2289 = vpack.c.bf16 %v2282, %v2281
  %v2290 = vpack.c.bf16 %v2284, %v2283
  %v2291 = vpack.c.bf16 %v2286, %v2285
  %v2292 = vpack.c.bf16 %v2288, %v2287
  %v2293 = vld [vmem:[%s12] sm:$0xff]
  %v2294 = vld [vmem:[%s12 + $0x8] sm:$0xff]
  %v2295 = vld [vmem:[%s12 + $0x10] sm:$0xff]
  %v2296 = vld [vmem:[%s12 + $0x18] sm:$0xff]
  %v2297 = vld [vmem:[%s12 + $0x20] sm:$0xff]
  %v2298 = vld [vmem:[%s12 + $0x28] sm:$0xff]
  %v2299 = vld [vmem:[%s12 + $0x30] sm:$0xff]
  %v2300 = vld [vmem:[%s12 + $0x38] sm:$0xff]
  %v2301 = vld [vmem:[%s13] sm:$0x3]
  %v2303 = vlaneseq
  %v2304 = vshrl.u32 %v2303, 7
  %v2305 = vsub.s32 0, %v2304
  %v2306 = vrot.slane %v2301, %v2305
  %v2307 = vlaneseq
  %v2308 = vshrl.u32 %v2307, 7
  %v2309 = vsub.s32 1, %v2308
  %v2310 = vrot.slane %v2301, %v2309
  %v2321 = vunpack.c.l.b16 %v2293
  %v2322 = vunpack.c.h.b16 %v2293
  %v2323 = vunpack.c.l.b16 %v2294
  %v2324 = vunpack.c.h.b16 %v2294
  %v2325 = vunpack.c.l.b16 %v2295
  %v2326 = vunpack.c.h.b16 %v2295
  %v2327 = vunpack.c.l.b16 %v2296
  %v2328 = vunpack.c.h.b16 %v2296
  %v2329 = vunpack.c.l.b16 %v2297
  %v2330 = vunpack.c.h.b16 %v2297
  %v2331 = vunpack.c.l.b16 %v2298
  %v2332 = vunpack.c.h.b16 %v2298
  %v2333 = vunpack.c.l.b16 %v2299
  %v2334 = vunpack.c.h.b16 %v2299
  %v2335 = vunpack.c.l.b16 %v2300
  %v2336 = vunpack.c.h.b16 %v2300
  %v2337 = vpack.c.b16 %v2323, %v2321
  %v2338 = vpack.c.b16 %v2324, %v2322
  %v2339 = vpack.c.b16 %v2327, %v2325
  %v2340 = vpack.c.b16 %v2328, %v2326
  %v2341 = vpack.c.b16 %v2331, %v2329
  %v2342 = vpack.c.b16 %v2332, %v2330
  %v2343 = vpack.c.b16 %v2335, %v2333
  %v2344 = vpack.c.b16 %v2336, %v2334
  %v2354 = vsel %vm449, %v2289, 0
  %v2357 = vsel %vm449, %v2290, 0
  %v2360 = vsel %vm449, %v2291, 0
  %v2363 = vsel %vm449, %v2292, 0
  %2365 = vmatprep.subr.bf16.mxu0 %v2338
  %2366 = vmatpush1.bf16.msra.mxu0 %v2337
  %2367 = vmatprep.subr.bf16.mxu0 %v2340
  %2368 = vmatpush1.bf16.msra.mxu0 %v2339
  %2369 = vmatprep.subr.bf16.mxu0 %v2342
  %2370 = vmatpush1.bf16.msra.mxu0 %v2341
  %2371 = vmatprep.subr.bf16.mxu0 %v2344
  %2372 = vmatpush1.bf16.msra.mxu0 %v2343
  %2373 = vmatprep.subr.bf16.mxu0 0
  %2374 = vmatpush1.bf16.msra.mxu0 0
  %2375 = vmatprep.subr.bf16.mxu0 0
  %2376 = vmatpush1.bf16.msra.mxu0 0
  %2377 = vmatprep.subr.bf16.mxu0 0
  %2378 = vmatpush1.bf16.msra.mxu0 0
  %2379 = vmatprep.subr.bf16.mxu0 0
  %2380 = vmatpush1.bf16.msra.mxu0 0
  %2381 = vmatprep.subr.bf16.mxu0 0
  %2382 = vmatpush1.bf16.msra.mxu0 0
  %2383 = vmatprep.subr.bf16.mxu0 0
  %2384 = vmatpush1.bf16.msra.mxu0 0
  %2385 = vmatprep.subr.bf16.mxu0 0
  %2386 = vmatpush1.bf16.msra.mxu0 0
  %2387 = vmatprep.subr.bf16.mxu0 0
  %2388 = vmatpush1.bf16.msra.mxu0 0
  %2389 = vmatprep.subr.bf16.mxu0 0
  %2390 = vmatpush1.bf16.msra.mxu0 0
  %2391 = vmatprep.subr.bf16.mxu0 0
  %2392 = vmatpush1.bf16.msra.mxu0 0
  %2393 = vmatprep.subr.bf16.mxu0 0
  %2394 = vmatpush1.bf16.msra.mxu0 0
  %2395 = vmatprep.subr.bf16.mxu0 0
  %2396 = vmatpush1.bf16.msra.mxu0 0
  %2397 = vmatprep.mubr.bf16.mxu0 0
  %2398 = vmatmul.mubr.bf16.gmra.mrb[0].mxu0 %v2354
  %v2399 = vpop.f32.mrb[0].mxu0
  %v2400 = vadd.f32 %v2306, %v2399
  %v2401 = vpop.f32.mrb[0].mxu0
  %v2402 = vadd.f32 %v2310, %v2401
  %v2403 = vpop.f32.mrb[0].mxu0
  %v2404 = vadd.f32 %v2306, %v2403
  %v2405 = vpop.f32.mrb[0].mxu0
  %v2406 = vadd.f32 %v2310, %v2405
  %2407 = vmatprep.mubr.bf16.mxu0 0
  %2408 = vmatmul.mubr.bf16.gmra.mrb[0].mxu0 %v2357
  %v2409 = vpop.f32.mrb[0].mxu0
  %v2410 = vadd.f32 %v2306, %v2409
  %v2411 = vpop.f32.mrb[0].mxu0
  %v2412 = vadd.f32 %v2310, %v2411
  %v2413 = vpop.f32.mrb[0].mxu0
  %v2414 = vadd.f32 %v2306, %v2413
  %v2415 = vpop.f32.mrb[0].mxu0
  %v2416 = vadd.f32 %v2310, %v2415
  %2417 = vmatprep.mubr.bf16.mxu0 0
  %2418 = vmatmul.mubr.bf16.gmra.mrb[0].mxu0 %v2360
  %v2419 = vpop.f32.mrb[0].mxu0
  %v2420 = vadd.f32 %v2306, %v2419
  %v2421 = vpop.f32.mrb[0].mxu0
  %v2422 = vadd.f32 %v2310, %v2421
  %v2423 = vpop.f32.mrb[0].mxu0
  %v2424 = vadd.f32 %v2306, %v2423
  %v2425 = vpop.f32.mrb[0].mxu0
  %v2426 = vadd.f32 %v2310, %v2425
  %2427 = vmatprep.mubr.bf16.mxu0 0
  %2428 = vmatmul.mubr.bf16.gmra.mrb[0].mxu0 %v2363
  %v2429 = vpop.f32.mrb[0].mxu0
  %v2430 = vadd.f32 %v2306, %v2429
  %v2431 = vpop.f32.mrb[0].mxu0
  %v2432 = vadd.f32 %v2310, %v2431
  %v2433 = vpop.f32.mrb[0].mxu0
  %v2434 = vadd.f32 %v2306, %v2433
  %v2435 = vpop.f32.mrb[0].mxu0
  %v2436 = vadd.f32 %v2310, %v2435
  %2437 = vdwg.mxu0
  %v2438 = vmul.f32 %v2400, 0.5
  %v2439 = vmul.f32 %v2402, 0.5
  %v2440 = vmul.f32 %v2404, 0.5
  %v2441 = vmul.f32 %v2406, 0.5
  %v2442 = vmul.f32 %v2410, 0.5
  %v2443 = vmul.f32 %v2412, 0.5
  %v2444 = vmul.f32 %v2414, 0.5
  %v2445 = vmul.f32 %v2416, 0.5
  %v2446 = vmul.f32 %v2420, 0.5
  %v2447 = vmul.f32 %v2422, 0.5
  %v2448 = vmul.f32 %v2424, 0.5
  %v2449 = vmul.f32 %v2426, 0.5
  %v2450 = vmul.f32 %v2430, 0.5
  %v2451 = vmul.f32 %v2432, 0.5
  %v2452 = vmul.f32 %v2434, 0.5
  %v2453 = vmul.f32 %v2436, 0.5
  %v2454 = vmul.f32 %v2400, 0.70710677
  %v2455 = vmul.f32 %v2402, 0.70710677
  %v2456 = vmul.f32 %v2404, 0.70710677
  %v2457 = vmul.f32 %v2406, 0.70710677
  %v2458 = vmul.f32 %v2410, 0.70710677
  %v2459 = vmul.f32 %v2412, 0.70710677
  %v2460 = vmul.f32 %v2414, 0.70710677
  %v2461 = vmul.f32 %v2416, 0.70710677
  %v2462 = vmul.f32 %v2420, 0.70710677
  %v2463 = vmul.f32 %v2422, 0.70710677
  %v2464 = vmul.f32 %v2424, 0.70710677
  %v2465 = vmul.f32 %v2426, 0.70710677
  %v2466 = vmul.f32 %v2430, 0.70710677
  %v2467 = vmul.f32 %v2432, 0.70710677
  %v2468 = vmul.f32 %v2434, 0.70710677
  %v2469 = vmul.f32 %v2436, 0.70710677
  %vm2470 = vcmp.lt.f32.partialorder %v2454, 0.0
  %vm2471 = vcmp.lt.f32.partialorder %v2455, 0.0
  %vm2472 = vcmp.lt.f32.partialorder %v2456, 0.0
  %vm2473 = vcmp.lt.f32.partialorder %v2457, 0.0
  %vm2474 = vcmp.lt.f32.partialorder %v2458, 0.0
  %vm2475 = vcmp.lt.f32.partialorder %v2459, 0.0
  %vm2476 = vcmp.lt.f32.partialorder %v2460, 0.0
  %vm2477 = vcmp.lt.f32.partialorder %v2461, 0.0
  %vm2478 = vcmp.lt.f32.partialorder %v2462, 0.0
  %vm2479 = vcmp.lt.f32.partialorder %v2463, 0.0
  %vm2480 = vcmp.lt.f32.partialorder %v2464, 0.0
  %vm2481 = vcmp.lt.f32.partialorder %v2465, 0.0
  %vm2482 = vcmp.lt.f32.partialorder %v2466, 0.0
  %vm2483 = vcmp.lt.f32.partialorder %v2467, 0.0
  %vm2484 = vcmp.lt.f32.partialorder %v2468, 0.0
  %vm2485 = vcmp.lt.f32.partialorder %v2469, 0.0
  %v2486 = vsel %vm2470, -1.0, 1.0
  %v2487 = vsel %vm2471, -1.0, 1.0
  %v2488 = vsel %vm2472, -1.0, 1.0
  %v2489 = vsel %vm2473, -1.0, 1.0
  %v2490 = vsel %vm2474, -1.0, 1.0
  %v2491 = vsel %vm2475, -1.0, 1.0
  %v2492 = vsel %vm2476, -1.0, 1.0
  %v2493 = vsel %vm2477, -1.0, 1.0
  %v2494 = vsel %vm2478, -1.0, 1.0
  %v2495 = vsel %vm2479, -1.0, 1.0
  %v2496 = vsel %vm2480, -1.0, 1.0
  %v2497 = vsel %vm2481, -1.0, 1.0
  %v2498 = vsel %vm2482, -1.0, 1.0
  %v2499 = vsel %vm2483, -1.0, 1.0
  %v2500 = vsel %vm2484, -1.0, 1.0
  %v2501 = vsel %vm2485, -1.0, 1.0
  %v2502 = vand.u32 2147483647, %v2454
  %v2503 = vand.u32 2147483647, %v2455
  %v2504 = vand.u32 2147483647, %v2456
  %v2505 = vand.u32 2147483647, %v2457
  %v2506 = vand.u32 2147483647, %v2458
  %v2507 = vand.u32 2147483647, %v2459
  %v2508 = vand.u32 2147483647, %v2460
  %v2509 = vand.u32 2147483647, %v2461
  %v2510 = vand.u32 2147483647, %v2462
  %v2511 = vand.u32 2147483647, %v2463
  %v2512 = vand.u32 2147483647, %v2464
  %v2513 = vand.u32 2147483647, %v2465
  %v2514 = vand.u32 2147483647, %v2466
  %v2515 = vand.u32 2147483647, %v2467
  %v2516 = vand.u32 2147483647, %v2468
  %v2517 = vand.u32 2147483647, %v2469
  %v2518 = vmul.f32 %v2502, 0.3275911
  %v2519 = vmul.f32 %v2503, 0.3275911
  %v2520 = vmul.f32 %v2504, 0.3275911
  %v2521 = vmul.f32 %v2505, 0.3275911
  %v2522 = vmul.f32 %v2506, 0.3275911
  %v2523 = vmul.f32 %v2507, 0.3275911
  %v2524 = vmul.f32 %v2508, 0.3275911
  %v2525 = vmul.f32 %v2509, 0.3275911
  %v2526 = vmul.f32 %v2510, 0.3275911
  %v2527 = vmul.f32 %v2511, 0.3275911
  %v2528 = vmul.f32 %v2512, 0.3275911
  %v2529 = vmul.f32 %v2513, 0.3275911
  %v2530 = vmul.f32 %v2514, 0.3275911
  %v2531 = vmul.f32 %v2515, 0.3275911
  %v2532 = vmul.f32 %v2516, 0.3275911
  %v2533 = vmul.f32 %v2517, 0.3275911
  %v2534 = vadd.f32 %v2518, 1.0
  %v2535 = vadd.f32 %v2519, 1.0
  %v2536 = vadd.f32 %v2520, 1.0
  %v2537 = vadd.f32 %v2521, 1.0
  %v2538 = vadd.f32 %v2522, 1.0
  %v2539 = vadd.f32 %v2523, 1.0
  %v2540 = vadd.f32 %v2524, 1.0
  %v2541 = vadd.f32 %v2525, 1.0
  %v2542 = vadd.f32 %v2526, 1.0
  %v2543 = vadd.f32 %v2527, 1.0
  %v2544 = vadd.f32 %v2528, 1.0
  %v2545 = vadd.f32 %v2529, 1.0
  %v2546 = vadd.f32 %v2530, 1.0
  %v2547 = vadd.f32 %v2531, 1.0
  %v2548 = vadd.f32 %v2532, 1.0
  %v2549 = vadd.f32 %v2533, 1.0
  %v2550 = vrcp.pop %v2534
  %v2551 = vrcp.pop %v2535
  %v2552 = vrcp.pop %v2536
  %v2553 = vrcp.pop %v2537
  %v2554 = vrcp.pop %v2538
  %v2555 = vrcp.pop %v2539
  %v2556 = vrcp.pop %v2540
  %v2557 = vrcp.pop %v2541
  %v2558 = vrcp.pop %v2542
  %v2559 = vrcp.pop %v2543
  %v2560 = vrcp.pop %v2544
  %v2561 = vrcp.pop %v2545
  %v2562 = vrcp.pop %v2546
  %v2563 = vrcp.pop %v2547
  %v2564 = vrcp.pop %v2548
  %v2565 = vrcp.pop %v2549
  %v2566 = vmul.f32 %v2550, 1.0614054
  %v2567 = vmul.f32 %v2551, 1.0614054
  %v2568 = vmul.f32 %v2552, 1.0614054
  %v2569 = vmul.f32 %v2553, 1.0614054
  %v2570 = vmul.f32 %v2554, 1.0614054
  %v2571 = vmul.f32 %v2555, 1.0614054
  %v2572 = vmul.f32 %v2556, 1.0614054
  %v2573 = vmul.f32 %v2557, 1.0614054
  %v2574 = vmul.f32 %v2558, 1.0614054
  %v2575 = vmul.f32 %v2559, 1.0614054
  %v2576 = vmul.f32 %v2560, 1.0614054
  %v2577 = vmul.f32 %v2561, 1.0614054
  %v2578 = vmul.f32 %v2562, 1.0614054
  %v2579 = vmul.f32 %v2563, 1.0614054
  %v2580 = vmul.f32 %v2564, 1.0614054
  %v2581 = vmul.f32 %v2565, 1.0614054
  %v2582 = vadd.f32 %v2566, -1.4531521
  %v2583 = vadd.f32 %v2567, -1.4531521
  %v2584 = vadd.f32 %v2568, -1.4531521
  %v2585 = vadd.f32 %v2569, -1.4531521
  %v2586 = vadd.f32 %v2570, -1.4531521
  %v2587 = vadd.f32 %v2571, -1.4531521
  %v2588 = vadd.f32 %v2572, -1.4531521
  %v2589 = vadd.f32 %v2573, -1.4531521
  %v2590 = vadd.f32 %v2574, -1.4531521
  %v2591 = vadd.f32 %v2575, -1.4531521
  %v2592 = vadd.f32 %v2576, -1.4531521
  %v2593 = vadd.f32 %v2577, -1.4531521
  %v2594 = vadd.f32 %v2578, -1.4531521
  %v2595 = vadd.f32 %v2579, -1.4531521
  %v2596 = vadd.f32 %v2580, -1.4531521
  %v2597 = vadd.f32 %v2581, -1.4531521
  %v2598 = vmul.f32 %v2582, %v2550
  %v2599 = vmul.f32 %v2583, %v2551
  %v2600 = vmul.f32 %v2584, %v2552
  %v2601 = vmul.f32 %v2585, %v2553
  %v2602 = vmul.f32 %v2586, %v2554
  %v2603 = vmul.f32 %v2587, %v2555
  %v2604 = vmul.f32 %v2588, %v2556
  %v2605 = vmul.f32 %v2589, %v2557
  %v2606 = vmul.f32 %v2590, %v2558
  %v2607 = vmul.f32 %v2591, %v2559
  %v2608 = vmul.f32 %v2592, %v2560
  %v2609 = vmul.f32 %v2593, %v2561
  %v2610 = vmul.f32 %v2594, %v2562
  %v2611 = vmul.f32 %v2595, %v2563
  %v2612 = vmul.f32 %v2596, %v2564
  %v2613 = vmul.f32 %v2597, %v2565
  %v2614 = vadd.f32 %v2598, 1.4214138
  %v2615 = vadd.f32 %v2599, 1.4214138
  %v2616 = vadd.f32 %v2600, 1.4214138
  %v2617 = vadd.f32 %v2601, 1.4214138
  %v2618 = vadd.f32 %v2602, 1.4214138
  %v2619 = vadd.f32 %v2603, 1.4214138
  %v2620 = vadd.f32 %v2604, 1.4214138
  %v2621 = vadd.f32 %v2605, 1.4214138
  %v2622 = vadd.f32 %v2606, 1.4214138
  %v2623 = vadd.f32 %v2607, 1.4214138
  %v2624 = vadd.f32 %v2608, 1.4214138
  %v2625 = vadd.f32 %v2609, 1.4214138
  %v2626 = vadd.f32 %v2610, 1.4214138
  %v2627 = vadd.f32 %v2611, 1.4214138
  %v2628 = vadd.f32 %v2612, 1.4214138
  %v2629 = vadd.f32 %v2613, 1.4214138
  %v2630 = vmul.f32 %v2614, %v2550
  %v2631 = vmul.f32 %v2615, %v2551
  %v2632 = vmul.f32 %v2616, %v2552
  %v2633 = vmul.f32 %v2617, %v2553
  %v2634 = vmul.f32 %v2618, %v2554
  %v2635 = vmul.f32 %v2619, %v2555
  %v2636 = vmul.f32 %v2620, %v2556
  %v2637 = vmul.f32 %v2621, %v2557
  %v2638 = vmul.f32 %v2622, %v2558
  %v2639 = vmul.f32 %v2623, %v2559
  %v2640 = vmul.f32 %v2624, %v2560
  %v2641 = vmul.f32 %v2625, %v2561
  %v2642 = vmul.f32 %v2626, %v2562
  %v2643 = vmul.f32 %v2627, %v2563
  %v2644 = vmul.f32 %v2628, %v2564
  %v2645 = vmul.f32 %v2629, %v2565
  %v2646 = vadd.f32 %v2630, -0.28449672
  %v2647 = vadd.f32 %v2631, -0.28449672
  %v2648 = vadd.f32 %v2632, -0.28449672
  %v2649 = vadd.f32 %v2633, -0.28449672
  %v2650 = vadd.f32 %v2634, -0.28449672
  %v2651 = vadd.f32 %v2635, -0.28449672
  %v2652 = vadd.f32 %v2636, -0.28449672
  %v2653 = vadd.f32 %v2637, -0.28449672
  %v2654 = vadd.f32 %v2638, -0.28449672
  %v2655 = vadd.f32 %v2639, -0.28449672
  %v2656 = vadd.f32 %v2640, -0.28449672
  %v2657 = vadd.f32 %v2641, -0.28449672
  %v2658 = vadd.f32 %v2642, -0.28449672
  %v2659 = vadd.f32 %v2643, -0.28449672
  %v2660 = vadd.f32 %v2644, -0.28449672
  %v2661 = vadd.f32 %v2645, -0.28449672
  %v2662 = vmul.f32 %v2646, %v2550
  %v2663 = vmul.f32 %v2647, %v2551
  %v2664 = vmul.f32 %v2648, %v2552
  %v2665 = vmul.f32 %v2649, %v2553
  %v2666 = vmul.f32 %v2650, %v2554
  %v2667 = vmul.f32 %v2651, %v2555
  %v2668 = vmul.f32 %v2652, %v2556
  %v2669 = vmul.f32 %v2653, %v2557
  %v2670 = vmul.f32 %v2654, %v2558
  %v2671 = vmul.f32 %v2655, %v2559
  %v2672 = vmul.f32 %v2656, %v2560
  %v2673 = vmul.f32 %v2657, %v2561
  %v2674 = vmul.f32 %v2658, %v2562
  %v2675 = vmul.f32 %v2659, %v2563
  %v2676 = vmul.f32 %v2660, %v2564
  %v2677 = vmul.f32 %v2661, %v2565
  %v2678 = vadd.f32 %v2662, 0.2548296
  %v2679 = vadd.f32 %v2663, 0.2548296
  %v2680 = vadd.f32 %v2664, 0.2548296
  %v2681 = vadd.f32 %v2665, 0.2548296
  %v2682 = vadd.f32 %v2666, 0.2548296
  %v2683 = vadd.f32 %v2667, 0.2548296
  %v2684 = vadd.f32 %v2668, 0.2548296
  %v2685 = vadd.f32 %v2669, 0.2548296
  %v2686 = vadd.f32 %v2670, 0.2548296
  %v2687 = vadd.f32 %v2671, 0.2548296
  %v2688 = vadd.f32 %v2672, 0.2548296
  %v2689 = vadd.f32 %v2673, 0.2548296
  %v2690 = vadd.f32 %v2674, 0.2548296
  %v2691 = vadd.f32 %v2675, 0.2548296
  %v2692 = vadd.f32 %v2676, 0.2548296
  %v2693 = vadd.f32 %v2677, 0.2548296
  %v2694 = vmul.f32 %v2678, %v2550
  %v2695 = vmul.f32 %v2679, %v2551
  %v2696 = vmul.f32 %v2680, %v2552
  %v2697 = vmul.f32 %v2681, %v2553
  %v2698 = vmul.f32 %v2682, %v2554
  %v2699 = vmul.f32 %v2683, %v2555
  %v2700 = vmul.f32 %v2684, %v2556
  %v2701 = vmul.f32 %v2685, %v2557
  %v2702 = vmul.f32 %v2686, %v2558
  %v2703 = vmul.f32 %v2687, %v2559
  %v2704 = vmul.f32 %v2688, %v2560
  %v2705 = vmul.f32 %v2689, %v2561
  %v2706 = vmul.f32 %v2690, %v2562
  %v2707 = vmul.f32 %v2691, %v2563
  %v2708 = vmul.f32 %v2692, %v2564
  %v2709 = vmul.f32 %v2693, %v2565
  %v2710 = vsub.f32 0.0, %v2502
  %v2711 = vsub.f32 0.0, %v2503
  %v2712 = vsub.f32 0.0, %v2504
  %v2713 = vsub.f32 0.0, %v2505
  %v2714 = vsub.f32 0.0, %v2506
  %v2715 = vsub.f32 0.0, %v2507
  %v2716 = vsub.f32 0.0, %v2508
  %v2717 = vsub.f32 0.0, %v2509
  %v2718 = vsub.f32 0.0, %v2510
  %v2719 = vsub.f32 0.0, %v2511
  %v2720 = vsub.f32 0.0, %v2512
  %v2721 = vsub.f32 0.0, %v2513
  %v2722 = vsub.f32 0.0, %v2514
  %v2723 = vsub.f32 0.0, %v2515
  %v2724 = vsub.f32 0.0, %v2516
  %v2725 = vsub.f32 0.0, %v2517
  %v2726 = vmul.f32 %v2710, %v2502
  %v2727 = vmul.f32 %v2711, %v2503
  %v2728 = vmul.f32 %v2712, %v2504
  %v2729 = vmul.f32 %v2713, %v2505
  %v2730 = vmul.f32 %v2714, %v2506
  %v2731 = vmul.f32 %v2715, %v2507
  %v2732 = vmul.f32 %v2716, %v2508
  %v2733 = vmul.f32 %v2717, %v2509
  %v2734 = vmul.f32 %v2718, %v2510
  %v2735 = vmul.f32 %v2719, %v2511
  %v2736 = vmul.f32 %v2720, %v2512
  %v2737 = vmul.f32 %v2721, %v2513
  %v2738 = vmul.f32 %v2722, %v2514
  %v2739 = vmul.f32 %v2723, %v2515
  %v2740 = vmul.f32 %v2724, %v2516
  %v2741 = vmul.f32 %v2725, %v2517
  %v2742 = vmul.f32 %v2726, 1.442695
  %v2743 = vpow.pop %v2742
  %v2744 = vmul.f32 %v2727, 1.442695
  %v2745 = vpow.pop %v2744
  %v2746 = vmul.f32 %v2728, 1.442695
  %v2747 = vpow.pop %v2746
  %v2748 = vmul.f32 %v2729, 1.442695
  %v2749 = vpow.pop %v2748
  %v2750 = vmul.f32 %v2730, 1.442695
  %v2751 = vpow.pop %v2750
  %v2752 = vmul.f32 %v2731, 1.442695
  %v2753 = vpow.pop %v2752
  %v2754 = vmul.f32 %v2732, 1.442695
  %v2755 = vpow.pop %v2754
  %v2756 = vmul.f32 %v2733, 1.442695
  %v2757 = vpow.pop %v2756
  %v2758 = vmul.f32 %v2734, 1.442695
  %v2759 = vpow.pop %v2758
  %v2760 = vmul.f32 %v2735, 1.442695
  %v2761 = vpow.pop %v2760
  %v2762 = vmul.f32 %v2736, 1.442695
  %v2763 = vpow.pop %v2762
  %v2764 = vmul.f32 %v2737, 1.442695
  %v2765 = vpow.pop %v2764
  %v2766 = vmul.f32 %v2738, 1.442695
  %v2767 = vpow.pop %v2766
  %v2768 = vmul.f32 %v2739, 1.442695
  %v2769 = vpow.pop %v2768
  %v2770 = vmul.f32 %v2740, 1.442695
  %v2771 = vpow.pop %v2770
  %v2772 = vmul.f32 %v2741, 1.442695
  %v2773 = vpow.pop %v2772
  %v2774 = vmul.f32 %v2694, %v2743
  %v2775 = vmul.f32 %v2695, %v2745
  %v2776 = vmul.f32 %v2696, %v2747
  %v2777 = vmul.f32 %v2697, %v2749
  %v2778 = vmul.f32 %v2698, %v2751
  %v2779 = vmul.f32 %v2699, %v2753
  %v2780 = vmul.f32 %v2700, %v2755
  %v2781 = vmul.f32 %v2701, %v2757
  %v2782 = vmul.f32 %v2702, %v2759
  %v2783 = vmul.f32 %v2703, %v2761
  %v2784 = vmul.f32 %v2704, %v2763
  %v2785 = vmul.f32 %v2705, %v2765
  %v2786 = vmul.f32 %v2706, %v2767
  %v2787 = vmul.f32 %v2707, %v2769
  %v2788 = vmul.f32 %v2708, %v2771
  %v2789 = vmul.f32 %v2709, %v2773
  %v2790 = vsub.f32 1.0, %v2774
  %v2791 = vsub.f32 1.0, %v2775
  %v2792 = vsub.f32 1.0, %v2776
  %v2793 = vsub.f32 1.0, %v2777
  %v2794 = vsub.f32 1.0, %v2778
  %v2795 = vsub.f32 1.0, %v2779
  %v2796 = vsub.f32 1.0, %v2780
  %v2797 = vsub.f32 1.0, %v2781
  %v2798 = vsub.f32 1.0, %v2782
  %v2799 = vsub.f32 1.0, %v2783
  %v2800 = vsub.f32 1.0, %v2784
  %v2801 = vsub.f32 1.0, %v2785
  %v2802 = vsub.f32 1.0, %v2786
  %v2803 = vsub.f32 1.0, %v2787
  %v2804 = vsub.f32 1.0, %v2788
  %v2805 = vsub.f32 1.0, %v2789
  %v2806 = vmul.f32 %v2486, %v2790
  %v2807 = vmul.f32 %v2487, %v2791
  %v2808 = vmul.f32 %v2488, %v2792
  %v2809 = vmul.f32 %v2489, %v2793
  %v2810 = vmul.f32 %v2490, %v2794
  %v2811 = vmul.f32 %v2491, %v2795
  %v2812 = vmul.f32 %v2492, %v2796
  %v2813 = vmul.f32 %v2493, %v2797
  %v2814 = vmul.f32 %v2494, %v2798
  %v2815 = vmul.f32 %v2495, %v2799
  %v2816 = vmul.f32 %v2496, %v2800
  %v2817 = vmul.f32 %v2497, %v2801
  %v2818 = vmul.f32 %v2498, %v2802
  %v2819 = vmul.f32 %v2499, %v2803
  %v2820 = vmul.f32 %v2500, %v2804
  %v2821 = vmul.f32 %v2501, %v2805
  %v2822 = vadd.f32 %v2806, 1.0
  %v2823 = vadd.f32 %v2807, 1.0
  %v2824 = vadd.f32 %v2808, 1.0
  %v2825 = vadd.f32 %v2809, 1.0
  %v2826 = vadd.f32 %v2810, 1.0
  %v2827 = vadd.f32 %v2811, 1.0
  %v2828 = vadd.f32 %v2812, 1.0
  %v2829 = vadd.f32 %v2813, 1.0
  %v2830 = vadd.f32 %v2814, 1.0
  %v2831 = vadd.f32 %v2815, 1.0
  %v2832 = vadd.f32 %v2816, 1.0
  %v2833 = vadd.f32 %v2817, 1.0
  %v2834 = vadd.f32 %v2818, 1.0
  %v2835 = vadd.f32 %v2819, 1.0
  %v2836 = vadd.f32 %v2820, 1.0
  %v2837 = vadd.f32 %v2821, 1.0
  %v2838 = vmul.f32 %v2438, %v2822
  %v2839 = vmul.f32 %v2439, %v2823
  %v2840 = vmul.f32 %v2440, %v2824
  %v2841 = vmul.f32 %v2441, %v2825
  %v2842 = vmul.f32 %v2442, %v2826
  %v2843 = vmul.f32 %v2443, %v2827
  %v2844 = vmul.f32 %v2444, %v2828
  %v2845 = vmul.f32 %v2445, %v2829
  %v2846 = vmul.f32 %v2446, %v2830
  %v2847 = vmul.f32 %v2447, %v2831
  %v2848 = vmul.f32 %v2448, %v2832
  %v2849 = vmul.f32 %v2449, %v2833
  %v2850 = vmul.f32 %v2450, %v2834
  %v2851 = vmul.f32 %v2451, %v2835
  %v2852 = vmul.f32 %v2452, %v2836
  %v2853 = vmul.f32 %v2453, %v2837
  %v2854 = vpack.c.bf16 %v2840, %v2838
  %v2855 = vpack.c.bf16 %v2841, %v2839
  %v2856 = vpack.c.bf16 %v2844, %v2842
  %v2857 = vpack.c.bf16 %v2845, %v2843
  %v2858 = vpack.c.bf16 %v2848, %v2846
  %v2859 = vpack.c.bf16 %v2849, %v2847
  %v2860 = vpack.c.bf16 %v2852, %v2850
  %v2861 = vpack.c.bf16 %v2853, %v2851
  %v2862 = vld [vmem:[%s14] sm:$0xf]
  %v2863 = vld [vmem:[%s14 + $0x4] sm:$0xf]
  %v2864 = vld [vmem:[%s14 + $0x8] sm:$0xf]
  %v2865 = vld [vmem:[%s14 + $0xc] sm:$0xf]
  %v2866 = vld [vmem:[%s14 + $0x10] sm:$0xf]
  %v2867 = vld [vmem:[%s14 + $0x14] sm:$0xf]
  %v2868 = vld [vmem:[%s14 + $0x18] sm:$0xf]
  %v2869 = vld [vmem:[%s14 + $0x1c] sm:$0xf]
  %v2870 = vld [vmem:[%s14 + $0x20] sm:$0xf]
  %v2871 = vld [vmem:[%s14 + $0x24] sm:$0xf]
  %v2872 = vld [vmem:[%s14 + $0x28] sm:$0xf]
  %v2873 = vld [vmem:[%s14 + $0x2c] sm:$0xf]
  %v2874 = vld [vmem:[%s14 + $0x30] sm:$0xf]
  %v2875 = vld [vmem:[%s14 + $0x34] sm:$0xf]
  %v2876 = vld [vmem:[%s14 + $0x38] sm:$0xf]
  %v2877 = vld [vmem:[%s14 + $0x3c] sm:$0xf]
  %v2878 = vld [vmem:[%s14 + $0x40] sm:$0xf]
  %v2879 = vld [vmem:[%s14 + $0x44] sm:$0xf]
  %v2880 = vld [vmem:[%s14 + $0x48] sm:$0xf]
  %v2881 = vld [vmem:[%s14 + $0x4c] sm:$0xf]
  %v2882 = vld [vmem:[%s14 + $0x50] sm:$0xf]
  %v2883 = vld [vmem:[%s14 + $0x54] sm:$0xf]
  %v2884 = vld [vmem:[%s14 + $0x58] sm:$0xf]
  %v2885 = vld [vmem:[%s14 + $0x5c] sm:$0xf]
  %v2886 = vld [vmem:[%s14 + $0x60] sm:$0xf]
  %v2887 = vld [vmem:[%s14 + $0x64] sm:$0xf]
  %v2888 = vld [vmem:[%s14 + $0x68] sm:$0xf]
  %v2889 = vld [vmem:[%s14 + $0x6c] sm:$0xf]
  %v2890 = vld [vmem:[%s14 + $0x70] sm:$0xf]
  %v2891 = vld [vmem:[%s14 + $0x74] sm:$0xf]
  %v2892 = vld [vmem:[%s14 + $0x78] sm:$0xf]
  %v2893 = vld [vmem:[%s14 + $0x7c] sm:$0xf]
  %v2894 = vld [vmem:[%s15] sm:$0x1]
  %v2896 = vlaneseq
  %v2897 = vshrl.u32 %v2896, 7
  %v2898 = vsub.s32 0, %v2897
  %v2899 = vrot.slane %v2894, %v2898
  %v2933 = vunpack.c.l.b16 %v2862
  %v2934 = vunpack.c.l.b16 %v2863
  %v2935 = vunpack.c.l.b16 %v2864
  %v2936 = vunpack.c.l.b16 %v2865
  %v2937 = vunpack.c.l.b16 %v2866
  %v2938 = vunpack.c.l.b16 %v2867
  %v2939 = vunpack.c.l.b16 %v2868
  %v2940 = vunpack.c.l.b16 %v2869
  %v2941 = vunpack.c.l.b16 %v2870
  %v2942 = vunpack.c.l.b16 %v2871
  %v2943 = vunpack.c.l.b16 %v2872
  %v2944 = vunpack.c.l.b16 %v2873
  %v2945 = vunpack.c.l.b16 %v2874
  %v2946 = vunpack.c.l.b16 %v2875
  %v2947 = vunpack.c.l.b16 %v2876
  %v2948 = vunpack.c.l.b16 %v2877
  %v2949 = vunpack.c.l.b16 %v2878
  %v2950 = vunpack.c.l.b16 %v2879
  %v2951 = vunpack.c.l.b16 %v2880
  %v2952 = vunpack.c.l.b16 %v2881
  %v2953 = vunpack.c.l.b16 %v2882
  %v2954 = vunpack.c.l.b16 %v2883
  %v2955 = vunpack.c.l.b16 %v2884
  %v2956 = vunpack.c.l.b16 %v2885
  %v2957 = vunpack.c.l.b16 %v2886
  %v2958 = vunpack.c.l.b16 %v2887
  %v2959 = vunpack.c.l.b16 %v2888
  %v2960 = vunpack.c.l.b16 %v2889
  %v2961 = vunpack.c.l.b16 %v2890
  %v2962 = vunpack.c.l.b16 %v2891
  %v2963 = vunpack.c.l.b16 %v2892
  %v2964 = vunpack.c.l.b16 %v2893
  %v2965 = vpack.c.b16 %v2934, %v2933
  %v2966 = vpack.c.b16 %v2936, %v2935
  %v2967 = vpack.c.b16 %v2938, %v2937
  %v2968 = vpack.c.b16 %v2940, %v2939
  %v2969 = vpack.c.b16 %v2942, %v2941
  %v2970 = vpack.c.b16 %v2944, %v2943
  %v2971 = vpack.c.b16 %v2946, %v2945
  %v2972 = vpack.c.b16 %v2948, %v2947
  %v2973 = vpack.c.b16 %v2950, %v2949
  %v2974 = vpack.c.b16 %v2952, %v2951
  %v2975 = vpack.c.b16 %v2954, %v2953
  %v2976 = vpack.c.b16 %v2956, %v2955
  %v2977 = vpack.c.b16 %v2958, %v2957
  %v2978 = vpack.c.b16 %v2960, %v2959
  %v2979 = vpack.c.b16 %v2962, %v2961
  %v2980 = vpack.c.b16 %v2964, %v2963
  %2997 = vmatprep.subr.bf16.mxu0 0
  %2998 = vmatpush1.bf16.msra.mxu0 %v2965
  %2999 = vmatprep.subr.bf16.mxu0 0
  %3000 = vmatpush1.bf16.msra.mxu0 %v2966
  %3001 = vmatprep.subr.bf16.mxu0 0
  %3002 = vmatpush1.bf16.msra.mxu0 %v2967
  %3003 = vmatprep.subr.bf16.mxu0 0
  %3004 = vmatpush1.bf16.msra.mxu0 %v2968
  %3005 = vmatprep.subr.bf16.mxu0 0
  %3006 = vmatpush1.bf16.msra.mxu0 %v2969
  %3007 = vmatprep.subr.bf16.mxu0 0
  %3008 = vmatpush1.bf16.msra.mxu0 %v2970
  %3009 = vmatprep.subr.bf16.mxu0 0
  %3010 = vmatpush1.bf16.msra.mxu0 %v2971
  %3011 = vmatprep.subr.bf16.mxu0 0
  %3012 = vmatpush1.bf16.msra.mxu0 %v2972
  %3013 = vmatprep.subr.bf16.mxu0 0
  %3014 = vmatpush1.bf16.msra.mxu0 %v2973
  %3015 = vmatprep.subr.bf16.mxu0 0
  %3016 = vmatpush1.bf16.msra.mxu0 %v2974
  %3017 = vmatprep.subr.bf16.mxu0 0
  %3018 = vmatpush1.bf16.msra.mxu0 %v2975
  %3019 = vmatprep.subr.bf16.mxu0 0
  %3020 = vmatpush1.bf16.msra.mxu0 %v2976
  %3021 = vmatprep.subr.bf16.mxu0 0
  %3022 = vmatpush1.bf16.msra.mxu0 %v2977
  %3023 = vmatprep.subr.bf16.mxu0 0
  %3024 = vmatpush1.bf16.msra.mxu0 %v2978
  %3025 = vmatprep.subr.bf16.mxu0 0
  %3026 = vmatpush1.bf16.msra.mxu0 %v2979
  %3027 = vmatprep.subr.bf16.mxu0 0
  %3028 = vmatpush1.bf16.msra.mxu0 %v2980
  %3029 = vmatprep.mubr.bf16.mxu0 %v2855
  %3030 = vmatmul.mubr.bf16.gmra.mrb[0].mxu0 %v2854
  %v3031 = vpop.f32.mrb[0].mxu0
  %v3032 = vadd.f32 %v2899, %v3031
  %v3033 = vpop.f32.mrb[0].mxu0
  %v3034 = vpop.f32.mrb[0].mxu0
  %v3035 = vadd.f32 %v2899, %v3034
  %v3036 = vpop.f32.mrb[0].mxu0
  %3037 = vmatprep.mubr.bf16.mxu0 %v2857
  %3038 = vmatmul.mubr.bf16.gmra.mrb[0].mxu0 %v2856
  %v3039 = vpop.f32.mrb[0].mxu0
  %v3040 = vadd.f32 %v2899, %v3039
  %v3041 = vpop.f32.mrb[0].mxu0
  %v3042 = vpop.f32.mrb[0].mxu0
  %v3043 = vadd.f32 %v2899, %v3042
  %v3044 = vpop.f32.mrb[0].mxu0
  %3045 = vmatprep.mubr.bf16.mxu0 %v2859
  %3046 = vmatmul.mubr.bf16.gmra.mrb[0].mxu0 %v2858
  %v3047 = vpop.f32.mrb[0].mxu0
  %v3048 = vadd.f32 %v2899, %v3047
  %v3049 = vpop.f32.mrb[0].mxu0
  %v3050 = vpop.f32.mrb[0].mxu0
  %v3051 = vadd.f32 %v2899, %v3050
  %v3052 = vpop.f32.mrb[0].mxu0
  %3053 = vmatprep.mubr.bf16.mxu0 %v2861
  %3054 = vmatmul.mubr.bf16.gmra.mrb[0].mxu0 %v2860
  %v3055 = vpop.f32.mrb[0].mxu0
  %v3056 = vadd.f32 %v2899, %v3055
  %v3057 = vpop.f32.mrb[0].mxu0
  %v3058 = vpop.f32.mrb[0].mxu0
  %v3059 = vadd.f32 %v2899, %v3058
  %v3060 = vpop.f32.mrb[0].mxu0
  %3061 = vdwg.mxu0
  %v3062 = vadd.f32 %v2147, %v3032
  %v3063 = vadd.f32 %v2148, %v3035
  %v3064 = vadd.f32 %v2149, %v3040
  %v3065 = vadd.f32 %v2150, %v3043
  %v3066 = vadd.f32 %v2151, %v3048
  %v3067 = vadd.f32 %v2152, %v3051
  %v3068 = vadd.f32 %v2153, %v3056
  %v3069 = vadd.f32 %v2154, %v3059
  %s3070 = scalar_lea.vmem %s4, 1
  %v3071 = vld [vmem:[%s3070] sm:$0x1]
  %s3072 = scalar_lea.vmem %s5, 1
  %v3073 = vld [vmem:[%s3072] sm:$0x1]
  %v3074 = vsel %vm449, %v3062, 0.0
  %3075 = vadd.xlane.f32.xlu0 %v3074
  %v3076 = vpop.xlane.xlu0 %3075
  %v3077 = vsel %vm449, %v3063, 0.0
  %3078 = vadd.xlane.f32.xlu0 %v3077
  %v3079 = vpop.xlane.xlu0 %3078
  %v3080 = vsel %vm449, %v3064, 0.0
  %3081 = vadd.xlane.f32.xlu0 %v3080
  %v3082 = vpop.xlane.xlu0 %3081
  %v3083 = vsel %vm449, %v3065, 0.0
  %3084 = vadd.xlane.f32.xlu0 %v3083
  %v3085 = vpop.xlane.xlu0 %3084
  %v3086 = vsel %vm449, %v3066, 0.0
  %3087 = vadd.xlane.f32.xlu0 %v3086
  %v3088 = vpop.xlane.xlu0 %3087
  %v3089 = vsel %vm449, %v3067, 0.0
  %3090 = vadd.xlane.f32.xlu0 %v3089
  %v3091 = vpop.xlane.xlu0 %3090
  %v3092 = vsel %vm449, %v3068, 0.0
  %3093 = vadd.xlane.f32.xlu0 %v3092
  %v3094 = vpop.xlane.xlu0 %3093
  %v3095 = vsel %vm449, %v3069, 0.0
  %3096 = vadd.xlane.f32.xlu0 %v3095
  %v3097 = vpop.xlane.xlu0 %3096
  %v3098 = vmul.f32 %v3076, %v474
  %v3099 = vmul.f32 %v3079, %v474
  %v3100 = vmul.f32 %v3082, %v474
  %v3101 = vmul.f32 %v3085, %v474
  %v3102 = vmul.f32 %v3088, %v474
  %v3103 = vmul.f32 %v3091, %v474
  %v3104 = vmul.f32 %v3094, %v474
  %v3105 = vmul.f32 %v3097, %v474
  %v3106 = vsub.f32 %v3062, %v3098
  %v3107 = vsub.f32 %v3063, %v3099
  %v3108 = vsub.f32 %v3064, %v3100
  %v3109 = vsub.f32 %v3065, %v3101
  %v3110 = vsub.f32 %v3066, %v3102
  %v3111 = vsub.f32 %v3067, %v3103
  %v3112 = vsub.f32 %v3068, %v3104
  %v3113 = vsub.f32 %v3069, %v3105
  %v3114 = vmul.f32 %v3106, %v3106
  %v3115 = vmul.f32 %v3107, %v3107
  %v3116 = vmul.f32 %v3108, %v3108
  %v3117 = vmul.f32 %v3109, %v3109
  %v3118 = vmul.f32 %v3110, %v3110
  %v3119 = vmul.f32 %v3111, %v3111
  %v3120 = vmul.f32 %v3112, %v3112
  %v3121 = vmul.f32 %v3113, %v3113
  %v3122 = vsel %vm449, %v3114, 0.0
  %3123 = vadd.xlane.f32.xlu0 %v3122
  %v3124 = vpop.xlane.xlu0 %3123
  %v3125 = vsel %vm449, %v3115, 0.0
  %3126 = vadd.xlane.f32.xlu0 %v3125
  %v3127 = vpop.xlane.xlu0 %3126
  %v3128 = vsel %vm449, %v3116, 0.0
  %3129 = vadd.xlane.f32.xlu0 %v3128
  %v3130 = vpop.xlane.xlu0 %3129
  %v3131 = vsel %vm449, %v3117, 0.0
  %3132 = vadd.xlane.f32.xlu0 %v3131
  %v3133 = vpop.xlane.xlu0 %3132
  %v3134 = vsel %vm449, %v3118, 0.0
  %3135 = vadd.xlane.f32.xlu0 %v3134
  %v3136 = vpop.xlane.xlu0 %3135
  %v3137 = vsel %vm449, %v3119, 0.0
  %3138 = vadd.xlane.f32.xlu0 %v3137
  %v3139 = vpop.xlane.xlu0 %3138
  %v3140 = vsel %vm449, %v3120, 0.0
  %3141 = vadd.xlane.f32.xlu0 %v3140
  %v3142 = vpop.xlane.xlu0 %3141
  %v3143 = vsel %vm449, %v3121, 0.0
  %3144 = vadd.xlane.f32.xlu0 %v3143
  %v3145 = vpop.xlane.xlu0 %3144
  %v3146 = vmul.f32 %v3124, %v474
  %v3147 = vmul.f32 %v3127, %v474
  %v3148 = vmul.f32 %v3130, %v474
  %v3149 = vmul.f32 %v3133, %v474
  %v3150 = vmul.f32 %v3136, %v474
  %v3151 = vmul.f32 %v3139, %v474
  %v3152 = vmul.f32 %v3142, %v474
  %v3153 = vmul.f32 %v3145, %v474
  %v3154 = vadd.f32 %v3146, 1e-06
  %v3155 = vadd.f32 %v3147, 1e-06
  %v3156 = vadd.f32 %v3148, 1e-06
  %v3157 = vadd.f32 %v3149, 1e-06
  %v3158 = vadd.f32 %v3150, 1e-06
  %v3159 = vadd.f32 %v3151, 1e-06
  %v3160 = vadd.f32 %v3152, 1e-06
  %v3161 = vadd.f32 %v3153, 1e-06
  %v3162 = vrsqrt.pop %v3154
  %v3163 = vrsqrt.pop %v3155
  %v3164 = vrsqrt.pop %v3156
  %v3165 = vrsqrt.pop %v3157
  %v3166 = vrsqrt.pop %v3158
  %v3167 = vrsqrt.pop %v3159
  %v3168 = vrsqrt.pop %v3160
  %v3169 = vrsqrt.pop %v3161
  %v3170 = vmul.f32 %v3106, %v3162
  %v3171 = vmul.f32 %v3107, %v3163
  %v3172 = vmul.f32 %v3108, %v3164
  %v3173 = vmul.f32 %v3109, %v3165
  %v3174 = vmul.f32 %v3110, %v3166
  %v3175 = vmul.f32 %v3111, %v3167
  %v3176 = vmul.f32 %v3112, %v3168
  %v3177 = vmul.f32 %v3113, %v3169
  %v3179 = vlaneseq
  %v3180 = vshrl.u32 %v3179, 7
  %v3181 = vsub.s32 0, %v3180
  %v3182 = vrot.slane %v3071, %v3181
  %v3184 = vmul.f32 %v3170, %v3182
  %v3185 = vmul.f32 %v3171, %v3182
  %v3186 = vmul.f32 %v3172, %v3182
  %v3187 = vmul.f32 %v3173, %v3182
  %v3188 = vmul.f32 %v3174, %v3182
  %v3189 = vmul.f32 %v3175, %v3182
  %v3190 = vmul.f32 %v3176, %v3182
  %v3191 = vmul.f32 %v3177, %v3182
  %v3193 = vlaneseq
  %v3194 = vshrl.u32 %v3193, 7
  %v3195 = vsub.s32 0, %v3194
  %v3196 = vrot.slane %v3073, %v3195
  %v3198 = vadd.f32 %v3184, %v3196
  %v3199 = vadd.f32 %v3185, %v3196
  %v3200 = vadd.f32 %v3186, %v3196
  %v3201 = vadd.f32 %v3187, %v3196
  %v3202 = vadd.f32 %v3188, %v3196
  %v3203 = vadd.f32 %v3189, %v3196
  %v3204 = vadd.f32 %v3190, %v3196
  %v3205 = vadd.f32 %v3191, %v3196
  %v3206 = vpack.c.bf16 %v3199, %v3198
  %v3207 = vpack.c.bf16 %v3201, %v3200
  %v3208 = vpack.c.bf16 %v3203, %v3202
  %v3209 = vpack.c.bf16 %v3205, %v3204
  %s3210 = scalar_lea.vmem %s6, 64
  %v3211 = vld [vmem:[%s3210] sm:$0xff]
  %v3212 = vld [vmem:[%s3210 + $0x8] sm:$0xff]
  %v3213 = vld [vmem:[%s3210 + $0x10] sm:$0xff]
  %v3214 = vld [vmem:[%s3210 + $0x18] sm:$0xff]
  %v3215 = vld [vmem:[%s3210 + $0x20] sm:$0xff]
  %v3216 = vld [vmem:[%s3210 + $0x28] sm:$0xff]
  %v3217 = vld [vmem:[%s3210 + $0x30] sm:$0xff]
  %v3218 = vld [vmem:[%s3210 + $0x38] sm:$0xff]
  %s3219 = scalar_lea.vmem %s7, 2
  %v3220 = vld [vmem:[%s3219] sm:$0x3]
  %v3222 = vlaneseq
  %v3223 = vshrl.u32 %v3222, 7
  %v3224 = vsub.s32 0, %v3223
  %v3225 = vrot.slane %v3220, %v3224
  %v3226 = vlaneseq
  %v3227 = vshrl.u32 %v3226, 7
  %v3228 = vsub.s32 1, %v3227
  %v3229 = vrot.slane %v3220, %v3228
  %v3240 = vunpack.c.l.b16 %v3211
  %v3241 = vunpack.c.h.b16 %v3211
  %v3242 = vunpack.c.l.b16 %v3212
  %v3243 = vunpack.c.h.b16 %v3212
  %v3244 = vunpack.c.l.b16 %v3213
  %v3245 = vunpack.c.h.b16 %v3213
  %v3246 = vunpack.c.l.b16 %v3214
  %v3247 = vunpack.c.h.b16 %v3214
  %v3248 = vunpack.c.l.b16 %v3215
  %v3249 = vunpack.c.h.b16 %v3215
  %v3250 = vunpack.c.l.b16 %v3216
  %v3251 = vunpack.c.h.b16 %v3216
  %v3252 = vunpack.c.l.b16 %v3217
  %v3253 = vunpack.c.h.b16 %v3217
  %v3254 = vunpack.c.l.b16 %v3218
  %v3255 = vunpack.c.h.b16 %v3218
  %v3256 = vpack.c.b16 %v3242, %v3240
  %v3257 = vpack.c.b16 %v3243, %v3241
  %v3258 = vpack.c.b16 %v3246, %v3244
  %v3259 = vpack.c.b16 %v3247, %v3245
  %v3260 = vpack.c.b16 %v3250, %v3248
  %v3261 = vpack.c.b16 %v3251, %v3249
  %v3262 = vpack.c.b16 %v3254, %v3252
  %v3263 = vpack.c.b16 %v3255, %v3253
  %v3273 = vsel %vm449, %v3206, 0
  %v3276 = vsel %vm449, %v3207, 0
  %v3279 = vsel %vm449, %v3208, 0
  %v3282 = vsel %vm449, %v3209, 0
  %3284 = vmatprep.subr.bf16.mxu0 %v3257
  %3285 = vmatpush1.bf16.msra.mxu0 %v3256
  %3286 = vmatprep.subr.bf16.mxu0 %v3259
  %3287 = vmatpush1.bf16.msra.mxu0 %v3258
  %3288 = vmatprep.subr.bf16.mxu0 %v3261
  %3289 = vmatpush1.bf16.msra.mxu0 %v3260
  %3290 = vmatprep.subr.bf16.mxu0 %v3263
  %3291 = vmatpush1.bf16.msra.mxu0 %v3262
  %3292 = vmatprep.subr.bf16.mxu0 0
  %3293 = vmatpush1.bf16.msra.mxu0 0
  %3294 = vmatprep.subr.bf16.mxu0 0
  %3295 = vmatpush1.bf16.msra.mxu0 0
  %3296 = vmatprep.subr.bf16.mxu0 0
  %3297 = vmatpush1.bf16.msra.mxu0 0
  %3298 = vmatprep.subr.bf16.mxu0 0
  %3299 = vmatpush1.bf16.msra.mxu0 0
  %3300 = vmatprep.subr.bf16.mxu0 0
  %3301 = vmatpush1.bf16.msra.mxu0 0
  %3302 = vmatprep.subr.bf16.mxu0 0
  %3303 = vmatpush1.bf16.msra.mxu0 0
  %3304 = vmatprep.subr.bf16.mxu0 0
  %3305 = vmatpush1.bf16.msra.mxu0 0
  %3306 = vmatprep.subr.bf16.mxu0 0
  %3307 = vmatpush1.bf16.msra.mxu0 0
  %3308 = vmatprep.subr.bf16.mxu0 0
  %3309 = vmatpush1.bf16.msra.mxu0 0
  %3310 = vmatprep.subr.bf16.mxu0 0
  %3311 = vmatpush1.bf16.msra.mxu0 0
  %3312 = vmatprep.subr.bf16.mxu0 0
  %3313 = vmatpush1.bf16.msra.mxu0 0
  %3314 = vmatprep.subr.bf16.mxu0 0
  %3315 = vmatpush1.bf16.msra.mxu0 0
  %3316 = vmatprep.mubr.bf16.mxu0 0
  %3317 = vmatmul.mubr.bf16.gmra.mrb[0].mxu0 %v3273
  %v3318 = vpop.f32.mrb[0].mxu0
  %v3319 = vadd.f32 %v3225, %v3318
  %v3320 = vpop.f32.mrb[0].mxu0
  %v3321 = vadd.f32 %v3229, %v3320
  %v3322 = vpop.f32.mrb[0].mxu0
  %v3323 = vadd.f32 %v3225, %v3322
  %v3324 = vpop.f32.mrb[0].mxu0
  %v3325 = vadd.f32 %v3229, %v3324
  %3326 = vmatprep.mubr.bf16.mxu0 0
  %3327 = vmatmul.mubr.bf16.gmra.mrb[0].mxu0 %v3276
  %v3328 = vpop.f32.mrb[0].mxu0
  %v3329 = vadd.f32 %v3225, %v3328
  %v3330 = vpop.f32.mrb[0].mxu0
  %v3331 = vadd.f32 %v3229, %v3330
  %v3332 = vpop.f32.mrb[0].mxu0
  %v3333 = vadd.f32 %v3225, %v3332
  %v3334 = vpop.f32.mrb[0].mxu0
  %v3335 = vadd.f32 %v3229, %v3334
  %3336 = vmatprep.mubr.bf16.mxu0 0
  %3337 = vmatmul.mubr.bf16.gmra.mrb[0].mxu0 %v3279
  %v3338 = vpop.f32.mrb[0].mxu0
  %v3339 = vadd.f32 %v3225, %v3338
  %v3340 = vpop.f32.mrb[0].mxu0
  %v3341 = vadd.f32 %v3229, %v3340
  %v3342 = vpop.f32.mrb[0].mxu0
  %v3343 = vadd.f32 %v3225, %v3342
  %v3344 = vpop.f32.mrb[0].mxu0
  %v3345 = vadd.f32 %v3229, %v3344
  %3346 = vmatprep.mubr.bf16.mxu0 0
  %3347 = vmatmul.mubr.bf16.gmra.mrb[0].mxu0 %v3282
  %v3348 = vpop.f32.mrb[0].mxu0
  %v3349 = vadd.f32 %v3225, %v3348
  %v3350 = vpop.f32.mrb[0].mxu0
  %v3351 = vadd.f32 %v3229, %v3350
  %v3352 = vpop.f32.mrb[0].mxu0
  %v3353 = vadd.f32 %v3225, %v3352
  %v3354 = vpop.f32.mrb[0].mxu0
  %v3355 = vadd.f32 %v3229, %v3354
  %3356 = vdwg.mxu0
  %v3357 = vpack.c.bf16 %v3323, %v3319
  %v3358 = vpack.c.bf16 %v3333, %v3329
  %v3359 = vpack.c.bf16 %v3343, %v3339
  %v3360 = vpack.c.bf16 %v3353, %v3349
  %3365 = vrot.lane.b32.xlu0 %v3357, 64
  %v3366 = vpop.permute.xlu0 %3365
  %3367 = vrot.lane.b32.xlu0 %v3358, 64
  %v3368 = vpop.permute.xlu0 %3367
  %3369 = vrot.lane.b32.xlu0 %v3359, 64
  %v3370 = vpop.permute.xlu0 %3369
  %3371 = vrot.lane.b32.xlu0 %v3360, 64
  %v3372 = vpop.permute.xlu0 %3371
  %v3374 = vsel %vm748, %v3357, 0
  %v3377 = vsel %vm748, %v3358, 0
  %v3380 = vsel %vm748, %v3359, 0
  %v3383 = vsel %vm748, %v3360, 0
  %v3386 = vsel %vm748, %v3366, 0
  %v3389 = vsel %vm748, %v3368, 0
  %v3392 = vsel %vm748, %v3370, 0
  %v3395 = vsel %vm748, %v3372, 0
  %3397 = vmatprep.subr.bf16.mxu0 0
  %3398 = vmatpush1.bf16.xpose.msra.mxu0 %v3386
  %3399 = vmatprep.subr.bf16.mxu0 0
  %3400 = vmatpush1.bf16.xpose.msra.mxu0 %v3389
  %3401 = vmatprep.subr.bf16.mxu0 0
  %3402 = vmatpush1.bf16.xpose.msra.mxu0 %v3392
  %3403 = vmatprep.subr.bf16.mxu0 0
  %3404 = vmatpush1.bf16.xpose.msra.mxu0 %v3395
  %3405 = vmatprep.subr.bf16.mxu0 0
  %3406 = vmatpush1.bf16.xpose.msra.mxu0 0
  %3407 = vmatprep.subr.bf16.mxu0 0
  %3408 = vmatpush1.bf16.xpose.msra.mxu0 0
  %3409 = vmatprep.subr.bf16.mxu0 0
  %3410 = vmatpush1.bf16.xpose.msra.mxu0 0
  %3411 = vmatprep.subr.bf16.mxu0 0
  %3412 = vmatpush1.bf16.xpose.msra.mxu0 0
  %3413 = vmatprep.subr.bf16.mxu0 0
  %3414 = vmatpush1.bf16.xpose.msra.mxu0 0
  %3415 = vmatprep.subr.bf16.mxu0 0
  %3416 = vmatpush1.bf16.xpose.msra.mxu0 0
  %3417 = vmatprep.subr.bf16.mxu0 0
  %3418 = vmatpush1.bf16.xpose.msra.mxu0 0
  %3419 = vmatprep.subr.bf16.mxu0 0
  %3420 = vmatpush1.bf16.xpose.msra.mxu0 0
  %3421 = vmatprep.subr.bf16.mxu0 0
  %3422 = vmatpush1.bf16.xpose.msra.mxu0 0
  %3423 = vmatprep.subr.bf16.mxu0 0
  %3424 = vmatpush1.bf16.xpose.msra.mxu0 0
  %3425 = vmatprep.subr.bf16.mxu0 0
  %3426 = vmatpush1.bf16.xpose.msra.mxu0 0
  %3427 = vmatprep.subr.bf16.mxu0 0
  %3428 = vmatpush1.bf16.xpose.msra.mxu0 0
  %3429 = vmatprep.mubr.bf16.mxu0 0
  %3430 = vmatmul.mubr.bf16.gmra.mrb[0].mxu0 %v3374
  %v3431 = vpop.f32.mrb[0].mxu0
  %v3432 = vadd.f32 0.0, %v3431
  %v3433 = vpop.f32.mrb[0].mxu0
  %v3434 = vpop.f32.mrb[0].mxu0
  %v3435 = vadd.f32 0.0, %v3434
  %v3436 = vpop.f32.mrb[0].mxu0
  %3437 = vmatprep.mubr.bf16.mxu0 0
  %3438 = vmatmul.mubr.bf16.gmra.mrb[0].mxu0 %v3377
  %v3439 = vpop.f32.mrb[0].mxu0
  %v3440 = vadd.f32 0.0, %v3439
  %v3441 = vpop.f32.mrb[0].mxu0
  %v3442 = vpop.f32.mrb[0].mxu0
  %v3443 = vadd.f32 0.0, %v3442
  %v3444 = vpop.f32.mrb[0].mxu0
  %3445 = vmatprep.mubr.bf16.mxu0 0
  %3446 = vmatmul.mubr.bf16.gmra.mrb[0].mxu0 %v3380
  %v3447 = vpop.f32.mrb[0].mxu0
  %v3448 = vadd.f32 0.0, %v3447
  %v3449 = vpop.f32.mrb[0].mxu0
  %v3450 = vpop.f32.mrb[0].mxu0
  %v3451 = vadd.f32 0.0, %v3450
  %v3452 = vpop.f32.mrb[0].mxu0
  %3453 = vmatprep.mubr.bf16.mxu0 0
  %3454 = vmatmul.mubr.bf16.gmra.mrb[0].mxu0 %v3383
  %v3455 = vpop.f32.mrb[0].mxu0
  %v3456 = vadd.f32 0.0, %v3455
  %v3457 = vpop.f32.mrb[0].mxu0
  %v3458 = vpop.f32.mrb[0].mxu0
  %v3459 = vadd.f32 0.0, %v3458
  %v3460 = vpop.f32.mrb[0].mxu0
  %3461 = vdwg.mxu0
  %v3462 = vmul.f32 %v3432, 0.25
  %v3463 = vmul.f32 %v3435, 0.25
  %v3464 = vmul.f32 %v3440, 0.25
  %v3465 = vmul.f32 %v3443, 0.25
  %v3466 = vmul.f32 %v3448, 0.25
  %v3467 = vmul.f32 %v3451, 0.25
  %v3468 = vmul.f32 %v3456, 0.25
  %v3469 = vmul.f32 %v3459, 0.25
  %v3470 = vsel %vm449, %v3462, -inf
  %3471 = vmax.xlane.f32.xlu0 %v3470
  %v3472 = vpop.xlane.xlu0 %3471
  %v3473 = vsel %vm449, %v3463, -inf
  %3474 = vmax.xlane.f32.xlu0 %v3473
  %v3475 = vpop.xlane.xlu0 %3474
  %v3476 = vsel %vm449, %v3464, -inf
  %3477 = vmax.xlane.f32.xlu0 %v3476
  %v3478 = vpop.xlane.xlu0 %3477
  %v3479 = vsel %vm449, %v3465, -inf
  %3480 = vmax.xlane.f32.xlu0 %v3479
  %v3481 = vpop.xlane.xlu0 %3480
  %v3482 = vsel %vm449, %v3466, -inf
  %3483 = vmax.xlane.f32.xlu0 %v3482
  %v3484 = vpop.xlane.xlu0 %3483
  %v3485 = vsel %vm449, %v3467, -inf
  %3486 = vmax.xlane.f32.xlu0 %v3485
  %v3487 = vpop.xlane.xlu0 %3486
  %v3488 = vsel %vm449, %v3468, -inf
  %3489 = vmax.xlane.f32.xlu0 %v3488
  %v3490 = vpop.xlane.xlu0 %3489
  %v3491 = vsel %vm449, %v3469, -inf
  %3492 = vmax.xlane.f32.xlu0 %v3491
  %v3493 = vpop.xlane.xlu0 %3492
  %v3494 = vsub.f32 %v3462, %v3472
  %v3495 = vsub.f32 %v3463, %v3475
  %v3496 = vsub.f32 %v3464, %v3478
  %v3497 = vsub.f32 %v3465, %v3481
  %v3498 = vsub.f32 %v3466, %v3484
  %v3499 = vsub.f32 %v3467, %v3487
  %v3500 = vsub.f32 %v3468, %v3490
  %v3501 = vsub.f32 %v3469, %v3493
  %v3502 = vmul.f32 %v3494, 1.442695
  %v3503 = vpow.pop %v3502
  %v3504 = vmul.f32 %v3495, 1.442695
  %v3505 = vpow.pop %v3504
  %v3506 = vmul.f32 %v3496, 1.442695
  %v3507 = vpow.pop %v3506
  %v3508 = vmul.f32 %v3497, 1.442695
  %v3509 = vpow.pop %v3508
  %v3510 = vmul.f32 %v3498, 1.442695
  %v3511 = vpow.pop %v3510
  %v3512 = vmul.f32 %v3499, 1.442695
  %v3513 = vpow.pop %v3512
  %v3514 = vmul.f32 %v3500, 1.442695
  %v3515 = vpow.pop %v3514
  %v3516 = vmul.f32 %v3501, 1.442695
  %v3517 = vpow.pop %v3516
  %v3518 = vsel %vm449, %v3503, 0.0
  %3519 = vadd.xlane.f32.xlu0 %v3518
  %v3520 = vpop.xlane.xlu0 %3519
  %v3521 = vsel %vm449, %v3505, 0.0
  %3522 = vadd.xlane.f32.xlu0 %v3521
  %v3523 = vpop.xlane.xlu0 %3522
  %v3524 = vsel %vm449, %v3507, 0.0
  %3525 = vadd.xlane.f32.xlu0 %v3524
  %v3526 = vpop.xlane.xlu0 %3525
  %v3527 = vsel %vm449, %v3509, 0.0
  %3528 = vadd.xlane.f32.xlu0 %v3527
  %v3529 = vpop.xlane.xlu0 %3528
  %v3530 = vsel %vm449, %v3511, 0.0
  %3531 = vadd.xlane.f32.xlu0 %v3530
  %v3532 = vpop.xlane.xlu0 %3531
  %v3533 = vsel %vm449, %v3513, 0.0
  %3534 = vadd.xlane.f32.xlu0 %v3533
  %v3535 = vpop.xlane.xlu0 %3534
  %v3536 = vsel %vm449, %v3515, 0.0
  %3537 = vadd.xlane.f32.xlu0 %v3536
  %v3538 = vpop.xlane.xlu0 %3537
  %v3539 = vsel %vm449, %v3517, 0.0
  %3540 = vadd.xlane.f32.xlu0 %v3539
  %v3541 = vpop.xlane.xlu0 %3540
  %v3542 = vrcp.pop %v3520
  %v3543 = vrcp.pop %v3523
  %v3544 = vrcp.pop %v3526
  %v3545 = vrcp.pop %v3529
  %v3546 = vrcp.pop %v3532
  %v3547 = vrcp.pop %v3535
  %v3548 = vrcp.pop %v3538
  %v3549 = vrcp.pop %v3541
  %v3550 = vmul.f32 %v3503, %v3542
  %v3551 = vmul.f32 %v3505, %v3543
  %v3552 = vmul.f32 %v3507, %v3544
  %v3553 = vmul.f32 %v3509, %v3545
  %v3554 = vmul.f32 %v3511, %v3546
  %v3555 = vmul.f32 %v3513, %v3547
  %v3556 = vmul.f32 %v3515, %v3548
  %v3557 = vmul.f32 %v3517, %v3549
  %v3558 = vpack.c.bf16 %v3551, %v3550
  %v3559 = vpack.c.bf16 %v3553, %v3552
  %v3560 = vpack.c.bf16 %v3555, %v3554
  %v3561 = vpack.c.bf16 %v3557, %v3556
  %v3562 = vpack.c.bf16 %v3325, %v3321
  %v3563 = vpack.c.bf16 %v3335, %v3331
  %v3564 = vpack.c.bf16 %v3345, %v3341
  %v3565 = vpack.c.bf16 %v3355, %v3351
  %v3567 = vsel %vm449, %v3558, 0
  %v3570 = vsel %vm449, %v3559, 0
  %v3573 = vsel %vm449, %v3560, 0
  %v3576 = vsel %vm449, %v3561, 0
  %3578 = vmatprep.subr.bf16.mxu0 0
  %3579 = vmatpush1.bf16.msra.mxu0 %v3562
  %3580 = vmatprep.subr.bf16.mxu0 0
  %3581 = vmatpush1.bf16.msra.mxu0 %v3563
  %3582 = vmatprep.subr.bf16.mxu0 0
  %3583 = vmatpush1.bf16.msra.mxu0 %v3564
  %3584 = vmatprep.subr.bf16.mxu0 0
  %3585 = vmatpush1.bf16.msra.mxu0 %v3565
  %3586 = vmatprep.subr.bf16.mxu0 0
  %3587 = vmatpush1.bf16.msra.mxu0 0
  %3588 = vmatprep.subr.bf16.mxu0 0
  %3589 = vmatpush1.bf16.msra.mxu0 0
  %3590 = vmatprep.subr.bf16.mxu0 0
  %3591 = vmatpush1.bf16.msra.mxu0 0
  %3592 = vmatprep.subr.bf16.mxu0 0
  %3593 = vmatpush1.bf16.msra.mxu0 0
  %3594 = vmatprep.subr.bf16.mxu0 0
  %3595 = vmatpush1.bf16.msra.mxu0 0
  %3596 = vmatprep.subr.bf16.mxu0 0
  %3597 = vmatpush1.bf16.msra.mxu0 0
  %3598 = vmatprep.subr.bf16.mxu0 0
  %3599 = vmatpush1.bf16.msra.mxu0 0
  %3600 = vmatprep.subr.bf16.mxu0 0
  %3601 = vmatpush1.bf16.msra.mxu0 0
  %3602 = vmatprep.subr.bf16.mxu0 0
  %3603 = vmatpush1.bf16.msra.mxu0 0
  %3604 = vmatprep.subr.bf16.mxu0 0
  %3605 = vmatpush1.bf16.msra.mxu0 0
  %3606 = vmatprep.subr.bf16.mxu0 0
  %3607 = vmatpush1.bf16.msra.mxu0 0
  %3608 = vmatprep.subr.bf16.mxu0 0
  %3609 = vmatpush1.bf16.msra.mxu0 0
  %3610 = vmatprep.mubr.bf16.mxu0 0
  %3611 = vmatmul.mubr.bf16.gmra.mrb[0].mxu0 %v3567
  %v3612 = vpop.f32.mrb[0].mxu0
  %v3613 = vadd.f32 0.0, %v3612
  %v3614 = vpop.f32.mrb[0].mxu0
  %v3615 = vpop.f32.mrb[0].mxu0
  %v3616 = vadd.f32 0.0, %v3615
  %v3617 = vpop.f32.mrb[0].mxu0
  %3618 = vmatprep.mubr.bf16.mxu0 0
  %3619 = vmatmul.mubr.bf16.gmra.mrb[0].mxu0 %v3570
  %v3620 = vpop.f32.mrb[0].mxu0
  %v3621 = vadd.f32 0.0, %v3620
  %v3622 = vpop.f32.mrb[0].mxu0
  %v3623 = vpop.f32.mrb[0].mxu0
  %v3624 = vadd.f32 0.0, %v3623
  %v3625 = vpop.f32.mrb[0].mxu0
  %3626 = vmatprep.mubr.bf16.mxu0 0
  %3627 = vmatmul.mubr.bf16.gmra.mrb[0].mxu0 %v3573
  %v3628 = vpop.f32.mrb[0].mxu0
  %v3629 = vadd.f32 0.0, %v3628
  %v3630 = vpop.f32.mrb[0].mxu0
  %v3631 = vpop.f32.mrb[0].mxu0
  %v3632 = vadd.f32 0.0, %v3631
  %v3633 = vpop.f32.mrb[0].mxu0
  %3634 = vmatprep.mubr.bf16.mxu0 0
  %3635 = vmatmul.mubr.bf16.gmra.mrb[0].mxu0 %v3576
  %v3636 = vpop.f32.mrb[0].mxu0
  %v3637 = vadd.f32 0.0, %v3636
  %v3638 = vpop.f32.mrb[0].mxu0
  %v3639 = vpop.f32.mrb[0].mxu0
  %v3640 = vadd.f32 0.0, %v3639
  %v3641 = vpop.f32.mrb[0].mxu0
  %3642 = vdwg.mxu0
  %3643 = vrot.lane.b32.xlu0 %v3357, 112
  %v3644 = vpop.permute.xlu0 %3643
  %3645 = vrot.lane.b32.xlu0 %v3358, 112
  %v3646 = vpop.permute.xlu0 %3645
  %3647 = vrot.lane.b32.xlu0 %v3359, 112
  %v3648 = vpop.permute.xlu0 %3647
  %3649 = vrot.lane.b32.xlu0 %v3360, 112
  %v3650 = vpop.permute.xlu0 %3649
  %3651 = vrot.lane.b32.xlu0 %v3357, 48
  %v3652 = vpop.permute.xlu0 %3651
  %3653 = vrot.lane.b32.xlu0 %v3358, 48
  %v3654 = vpop.permute.xlu0 %3653
  %3655 = vrot.lane.b32.xlu0 %v3359, 48
  %v3656 = vpop.permute.xlu0 %3655
  %3657 = vrot.lane.b32.xlu0 %v3360, 48
  %v3658 = vpop.permute.xlu0 %3657
  %v3660 = vsel %vm748, %v3644, 0
  %v3663 = vsel %vm748, %v3646, 0
  %v3666 = vsel %vm748, %v3648, 0
  %v3669 = vsel %vm748, %v3650, 0
  %v3672 = vsel %vm748, %v3652, 0
  %v3675 = vsel %vm748, %v3654, 0
  %v3678 = vsel %vm748, %v3656, 0
  %v3681 = vsel %vm748, %v3658, 0
  %3683 = vmatprep.subr.bf16.mxu0 0
  %3684 = vmatpush1.bf16.xpose.msra.mxu0 %v3672
  %3685 = vmatprep.subr.bf16.mxu0 0
  %3686 = vmatpush1.bf16.xpose.msra.mxu0 %v3675
  %3687 = vmatprep.subr.bf16.mxu0 0
  %3688 = vmatpush1.bf16.xpose.msra.mxu0 %v3678
  %3689 = vmatprep.subr.bf16.mxu0 0
  %3690 = vmatpush1.bf16.xpose.msra.mxu0 %v3681
  %3691 = vmatprep.subr.bf16.mxu0 0
  %3692 = vmatpush1.bf16.xpose.msra.mxu0 0
  %3693 = vmatprep.subr.bf16.mxu0 0
  %3694 = vmatpush1.bf16.xpose.msra.mxu0 0
  %3695 = vmatprep.subr.bf16.mxu0 0
  %3696 = vmatpush1.bf16.xpose.msra.mxu0 0
  %3697 = vmatprep.subr.bf16.mxu0 0
  %3698 = vmatpush1.bf16.xpose.msra.mxu0 0
  %3699 = vmatprep.subr.bf16.mxu0 0
  %3700 = vmatpush1.bf16.xpose.msra.mxu0 0
  %3701 = vmatprep.subr.bf16.mxu0 0
  %3702 = vmatpush1.bf16.xpose.msra.mxu0 0
  %3703 = vmatprep.subr.bf16.mxu0 0
  %3704 = vmatpush1.bf16.xpose.msra.mxu0 0
  %3705 = vmatprep.subr.bf16.mxu0 0
  %3706 = vmatpush1.bf16.xpose.msra.mxu0 0
  %3707 = vmatprep.subr.bf16.mxu0 0
  %3708 = vmatpush1.bf16.xpose.msra.mxu0 0
  %3709 = vmatprep.subr.bf16.mxu0 0
  %3710 = vmatpush1.bf16.xpose.msra.mxu0 0
  %3711 = vmatprep.subr.bf16.mxu0 0
  %3712 = vmatpush1.bf16.xpose.msra.mxu0 0
  %3713 = vmatprep.subr.bf16.mxu0 0
  %3714 = vmatpush1.bf16.xpose.msra.mxu0 0
  %3715 = vmatprep.mubr.bf16.mxu0 0
  %3716 = vmatmul.mubr.bf16.gmra.mrb[0].mxu0 %v3660
  %v3717 = vpop.f32.mrb[0].mxu0
  %v3718 = vadd.f32 0.0, %v3717
  %v3719 = vpop.f32.mrb[0].mxu0
  %v3720 = vpop.f32.mrb[0].mxu0
  %v3721 = vadd.f32 0.0, %v3720
  %v3722 = vpop.f32.mrb[0].mxu0
  %3723 = vmatprep.mubr.bf16.mxu0 0
  %3724 = vmatmul.mubr.bf16.gmra.mrb[0].mxu0 %v3663
  %v3725 = vpop.f32.mrb[0].mxu0
  %v3726 = vadd.f32 0.0, %v3725
  %v3727 = vpop.f32.mrb[0].mxu0
  %v3728 = vpop.f32.mrb[0].mxu0
  %v3729 = vadd.f32 0.0, %v3728
  %v3730 = vpop.f32.mrb[0].mxu0
  %3731 = vmatprep.mubr.bf16.mxu0 0
  %3732 = vmatmul.mubr.bf16.gmra.mrb[0].mxu0 %v3666
  %v3733 = vpop.f32.mrb[0].mxu0
  %v3734 = vadd.f32 0.0, %v3733
  %v3735 = vpop.f32.mrb[0].mxu0
  %v3736 = vpop.f32.mrb[0].mxu0
  %v3737 = vadd.f32 0.0, %v3736
  %v3738 = vpop.f32.mrb[0].mxu0
  %3739 = vmatprep.mubr.bf16.mxu0 0
  %3740 = vmatmul.mubr.bf16.gmra.mrb[0].mxu0 %v3669
  %v3741 = vpop.f32.mrb[0].mxu0
  %v3742 = vadd.f32 0.0, %v3741
  %v3743 = vpop.f32.mrb[0].mxu0
  %v3744 = vpop.f32.mrb[0].mxu0
  %v3745 = vadd.f32 0.0, %v3744
  %v3746 = vpop.f32.mrb[0].mxu0
  %3747 = vdwg.mxu0
  %v3748 = vmul.f32 %v3718, 0.25
  %v3749 = vmul.f32 %v3721, 0.25
  %v3750 = vmul.f32 %v3726, 0.25
  %v3751 = vmul.f32 %v3729, 0.25
  %v3752 = vmul.f32 %v3734, 0.25
  %v3753 = vmul.f32 %v3737, 0.25
  %v3754 = vmul.f32 %v3742, 0.25
  %v3755 = vmul.f32 %v3745, 0.25
  %v3756 = vsel %vm449, %v3748, -inf
  %3757 = vmax.xlane.f32.xlu0 %v3756
  %v3758 = vpop.xlane.xlu0 %3757
  %v3759 = vsel %vm449, %v3749, -inf
  %3760 = vmax.xlane.f32.xlu0 %v3759
  %v3761 = vpop.xlane.xlu0 %3760
  %v3762 = vsel %vm449, %v3750, -inf
  %3763 = vmax.xlane.f32.xlu0 %v3762
  %v3764 = vpop.xlane.xlu0 %3763
  %v3765 = vsel %vm449, %v3751, -inf
  %3766 = vmax.xlane.f32.xlu0 %v3765
  %v3767 = vpop.xlane.xlu0 %3766
  %v3768 = vsel %vm449, %v3752, -inf
  %3769 = vmax.xlane.f32.xlu0 %v3768
  %v3770 = vpop.xlane.xlu0 %3769
  %v3771 = vsel %vm449, %v3753, -inf
  %3772 = vmax.xlane.f32.xlu0 %v3771
  %v3773 = vpop.xlane.xlu0 %3772
  %v3774 = vsel %vm449, %v3754, -inf
  %3775 = vmax.xlane.f32.xlu0 %v3774
  %v3776 = vpop.xlane.xlu0 %3775
  %v3777 = vsel %vm449, %v3755, -inf
  %3778 = vmax.xlane.f32.xlu0 %v3777
  %v3779 = vpop.xlane.xlu0 %3778
  %v3780 = vsub.f32 %v3748, %v3758
  %v3781 = vsub.f32 %v3749, %v3761
  %v3782 = vsub.f32 %v3750, %v3764
  %v3783 = vsub.f32 %v3751, %v3767
  %v3784 = vsub.f32 %v3752, %v3770
  %v3785 = vsub.f32 %v3753, %v3773
  %v3786 = vsub.f32 %v3754, %v3776
  %v3787 = vsub.f32 %v3755, %v3779
  %v3788 = vmul.f32 %v3780, 1.442695
  %v3789 = vpow.pop %v3788
  %v3790 = vmul.f32 %v3781, 1.442695
  %v3791 = vpow.pop %v3790
  %v3792 = vmul.f32 %v3782, 1.442695
  %v3793 = vpow.pop %v3792
  %v3794 = vmul.f32 %v3783, 1.442695
  %v3795 = vpow.pop %v3794
  %v3796 = vmul.f32 %v3784, 1.442695
  %v3797 = vpow.pop %v3796
  %v3798 = vmul.f32 %v3785, 1.442695
  %v3799 = vpow.pop %v3798
  %v3800 = vmul.f32 %v3786, 1.442695
  %v3801 = vpow.pop %v3800
  %v3802 = vmul.f32 %v3787, 1.442695
  %v3803 = vpow.pop %v3802
  %v3804 = vsel %vm449, %v3789, 0.0
  %3805 = vadd.xlane.f32.xlu0 %v3804
  %v3806 = vpop.xlane.xlu0 %3805
  %v3807 = vsel %vm449, %v3791, 0.0
  %3808 = vadd.xlane.f32.xlu0 %v3807
  %v3809 = vpop.xlane.xlu0 %3808
  %v3810 = vsel %vm449, %v3793, 0.0
  %3811 = vadd.xlane.f32.xlu0 %v3810
  %v3812 = vpop.xlane.xlu0 %3811
  %v3813 = vsel %vm449, %v3795, 0.0
  %3814 = vadd.xlane.f32.xlu0 %v3813
  %v3815 = vpop.xlane.xlu0 %3814
  %v3816 = vsel %vm449, %v3797, 0.0
  %3817 = vadd.xlane.f32.xlu0 %v3816
  %v3818 = vpop.xlane.xlu0 %3817
  %v3819 = vsel %vm449, %v3799, 0.0
  %3820 = vadd.xlane.f32.xlu0 %v3819
  %v3821 = vpop.xlane.xlu0 %3820
  %v3822 = vsel %vm449, %v3801, 0.0
  %3823 = vadd.xlane.f32.xlu0 %v3822
  %v3824 = vpop.xlane.xlu0 %3823
  %v3825 = vsel %vm449, %v3803, 0.0
  %3826 = vadd.xlane.f32.xlu0 %v3825
  %v3827 = vpop.xlane.xlu0 %3826
  %v3828 = vrcp.pop %v3806
  %v3829 = vrcp.pop %v3809
  %v3830 = vrcp.pop %v3812
  %v3831 = vrcp.pop %v3815
  %v3832 = vrcp.pop %v3818
  %v3833 = vrcp.pop %v3821
  %v3834 = vrcp.pop %v3824
  %v3835 = vrcp.pop %v3827
  %v3836 = vmul.f32 %v3789, %v3828
  %v3837 = vmul.f32 %v3791, %v3829
  %v3838 = vmul.f32 %v3793, %v3830
  %v3839 = vmul.f32 %v3795, %v3831
  %v3840 = vmul.f32 %v3797, %v3832
  %v3841 = vmul.f32 %v3799, %v3833
  %v3842 = vmul.f32 %v3801, %v3834
  %v3843 = vmul.f32 %v3803, %v3835
  %v3844 = vpack.c.bf16 %v3837, %v3836
  %v3845 = vpack.c.bf16 %v3839, %v3838
  %v3846 = vpack.c.bf16 %v3841, %v3840
  %v3847 = vpack.c.bf16 %v3843, %v3842
  %3852 = vrot.lane.b32.xlu0 %v3562, 112
  %v3853 = vpop.permute.xlu0 %3852
  %3854 = vrot.lane.b32.xlu0 %v3563, 112
  %v3855 = vpop.permute.xlu0 %3854
  %3856 = vrot.lane.b32.xlu0 %v3564, 112
  %v3857 = vpop.permute.xlu0 %3856
  %3858 = vrot.lane.b32.xlu0 %v3565, 112
  %v3859 = vpop.permute.xlu0 %3858
  %v3865 = vsel %vm449, %v3844, 0
  %v3868 = vsel %vm449, %v3845, 0
  %v3871 = vsel %vm449, %v3846, 0
  %v3874 = vsel %vm449, %v3847, 0
  %3876 = vmatprep.subr.bf16.mxu0 0
  %3877 = vmatpush1.bf16.msra.mxu0 %v3853
  %3878 = vmatprep.subr.bf16.mxu0 0
  %3879 = vmatpush1.bf16.msra.mxu0 %v3855
  %3880 = vmatprep.subr.bf16.mxu0 0
  %3881 = vmatpush1.bf16.msra.mxu0 %v3857
  %3882 = vmatprep.subr.bf16.mxu0 0
  %3883 = vmatpush1.bf16.msra.mxu0 %v3859
  %3884 = vmatprep.subr.bf16.mxu0 0
  %3885 = vmatpush1.bf16.msra.mxu0 0
  %3886 = vmatprep.subr.bf16.mxu0 0
  %3887 = vmatpush1.bf16.msra.mxu0 0
  %3888 = vmatprep.subr.bf16.mxu0 0
  %3889 = vmatpush1.bf16.msra.mxu0 0
  %3890 = vmatprep.subr.bf16.mxu0 0
  %3891 = vmatpush1.bf16.msra.mxu0 0
  %3892 = vmatprep.subr.bf16.mxu0 0
  %3893 = vmatpush1.bf16.msra.mxu0 0
  %3894 = vmatprep.subr.bf16.mxu0 0
  %3895 = vmatpush1.bf16.msra.mxu0 0
  %3896 = vmatprep.subr.bf16.mxu0 0
  %3897 = vmatpush1.bf16.msra.mxu0 0
  %3898 = vmatprep.subr.bf16.mxu0 0
  %3899 = vmatpush1.bf16.msra.mxu0 0
  %3900 = vmatprep.subr.bf16.mxu0 0
  %3901 = vmatpush1.bf16.msra.mxu0 0
  %3902 = vmatprep.subr.bf16.mxu0 0
  %3903 = vmatpush1.bf16.msra.mxu0 0
  %3904 = vmatprep.subr.bf16.mxu0 0
  %3905 = vmatpush1.bf16.msra.mxu0 0
  %3906 = vmatprep.subr.bf16.mxu0 0
  %3907 = vmatpush1.bf16.msra.mxu0 0
  %3908 = vmatprep.mubr.bf16.mxu0 0
  %3909 = vmatmul.mubr.bf16.gmra.mrb[0].mxu0 %v3865
  %v3910 = vpop.f32.mrb[0].mxu0
  %v3911 = vadd.f32 0.0, %v3910
  %v3912 = vpop.f32.mrb[0].mxu0
  %v3913 = vpop.f32.mrb[0].mxu0
  %v3914 = vadd.f32 0.0, %v3913
  %v3915 = vpop.f32.mrb[0].mxu0
  %3916 = vmatprep.mubr.bf16.mxu0 0
  %3917 = vmatmul.mubr.bf16.gmra.mrb[0].mxu0 %v3868
  %v3918 = vpop.f32.mrb[0].mxu0
  %v3919 = vadd.f32 0.0, %v3918
  %v3920 = vpop.f32.mrb[0].mxu0
  %v3921 = vpop.f32.mrb[0].mxu0
  %v3922 = vadd.f32 0.0, %v3921
  %v3923 = vpop.f32.mrb[0].mxu0
  %3924 = vmatprep.mubr.bf16.mxu0 0
  %3925 = vmatmul.mubr.bf16.gmra.mrb[0].mxu0 %v3871
  %v3926 = vpop.f32.mrb[0].mxu0
  %v3927 = vadd.f32 0.0, %v3926
  %v3928 = vpop.f32.mrb[0].mxu0
  %v3929 = vpop.f32.mrb[0].mxu0
  %v3930 = vadd.f32 0.0, %v3929
  %v3931 = vpop.f32.mrb[0].mxu0
  %3932 = vmatprep.mubr.bf16.mxu0 0
  %3933 = vmatmul.mubr.bf16.gmra.mrb[0].mxu0 %v3874
  %v3934 = vpop.f32.mrb[0].mxu0
  %v3935 = vadd.f32 0.0, %v3934
  %v3936 = vpop.f32.mrb[0].mxu0
  %v3937 = vpop.f32.mrb[0].mxu0
  %v3938 = vadd.f32 0.0, %v3937
  %v3939 = vpop.f32.mrb[0].mxu0
  %3940 = vdwg.mxu0
  %3941 = vrot.lane.b32.xlu0 %v3357, 96
  %v3942 = vpop.permute.xlu0 %3941
  %3943 = vrot.lane.b32.xlu0 %v3358, 96
  %v3944 = vpop.permute.xlu0 %3943
  %3945 = vrot.lane.b32.xlu0 %v3359, 96
  %v3946 = vpop.permute.xlu0 %3945
  %3947 = vrot.lane.b32.xlu0 %v3360, 96
  %v3948 = vpop.permute.xlu0 %3947
  %3949 = vrot.lane.b32.xlu0 %v3357, 32
  %v3950 = vpop.permute.xlu0 %3949
  %3951 = vrot.lane.b32.xlu0 %v3358, 32
  %v3952 = vpop.permute.xlu0 %3951
  %3953 = vrot.lane.b32.xlu0 %v3359, 32
  %v3954 = vpop.permute.xlu0 %3953
  %3955 = vrot.lane.b32.xlu0 %v3360, 32
  %v3956 = vpop.permute.xlu0 %3955
  %v3958 = vsel %vm748, %v3942, 0
  %v3961 = vsel %vm748, %v3944, 0
  %v3964 = vsel %vm748, %v3946, 0
  %v3967 = vsel %vm748, %v3948, 0
  %v3970 = vsel %vm748, %v3950, 0
  %v3973 = vsel %vm748, %v3952, 0
  %v3976 = vsel %vm748, %v3954, 0
  %v3979 = vsel %vm748, %v3956, 0
  %3981 = vmatprep.subr.bf16.mxu0 0
  %3982 = vmatpush1.bf16.xpose.msra.mxu0 %v3970
  %3983 = vmatprep.subr.bf16.mxu0 0
  %3984 = vmatpush1.bf16.xpose.msra.mxu0 %v3973
  %3985 = vmatprep.subr.bf16.mxu0 0
  %3986 = vmatpush1.bf16.xpose.msra.mxu0 %v3976
  %3987 = vmatprep.subr.bf16.mxu0 0
  %3988 = vmatpush1.bf16.xpose.msra.mxu0 %v3979
  %3989 = vmatprep.subr.bf16.mxu0 0
  %3990 = vmatpush1.bf16.xpose.msra.mxu0 0
  %3991 = vmatprep.subr.bf16.mxu0 0
  %3992 = vmatpush1.bf16.xpose.msra.mxu0 0
  %3993 = vmatprep.subr.bf16.mxu0 0
  %3994 = vmatpush1.bf16.xpose.msra.mxu0 0
  %3995 = vmatprep.subr.bf16.mxu0 0
  %3996 = vmatpush1.bf16.xpose.msra.mxu0 0
  %3997 = vmatprep.subr.bf16.mxu0 0
  %3998 = vmatpush1.bf16.xpose.msra.mxu0 0
  %3999 = vmatprep.subr.bf16.mxu0 0
  %4000 = vmatpush1.bf16.xpose.msra.mxu0 0
  %4001 = vmatprep.subr.bf16.mxu0 0
  %4002 = vmatpush1.bf16.xpose.msra.mxu0 0
  %4003 = vmatprep.subr.bf16.mxu0 0
  %4004 = vmatpush1.bf16.xpose.msra.mxu0 0
  %4005 = vmatprep.subr.bf16.mxu0 0
  %4006 = vmatpush1.bf16.xpose.msra.mxu0 0
  %4007 = vmatprep.subr.bf16.mxu0 0
  %4008 = vmatpush1.bf16.xpose.msra.mxu0 0
  %4009 = vmatprep.subr.bf16.mxu0 0
  %4010 = vmatpush1.bf16.xpose.msra.mxu0 0
  %4011 = vmatprep.subr.bf16.mxu0 0
  %4012 = vmatpush1.bf16.xpose.msra.mxu0 0
  %4013 = vmatprep.mubr.bf16.mxu0 0
  %4014 = vmatmul.mubr.bf16.gmra.mrb[0].mxu0 %v3958
  %v4015 = vpop.f32.mrb[0].mxu0
  %v4016 = vadd.f32 0.0, %v4015
  %v4017 = vpop.f32.mrb[0].mxu0
  %v4018 = vpop.f32.mrb[0].mxu0
  %v4019 = vadd.f32 0.0, %v4018
  %v4020 = vpop.f32.mrb[0].mxu0
  %4021 = vmatprep.mubr.bf16.mxu0 0
  %4022 = vmatmul.mubr.bf16.gmra.mrb[0].mxu0 %v3961
  %v4023 = vpop.f32.mrb[0].mxu0
  %v4024 = vadd.f32 0.0, %v4023
  %v4025 = vpop.f32.mrb[0].mxu0
  %v4026 = vpop.f32.mrb[0].mxu0
  %v4027 = vadd.f32 0.0, %v4026
  %v4028 = vpop.f32.mrb[0].mxu0
  %4029 = vmatprep.mubr.bf16.mxu0 0
  %4030 = vmatmul.mubr.bf16.gmra.mrb[0].mxu0 %v3964
  %v4031 = vpop.f32.mrb[0].mxu0
  %v4032 = vadd.f32 0.0, %v4031
  %v4033 = vpop.f32.mrb[0].mxu0
  %v4034 = vpop.f32.mrb[0].mxu0
  %v4035 = vadd.f32 0.0, %v4034
  %v4036 = vpop.f32.mrb[0].mxu0
  %4037 = vmatprep.mubr.bf16.mxu0 0
  %4038 = vmatmul.mubr.bf16.gmra.mrb[0].mxu0 %v3967
  %v4039 = vpop.f32.mrb[0].mxu0
  %v4040 = vadd.f32 0.0, %v4039
  %v4041 = vpop.f32.mrb[0].mxu0
  %v4042 = vpop.f32.mrb[0].mxu0
  %v4043 = vadd.f32 0.0, %v4042
  %v4044 = vpop.f32.mrb[0].mxu0
  %4045 = vdwg.mxu0
  %v4046 = vmul.f32 %v4016, 0.25
  %v4047 = vmul.f32 %v4019, 0.25
  %v4048 = vmul.f32 %v4024, 0.25
  %v4049 = vmul.f32 %v4027, 0.25
  %v4050 = vmul.f32 %v4032, 0.25
  %v4051 = vmul.f32 %v4035, 0.25
  %v4052 = vmul.f32 %v4040, 0.25
  %v4053 = vmul.f32 %v4043, 0.25
  %v4054 = vsel %vm449, %v4046, -inf
  %4055 = vmax.xlane.f32.xlu0 %v4054
  %v4056 = vpop.xlane.xlu0 %4055
  %v4057 = vsel %vm449, %v4047, -inf
  %4058 = vmax.xlane.f32.xlu0 %v4057
  %v4059 = vpop.xlane.xlu0 %4058
  %v4060 = vsel %vm449, %v4048, -inf
  %4061 = vmax.xlane.f32.xlu0 %v4060
  %v4062 = vpop.xlane.xlu0 %4061
  %v4063 = vsel %vm449, %v4049, -inf
  %4064 = vmax.xlane.f32.xlu0 %v4063
  %v4065 = vpop.xlane.xlu0 %4064
  %v4066 = vsel %vm449, %v4050, -inf
  %4067 = vmax.xlane.f32.xlu0 %v4066
  %v4068 = vpop.xlane.xlu0 %4067
  %v4069 = vsel %vm449, %v4051, -inf
  %4070 = vmax.xlane.f32.xlu0 %v4069
  %v4071 = vpop.xlane.xlu0 %4070
  %v4072 = vsel %vm449, %v4052, -inf
  %4073 = vmax.xlane.f32.xlu0 %v4072
  %v4074 = vpop.xlane.xlu0 %4073
  %v4075 = vsel %vm449, %v4053, -inf
  %4076 = vmax.xlane.f32.xlu0 %v4075
  %v4077 = vpop.xlane.xlu0 %4076
  %v4078 = vsub.f32 %v4046, %v4056
  %v4079 = vsub.f32 %v4047, %v4059
  %v4080 = vsub.f32 %v4048, %v4062
  %v4081 = vsub.f32 %v4049, %v4065
  %v4082 = vsub.f32 %v4050, %v4068
  %v4083 = vsub.f32 %v4051, %v4071
  %v4084 = vsub.f32 %v4052, %v4074
  %v4085 = vsub.f32 %v4053, %v4077
  %v4086 = vmul.f32 %v4078, 1.442695
  %v4087 = vpow.pop %v4086
  %v4088 = vmul.f32 %v4079, 1.442695
  %v4089 = vpow.pop %v4088
  %v4090 = vmul.f32 %v4080, 1.442695
  %v4091 = vpow.pop %v4090
  %v4092 = vmul.f32 %v4081, 1.442695
  %v4093 = vpow.pop %v4092
  %v4094 = vmul.f32 %v4082, 1.442695
  %v4095 = vpow.pop %v4094
  %v4096 = vmul.f32 %v4083, 1.442695
  %v4097 = vpow.pop %v4096
  %v4098 = vmul.f32 %v4084, 1.442695
  %v4099 = vpow.pop %v4098
  %v4100 = vmul.f32 %v4085, 1.442695
  %v4101 = vpow.pop %v4100
  %v4102 = vsel %vm449, %v4087, 0.0
  %4103 = vadd.xlane.f32.xlu0 %v4102
  %v4104 = vpop.xlane.xlu0 %4103
  %v4105 = vsel %vm449, %v4089, 0.0
  %4106 = vadd.xlane.f32.xlu0 %v4105
  %v4107 = vpop.xlane.xlu0 %4106
  %v4108 = vsel %vm449, %v4091, 0.0
  %4109 = vadd.xlane.f32.xlu0 %v4108
  %v4110 = vpop.xlane.xlu0 %4109
  %v4111 = vsel %vm449, %v4093, 0.0
  %4112 = vadd.xlane.f32.xlu0 %v4111
  %v4113 = vpop.xlane.xlu0 %4112
  %v4114 = vsel %vm449, %v4095, 0.0
  %4115 = vadd.xlane.f32.xlu0 %v4114
  %v4116 = vpop.xlane.xlu0 %4115
  %v4117 = vsel %vm449, %v4097, 0.0
  %4118 = vadd.xlane.f32.xlu0 %v4117
  %v4119 = vpop.xlane.xlu0 %4118
  %v4120 = vsel %vm449, %v4099, 0.0
  %4121 = vadd.xlane.f32.xlu0 %v4120
  %v4122 = vpop.xlane.xlu0 %4121
  %v4123 = vsel %vm449, %v4101, 0.0
  %4124 = vadd.xlane.f32.xlu0 %v4123
  %v4125 = vpop.xlane.xlu0 %4124
  %v4126 = vrcp.pop %v4104
  %v4127 = vrcp.pop %v4107
  %v4128 = vrcp.pop %v4110
  %v4129 = vrcp.pop %v4113
  %v4130 = vrcp.pop %v4116
  %v4131 = vrcp.pop %v4119
  %v4132 = vrcp.pop %v4122
  %v4133 = vrcp.pop %v4125
  %v4134 = vmul.f32 %v4087, %v4126
  %v4135 = vmul.f32 %v4089, %v4127
  %v4136 = vmul.f32 %v4091, %v4128
  %v4137 = vmul.f32 %v4093, %v4129
  %v4138 = vmul.f32 %v4095, %v4130
  %v4139 = vmul.f32 %v4097, %v4131
  %v4140 = vmul.f32 %v4099, %v4132
  %v4141 = vmul.f32 %v4101, %v4133
  %v4142 = vpack.c.bf16 %v4135, %v4134
  %v4143 = vpack.c.bf16 %v4137, %v4136
  %v4144 = vpack.c.bf16 %v4139, %v4138
  %v4145 = vpack.c.bf16 %v4141, %v4140
  %4146 = vrot.lane.b32.xlu0 %v3562, 96
  %v4147 = vpop.permute.xlu0 %4146
  %4148 = vrot.lane.b32.xlu0 %v3563, 96
  %v4149 = vpop.permute.xlu0 %4148
  %4150 = vrot.lane.b32.xlu0 %v3564, 96
  %v4151 = vpop.permute.xlu0 %4150
  %4152 = vrot.lane.b32.xlu0 %v3565, 96
  %v4153 = vpop.permute.xlu0 %4152
  %v4159 = vsel %vm449, %v4142, 0
  %v4162 = vsel %vm449, %v4143, 0
  %v4165 = vsel %vm449, %v4144, 0
  %v4168 = vsel %vm449, %v4145, 0
  %4170 = vmatprep.subr.bf16.mxu0 0
  %4171 = vmatpush1.bf16.msra.mxu0 %v4147
  %4172 = vmatprep.subr.bf16.mxu0 0
  %4173 = vmatpush1.bf16.msra.mxu0 %v4149
  %4174 = vmatprep.subr.bf16.mxu0 0
  %4175 = vmatpush1.bf16.msra.mxu0 %v4151
  %4176 = vmatprep.subr.bf16.mxu0 0
  %4177 = vmatpush1.bf16.msra.mxu0 %v4153
  %4178 = vmatprep.subr.bf16.mxu0 0
  %4179 = vmatpush1.bf16.msra.mxu0 0
  %4180 = vmatprep.subr.bf16.mxu0 0
  %4181 = vmatpush1.bf16.msra.mxu0 0
  %4182 = vmatprep.subr.bf16.mxu0 0
  %4183 = vmatpush1.bf16.msra.mxu0 0
  %4184 = vmatprep.subr.bf16.mxu0 0
  %4185 = vmatpush1.bf16.msra.mxu0 0
  %4186 = vmatprep.subr.bf16.mxu0 0
  %4187 = vmatpush1.bf16.msra.mxu0 0
  %4188 = vmatprep.subr.bf16.mxu0 0
  %4189 = vmatpush1.bf16.msra.mxu0 0
  %4190 = vmatprep.subr.bf16.mxu0 0
  %4191 = vmatpush1.bf16.msra.mxu0 0
  %4192 = vmatprep.subr.bf16.mxu0 0
  %4193 = vmatpush1.bf16.msra.mxu0 0
  %4194 = vmatprep.subr.bf16.mxu0 0
  %4195 = vmatpush1.bf16.msra.mxu0 0
  %4196 = vmatprep.subr.bf16.mxu0 0
  %4197 = vmatpush1.bf16.msra.mxu0 0
  %4198 = vmatprep.subr.bf16.mxu0 0
  %4199 = vmatpush1.bf16.msra.mxu0 0
  %4200 = vmatprep.subr.bf16.mxu0 0
  %4201 = vmatpush1.bf16.msra.mxu0 0
  %4202 = vmatprep.mubr.bf16.mxu0 0
  %4203 = vmatmul.mubr.bf16.gmra.mrb[0].mxu0 %v4159
  %v4204 = vpop.f32.mrb[0].mxu0
  %v4205 = vadd.f32 0.0, %v4204
  %v4206 = vpop.f32.mrb[0].mxu0
  %v4207 = vpop.f32.mrb[0].mxu0
  %v4208 = vadd.f32 0.0, %v4207
  %v4209 = vpop.f32.mrb[0].mxu0
  %4210 = vmatprep.mubr.bf16.mxu0 0
  %4211 = vmatmul.mubr.bf16.gmra.mrb[0].mxu0 %v4162
  %v4212 = vpop.f32.mrb[0].mxu0
  %v4213 = vadd.f32 0.0, %v4212
  %v4214 = vpop.f32.mrb[0].mxu0
  %v4215 = vpop.f32.mrb[0].mxu0
  %v4216 = vadd.f32 0.0, %v4215
  %v4217 = vpop.f32.mrb[0].mxu0
  %4218 = vmatprep.mubr.bf16.mxu0 0
  %4219 = vmatmul.mubr.bf16.gmra.mrb[0].mxu0 %v4165
  %v4220 = vpop.f32.mrb[0].mxu0
  %v4221 = vadd.f32 0.0, %v4220
  %v4222 = vpop.f32.mrb[0].mxu0
  %v4223 = vpop.f32.mrb[0].mxu0
  %v4224 = vadd.f32 0.0, %v4223
  %v4225 = vpop.f32.mrb[0].mxu0
  %4226 = vmatprep.mubr.bf16.mxu0 0
  %4227 = vmatmul.mubr.bf16.gmra.mrb[0].mxu0 %v4168
  %v4228 = vpop.f32.mrb[0].mxu0
  %v4229 = vadd.f32 0.0, %v4228
  %v4230 = vpop.f32.mrb[0].mxu0
  %v4231 = vpop.f32.mrb[0].mxu0
  %v4232 = vadd.f32 0.0, %v4231
  %v4233 = vpop.f32.mrb[0].mxu0
  %4234 = vdwg.mxu0
  %4235 = vrot.lane.b32.xlu0 %v3357, 80
  %v4236 = vpop.permute.xlu0 %4235
  %4237 = vrot.lane.b32.xlu0 %v3358, 80
  %v4238 = vpop.permute.xlu0 %4237
  %4239 = vrot.lane.b32.xlu0 %v3359, 80
  %v4240 = vpop.permute.xlu0 %4239
  %4241 = vrot.lane.b32.xlu0 %v3360, 80
  %v4242 = vpop.permute.xlu0 %4241
  %4243 = vrot.lane.b32.xlu0 %v3357, 16
  %v4244 = vpop.permute.xlu0 %4243
  %4245 = vrot.lane.b32.xlu0 %v3358, 16
  %v4246 = vpop.permute.xlu0 %4245
  %4247 = vrot.lane.b32.xlu0 %v3359, 16
  %v4248 = vpop.permute.xlu0 %4247
  %4249 = vrot.lane.b32.xlu0 %v3360, 16
  %v4250 = vpop.permute.xlu0 %4249
  %v4252 = vsel %vm748, %v4236, 0
  %v4255 = vsel %vm748, %v4238, 0
  %v4258 = vsel %vm748, %v4240, 0
  %v4261 = vsel %vm748, %v4242, 0
  %v4264 = vsel %vm748, %v4244, 0
  %v4267 = vsel %vm748, %v4246, 0
  %v4270 = vsel %vm748, %v4248, 0
  %v4273 = vsel %vm748, %v4250, 0
  %4275 = vmatprep.subr.bf16.mxu0 0
  %4276 = vmatpush1.bf16.xpose.msra.mxu0 %v4264
  %4277 = vmatprep.subr.bf16.mxu0 0
  %4278 = vmatpush1.bf16.xpose.msra.mxu0 %v4267
  %4279 = vmatprep.subr.bf16.mxu0 0
  %4280 = vmatpush1.bf16.xpose.msra.mxu0 %v4270
  %4281 = vmatprep.subr.bf16.mxu0 0
  %4282 = vmatpush1.bf16.xpose.msra.mxu0 %v4273
  %4283 = vmatprep.subr.bf16.mxu0 0
  %4284 = vmatpush1.bf16.xpose.msra.mxu0 0
  %4285 = vmatprep.subr.bf16.mxu0 0
  %4286 = vmatpush1.bf16.xpose.msra.mxu0 0
  %4287 = vmatprep.subr.bf16.mxu0 0
  %4288 = vmatpush1.bf16.xpose.msra.mxu0 0
  %4289 = vmatprep.subr.bf16.mxu0 0
  %4290 = vmatpush1.bf16.xpose.msra.mxu0 0
  %4291 = vmatprep.subr.bf16.mxu0 0
  %4292 = vmatpush1.bf16.xpose.msra.mxu0 0
  %4293 = vmatprep.subr.bf16.mxu0 0
  %4294 = vmatpush1.bf16.xpose.msra.mxu0 0
  %4295 = vmatprep.subr.bf16.mxu0 0
  %4296 = vmatpush1.bf16.xpose.msra.mxu0 0
  %4297 = vmatprep.subr.bf16.mxu0 0
  %4298 = vmatpush1.bf16.xpose.msra.mxu0 0
  %4299 = vmatprep.subr.bf16.mxu0 0
  %4300 = vmatpush1.bf16.xpose.msra.mxu0 0
  %4301 = vmatprep.subr.bf16.mxu0 0
  %4302 = vmatpush1.bf16.xpose.msra.mxu0 0
  %4303 = vmatprep.subr.bf16.mxu0 0
  %4304 = vmatpush1.bf16.xpose.msra.mxu0 0
  %4305 = vmatprep.subr.bf16.mxu0 0
  %4306 = vmatpush1.bf16.xpose.msra.mxu0 0
  %4307 = vmatprep.mubr.bf16.mxu0 0
  %4308 = vmatmul.mubr.bf16.gmra.mrb[0].mxu0 %v4252
  %v4309 = vpop.f32.mrb[0].mxu0
  %v4310 = vadd.f32 0.0, %v4309
  %v4311 = vpop.f32.mrb[0].mxu0
  %v4312 = vpop.f32.mrb[0].mxu0
  %v4313 = vadd.f32 0.0, %v4312
  %v4314 = vpop.f32.mrb[0].mxu0
  %4315 = vmatprep.mubr.bf16.mxu0 0
  %4316 = vmatmul.mubr.bf16.gmra.mrb[0].mxu0 %v4255
  %v4317 = vpop.f32.mrb[0].mxu0
  %v4318 = vadd.f32 0.0, %v4317
  %v4319 = vpop.f32.mrb[0].mxu0
  %v4320 = vpop.f32.mrb[0].mxu0
  %v4321 = vadd.f32 0.0, %v4320
  %v4322 = vpop.f32.mrb[0].mxu0
  %4323 = vmatprep.mubr.bf16.mxu0 0
  %4324 = vmatmul.mubr.bf16.gmra.mrb[0].mxu0 %v4258
  %v4325 = vpop.f32.mrb[0].mxu0
  %v4326 = vadd.f32 0.0, %v4325
  %v4327 = vpop.f32.mrb[0].mxu0
  %v4328 = vpop.f32.mrb[0].mxu0
  %v4329 = vadd.f32 0.0, %v4328
  %v4330 = vpop.f32.mrb[0].mxu0
  %4331 = vmatprep.mubr.bf16.mxu0 0
  %4332 = vmatmul.mubr.bf16.gmra.mrb[0].mxu0 %v4261
  %v4333 = vpop.f32.mrb[0].mxu0
  %v4334 = vadd.f32 0.0, %v4333
  %v4335 = vpop.f32.mrb[0].mxu0
  %v4336 = vpop.f32.mrb[0].mxu0
  %v4337 = vadd.f32 0.0, %v4336
  %v4338 = vpop.f32.mrb[0].mxu0
  %4339 = vdwg.mxu0
  %v4340 = vmul.f32 %v4310, 0.25
  %v4341 = vmul.f32 %v4313, 0.25
  %v4342 = vmul.f32 %v4318, 0.25
  %v4343 = vmul.f32 %v4321, 0.25
  %v4344 = vmul.f32 %v4326, 0.25
  %v4345 = vmul.f32 %v4329, 0.25
  %v4346 = vmul.f32 %v4334, 0.25
  %v4347 = vmul.f32 %v4337, 0.25
  %v4348 = vsel %vm449, %v4340, -inf
  %4349 = vmax.xlane.f32.xlu0 %v4348
  %v4350 = vpop.xlane.xlu0 %4349
  %v4351 = vsel %vm449, %v4341, -inf
  %4352 = vmax.xlane.f32.xlu0 %v4351
  %v4353 = vpop.xlane.xlu0 %4352
  %v4354 = vsel %vm449, %v4342, -inf
  %4355 = vmax.xlane.f32.xlu0 %v4354
  %v4356 = vpop.xlane.xlu0 %4355
  %v4357 = vsel %vm449, %v4343, -inf
  %4358 = vmax.xlane.f32.xlu0 %v4357
  %v4359 = vpop.xlane.xlu0 %4358
  %v4360 = vsel %vm449, %v4344, -inf
  %4361 = vmax.xlane.f32.xlu0 %v4360
  %v4362 = vpop.xlane.xlu0 %4361
  %v4363 = vsel %vm449, %v4345, -inf
  %4364 = vmax.xlane.f32.xlu0 %v4363
  %v4365 = vpop.xlane.xlu0 %4364
  %v4366 = vsel %vm449, %v4346, -inf
  %4367 = vmax.xlane.f32.xlu0 %v4366
  %v4368 = vpop.xlane.xlu0 %4367
  %v4369 = vsel %vm449, %v4347, -inf
  %4370 = vmax.xlane.f32.xlu0 %v4369
  %v4371 = vpop.xlane.xlu0 %4370
  %v4372 = vsub.f32 %v4340, %v4350
  %v4373 = vsub.f32 %v4341, %v4353
  %v4374 = vsub.f32 %v4342, %v4356
  %v4375 = vsub.f32 %v4343, %v4359
  %v4376 = vsub.f32 %v4344, %v4362
  %v4377 = vsub.f32 %v4345, %v4365
  %v4378 = vsub.f32 %v4346, %v4368
  %v4379 = vsub.f32 %v4347, %v4371
  %v4380 = vmul.f32 %v4372, 1.442695
  %v4381 = vpow.pop %v4380
  %v4382 = vmul.f32 %v4373, 1.442695
  %v4383 = vpow.pop %v4382
  %v4384 = vmul.f32 %v4374, 1.442695
  %v4385 = vpow.pop %v4384
  %v4386 = vmul.f32 %v4375, 1.442695
  %v4387 = vpow.pop %v4386
  %v4388 = vmul.f32 %v4376, 1.442695
  %v4389 = vpow.pop %v4388
  %v4390 = vmul.f32 %v4377, 1.442695
  %v4391 = vpow.pop %v4390
  %v4392 = vmul.f32 %v4378, 1.442695
  %v4393 = vpow.pop %v4392
  %v4394 = vmul.f32 %v4379, 1.442695
  %v4395 = vpow.pop %v4394
  %v4396 = vsel %vm449, %v4381, 0.0
  %4397 = vadd.xlane.f32.xlu0 %v4396
  %v4398 = vpop.xlane.xlu0 %4397
  %v4399 = vsel %vm449, %v4383, 0.0
  %4400 = vadd.xlane.f32.xlu0 %v4399
  %v4401 = vpop.xlane.xlu0 %4400
  %v4402 = vsel %vm449, %v4385, 0.0
  %4403 = vadd.xlane.f32.xlu0 %v4402
  %v4404 = vpop.xlane.xlu0 %4403
  %v4405 = vsel %vm449, %v4387, 0.0
  %4406 = vadd.xlane.f32.xlu0 %v4405
  %v4407 = vpop.xlane.xlu0 %4406
  %v4408 = vsel %vm449, %v4389, 0.0
  %4409 = vadd.xlane.f32.xlu0 %v4408
  %v4410 = vpop.xlane.xlu0 %4409
  %v4411 = vsel %vm449, %v4391, 0.0
  %4412 = vadd.xlane.f32.xlu0 %v4411
  %v4413 = vpop.xlane.xlu0 %4412
  %v4414 = vsel %vm449, %v4393, 0.0
  %4415 = vadd.xlane.f32.xlu0 %v4414
  %v4416 = vpop.xlane.xlu0 %4415
  %v4417 = vsel %vm449, %v4395, 0.0
  %4418 = vadd.xlane.f32.xlu0 %v4417
  %v4419 = vpop.xlane.xlu0 %4418
  %v4420 = vrcp.pop %v4398
  %v4421 = vrcp.pop %v4401
  %v4422 = vrcp.pop %v4404
  %v4423 = vrcp.pop %v4407
  %v4424 = vrcp.pop %v4410
  %v4425 = vrcp.pop %v4413
  %v4426 = vrcp.pop %v4416
  %v4427 = vrcp.pop %v4419
  %v4428 = vmul.f32 %v4381, %v4420
  %v4429 = vmul.f32 %v4383, %v4421
  %v4430 = vmul.f32 %v4385, %v4422
  %v4431 = vmul.f32 %v4387, %v4423
  %v4432 = vmul.f32 %v4389, %v4424
  %v4433 = vmul.f32 %v4391, %v4425
  %v4434 = vmul.f32 %v4393, %v4426
  %v4435 = vmul.f32 %v4395, %v4427
  %v4436 = vpack.c.bf16 %v4429, %v4428
  %v4437 = vpack.c.bf16 %v4431, %v4430
  %v4438 = vpack.c.bf16 %v4433, %v4432
  %v4439 = vpack.c.bf16 %v4435, %v4434
  %4440 = vrot.lane.b32.xlu0 %v3562, 80
  %v4441 = vpop.permute.xlu0 %4440
  %4442 = vrot.lane.b32.xlu0 %v3563, 80
  %v4443 = vpop.permute.xlu0 %4442
  %4444 = vrot.lane.b32.xlu0 %v3564, 80
  %v4445 = vpop.permute.xlu0 %4444
  %4446 = vrot.lane.b32.xlu0 %v3565, 80
  %v4447 = vpop.permute.xlu0 %4446
  %v4453 = vsel %vm449, %v4436, 0
  %v4456 = vsel %vm449, %v4437, 0
  %v4459 = vsel %vm449, %v4438, 0
  %v4462 = vsel %vm449, %v4439, 0
  %4464 = vmatprep.subr.bf16.mxu0 0
  %4465 = vmatpush1.bf16.msra.mxu0 %v4441
  %4466 = vmatprep.subr.bf16.mxu0 0
  %4467 = vmatpush1.bf16.msra.mxu0 %v4443
  %4468 = vmatprep.subr.bf16.mxu0 0
  %4469 = vmatpush1.bf16.msra.mxu0 %v4445
  %4470 = vmatprep.subr.bf16.mxu0 0
  %4471 = vmatpush1.bf16.msra.mxu0 %v4447
  %4472 = vmatprep.subr.bf16.mxu0 0
  %4473 = vmatpush1.bf16.msra.mxu0 0
  %4474 = vmatprep.subr.bf16.mxu0 0
  %4475 = vmatpush1.bf16.msra.mxu0 0
  %4476 = vmatprep.subr.bf16.mxu0 0
  %4477 = vmatpush1.bf16.msra.mxu0 0
  %4478 = vmatprep.subr.bf16.mxu0 0
  %4479 = vmatpush1.bf16.msra.mxu0 0
  %4480 = vmatprep.subr.bf16.mxu0 0
  %4481 = vmatpush1.bf16.msra.mxu0 0
  %4482 = vmatprep.subr.bf16.mxu0 0
  %4483 = vmatpush1.bf16.msra.mxu0 0
  %4484 = vmatprep.subr.bf16.mxu0 0
  %4485 = vmatpush1.bf16.msra.mxu0 0
  %4486 = vmatprep.subr.bf16.mxu0 0
  %4487 = vmatpush1.bf16.msra.mxu0 0
  %4488 = vmatprep.subr.bf16.mxu0 0
  %4489 = vmatpush1.bf16.msra.mxu0 0
  %4490 = vmatprep.subr.bf16.mxu0 0
  %4491 = vmatpush1.bf16.msra.mxu0 0
  %4492 = vmatprep.subr.bf16.mxu0 0
  %4493 = vmatpush1.bf16.msra.mxu0 0
  %4494 = vmatprep.subr.bf16.mxu0 0
  %4495 = vmatpush1.bf16.msra.mxu0 0
  %4496 = vmatprep.mubr.bf16.mxu0 0
  %4497 = vmatmul.mubr.bf16.gmra.mrb[0].mxu0 %v4453
  %v4498 = vpop.f32.mrb[0].mxu0
  %v4499 = vadd.f32 0.0, %v4498
  %v4500 = vpop.f32.mrb[0].mxu0
  %v4501 = vpop.f32.mrb[0].mxu0
  %v4502 = vadd.f32 0.0, %v4501
  %v4503 = vpop.f32.mrb[0].mxu0
  %4504 = vmatprep.mubr.bf16.mxu0 0
  %4505 = vmatmul.mubr.bf16.gmra.mrb[0].mxu0 %v4456
  %v4506 = vpop.f32.mrb[0].mxu0
  %v4507 = vadd.f32 0.0, %v4506
  %v4508 = vpop.f32.mrb[0].mxu0
  %v4509 = vpop.f32.mrb[0].mxu0
  %v4510 = vadd.f32 0.0, %v4509
  %v4511 = vpop.f32.mrb[0].mxu0
  %4512 = vmatprep.mubr.bf16.mxu0 0
  %4513 = vmatmul.mubr.bf16.gmra.mrb[0].mxu0 %v4459
  %v4514 = vpop.f32.mrb[0].mxu0
  %v4515 = vadd.f32 0.0, %v4514
  %v4516 = vpop.f32.mrb[0].mxu0
  %v4517 = vpop.f32.mrb[0].mxu0
  %v4518 = vadd.f32 0.0, %v4517
  %v4519 = vpop.f32.mrb[0].mxu0
  %4520 = vmatprep.mubr.bf16.mxu0 0
  %4521 = vmatmul.mubr.bf16.gmra.mrb[0].mxu0 %v4462
  %v4522 = vpop.f32.mrb[0].mxu0
  %v4523 = vadd.f32 0.0, %v4522
  %v4524 = vpop.f32.mrb[0].mxu0
  %v4525 = vpop.f32.mrb[0].mxu0
  %v4526 = vadd.f32 0.0, %v4525
  %v4527 = vpop.f32.mrb[0].mxu0
  %4528 = vdwg.mxu0
  %4537 = vrot.lane.b32.xlu0 %v3911, 16
  %v4538 = vpop.permute.xlu0 %4537
  %4539 = vrot.lane.b32.xlu0 %v3914, 16
  %v4540 = vpop.permute.xlu0 %4539
  %4541 = vrot.lane.b32.xlu0 %v3919, 16
  %v4542 = vpop.permute.xlu0 %4541
  %4543 = vrot.lane.b32.xlu0 %v3922, 16
  %v4544 = vpop.permute.xlu0 %4543
  %4545 = vrot.lane.b32.xlu0 %v3927, 16
  %v4546 = vpop.permute.xlu0 %4545
  %4547 = vrot.lane.b32.xlu0 %v3930, 16
  %v4548 = vpop.permute.xlu0 %4547
  %4549 = vrot.lane.b32.xlu0 %v3935, 16
  %v4550 = vpop.permute.xlu0 %4549
  %4551 = vrot.lane.b32.xlu0 %v3938, 16
  %v4552 = vpop.permute.xlu0 %4551
  %4569 = vrot.lane.b32.xlu0 %v4205, 32
  %v4570 = vpop.permute.xlu0 %4569
  %4571 = vrot.lane.b32.xlu0 %v4208, 32
  %v4572 = vpop.permute.xlu0 %4571
  %4573 = vrot.lane.b32.xlu0 %v4213, 32
  %v4574 = vpop.permute.xlu0 %4573
  %4575 = vrot.lane.b32.xlu0 %v4216, 32
  %v4576 = vpop.permute.xlu0 %4575
  %4577 = vrot.lane.b32.xlu0 %v4221, 32
  %v4578 = vpop.permute.xlu0 %4577
  %4579 = vrot.lane.b32.xlu0 %v4224, 32
  %v4580 = vpop.permute.xlu0 %4579
  %4581 = vrot.lane.b32.xlu0 %v4229, 32
  %v4582 = vpop.permute.xlu0 %4581
  %4583 = vrot.lane.b32.xlu0 %v4232, 32
  %v4584 = vpop.permute.xlu0 %4583
  %4601 = vrot.lane.b32.xlu0 %v4499, 48
  %v4602 = vpop.permute.xlu0 %4601
  %4603 = vrot.lane.b32.xlu0 %v4502, 48
  %v4604 = vpop.permute.xlu0 %4603
  %4605 = vrot.lane.b32.xlu0 %v4507, 48
  %v4606 = vpop.permute.xlu0 %4605
  %4607 = vrot.lane.b32.xlu0 %v4510, 48
  %v4608 = vpop.permute.xlu0 %4607
  %4609 = vrot.lane.b32.xlu0 %v4515, 48
  %v4610 = vpop.permute.xlu0 %4609
  %4611 = vrot.lane.b32.xlu0 %v4518, 48
  %v4612 = vpop.permute.xlu0 %4611
  %4613 = vrot.lane.b32.xlu0 %v4523, 48
  %v4614 = vpop.permute.xlu0 %4613
  %4615 = vrot.lane.b32.xlu0 %v4526, 48
  %v4616 = vpop.permute.xlu0 %4615
  %v4625 = vsel %vm748, %v3613, %v4538
  %v4626 = vsel %vm748, %v3616, %v4540
  %v4627 = vsel %vm748, %v3621, %v4542
  %v4628 = vsel %vm748, %v3624, %v4544
  %v4629 = vsel %vm748, %v3629, %v4546
  %v4630 = vsel %vm748, %v3632, %v4548
  %v4631 = vsel %vm748, %v3637, %v4550
  %v4632 = vsel %vm748, %v3640, %v4552
  %v4633 = vsel %vm2009, %v4625, %v4570
  %v4634 = vsel %vm2009, %v4626, %v4572
  %v4635 = vsel %vm2009, %v4627, %v4574
  %v4636 = vsel %vm2009, %v4628, %v4576
  %v4637 = vsel %vm2009, %v4629, %v4578
  %v4638 = vsel %vm2009, %v4630, %v4580
  %v4639 = vsel %vm2009, %v4631, %v4582
  %v4640 = vsel %vm2009, %v4632, %v4584
  %v4641 = vsel %vm2018, %v4633, %v4602
  %v4642 = vsel %vm2018, %v4634, %v4604
  %v4643 = vsel %vm2018, %v4635, %v4606
  %v4644 = vsel %vm2018, %v4636, %v4608
  %v4645 = vsel %vm2018, %v4637, %v4610
  %v4646 = vsel %vm2018, %v4638, %v4612
  %v4647 = vsel %vm2018, %v4639, %v4614
  %v4648 = vsel %vm2018, %v4640, %v4616
  %v4649 = vpack.c.bf16 %v4642, %v4641
  %v4650 = vpack.c.bf16 %v4644, %v4643
  %v4651 = vpack.c.bf16 %v4646, %v4645
  %v4652 = vpack.c.bf16 %v4648, %v4647
  %s4653 = scalar_lea.vmem %s8, 32
  %v4654 = vld [vmem:[%s4653] sm:$0xf]
  %v4655 = vld [vmem:[%s4653 + $0x4] sm:$0xf]
  %v4656 = vld [vmem:[%s4653 + $0x8] sm:$0xf]
  %v4657 = vld [vmem:[%s4653 + $0xc] sm:$0xf]
  %v4658 = vld [vmem:[%s4653 + $0x10] sm:$0xf]
  %v4659 = vld [vmem:[%s4653 + $0x14] sm:$0xf]
  %v4660 = vld [vmem:[%s4653 + $0x18] sm:$0xf]
  %v4661 = vld [vmem:[%s4653 + $0x1c] sm:$0xf]
  %s4662 = scalar_lea.vmem %s9, 1
  %v4663 = vld [vmem:[%s4662] sm:$0x1]
  %v4665 = vlaneseq
  %v4666 = vshrl.u32 %v4665, 7
  %v4667 = vsub.s32 0, %v4666
  %v4668 = vrot.slane %v4663, %v4667
  %v4678 = vunpack.c.l.b16 %v4654
  %v4679 = vunpack.c.l.b16 %v4655
  %v4680 = vunpack.c.l.b16 %v4656
  %v4681 = vunpack.c.l.b16 %v4657
  %v4682 = vunpack.c.l.b16 %v4658
  %v4683 = vunpack.c.l.b16 %v4659
  %v4684 = vunpack.c.l.b16 %v4660
  %v4685 = vunpack.c.l.b16 %v4661
  %v4686 = vpack.c.b16 %v4679, %v4678
  %v4687 = vpack.c.b16 %v4681, %v4680
  %v4688 = vpack.c.b16 %v4683, %v4682
  %v4689 = vpack.c.b16 %v4685, %v4684
  %v4695 = vsel %vm449, %v4649, 0
  %v4698 = vsel %vm449, %v4650, 0
  %v4701 = vsel %vm449, %v4651, 0
  %v4704 = vsel %vm449, %v4652, 0
  %4706 = vmatprep.subr.bf16.mxu0 0
  %4707 = vmatpush1.bf16.msra.mxu0 %v4686
  %4708 = vmatprep.subr.bf16.mxu0 0
  %4709 = vmatpush1.bf16.msra.mxu0 %v4687
  %4710 = vmatprep.subr.bf16.mxu0 0
  %4711 = vmatpush1.bf16.msra.mxu0 %v4688
  %4712 = vmatprep.subr.bf16.mxu0 0
  %4713 = vmatpush1.bf16.msra.mxu0 %v4689
  %4714 = vmatprep.subr.bf16.mxu0 0
  %4715 = vmatpush1.bf16.msra.mxu0 0
  %4716 = vmatprep.subr.bf16.mxu0 0
  %4717 = vmatpush1.bf16.msra.mxu0 0
  %4718 = vmatprep.subr.bf16.mxu0 0
  %4719 = vmatpush1.bf16.msra.mxu0 0
  %4720 = vmatprep.subr.bf16.mxu0 0
  %4721 = vmatpush1.bf16.msra.mxu0 0
  %4722 = vmatprep.subr.bf16.mxu0 0
  %4723 = vmatpush1.bf16.msra.mxu0 0
  %4724 = vmatprep.subr.bf16.mxu0 0
  %4725 = vmatpush1.bf16.msra.mxu0 0
  %4726 = vmatprep.subr.bf16.mxu0 0
  %4727 = vmatpush1.bf16.msra.mxu0 0
  %4728 = vmatprep.subr.bf16.mxu0 0
  %4729 = vmatpush1.bf16.msra.mxu0 0
  %4730 = vmatprep.subr.bf16.mxu0 0
  %4731 = vmatpush1.bf16.msra.mxu0 0
  %4732 = vmatprep.subr.bf16.mxu0 0
  %4733 = vmatpush1.bf16.msra.mxu0 0
  %4734 = vmatprep.subr.bf16.mxu0 0
  %4735 = vmatpush1.bf16.msra.mxu0 0
  %4736 = vmatprep.subr.bf16.mxu0 0
  %4737 = vmatpush1.bf16.msra.mxu0 0
  %4738 = vmatprep.mubr.bf16.mxu0 0
  %4739 = vmatmul.mubr.bf16.gmra.mrb[0].mxu0 %v4695
  %v4740 = vpop.f32.mrb[0].mxu0
  %v4741 = vadd.f32 %v4668, %v4740
  %v4742 = vpop.f32.mrb[0].mxu0
  %v4743 = vpop.f32.mrb[0].mxu0
  %v4744 = vadd.f32 %v4668, %v4743
  %v4745 = vpop.f32.mrb[0].mxu0
  %4746 = vmatprep.mubr.bf16.mxu0 0
  %4747 = vmatmul.mubr.bf16.gmra.mrb[0].mxu0 %v4698
  %v4748 = vpop.f32.mrb[0].mxu0
  %v4749 = vadd.f32 %v4668, %v4748
  %v4750 = vpop.f32.mrb[0].mxu0
  %v4751 = vpop.f32.mrb[0].mxu0
  %v4752 = vadd.f32 %v4668, %v4751
  %v4753 = vpop.f32.mrb[0].mxu0
  %4754 = vmatprep.mubr.bf16.mxu0 0
  %4755 = vmatmul.mubr.bf16.gmra.mrb[0].mxu0 %v4701
  %v4756 = vpop.f32.mrb[0].mxu0
  %v4757 = vadd.f32 %v4668, %v4756
  %v4758 = vpop.f32.mrb[0].mxu0
  %v4759 = vpop.f32.mrb[0].mxu0
  %v4760 = vadd.f32 %v4668, %v4759
  %v4761 = vpop.f32.mrb[0].mxu0
  %4762 = vmatprep.mubr.bf16.mxu0 0
  %4763 = vmatmul.mubr.bf16.gmra.mrb[0].mxu0 %v4704
  %v4764 = vpop.f32.mrb[0].mxu0
  %v4765 = vadd.f32 %v4668, %v4764
  %v4766 = vpop.f32.mrb[0].mxu0
  %v4767 = vpop.f32.mrb[0].mxu0
  %v4768 = vadd.f32 %v4668, %v4767
  %v4769 = vpop.f32.mrb[0].mxu0
  %4770 = vdwg.mxu0
  %v4771 = vadd.f32 %v3062, %v4741
  %v4772 = vadd.f32 %v3063, %v4744
  %v4773 = vadd.f32 %v3064, %v4749
  %v4774 = vadd.f32 %v3065, %v4752
  %v4775 = vadd.f32 %v3066, %v4757
  %v4776 = vadd.f32 %v3067, %v4760
  %v4777 = vadd.f32 %v3068, %v4765
  %v4778 = vadd.f32 %v3069, %v4768
  %s4779 = scalar_lea.vmem %s10, 1
  %v4780 = vld [vmem:[%s4779] sm:$0x1]
  %s4781 = scalar_lea.vmem %s11, 1
  %v4782 = vld [vmem:[%s4781] sm:$0x1]
  %v4783 = vsel %vm449, %v4771, 0.0
  %4784 = vadd.xlane.f32.xlu0 %v4783
  %v4785 = vpop.xlane.xlu0 %4784
  %v4786 = vsel %vm449, %v4772, 0.0
  %4787 = vadd.xlane.f32.xlu0 %v4786
  %v4788 = vpop.xlane.xlu0 %4787
  %v4789 = vsel %vm449, %v4773, 0.0
  %4790 = vadd.xlane.f32.xlu0 %v4789
  %v4791 = vpop.xlane.xlu0 %4790
  %v4792 = vsel %vm449, %v4774, 0.0
  %4793 = vadd.xlane.f32.xlu0 %v4792
  %v4794 = vpop.xlane.xlu0 %4793
  %v4795 = vsel %vm449, %v4775, 0.0
  %4796 = vadd.xlane.f32.xlu0 %v4795
  %v4797 = vpop.xlane.xlu0 %4796
  %v4798 = vsel %vm449, %v4776, 0.0
  %4799 = vadd.xlane.f32.xlu0 %v4798
  %v4800 = vpop.xlane.xlu0 %4799
  %v4801 = vsel %vm449, %v4777, 0.0
  %4802 = vadd.xlane.f32.xlu0 %v4801
  %v4803 = vpop.xlane.xlu0 %4802
  %v4804 = vsel %vm449, %v4778, 0.0
  %4805 = vadd.xlane.f32.xlu0 %v4804
  %v4806 = vpop.xlane.xlu0 %4805
  %v4807 = vmul.f32 %v4785, %v474
  %v4808 = vmul.f32 %v4788, %v474
  %v4809 = vmul.f32 %v4791, %v474
  %v4810 = vmul.f32 %v4794, %v474
  %v4811 = vmul.f32 %v4797, %v474
  %v4812 = vmul.f32 %v4800, %v474
  %v4813 = vmul.f32 %v4803, %v474
  %v4814 = vmul.f32 %v4806, %v474
  %v4815 = vsub.f32 %v4771, %v4807
  %v4816 = vsub.f32 %v4772, %v4808
  %v4817 = vsub.f32 %v4773, %v4809
  %v4818 = vsub.f32 %v4774, %v4810
  %v4819 = vsub.f32 %v4775, %v4811
  %v4820 = vsub.f32 %v4776, %v4812
  %v4821 = vsub.f32 %v4777, %v4813
  %v4822 = vsub.f32 %v4778, %v4814
  %v4823 = vmul.f32 %v4815, %v4815
  %v4824 = vmul.f32 %v4816, %v4816
  %v4825 = vmul.f32 %v4817, %v4817
  %v4826 = vmul.f32 %v4818, %v4818
  %v4827 = vmul.f32 %v4819, %v4819
  %v4828 = vmul.f32 %v4820, %v4820
  %v4829 = vmul.f32 %v4821, %v4821
  %v4830 = vmul.f32 %v4822, %v4822
  %v4831 = vsel %vm449, %v4823, 0.0
  %4832 = vadd.xlane.f32.xlu0 %v4831
  %v4833 = vpop.xlane.xlu0 %4832
  %v4834 = vsel %vm449, %v4824, 0.0
  %4835 = vadd.xlane.f32.xlu0 %v4834
  %v4836 = vpop.xlane.xlu0 %4835
  %v4837 = vsel %vm449, %v4825, 0.0
  %4838 = vadd.xlane.f32.xlu0 %v4837
  %v4839 = vpop.xlane.xlu0 %4838
  %v4840 = vsel %vm449, %v4826, 0.0
  %4841 = vadd.xlane.f32.xlu0 %v4840
  %v4842 = vpop.xlane.xlu0 %4841
  %v4843 = vsel %vm449, %v4827, 0.0
  %4844 = vadd.xlane.f32.xlu0 %v4843
  %v4845 = vpop.xlane.xlu0 %4844
  %v4846 = vsel %vm449, %v4828, 0.0
  %4847 = vadd.xlane.f32.xlu0 %v4846
  %v4848 = vpop.xlane.xlu0 %4847
  %v4849 = vsel %vm449, %v4829, 0.0
  %4850 = vadd.xlane.f32.xlu0 %v4849
  %v4851 = vpop.xlane.xlu0 %4850
  %v4852 = vsel %vm449, %v4830, 0.0
  %4853 = vadd.xlane.f32.xlu0 %v4852
  %v4854 = vpop.xlane.xlu0 %4853
  %v4855 = vmul.f32 %v4833, %v474
  %v4856 = vmul.f32 %v4836, %v474
  %v4857 = vmul.f32 %v4839, %v474
  %v4858 = vmul.f32 %v4842, %v474
  %v4859 = vmul.f32 %v4845, %v474
  %v4860 = vmul.f32 %v4848, %v474
  %v4861 = vmul.f32 %v4851, %v474
  %v4862 = vmul.f32 %v4854, %v474
  %v4863 = vadd.f32 %v4855, 1e-06
  %v4864 = vadd.f32 %v4856, 1e-06
  %v4865 = vadd.f32 %v4857, 1e-06
  %v4866 = vadd.f32 %v4858, 1e-06
  %v4867 = vadd.f32 %v4859, 1e-06
  %v4868 = vadd.f32 %v4860, 1e-06
  %v4869 = vadd.f32 %v4861, 1e-06
  %v4870 = vadd.f32 %v4862, 1e-06
  %v4871 = vrsqrt.pop %v4863
  %v4872 = vrsqrt.pop %v4864
  %v4873 = vrsqrt.pop %v4865
  %v4874 = vrsqrt.pop %v4866
  %v4875 = vrsqrt.pop %v4867
  %v4876 = vrsqrt.pop %v4868
  %v4877 = vrsqrt.pop %v4869
  %v4878 = vrsqrt.pop %v4870
  %v4879 = vmul.f32 %v4815, %v4871
  %v4880 = vmul.f32 %v4816, %v4872
  %v4881 = vmul.f32 %v4817, %v4873
  %v4882 = vmul.f32 %v4818, %v4874
  %v4883 = vmul.f32 %v4819, %v4875
  %v4884 = vmul.f32 %v4820, %v4876
  %v4885 = vmul.f32 %v4821, %v4877
  %v4886 = vmul.f32 %v4822, %v4878
  %v4888 = vlaneseq
  %v4889 = vshrl.u32 %v4888, 7
  %v4890 = vsub.s32 0, %v4889
  %v4891 = vrot.slane %v4780, %v4890
  %v4893 = vmul.f32 %v4879, %v4891
  %v4894 = vmul.f32 %v4880, %v4891
  %v4895 = vmul.f32 %v4881, %v4891
  %v4896 = vmul.f32 %v4882, %v4891
  %v4897 = vmul.f32 %v4883, %v4891
  %v4898 = vmul.f32 %v4884, %v4891
  %v4899 = vmul.f32 %v4885, %v4891
  %v4900 = vmul.f32 %v4886, %v4891
  %v4902 = vlaneseq
  %v4903 = vshrl.u32 %v4902, 7
  %v4904 = vsub.s32 0, %v4903
  %v4905 = vrot.slane %v4782, %v4904
  %v4907 = vadd.f32 %v4893, %v4905
  %v4908 = vadd.f32 %v4894, %v4905
  %v4909 = vadd.f32 %v4895, %v4905
  %v4910 = vadd.f32 %v4896, %v4905
  %v4911 = vadd.f32 %v4897, %v4905
  %v4912 = vadd.f32 %v4898, %v4905
  %v4913 = vadd.f32 %v4899, %v4905
  %v4914 = vadd.f32 %v4900, %v4905
  %v4915 = vpack.c.bf16 %v4908, %v4907
  %v4916 = vpack.c.bf16 %v4910, %v4909
  %v4917 = vpack.c.bf16 %v4912, %v4911
  %v4918 = vpack.c.bf16 %v4914, %v4913
  %s4919 = scalar_lea.vmem %s12, 64
  %v4920 = vld [vmem:[%s4919] sm:$0xff]
  %v4921 = vld [vmem:[%s4919 + $0x8] sm:$0xff]
  %v4922 = vld [vmem:[%s4919 + $0x10] sm:$0xff]
  %v4923 = vld [vmem:[%s4919 + $0x18] sm:$0xff]
  %v4924 = vld [vmem:[%s4919 + $0x20] sm:$0xff]
  %v4925 = vld [vmem:[%s4919 + $0x28] sm:$0xff]
  %v4926 = vld [vmem:[%s4919 + $0x30] sm:$0xff]
  %v4927 = vld [vmem:[%s4919 + $0x38] sm:$0xff]
  %s4928 = scalar_lea.vmem %s13, 2
  %v4929 = vld [vmem:[%s4928] sm:$0x3]
  %v4931 = vlaneseq
  %v4932 = vshrl.u32 %v4931, 7
  %v4933 = vsub.s32 0, %v4932
  %v4934 = vrot.slane %v4929, %v4933
  %v4935 = vlaneseq
  %v4936 = vshrl.u32 %v4935, 7
  %v4937 = vsub.s32 1, %v4936
  %v4938 = vrot.slane %v4929, %v4937
  %v4949 = vunpack.c.l.b16 %v4920
  %v4950 = vunpack.c.h.b16 %v4920
  %v4951 = vunpack.c.l.b16 %v4921
  %v4952 = vunpack.c.h.b16 %v4921
  %v4953 = vunpack.c.l.b16 %v4922
  %v4954 = vunpack.c.h.b16 %v4922
  %v4955 = vunpack.c.l.b16 %v4923
  %v4956 = vunpack.c.h.b16 %v4923
  %v4957 = vunpack.c.l.b16 %v4924
  %v4958 = vunpack.c.h.b16 %v4924
  %v4959 = vunpack.c.l.b16 %v4925
  %v4960 = vunpack.c.h.b16 %v4925
  %v4961 = vunpack.c.l.b16 %v4926
  %v4962 = vunpack.c.h.b16 %v4926
  %v4963 = vunpack.c.l.b16 %v4927
  %v4964 = vunpack.c.h.b16 %v4927
  %v4965 = vpack.c.b16 %v4951, %v4949
  %v4966 = vpack.c.b16 %v4952, %v4950
  %v4967 = vpack.c.b16 %v4955, %v4953
  %v4968 = vpack.c.b16 %v4956, %v4954
  %v4969 = vpack.c.b16 %v4959, %v4957
  %v4970 = vpack.c.b16 %v4960, %v4958
  %v4971 = vpack.c.b16 %v4963, %v4961
  %v4972 = vpack.c.b16 %v4964, %v4962
  %v4982 = vsel %vm449, %v4915, 0
  %v4985 = vsel %vm449, %v4916, 0
  %v4988 = vsel %vm449, %v4917, 0
  %v4991 = vsel %vm449, %v4918, 0
  %4993 = vmatprep.subr.bf16.mxu0 %v4966
  %4994 = vmatpush1.bf16.msra.mxu0 %v4965
  %4995 = vmatprep.subr.bf16.mxu0 %v4968
  %4996 = vmatpush1.bf16.msra.mxu0 %v4967
  %4997 = vmatprep.subr.bf16.mxu0 %v4970
  %4998 = vmatpush1.bf16.msra.mxu0 %v4969
  %4999 = vmatprep.subr.bf16.mxu0 %v4972
  %5000 = vmatpush1.bf16.msra.mxu0 %v4971
  %5001 = vmatprep.subr.bf16.mxu0 0
  %5002 = vmatpush1.bf16.msra.mxu0 0
  %5003 = vmatprep.subr.bf16.mxu0 0
  %5004 = vmatpush1.bf16.msra.mxu0 0
  %5005 = vmatprep.subr.bf16.mxu0 0
  %5006 = vmatpush1.bf16.msra.mxu0 0
  %5007 = vmatprep.subr.bf16.mxu0 0
  %5008 = vmatpush1.bf16.msra.mxu0 0
  %5009 = vmatprep.subr.bf16.mxu0 0
  %5010 = vmatpush1.bf16.msra.mxu0 0
  %5011 = vmatprep.subr.bf16.mxu0 0
  %5012 = vmatpush1.bf16.msra.mxu0 0
  %5013 = vmatprep.subr.bf16.mxu0 0
  %5014 = vmatpush1.bf16.msra.mxu0 0
  %5015 = vmatprep.subr.bf16.mxu0 0
  %5016 = vmatpush1.bf16.msra.mxu0 0
  %5017 = vmatprep.subr.bf16.mxu0 0
  %5018 = vmatpush1.bf16.msra.mxu0 0
  %5019 = vmatprep.subr.bf16.mxu0 0
  %5020 = vmatpush1.bf16.msra.mxu0 0
  %5021 = vmatprep.subr.bf16.mxu0 0
  %5022 = vmatpush1.bf16.msra.mxu0 0
  %5023 = vmatprep.subr.bf16.mxu0 0
  %5024 = vmatpush1.bf16.msra.mxu0 0
  %5025 = vmatprep.mubr.bf16.mxu0 0
  %5026 = vmatmul.mubr.bf16.gmra.mrb[0].mxu0 %v4982
  %v5027 = vpop.f32.mrb[0].mxu0
  %v5028 = vadd.f32 %v4934, %v5027
  %v5029 = vpop.f32.mrb[0].mxu0
  %v5030 = vadd.f32 %v4938, %v5029
  %v5031 = vpop.f32.mrb[0].mxu0
  %v5032 = vadd.f32 %v4934, %v5031
  %v5033 = vpop.f32.mrb[0].mxu0
  %v5034 = vadd.f32 %v4938, %v5033
  %5035 = vmatprep.mubr.bf16.mxu0 0
  %5036 = vmatmul.mubr.bf16.gmra.mrb[0].mxu0 %v4985
  %v5037 = vpop.f32.mrb[0].mxu0
  %v5038 = vadd.f32 %v4934, %v5037
  %v5039 = vpop.f32.mrb[0].mxu0
  %v5040 = vadd.f32 %v4938, %v5039
  %v5041 = vpop.f32.mrb[0].mxu0
  %v5042 = vadd.f32 %v4934, %v5041
  %v5043 = vpop.f32.mrb[0].mxu0
  %v5044 = vadd.f32 %v4938, %v5043
  %5045 = vmatprep.mubr.bf16.mxu0 0
  %5046 = vmatmul.mubr.bf16.gmra.mrb[0].mxu0 %v4988
  %v5047 = vpop.f32.mrb[0].mxu0
  %v5048 = vadd.f32 %v4934, %v5047
  %v5049 = vpop.f32.mrb[0].mxu0
  %v5050 = vadd.f32 %v4938, %v5049
  %v5051 = vpop.f32.mrb[0].mxu0
  %v5052 = vadd.f32 %v4934, %v5051
  %v5053 = vpop.f32.mrb[0].mxu0
  %v5054 = vadd.f32 %v4938, %v5053
  %5055 = vmatprep.mubr.bf16.mxu0 0
  %5056 = vmatmul.mubr.bf16.gmra.mrb[0].mxu0 %v4991
  %v5057 = vpop.f32.mrb[0].mxu0
  %v5058 = vadd.f32 %v4934, %v5057
  %v5059 = vpop.f32.mrb[0].mxu0
  %v5060 = vadd.f32 %v4938, %v5059
  %v5061 = vpop.f32.mrb[0].mxu0
  %v5062 = vadd.f32 %v4934, %v5061
  %v5063 = vpop.f32.mrb[0].mxu0
  %v5064 = vadd.f32 %v4938, %v5063
  %5065 = vdwg.mxu0
  %v5066 = vmul.f32 %v5028, 0.5
  %v5067 = vmul.f32 %v5030, 0.5
  %v5068 = vmul.f32 %v5032, 0.5
  %v5069 = vmul.f32 %v5034, 0.5
  %v5070 = vmul.f32 %v5038, 0.5
  %v5071 = vmul.f32 %v5040, 0.5
  %v5072 = vmul.f32 %v5042, 0.5
  %v5073 = vmul.f32 %v5044, 0.5
  %v5074 = vmul.f32 %v5048, 0.5
  %v5075 = vmul.f32 %v5050, 0.5
  %v5076 = vmul.f32 %v5052, 0.5
  %v5077 = vmul.f32 %v5054, 0.5
  %v5078 = vmul.f32 %v5058, 0.5
  %v5079 = vmul.f32 %v5060, 0.5
  %v5080 = vmul.f32 %v5062, 0.5
  %v5081 = vmul.f32 %v5064, 0.5
  %v5082 = vmul.f32 %v5028, 0.70710677
  %v5083 = vmul.f32 %v5030, 0.70710677
  %v5084 = vmul.f32 %v5032, 0.70710677
  %v5085 = vmul.f32 %v5034, 0.70710677
  %v5086 = vmul.f32 %v5038, 0.70710677
  %v5087 = vmul.f32 %v5040, 0.70710677
  %v5088 = vmul.f32 %v5042, 0.70710677
  %v5089 = vmul.f32 %v5044, 0.70710677
  %v5090 = vmul.f32 %v5048, 0.70710677
  %v5091 = vmul.f32 %v5050, 0.70710677
  %v5092 = vmul.f32 %v5052, 0.70710677
  %v5093 = vmul.f32 %v5054, 0.70710677
  %v5094 = vmul.f32 %v5058, 0.70710677
  %v5095 = vmul.f32 %v5060, 0.70710677
  %v5096 = vmul.f32 %v5062, 0.70710677
  %v5097 = vmul.f32 %v5064, 0.70710677
  %vm5098 = vcmp.lt.f32.partialorder %v5082, 0.0
  %vm5099 = vcmp.lt.f32.partialorder %v5083, 0.0
  %vm5100 = vcmp.lt.f32.partialorder %v5084, 0.0
  %vm5101 = vcmp.lt.f32.partialorder %v5085, 0.0
  %vm5102 = vcmp.lt.f32.partialorder %v5086, 0.0
  %vm5103 = vcmp.lt.f32.partialorder %v5087, 0.0
  %vm5104 = vcmp.lt.f32.partialorder %v5088, 0.0
  %vm5105 = vcmp.lt.f32.partialorder %v5089, 0.0
  %vm5106 = vcmp.lt.f32.partialorder %v5090, 0.0
  %vm5107 = vcmp.lt.f32.partialorder %v5091, 0.0
  %vm5108 = vcmp.lt.f32.partialorder %v5092, 0.0
  %vm5109 = vcmp.lt.f32.partialorder %v5093, 0.0
  %vm5110 = vcmp.lt.f32.partialorder %v5094, 0.0
  %vm5111 = vcmp.lt.f32.partialorder %v5095, 0.0
  %vm5112 = vcmp.lt.f32.partialorder %v5096, 0.0
  %vm5113 = vcmp.lt.f32.partialorder %v5097, 0.0
  %v5114 = vsel %vm5098, -1.0, 1.0
  %v5115 = vsel %vm5099, -1.0, 1.0
  %v5116 = vsel %vm5100, -1.0, 1.0
  %v5117 = vsel %vm5101, -1.0, 1.0
  %v5118 = vsel %vm5102, -1.0, 1.0
  %v5119 = vsel %vm5103, -1.0, 1.0
  %v5120 = vsel %vm5104, -1.0, 1.0
  %v5121 = vsel %vm5105, -1.0, 1.0
  %v5122 = vsel %vm5106, -1.0, 1.0
  %v5123 = vsel %vm5107, -1.0, 1.0
  %v5124 = vsel %vm5108, -1.0, 1.0
  %v5125 = vsel %vm5109, -1.0, 1.0
  %v5126 = vsel %vm5110, -1.0, 1.0
  %v5127 = vsel %vm5111, -1.0, 1.0
  %v5128 = vsel %vm5112, -1.0, 1.0
  %v5129 = vsel %vm5113, -1.0, 1.0
  %v5130 = vand.u32 2147483647, %v5082
  %v5131 = vand.u32 2147483647, %v5083
  %v5132 = vand.u32 2147483647, %v5084
  %v5133 = vand.u32 2147483647, %v5085
  %v5134 = vand.u32 2147483647, %v5086
  %v5135 = vand.u32 2147483647, %v5087
  %v5136 = vand.u32 2147483647, %v5088
  %v5137 = vand.u32 2147483647, %v5089
  %v5138 = vand.u32 2147483647, %v5090
  %v5139 = vand.u32 2147483647, %v5091
  %v5140 = vand.u32 2147483647, %v5092
  %v5141 = vand.u32 2147483647, %v5093
  %v5142 = vand.u32 2147483647, %v5094
  %v5143 = vand.u32 2147483647, %v5095
  %v5144 = vand.u32 2147483647, %v5096
  %v5145 = vand.u32 2147483647, %v5097
  %v5146 = vmul.f32 %v5130, 0.3275911
  %v5147 = vmul.f32 %v5131, 0.3275911
  %v5148 = vmul.f32 %v5132, 0.3275911
  %v5149 = vmul.f32 %v5133, 0.3275911
  %v5150 = vmul.f32 %v5134, 0.3275911
  %v5151 = vmul.f32 %v5135, 0.3275911
  %v5152 = vmul.f32 %v5136, 0.3275911
  %v5153 = vmul.f32 %v5137, 0.3275911
  %v5154 = vmul.f32 %v5138, 0.3275911
  %v5155 = vmul.f32 %v5139, 0.3275911
  %v5156 = vmul.f32 %v5140, 0.3275911
  %v5157 = vmul.f32 %v5141, 0.3275911
  %v5158 = vmul.f32 %v5142, 0.3275911
  %v5159 = vmul.f32 %v5143, 0.3275911
  %v5160 = vmul.f32 %v5144, 0.3275911
  %v5161 = vmul.f32 %v5145, 0.3275911
  %v5162 = vadd.f32 %v5146, 1.0
  %v5163 = vadd.f32 %v5147, 1.0
  %v5164 = vadd.f32 %v5148, 1.0
  %v5165 = vadd.f32 %v5149, 1.0
  %v5166 = vadd.f32 %v5150, 1.0
  %v5167 = vadd.f32 %v5151, 1.0
  %v5168 = vadd.f32 %v5152, 1.0
  %v5169 = vadd.f32 %v5153, 1.0
  %v5170 = vadd.f32 %v5154, 1.0
  %v5171 = vadd.f32 %v5155, 1.0
  %v5172 = vadd.f32 %v5156, 1.0
  %v5173 = vadd.f32 %v5157, 1.0
  %v5174 = vadd.f32 %v5158, 1.0
  %v5175 = vadd.f32 %v5159, 1.0
  %v5176 = vadd.f32 %v5160, 1.0
  %v5177 = vadd.f32 %v5161, 1.0
  %v5178 = vrcp.pop %v5162
  %v5179 = vrcp.pop %v5163
  %v5180 = vrcp.pop %v5164
  %v5181 = vrcp.pop %v5165
  %v5182 = vrcp.pop %v5166
  %v5183 = vrcp.pop %v5167
  %v5184 = vrcp.pop %v5168
  %v5185 = vrcp.pop %v5169
  %v5186 = vrcp.pop %v5170
  %v5187 = vrcp.pop %v5171
  %v5188 = vrcp.pop %v5172
  %v5189 = vrcp.pop %v5173
  %v5190 = vrcp.pop %v5174
  %v5191 = vrcp.pop %v5175
  %v5192 = vrcp.pop %v5176
  %v5193 = vrcp.pop %v5177
  %v5194 = vmul.f32 %v5178, 1.0614054
  %v5195 = vmul.f32 %v5179, 1.0614054
  %v5196 = vmul.f32 %v5180, 1.0614054
  %v5197 = vmul.f32 %v5181, 1.0614054
  %v5198 = vmul.f32 %v5182, 1.0614054
  %v5199 = vmul.f32 %v5183, 1.0614054
  %v5200 = vmul.f32 %v5184, 1.0614054
  %v5201 = vmul.f32 %v5185, 1.0614054
  %v5202 = vmul.f32 %v5186, 1.0614054
  %v5203 = vmul.f32 %v5187, 1.0614054
  %v5204 = vmul.f32 %v5188, 1.0614054
  %v5205 = vmul.f32 %v5189, 1.0614054
  %v5206 = vmul.f32 %v5190, 1.0614054
  %v5207 = vmul.f32 %v5191, 1.0614054
  %v5208 = vmul.f32 %v5192, 1.0614054
  %v5209 = vmul.f32 %v5193, 1.0614054
  %v5210 = vadd.f32 %v5194, -1.4531521
  %v5211 = vadd.f32 %v5195, -1.4531521
  %v5212 = vadd.f32 %v5196, -1.4531521
  %v5213 = vadd.f32 %v5197, -1.4531521
  %v5214 = vadd.f32 %v5198, -1.4531521
  %v5215 = vadd.f32 %v5199, -1.4531521
  %v5216 = vadd.f32 %v5200, -1.4531521
  %v5217 = vadd.f32 %v5201, -1.4531521
  %v5218 = vadd.f32 %v5202, -1.4531521
  %v5219 = vadd.f32 %v5203, -1.4531521
  %v5220 = vadd.f32 %v5204, -1.4531521
  %v5221 = vadd.f32 %v5205, -1.4531521
  %v5222 = vadd.f32 %v5206, -1.4531521
  %v5223 = vadd.f32 %v5207, -1.4531521
  %v5224 = vadd.f32 %v5208, -1.4531521
  %v5225 = vadd.f32 %v5209, -1.4531521
  %v5226 = vmul.f32 %v5210, %v5178
  %v5227 = vmul.f32 %v5211, %v5179
  %v5228 = vmul.f32 %v5212, %v5180
  %v5229 = vmul.f32 %v5213, %v5181
  %v5230 = vmul.f32 %v5214, %v5182
  %v5231 = vmul.f32 %v5215, %v5183
  %v5232 = vmul.f32 %v5216, %v5184
  %v5233 = vmul.f32 %v5217, %v5185
  %v5234 = vmul.f32 %v5218, %v5186
  %v5235 = vmul.f32 %v5219, %v5187
  %v5236 = vmul.f32 %v5220, %v5188
  %v5237 = vmul.f32 %v5221, %v5189
  %v5238 = vmul.f32 %v5222, %v5190
  %v5239 = vmul.f32 %v5223, %v5191
  %v5240 = vmul.f32 %v5224, %v5192
  %v5241 = vmul.f32 %v5225, %v5193
  %v5242 = vadd.f32 %v5226, 1.4214138
  %v5243 = vadd.f32 %v5227, 1.4214138
  %v5244 = vadd.f32 %v5228, 1.4214138
  %v5245 = vadd.f32 %v5229, 1.4214138
  %v5246 = vadd.f32 %v5230, 1.4214138
  %v5247 = vadd.f32 %v5231, 1.4214138
  %v5248 = vadd.f32 %v5232, 1.4214138
  %v5249 = vadd.f32 %v5233, 1.4214138
  %v5250 = vadd.f32 %v5234, 1.4214138
  %v5251 = vadd.f32 %v5235, 1.4214138
  %v5252 = vadd.f32 %v5236, 1.4214138
  %v5253 = vadd.f32 %v5237, 1.4214138
  %v5254 = vadd.f32 %v5238, 1.4214138
  %v5255 = vadd.f32 %v5239, 1.4214138
  %v5256 = vadd.f32 %v5240, 1.4214138
  %v5257 = vadd.f32 %v5241, 1.4214138
  %v5258 = vmul.f32 %v5242, %v5178
  %v5259 = vmul.f32 %v5243, %v5179
  %v5260 = vmul.f32 %v5244, %v5180
  %v5261 = vmul.f32 %v5245, %v5181
  %v5262 = vmul.f32 %v5246, %v5182
  %v5263 = vmul.f32 %v5247, %v5183
  %v5264 = vmul.f32 %v5248, %v5184
  %v5265 = vmul.f32 %v5249, %v5185
  %v5266 = vmul.f32 %v5250, %v5186
  %v5267 = vmul.f32 %v5251, %v5187
  %v5268 = vmul.f32 %v5252, %v5188
  %v5269 = vmul.f32 %v5253, %v5189
  %v5270 = vmul.f32 %v5254, %v5190
  %v5271 = vmul.f32 %v5255, %v5191
  %v5272 = vmul.f32 %v5256, %v5192
  %v5273 = vmul.f32 %v5257, %v5193
  %v5274 = vadd.f32 %v5258, -0.28449672
  %v5275 = vadd.f32 %v5259, -0.28449672
  %v5276 = vadd.f32 %v5260, -0.28449672
  %v5277 = vadd.f32 %v5261, -0.28449672
  %v5278 = vadd.f32 %v5262, -0.28449672
  %v5279 = vadd.f32 %v5263, -0.28449672
  %v5280 = vadd.f32 %v5264, -0.28449672
  %v5281 = vadd.f32 %v5265, -0.28449672
  %v5282 = vadd.f32 %v5266, -0.28449672
  %v5283 = vadd.f32 %v5267, -0.28449672
  %v5284 = vadd.f32 %v5268, -0.28449672
  %v5285 = vadd.f32 %v5269, -0.28449672
  %v5286 = vadd.f32 %v5270, -0.28449672
  %v5287 = vadd.f32 %v5271, -0.28449672
  %v5288 = vadd.f32 %v5272, -0.28449672
  %v5289 = vadd.f32 %v5273, -0.28449672
  %v5290 = vmul.f32 %v5274, %v5178
  %v5291 = vmul.f32 %v5275, %v5179
  %v5292 = vmul.f32 %v5276, %v5180
  %v5293 = vmul.f32 %v5277, %v5181
  %v5294 = vmul.f32 %v5278, %v5182
  %v5295 = vmul.f32 %v5279, %v5183
  %v5296 = vmul.f32 %v5280, %v5184
  %v5297 = vmul.f32 %v5281, %v5185
  %v5298 = vmul.f32 %v5282, %v5186
  %v5299 = vmul.f32 %v5283, %v5187
  %v5300 = vmul.f32 %v5284, %v5188
  %v5301 = vmul.f32 %v5285, %v5189
  %v5302 = vmul.f32 %v5286, %v5190
  %v5303 = vmul.f32 %v5287, %v5191
  %v5304 = vmul.f32 %v5288, %v5192
  %v5305 = vmul.f32 %v5289, %v5193
  %v5306 = vadd.f32 %v5290, 0.2548296
  %v5307 = vadd.f32 %v5291, 0.2548296
  %v5308 = vadd.f32 %v5292, 0.2548296
  %v5309 = vadd.f32 %v5293, 0.2548296
  %v5310 = vadd.f32 %v5294, 0.2548296
  %v5311 = vadd.f32 %v5295, 0.2548296
  %v5312 = vadd.f32 %v5296, 0.2548296
  %v5313 = vadd.f32 %v5297, 0.2548296
  %v5314 = vadd.f32 %v5298, 0.2548296
  %v5315 = vadd.f32 %v5299, 0.2548296
  %v5316 = vadd.f32 %v5300, 0.2548296
  %v5317 = vadd.f32 %v5301, 0.2548296
  %v5318 = vadd.f32 %v5302, 0.2548296
  %v5319 = vadd.f32 %v5303, 0.2548296
  %v5320 = vadd.f32 %v5304, 0.2548296
  %v5321 = vadd.f32 %v5305, 0.2548296
  %v5322 = vmul.f32 %v5306, %v5178
  %v5323 = vmul.f32 %v5307, %v5179
  %v5324 = vmul.f32 %v5308, %v5180
  %v5325 = vmul.f32 %v5309, %v5181
  %v5326 = vmul.f32 %v5310, %v5182
  %v5327 = vmul.f32 %v5311, %v5183
  %v5328 = vmul.f32 %v5312, %v5184
  %v5329 = vmul.f32 %v5313, %v5185
  %v5330 = vmul.f32 %v5314, %v5186
  %v5331 = vmul.f32 %v5315, %v5187
  %v5332 = vmul.f32 %v5316, %v5188
  %v5333 = vmul.f32 %v5317, %v5189
  %v5334 = vmul.f32 %v5318, %v5190
  %v5335 = vmul.f32 %v5319, %v5191
  %v5336 = vmul.f32 %v5320, %v5192
  %v5337 = vmul.f32 %v5321, %v5193
  %v5338 = vsub.f32 0.0, %v5130
  %v5339 = vsub.f32 0.0, %v5131
  %v5340 = vsub.f32 0.0, %v5132
  %v5341 = vsub.f32 0.0, %v5133
  %v5342 = vsub.f32 0.0, %v5134
  %v5343 = vsub.f32 0.0, %v5135
  %v5344 = vsub.f32 0.0, %v5136
  %v5345 = vsub.f32 0.0, %v5137
  %v5346 = vsub.f32 0.0, %v5138
  %v5347 = vsub.f32 0.0, %v5139
  %v5348 = vsub.f32 0.0, %v5140
  %v5349 = vsub.f32 0.0, %v5141
  %v5350 = vsub.f32 0.0, %v5142
  %v5351 = vsub.f32 0.0, %v5143
  %v5352 = vsub.f32 0.0, %v5144
  %v5353 = vsub.f32 0.0, %v5145
  %v5354 = vmul.f32 %v5338, %v5130
  %v5355 = vmul.f32 %v5339, %v5131
  %v5356 = vmul.f32 %v5340, %v5132
  %v5357 = vmul.f32 %v5341, %v5133
  %v5358 = vmul.f32 %v5342, %v5134
  %v5359 = vmul.f32 %v5343, %v5135
  %v5360 = vmul.f32 %v5344, %v5136
  %v5361 = vmul.f32 %v5345, %v5137
  %v5362 = vmul.f32 %v5346, %v5138
  %v5363 = vmul.f32 %v5347, %v5139
  %v5364 = vmul.f32 %v5348, %v5140
  %v5365 = vmul.f32 %v5349, %v5141
  %v5366 = vmul.f32 %v5350, %v5142
  %v5367 = vmul.f32 %v5351, %v5143
  %v5368 = vmul.f32 %v5352, %v5144
  %v5369 = vmul.f32 %v5353, %v5145
  %v5370 = vmul.f32 %v5354, 1.442695
  %v5371 = vpow.pop %v5370
  %v5372 = vmul.f32 %v5355, 1.442695
  %v5373 = vpow.pop %v5372
  %v5374 = vmul.f32 %v5356, 1.442695
  %v5375 = vpow.pop %v5374
  %v5376 = vmul.f32 %v5357, 1.442695
  %v5377 = vpow.pop %v5376
  %v5378 = vmul.f32 %v5358, 1.442695
  %v5379 = vpow.pop %v5378
  %v5380 = vmul.f32 %v5359, 1.442695
  %v5381 = vpow.pop %v5380
  %v5382 = vmul.f32 %v5360, 1.442695
  %v5383 = vpow.pop %v5382
  %v5384 = vmul.f32 %v5361, 1.442695
  %v5385 = vpow.pop %v5384
  %v5386 = vmul.f32 %v5362, 1.442695
  %v5387 = vpow.pop %v5386
  %v5388 = vmul.f32 %v5363, 1.442695
  %v5389 = vpow.pop %v5388
  %v5390 = vmul.f32 %v5364, 1.442695
  %v5391 = vpow.pop %v5390
  %v5392 = vmul.f32 %v5365, 1.442695
  %v5393 = vpow.pop %v5392
  %v5394 = vmul.f32 %v5366, 1.442695
  %v5395 = vpow.pop %v5394
  %v5396 = vmul.f32 %v5367, 1.442695
  %v5397 = vpow.pop %v5396
  %v5398 = vmul.f32 %v5368, 1.442695
  %v5399 = vpow.pop %v5398
  %v5400 = vmul.f32 %v5369, 1.442695
  %v5401 = vpow.pop %v5400
  %v5402 = vmul.f32 %v5322, %v5371
  %v5403 = vmul.f32 %v5323, %v5373
  %v5404 = vmul.f32 %v5324, %v5375
  %v5405 = vmul.f32 %v5325, %v5377
  %v5406 = vmul.f32 %v5326, %v5379
  %v5407 = vmul.f32 %v5327, %v5381
  %v5408 = vmul.f32 %v5328, %v5383
  %v5409 = vmul.f32 %v5329, %v5385
  %v5410 = vmul.f32 %v5330, %v5387
  %v5411 = vmul.f32 %v5331, %v5389
  %v5412 = vmul.f32 %v5332, %v5391
  %v5413 = vmul.f32 %v5333, %v5393
  %v5414 = vmul.f32 %v5334, %v5395
  %v5415 = vmul.f32 %v5335, %v5397
  %v5416 = vmul.f32 %v5336, %v5399
  %v5417 = vmul.f32 %v5337, %v5401
  %v5418 = vsub.f32 1.0, %v5402
  %v5419 = vsub.f32 1.0, %v5403
  %v5420 = vsub.f32 1.0, %v5404
  %v5421 = vsub.f32 1.0, %v5405
  %v5422 = vsub.f32 1.0, %v5406
  %v5423 = vsub.f32 1.0, %v5407
  %v5424 = vsub.f32 1.0, %v5408
  %v5425 = vsub.f32 1.0, %v5409
  %v5426 = vsub.f32 1.0, %v5410
  %v5427 = vsub.f32 1.0, %v5411
  %v5428 = vsub.f32 1.0, %v5412
  %v5429 = vsub.f32 1.0, %v5413
  %v5430 = vsub.f32 1.0, %v5414
  %v5431 = vsub.f32 1.0, %v5415
  %v5432 = vsub.f32 1.0, %v5416
  %v5433 = vsub.f32 1.0, %v5417
  %v5434 = vmul.f32 %v5114, %v5418
  %v5435 = vmul.f32 %v5115, %v5419
  %v5436 = vmul.f32 %v5116, %v5420
  %v5437 = vmul.f32 %v5117, %v5421
  %v5438 = vmul.f32 %v5118, %v5422
  %v5439 = vmul.f32 %v5119, %v5423
  %v5440 = vmul.f32 %v5120, %v5424
  %v5441 = vmul.f32 %v5121, %v5425
  %v5442 = vmul.f32 %v5122, %v5426
  %v5443 = vmul.f32 %v5123, %v5427
  %v5444 = vmul.f32 %v5124, %v5428
  %v5445 = vmul.f32 %v5125, %v5429
  %v5446 = vmul.f32 %v5126, %v5430
  %v5447 = vmul.f32 %v5127, %v5431
  %v5448 = vmul.f32 %v5128, %v5432
  %v5449 = vmul.f32 %v5129, %v5433
  %v5450 = vadd.f32 %v5434, 1.0
  %v5451 = vadd.f32 %v5435, 1.0
  %v5452 = vadd.f32 %v5436, 1.0
  %v5453 = vadd.f32 %v5437, 1.0
  %v5454 = vadd.f32 %v5438, 1.0
  %v5455 = vadd.f32 %v5439, 1.0
  %v5456 = vadd.f32 %v5440, 1.0
  %v5457 = vadd.f32 %v5441, 1.0
  %v5458 = vadd.f32 %v5442, 1.0
  %v5459 = vadd.f32 %v5443, 1.0
  %v5460 = vadd.f32 %v5444, 1.0
  %v5461 = vadd.f32 %v5445, 1.0
  %v5462 = vadd.f32 %v5446, 1.0
  %v5463 = vadd.f32 %v5447, 1.0
  %v5464 = vadd.f32 %v5448, 1.0
  %v5465 = vadd.f32 %v5449, 1.0
  %v5466 = vmul.f32 %v5066, %v5450
  %v5467 = vmul.f32 %v5067, %v5451
  %v5468 = vmul.f32 %v5068, %v5452
  %v5469 = vmul.f32 %v5069, %v5453
  %v5470 = vmul.f32 %v5070, %v5454
  %v5471 = vmul.f32 %v5071, %v5455
  %v5472 = vmul.f32 %v5072, %v5456
  %v5473 = vmul.f32 %v5073, %v5457
  %v5474 = vmul.f32 %v5074, %v5458
  %v5475 = vmul.f32 %v5075, %v5459
  %v5476 = vmul.f32 %v5076, %v5460
  %v5477 = vmul.f32 %v5077, %v5461
  %v5478 = vmul.f32 %v5078, %v5462
  %v5479 = vmul.f32 %v5079, %v5463
  %v5480 = vmul.f32 %v5080, %v5464
  %v5481 = vmul.f32 %v5081, %v5465
  %v5482 = vpack.c.bf16 %v5468, %v5466
  %v5483 = vpack.c.bf16 %v5469, %v5467
  %v5484 = vpack.c.bf16 %v5472, %v5470
  %v5485 = vpack.c.bf16 %v5473, %v5471
  %v5486 = vpack.c.bf16 %v5476, %v5474
  %v5487 = vpack.c.bf16 %v5477, %v5475
  %v5488 = vpack.c.bf16 %v5480, %v5478
  %v5489 = vpack.c.bf16 %v5481, %v5479
  %s5490 = scalar_lea.vmem %s14, 128
  %v5491 = vld [vmem:[%s5490] sm:$0xf]
  %v5492 = vld [vmem:[%s5490 + $0x4] sm:$0xf]
  %v5493 = vld [vmem:[%s5490 + $0x8] sm:$0xf]
  %v5494 = vld [vmem:[%s5490 + $0xc] sm:$0xf]
  %v5495 = vld [vmem:[%s5490 + $0x10] sm:$0xf]
  %v5496 = vld [vmem:[%s5490 + $0x14] sm:$0xf]
  %v5497 = vld [vmem:[%s5490 + $0x18] sm:$0xf]
  %v5498 = vld [vmem:[%s5490 + $0x1c] sm:$0xf]
  %v5499 = vld [vmem:[%s5490 + $0x20] sm:$0xf]
  %v5500 = vld [vmem:[%s5490 + $0x24] sm:$0xf]
  %v5501 = vld [vmem:[%s5490 + $0x28] sm:$0xf]
  %v5502 = vld [vmem:[%s5490 + $0x2c] sm:$0xf]
  %v5503 = vld [vmem:[%s5490 + $0x30] sm:$0xf]
  %v5504 = vld [vmem:[%s5490 + $0x34] sm:$0xf]
  %v5505 = vld [vmem:[%s5490 + $0x38] sm:$0xf]
  %v5506 = vld [vmem:[%s5490 + $0x3c] sm:$0xf]
  %v5507 = vld [vmem:[%s5490 + $0x40] sm:$0xf]
  %v5508 = vld [vmem:[%s5490 + $0x44] sm:$0xf]
  %v5509 = vld [vmem:[%s5490 + $0x48] sm:$0xf]
  %v5510 = vld [vmem:[%s5490 + $0x4c] sm:$0xf]
  %v5511 = vld [vmem:[%s5490 + $0x50] sm:$0xf]
  %v5512 = vld [vmem:[%s5490 + $0x54] sm:$0xf]
  %v5513 = vld [vmem:[%s5490 + $0x58] sm:$0xf]
  %v5514 = vld [vmem:[%s5490 + $0x5c] sm:$0xf]
  %v5515 = vld [vmem:[%s5490 + $0x60] sm:$0xf]
  %v5516 = vld [vmem:[%s5490 + $0x64] sm:$0xf]
  %v5517 = vld [vmem:[%s5490 + $0x68] sm:$0xf]
  %v5518 = vld [vmem:[%s5490 + $0x6c] sm:$0xf]
  %v5519 = vld [vmem:[%s5490 + $0x70] sm:$0xf]
  %v5520 = vld [vmem:[%s5490 + $0x74] sm:$0xf]
  %v5521 = vld [vmem:[%s5490 + $0x78] sm:$0xf]
  %v5522 = vld [vmem:[%s5490 + $0x7c] sm:$0xf]
  %s5523 = scalar_lea.vmem %s15, 1
  %v5524 = vld [vmem:[%s5523] sm:$0x1]
  %v5526 = vlaneseq
  %v5527 = vshrl.u32 %v5526, 7
  %v5528 = vsub.s32 0, %v5527
  %v5529 = vrot.slane %v5524, %v5528
  %v5563 = vunpack.c.l.b16 %v5491
  %v5564 = vunpack.c.l.b16 %v5492
  %v5565 = vunpack.c.l.b16 %v5493
  %v5566 = vunpack.c.l.b16 %v5494
  %v5567 = vunpack.c.l.b16 %v5495
  %v5568 = vunpack.c.l.b16 %v5496
  %v5569 = vunpack.c.l.b16 %v5497
  %v5570 = vunpack.c.l.b16 %v5498
  %v5571 = vunpack.c.l.b16 %v5499
  %v5572 = vunpack.c.l.b16 %v5500
  %v5573 = vunpack.c.l.b16 %v5501
  %v5574 = vunpack.c.l.b16 %v5502
  %v5575 = vunpack.c.l.b16 %v5503
  %v5576 = vunpack.c.l.b16 %v5504
  %v5577 = vunpack.c.l.b16 %v5505
  %v5578 = vunpack.c.l.b16 %v5506
  %v5579 = vunpack.c.l.b16 %v5507
  %v5580 = vunpack.c.l.b16 %v5508
  %v5581 = vunpack.c.l.b16 %v5509
  %v5582 = vunpack.c.l.b16 %v5510
  %v5583 = vunpack.c.l.b16 %v5511
  %v5584 = vunpack.c.l.b16 %v5512
  %v5585 = vunpack.c.l.b16 %v5513
  %v5586 = vunpack.c.l.b16 %v5514
  %v5587 = vunpack.c.l.b16 %v5515
  %v5588 = vunpack.c.l.b16 %v5516
  %v5589 = vunpack.c.l.b16 %v5517
  %v5590 = vunpack.c.l.b16 %v5518
  %v5591 = vunpack.c.l.b16 %v5519
  %v5592 = vunpack.c.l.b16 %v5520
  %v5593 = vunpack.c.l.b16 %v5521
  %v5594 = vunpack.c.l.b16 %v5522
  %v5595 = vpack.c.b16 %v5564, %v5563
  %v5596 = vpack.c.b16 %v5566, %v5565
  %v5597 = vpack.c.b16 %v5568, %v5567
  %v5598 = vpack.c.b16 %v5570, %v5569
  %v5599 = vpack.c.b16 %v5572, %v5571
  %v5600 = vpack.c.b16 %v5574, %v5573
  %v5601 = vpack.c.b16 %v5576, %v5575
  %v5602 = vpack.c.b16 %v5578, %v5577
  %v5603 = vpack.c.b16 %v5580, %v5579
  %v5604 = vpack.c.b16 %v5582, %v5581
  %v5605 = vpack.c.b16 %v5584, %v5583
  %v5606 = vpack.c.b16 %v5586, %v5585
  %v5607 = vpack.c.b16 %v5588, %v5587
  %v5608 = vpack.c.b16 %v5590, %v5589
  %v5609 = vpack.c.b16 %v5592, %v5591
  %v5610 = vpack.c.b16 %v5594, %v5593
  %5627 = vmatprep.subr.bf16.mxu0 0
  %5628 = vmatpush1.bf16.msra.mxu0 %v5595
  %5629 = vmatprep.subr.bf16.mxu0 0
  %5630 = vmatpush1.bf16.msra.mxu0 %v5596
  %5631 = vmatprep.subr.bf16.mxu0 0
  %5632 = vmatpush1.bf16.msra.mxu0 %v5597
  %5633 = vmatprep.subr.bf16.mxu0 0
  %5634 = vmatpush1.bf16.msra.mxu0 %v5598
  %5635 = vmatprep.subr.bf16.mxu0 0
  %5636 = vmatpush1.bf16.msra.mxu0 %v5599
  %5637 = vmatprep.subr.bf16.mxu0 0
  %5638 = vmatpush1.bf16.msra.mxu0 %v5600
  %5639 = vmatprep.subr.bf16.mxu0 0
  %5640 = vmatpush1.bf16.msra.mxu0 %v5601
  %5641 = vmatprep.subr.bf16.mxu0 0
  %5642 = vmatpush1.bf16.msra.mxu0 %v5602
  %5643 = vmatprep.subr.bf16.mxu0 0
  %5644 = vmatpush1.bf16.msra.mxu0 %v5603
  %5645 = vmatprep.subr.bf16.mxu0 0
  %5646 = vmatpush1.bf16.msra.mxu0 %v5604
  %5647 = vmatprep.subr.bf16.mxu0 0
  %5648 = vmatpush1.bf16.msra.mxu0 %v5605
  %5649 = vmatprep.subr.bf16.mxu0 0
  %5650 = vmatpush1.bf16.msra.mxu0 %v5606
  %5651 = vmatprep.subr.bf16.mxu0 0
  %5652 = vmatpush1.bf16.msra.mxu0 %v5607
  %5653 = vmatprep.subr.bf16.mxu0 0
  %5654 = vmatpush1.bf16.msra.mxu0 %v5608
  %5655 = vmatprep.subr.bf16.mxu0 0
  %5656 = vmatpush1.bf16.msra.mxu0 %v5609
  %5657 = vmatprep.subr.bf16.mxu0 0
  %5658 = vmatpush1.bf16.msra.mxu0 %v5610
  %5659 = vmatprep.mubr.bf16.mxu0 %v5483
  %5660 = vmatmul.mubr.bf16.gmra.mrb[0].mxu0 %v5482
  %v5661 = vpop.f32.mrb[0].mxu0
  %v5662 = vadd.f32 %v5529, %v5661
  %v5663 = vpop.f32.mrb[0].mxu0
  %v5664 = vpop.f32.mrb[0].mxu0
  %v5665 = vadd.f32 %v5529, %v5664
  %v5666 = vpop.f32.mrb[0].mxu0
  %5667 = vmatprep.mubr.bf16.mxu0 %v5485
  %5668 = vmatmul.mubr.bf16.gmra.mrb[0].mxu0 %v5484
  %v5669 = vpop.f32.mrb[0].mxu0
  %v5670 = vadd.f32 %v5529, %v5669
  %v5671 = vpop.f32.mrb[0].mxu0
  %v5672 = vpop.f32.mrb[0].mxu0
  %v5673 = vadd.f32 %v5529, %v5672
  %v5674 = vpop.f32.mrb[0].mxu0
  %5675 = vmatprep.mubr.bf16.mxu0 %v5487
  %5676 = vmatmul.mubr.bf16.gmra.mrb[0].mxu0 %v5486
  %v5677 = vpop.f32.mrb[0].mxu0
  %v5678 = vadd.f32 %v5529, %v5677
  %v5679 = vpop.f32.mrb[0].mxu0
  %v5680 = vpop.f32.mrb[0].mxu0
  %v5681 = vadd.f32 %v5529, %v5680
  %v5682 = vpop.f32.mrb[0].mxu0
  %5683 = vmatprep.mubr.bf16.mxu0 %v5489
  %5684 = vmatmul.mubr.bf16.gmra.mrb[0].mxu0 %v5488
  %v5685 = vpop.f32.mrb[0].mxu0
  %v5686 = vadd.f32 %v5529, %v5685
  %v5687 = vpop.f32.mrb[0].mxu0
  %v5688 = vpop.f32.mrb[0].mxu0
  %v5689 = vadd.f32 %v5529, %v5688
  %v5690 = vpop.f32.mrb[0].mxu0
  %5691 = vdwg.mxu0
  %v5692 = vadd.f32 %v4771, %v5662
  %v5693 = vadd.f32 %v4772, %v5665
  %v5694 = vadd.f32 %v4773, %v5670
  %v5695 = vadd.f32 %v4774, %v5673
  %v5696 = vadd.f32 %v4775, %v5678
  %v5697 = vadd.f32 %v4776, %v5681
  %v5698 = vadd.f32 %v4777, %v5686
  %v5699 = vadd.f32 %v4778, %v5689
  %v5700 = vld [vmem:[%s16] sm:$0x1]
  %v5701 = vld [vmem:[%s17] sm:$0x1]
  %v5702 = vsel %vm449, %v5692, 0.0
  %5703 = vadd.xlane.f32.xlu0 %v5702
  %v5704 = vpop.xlane.xlu0 %5703
  %v5705 = vsel %vm449, %v5693, 0.0
  %5706 = vadd.xlane.f32.xlu0 %v5705
  %v5707 = vpop.xlane.xlu0 %5706
  %v5708 = vsel %vm449, %v5694, 0.0
  %5709 = vadd.xlane.f32.xlu0 %v5708
  %v5710 = vpop.xlane.xlu0 %5709
  %v5711 = vsel %vm449, %v5695, 0.0
  %5712 = vadd.xlane.f32.xlu0 %v5711
  %v5713 = vpop.xlane.xlu0 %5712
  %v5714 = vsel %vm449, %v5696, 0.0
  %5715 = vadd.xlane.f32.xlu0 %v5714
  %v5716 = vpop.xlane.xlu0 %5715
  %v5717 = vsel %vm449, %v5697, 0.0
  %5718 = vadd.xlane.f32.xlu0 %v5717
  %v5719 = vpop.xlane.xlu0 %5718
  %v5720 = vsel %vm449, %v5698, 0.0
  %5721 = vadd.xlane.f32.xlu0 %v5720
  %v5722 = vpop.xlane.xlu0 %5721
  %v5723 = vsel %vm449, %v5699, 0.0
  %5724 = vadd.xlane.f32.xlu0 %v5723
  %v5725 = vpop.xlane.xlu0 %5724
  %v5726 = vmul.f32 %v5704, %v474
  %v5727 = vmul.f32 %v5707, %v474
  %v5728 = vmul.f32 %v5710, %v474
  %v5729 = vmul.f32 %v5713, %v474
  %v5730 = vmul.f32 %v5716, %v474
  %v5731 = vmul.f32 %v5719, %v474
  %v5732 = vmul.f32 %v5722, %v474
  %v5733 = vmul.f32 %v5725, %v474
  %v5734 = vsub.f32 %v5692, %v5726
  %v5735 = vsub.f32 %v5693, %v5727
  %v5736 = vsub.f32 %v5694, %v5728
  %v5737 = vsub.f32 %v5695, %v5729
  %v5738 = vsub.f32 %v5696, %v5730
  %v5739 = vsub.f32 %v5697, %v5731
  %v5740 = vsub.f32 %v5698, %v5732
  %v5741 = vsub.f32 %v5699, %v5733
  %v5742 = vmul.f32 %v5734, %v5734
  %v5743 = vmul.f32 %v5735, %v5735
  %v5744 = vmul.f32 %v5736, %v5736
  %v5745 = vmul.f32 %v5737, %v5737
  %v5746 = vmul.f32 %v5738, %v5738
  %v5747 = vmul.f32 %v5739, %v5739
  %v5748 = vmul.f32 %v5740, %v5740
  %v5749 = vmul.f32 %v5741, %v5741
  %v5750 = vsel %vm449, %v5742, 0.0
  %5751 = vadd.xlane.f32.xlu0 %v5750
  %v5752 = vpop.xlane.xlu0 %5751
  %v5753 = vsel %vm449, %v5743, 0.0
  %5754 = vadd.xlane.f32.xlu0 %v5753
  %v5755 = vpop.xlane.xlu0 %5754
  %v5756 = vsel %vm449, %v5744, 0.0
  %5757 = vadd.xlane.f32.xlu0 %v5756
  %v5758 = vpop.xlane.xlu0 %5757
  %v5759 = vsel %vm449, %v5745, 0.0
  %5760 = vadd.xlane.f32.xlu0 %v5759
  %v5761 = vpop.xlane.xlu0 %5760
  %v5762 = vsel %vm449, %v5746, 0.0
  %5763 = vadd.xlane.f32.xlu0 %v5762
  %v5764 = vpop.xlane.xlu0 %5763
  %v5765 = vsel %vm449, %v5747, 0.0
  %5766 = vadd.xlane.f32.xlu0 %v5765
  %v5767 = vpop.xlane.xlu0 %5766
  %v5768 = vsel %vm449, %v5748, 0.0
  %5769 = vadd.xlane.f32.xlu0 %v5768
  %v5770 = vpop.xlane.xlu0 %5769
  %v5771 = vsel %vm449, %v5749, 0.0
  %5772 = vadd.xlane.f32.xlu0 %v5771
  %v5773 = vpop.xlane.xlu0 %5772
  %v5774 = vmul.f32 %v5752, %v474
  %v5775 = vmul.f32 %v5755, %v474
  %v5776 = vmul.f32 %v5758, %v474
  %v5777 = vmul.f32 %v5761, %v474
  %v5778 = vmul.f32 %v5764, %v474
  %v5779 = vmul.f32 %v5767, %v474
  %v5780 = vmul.f32 %v5770, %v474
  %v5781 = vmul.f32 %v5773, %v474
  %v5782 = vadd.f32 %v5774, 1e-06
  %v5783 = vadd.f32 %v5775, 1e-06
  %v5784 = vadd.f32 %v5776, 1e-06
  %v5785 = vadd.f32 %v5777, 1e-06
  %v5786 = vadd.f32 %v5778, 1e-06
  %v5787 = vadd.f32 %v5779, 1e-06
  %v5788 = vadd.f32 %v5780, 1e-06
  %v5789 = vadd.f32 %v5781, 1e-06
  %v5790 = vrsqrt.pop %v5782
  %v5791 = vrsqrt.pop %v5783
  %v5792 = vrsqrt.pop %v5784
  %v5793 = vrsqrt.pop %v5785
  %v5794 = vrsqrt.pop %v5786
  %v5795 = vrsqrt.pop %v5787
  %v5796 = vrsqrt.pop %v5788
  %v5797 = vrsqrt.pop %v5789
  %v5798 = vmul.f32 %v5734, %v5790
  %v5799 = vmul.f32 %v5735, %v5791
  %v5800 = vmul.f32 %v5736, %v5792
  %v5801 = vmul.f32 %v5737, %v5793
  %v5802 = vmul.f32 %v5738, %v5794
  %v5803 = vmul.f32 %v5739, %v5795
  %v5804 = vmul.f32 %v5740, %v5796
  %v5805 = vmul.f32 %v5741, %v5797
  %v5807 = vlaneseq
  %v5808 = vshrl.u32 %v5807, 7
  %v5809 = vsub.s32 0, %v5808
  %v5810 = vrot.slane %v5700, %v5809
  %v5812 = vmul.f32 %v5798, %v5810
  %v5813 = vmul.f32 %v5799, %v5810
  %v5814 = vmul.f32 %v5800, %v5810
  %v5815 = vmul.f32 %v5801, %v5810
  %v5816 = vmul.f32 %v5802, %v5810
  %v5817 = vmul.f32 %v5803, %v5810
  %v5818 = vmul.f32 %v5804, %v5810
  %v5819 = vmul.f32 %v5805, %v5810
  %v5821 = vlaneseq
  %v5822 = vshrl.u32 %v5821, 7
  %v5823 = vsub.s32 0, %v5822
  %v5824 = vrot.slane %v5701, %v5823
  %v5826 = vadd.f32 %v5812, %v5824
  %v5827 = vadd.f32 %v5813, %v5824
  %v5828 = vadd.f32 %v5814, %v5824
  %v5829 = vadd.f32 %v5815, %v5824
  %v5830 = vadd.f32 %v5816, %v5824
  %v5831 = vadd.f32 %v5817, %v5824
  %v5832 = vadd.f32 %v5818, %v5824
  %v5833 = vadd.f32 %v5819, %v5824
  %v5834 = vpack.c.bf16 %v5827, %v5826
  %v5835 = vpack.c.bf16 %v5829, %v5828
  %v5836 = vpack.c.bf16 %v5831, %v5830
  %v5837 = vpack.c.bf16 %v5833, %v5832
  %v5838 = vld [vmem:[%s18] sm:$0xff]
  %v5839 = vld [vmem:[%s18 + $0x8] sm:$0xff]
  %v5840 = vld [vmem:[%s18 + $0x10] sm:$0xff]
  %v5841 = vld [vmem:[%s18 + $0x18] sm:$0xff]
  %v5842 = vld [vmem:[%s18 + $0x20] sm:$0xff]
  %v5843 = vld [vmem:[%s18 + $0x28] sm:$0xff]
  %v5844 = vld [vmem:[%s18 + $0x30] sm:$0xff]
  %v5845 = vld [vmem:[%s18 + $0x38] sm:$0xff]
  %v5846 = vld [vmem:[%s19] sm:$0x3]
  %v5848 = vlaneseq
  %v5849 = vshrl.u32 %v5848, 7
  %v5850 = vsub.s32 0, %v5849
  %v5851 = vrot.slane %v5846, %v5850
  %v5852 = vlaneseq
  %v5853 = vshrl.u32 %v5852, 7
  %v5854 = vsub.s32 1, %v5853
  %v5855 = vrot.slane %v5846, %v5854
  %v5866 = vunpack.c.l.b16 %v5838
  %v5867 = vunpack.c.h.b16 %v5838
  %v5868 = vunpack.c.l.b16 %v5839
  %v5869 = vunpack.c.h.b16 %v5839
  %v5870 = vunpack.c.l.b16 %v5840
  %v5871 = vunpack.c.h.b16 %v5840
  %v5872 = vunpack.c.l.b16 %v5841
  %v5873 = vunpack.c.h.b16 %v5841
  %v5874 = vunpack.c.l.b16 %v5842
  %v5875 = vunpack.c.h.b16 %v5842
  %v5876 = vunpack.c.l.b16 %v5843
  %v5877 = vunpack.c.h.b16 %v5843
  %v5878 = vunpack.c.l.b16 %v5844
  %v5879 = vunpack.c.h.b16 %v5844
  %v5880 = vunpack.c.l.b16 %v5845
  %v5881 = vunpack.c.h.b16 %v5845
  %v5882 = vpack.c.b16 %v5868, %v5866
  %v5883 = vpack.c.b16 %v5869, %v5867
  %v5884 = vpack.c.b16 %v5872, %v5870
  %v5885 = vpack.c.b16 %v5873, %v5871
  %v5886 = vpack.c.b16 %v5876, %v5874
  %v5887 = vpack.c.b16 %v5877, %v5875
  %v5888 = vpack.c.b16 %v5880, %v5878
  %v5889 = vpack.c.b16 %v5881, %v5879
  %v5899 = vsel %vm449, %v5834, 0
  %v5902 = vsel %vm449, %v5835, 0
  %v5905 = vsel %vm449, %v5836, 0
  %v5908 = vsel %vm449, %v5837, 0
  %5910 = vmatprep.subr.bf16.mxu0 %v5883
  %5911 = vmatpush1.bf16.msra.mxu0 %v5882
  %5912 = vmatprep.subr.bf16.mxu0 %v5885
  %5913 = vmatpush1.bf16.msra.mxu0 %v5884
  %5914 = vmatprep.subr.bf16.mxu0 %v5887
  %5915 = vmatpush1.bf16.msra.mxu0 %v5886
  %5916 = vmatprep.subr.bf16.mxu0 %v5889
  %5917 = vmatpush1.bf16.msra.mxu0 %v5888
  %5918 = vmatprep.subr.bf16.mxu0 0
  %5919 = vmatpush1.bf16.msra.mxu0 0
  %5920 = vmatprep.subr.bf16.mxu0 0
  %5921 = vmatpush1.bf16.msra.mxu0 0
  %5922 = vmatprep.subr.bf16.mxu0 0
  %5923 = vmatpush1.bf16.msra.mxu0 0
  %5924 = vmatprep.subr.bf16.mxu0 0
  %5925 = vmatpush1.bf16.msra.mxu0 0
  %5926 = vmatprep.subr.bf16.mxu0 0
  %5927 = vmatpush1.bf16.msra.mxu0 0
  %5928 = vmatprep.subr.bf16.mxu0 0
  %5929 = vmatpush1.bf16.msra.mxu0 0
  %5930 = vmatprep.subr.bf16.mxu0 0
  %5931 = vmatpush1.bf16.msra.mxu0 0
  %5932 = vmatprep.subr.bf16.mxu0 0
  %5933 = vmatpush1.bf16.msra.mxu0 0
  %5934 = vmatprep.subr.bf16.mxu0 0
  %5935 = vmatpush1.bf16.msra.mxu0 0
  %5936 = vmatprep.subr.bf16.mxu0 0
  %5937 = vmatpush1.bf16.msra.mxu0 0
  %5938 = vmatprep.subr.bf16.mxu0 0
  %5939 = vmatpush1.bf16.msra.mxu0 0
  %5940 = vmatprep.subr.bf16.mxu0 0
  %5941 = vmatpush1.bf16.msra.mxu0 0
  %5942 = vmatprep.mubr.bf16.mxu0 0
  %5943 = vmatmul.mubr.bf16.gmra.mrb[0].mxu0 %v5899
  %v5944 = vpop.f32.mrb[0].mxu0
  %v5945 = vadd.f32 %v5851, %v5944
  %v5946 = vpop.f32.mrb[0].mxu0
  %v5947 = vadd.f32 %v5855, %v5946
  %v5948 = vpop.f32.mrb[0].mxu0
  %v5949 = vadd.f32 %v5851, %v5948
  %v5950 = vpop.f32.mrb[0].mxu0
  %v5951 = vadd.f32 %v5855, %v5950
  %5952 = vmatprep.mubr.bf16.mxu0 0
  %5953 = vmatmul.mubr.bf16.gmra.mrb[0].mxu0 %v5902
  %v5954 = vpop.f32.mrb[0].mxu0
  %v5955 = vadd.f32 %v5851, %v5954
  %v5956 = vpop.f32.mrb[0].mxu0
  %v5957 = vadd.f32 %v5855, %v5956
  %v5958 = vpop.f32.mrb[0].mxu0
  %v5959 = vadd.f32 %v5851, %v5958
  %v5960 = vpop.f32.mrb[0].mxu0
  %v5961 = vadd.f32 %v5855, %v5960
  %5962 = vmatprep.mubr.bf16.mxu0 0
  %5963 = vmatmul.mubr.bf16.gmra.mrb[0].mxu0 %v5905
  %v5964 = vpop.f32.mrb[0].mxu0
  %v5965 = vadd.f32 %v5851, %v5964
  %v5966 = vpop.f32.mrb[0].mxu0
  %v5967 = vadd.f32 %v5855, %v5966
  %v5968 = vpop.f32.mrb[0].mxu0
  %v5969 = vadd.f32 %v5851, %v5968
  %v5970 = vpop.f32.mrb[0].mxu0
  %v5971 = vadd.f32 %v5855, %v5970
  %5972 = vmatprep.mubr.bf16.mxu0 0
  %5973 = vmatmul.mubr.bf16.gmra.mrb[0].mxu0 %v5908
  %v5974 = vpop.f32.mrb[0].mxu0
  %v5975 = vadd.f32 %v5851, %v5974
  %v5976 = vpop.f32.mrb[0].mxu0
  %v5977 = vadd.f32 %v5855, %v5976
  %v5978 = vpop.f32.mrb[0].mxu0
  %v5979 = vadd.f32 %v5851, %v5978
  %v5980 = vpop.f32.mrb[0].mxu0
  %v5981 = vadd.f32 %v5855, %v5980
  %5982 = vdwg.mxu0
  %5983 = vst [vmem:[%s20] sm:$0xff] %v5945
  %5984 = vst [vmem:[%s20 + $0x8] sm:$0xff] %v5947
  %5985 = vst [vmem:[%s20 + $0x10] sm:$0xff] %v5949
  %5986 = vst [vmem:[%s20 + $0x18] sm:$0xff] %v5951
  %5987 = vst [vmem:[%s20 + $0x20] sm:$0xff] %v5955
  %5988 = vst [vmem:[%s20 + $0x28] sm:$0xff] %v5957
  %5989 = vst [vmem:[%s20 + $0x30] sm:$0xff] %v5959
  %5990 = vst [vmem:[%s20 + $0x38] sm:$0xff] %v5961
  %5991 = vst [vmem:[%s20 + $0x40] sm:$0xff] %v5965
  %5992 = vst [vmem:[%s20 + $0x48] sm:$0xff] %v5967
  %5993 = vst [vmem:[%s20 + $0x50] sm:$0xff] %v5969
  %5994 = vst [vmem:[%s20 + $0x58] sm:$0xff] %v5971
  %5995 = vst [vmem:[%s20 + $0x60] sm:$0xff] %v5975
  %5996 = vst [vmem:[%s20 + $0x68] sm:$0xff] %v5977
  %5997 = vst [vmem:[%s20 + $0x70] sm:$0xff] %v5979
  %5998 = vst [vmem:[%s20 + $0x78] sm:$0xff] %v5981
  // Predicated region
  $region82: #{_lambda_.1} parent=0 // pred_check
    _
  $region83: #{_lambda_.1} parent=0 // pred_check_branch
    %6000 = sbr.rel (0) target = $region85
  $region84: #{_lambda_.1} parent=0 // pred_region
    _
  $region85: #{_lambda_.1} parent=0 // pred_fallthru
    _
  // Predicated region
  $region86: #{_lambda_.1} parent=0 // pred_check
    _
  $region87: #{_lambda_.1} parent=0 // pred_check_branch
    %6002 = sbr.rel (0) target = $region89
  $region88: #{_lambda_.1} parent=0 // pred_region
    _
  $region89: #{_lambda_.1} parent=0 // pred_fallthru
    _

</llo_original>
